<compile_context>
chip_gen: v7x
topology: tpu7x:2x2x1
jax: 0.10.0
libtpu: 0.0.40
codegen_flags: <defaults>
</compile_context>

<pallas_src>
import functools
import numpy as np

import jax
import jax.numpy as jnp
from jax.experimental import pallas as pl
from jax.experimental.pallas import tpu as pltpu


# ----------------------------------------------------------------------------
# Pallas kernels
# ----------------------------------------------------------------------------
def fe_mlp_kernel(x_ref, w1_ref, b1_ref, s1e_ref, s1o_ref, p1m_ref,
                  w2_ref, b2_ref, s2e_ref, s2o_ref, p2m_ref,
                  w3_ref, b3_ref,
                  waT_ref, baT_ref, wbT_ref, bbT_ref, wcT_ref, bcT_ref,
                  coef_ref, coefmod_ref):
    """Fused Custom1DFeatureExtractor + aux MLP (+ exp(a), exp(b) folding).

    x_ref : (3, L+2)          zero-padded GT signal (channels-first)
    wK_ref: (taps, Cout, Cin) tap-major dense conv weights,  bK_ref: (Cout, 1)
    sKe/sKo: even/odd column-selection matrices (MaxPool1d k=2,s=2)
    pKm    : zero-padding shift matrices
    w*T/b*T: aux-MLP weights in column form (out, in) / (out, 1)
    coef_ref    : (4, 1)  raw MLP output  [a, b, c, d]^T
    coefmod_ref : (4, 1)  [exp(a), exp(b), c, d]^T for the SIREN kernel
    """
    f32 = jnp.float32
    x = x_ref[...]                                   # (3, L+2)

    # conv1 (dense, k=3, pad=1) + ReLU
    # NOTE: lane-offset tap slices kept (proven lowering); pltpu.roll variant is an optional micro-opt.
    L1 = x.shape[1] - 2
    out1 = jnp.zeros((w1_ref.shape[1], L1), f32)
    for k in range(w1_ref.shape[0]):
        out1 = out1 + jnp.dot(w1_ref[k], x[:, k:k + L1], preferred_element_type=f32)
    out1 = jnp.maximum(out1 + b1_ref[...], 0.0)

    # maxpool1 (k=2, s=2) via even/odd selection matmuls
    p1 = jnp.maximum(jnp.dot(out1, s1e_ref[...], preferred_element_type=f32),
                     jnp.dot(out1, s1o_ref[...], preferred_element_type=f32))

    # zero pad (padding=1) via shift matrix, then conv2 (grouped, densified, k=5) + ReLU
    x1p = jnp.dot(p1, p1m_ref[...], preferred_element_type=f32)
    L2 = x1p.shape[1] - 4
    out2 = jnp.zeros((w2_ref.shape[1], L2), f32)
    for k in range(w2_ref.shape[0]):
        out2 = out2 + jnp.dot(w2_ref[k], x1p[:, k:k + L2], preferred_element_type=f32)
    out2 = jnp.maximum(out2 + b2_ref[...], 0.0)

    # maxpool2
    p2 = jnp.maximum(jnp.dot(out2, s2e_ref[...], preferred_element_type=f32),
                     jnp.dot(out2, s2o_ref[...], preferred_element_type=f32))

    # pad + conv3 (grouped, densified, k=7) + ReLU
    x2p = jnp.dot(p2, p2m_ref[...], preferred_element_type=f32)
    L3 = x2p.shape[1] - 6
    out3 = jnp.zeros((w3_ref.shape[1], L3), f32)
    for k in range(w3_ref.shape[0]):
        out3 = out3 + jnp.dot(w3_ref[k], x2p[:, k:k + L3], preferred_element_type=f32)
    out3 = jnp.maximum(out3 + b3_ref[...], 0.0)

    # AdaptiveAvgPool1d(1)  -> (64, 1) feature column
    feat = jnp.mean(out3, axis=1, keepdims=True)

    # aux MLP (column form): Linear -> SiLU -> Linear -> SiLU -> Linear.
    # Dropout(p=0.0) is identity.
    h = jnp.dot(waT_ref[...], feat, preferred_element_type=f32) + baT_ref[...]
    h = h * (1.0 / (1.0 + jnp.exp(-h)))              # SiLU (transient inf resolves to 0)
    h = jnp.dot(wbT_ref[...], h, preferred_element_type=f32) + bbT_ref[...]
    h = h * (1.0 / (1.0 + jnp.exp(-h)))              # SiLU
    coef = jnp.dot(wcT_ref[...], h, preferred_element_type=f32) + bcT_ref[...]   # (4, 1)
    coef_ref[...] = coef

    # pre-exponentiate a and b once, here, so the SIREN grid never recomputes exp per step
    row = jax.lax.broadcasted_iota(jnp.int32, coef.shape, 0)
    coefmod_ref[...] = jnp.where(row < 2, jnp.exp(coef), coef)
    # TODO(synk): Dropout with p > 0 (stochastic) not implemented; here p = 0.0 so it is identity.


def siren_kernel(coef_ref, coords_ref, w0_ref, b0_ref, wh_ref, bh_ref, wf_ref, bf_ref,
                 out_ref, *, first_omega, hidden_omega, hidden_layers):
    """Fused SIREN net, tiled over coordinates.

    SineLayer: exp(a)*sin(exp(b)*omega*(x@W+b) + c) + d, with coef_ref = (1,4) [exp(a),exp(b),c,d].
    The exp(b)*omega scale and the phase c are folded into each layer's weights/bias once per
    grid step; exp(a)/d broadcasts are hoisted out of the layer loop.
    wf_ref/bf_ref/out_ref are lane-padded to a multiple of 128 for dense stores.
    """
    f32 = jnp.float32
    cv = coef_ref[...]                               # (1, 4)
    ea = cv[:, 0:1]                                  # exp(a)
    eb = cv[:, 1:2]                                  # exp(b)
    c_p = cv[:, 2:3]
    d_p = cv[:, 3:4]

    tile_n = coords_ref.shape[0]
    H = w0_ref.shape[1]

    # hoisted broadcasts (reused in every layer)
    ea_b = jnp.broadcast_to(ea, (tile_n, H))
    d_b = jnp.broadcast_to(d_p, (tile_n, H))

    # exp(b)*omega, computed once per grid step
    s_first = eb * first_omega                       # (1, 1)
    s_hidden = eb * hidden_omega

    # First SineLayer: K = in_features (tiny) -> VPU outer-product FMAs, no MXU matmul.
    x = coords_ref[...]                              # (tile_n, in_f)
    w0s = s_first * w0_ref[...]                      # (in_f, H)
    b0s = s_first * b0_ref[...] + c_p                # (1, H)
    z = jnp.broadcast_to(b0s, (tile_n, H))
    for j in range(x.shape[1]):
        z = z + x[:, j:j + 1] * w0s[j:j + 1, :]
    h = ea_b * jnp.sin(z) + d_b

    # Hidden SineLayers (MXU matmuls with pre-scaled weights).
    for i in range(hidden_layers):
        ws = s_hidden * wh_ref[i]                    # (H, H)
        bs = s_hidden * bh_ref[i] + c_p              # (1, H)
        z = jnp.dot(h, ws, preferred_element_type=f32) + bs
        h = ea_b * jnp.sin(z) + d_b

    # Final linear; output block is lane-dense (padded to 128 columns).
    out_ref[...] = jnp.dot(h, wf_ref[...], preferred_element_type=f32) + bf_ref[...]


# ----------------------------------------------------------------------------
# One-time parameter preparation (pure glue, hoisted out of the per-call path)
# ----------------------------------------------------------------------------
def _pool_select(L):
    e = np.zeros((L, L // 2), np.float32)
    o = np.zeros((L, L // 2), np.float32)
    e[np.arange(0, 2 * (L // 2), 2), np.arange(L // 2)] = 1.0
    o[np.arange(1, 2 * (L // 2), 2), np.arange(L // 2)] = 1.0
    return jnp.asarray(e), jnp.asarray(o)


def _pad_matrix(L):
    p = np.zeros((L, L + 2), np.float32)
    p[np.arange(L), np.arange(L) + 1] = 1.0
    return jnp.asarray(p)


def prepare_params(params, gt_len):
    """Precompute kernel-layout weights + constant selection matrices (called once)."""
    L = gt_len
    Lp1 = L // 2
    L2 = Lp1 - 2
    s1e, s1o = _pool_select(L)
    p1m = _pad_matrix(Lp1)
    s2e, s2o = _pool_select(L2)
    p2m = _pad_matrix(L2 // 2)

    fe = params['fe']
    # densify grouped conv weights, reorder to tap-major (k, Cout, Cin)
    idx = jnp.arange(64)
    w2_dense = jnp.zeros((64, 32, 5), jnp.float32).at[idx, idx // 2, :].set(fe['w2'][:, 0, :])
    w3_dense = jnp.zeros((64, 64, 7), jnp.float32).at[idx, idx, :].set(fe['w3'][:, 0, :])

    mlp = params['mlp']
    fe_mlp = dict(
        w1_taps=jnp.transpose(fe['w1'], (2, 0, 1)), b1=fe['b1'],
        w2_taps=jnp.transpose(w2_dense, (2, 0, 1)), b2=fe['b2'],
        w3_taps=jnp.transpose(w3_dense, (2, 0, 1)), b3=fe['b3'],
        s1e=s1e, s1o=s1o, p1m=p1m, s2e=s2e, s2o=s2o, p2m=p2m,
        # aux MLP in column form: (out, in) weights, (out, 1) biases
        waT=mlp['wa'].T, baT=mlp['ba'].T,
        wbT=mlp['wb'].T, bbT=mlp['bb'].T,
        wcT=mlp['wc'].T, bcT=mlp['bc'].T,
    )
    return dict(fe_mlp=fe_mlp, siren=params['siren'])


# ----------------------------------------------------------------------------
# Forward wrappers
# ----------------------------------------------------------------------------
def fe_mlp_forward(gt, fp):
    """gt: (1, 3, L) channels-first. Returns (coef (1,4), coefmod (1,4))."""
    gt_pad = jnp.pad(gt[0], ((0, 0), (1, 1)))        # (3, L+2)  -- glue
    coef_col, coefmod_col = pl.pallas_call(
        fe_mlp_kernel,
        out_shape=(jax.ShapeDtypeStruct((4, 1), jnp.float32),
                   jax.ShapeDtypeStruct((4, 1), jnp.float32)),
    )(gt_pad,
      fp['w1_taps'], fp['b1'], fp['s1e'], fp['s1o'], fp['p1m'],
      fp['w2_taps'], fp['b2'], fp['s2e'], fp['s2o'], fp['p2m'],
      fp['w3_taps'], fp['b3'],
      fp['waT'], fp['baT'], fp['wbT'], fp['bbT'], fp['wcT'], fp['bcT'])
    return coef_col.reshape(1, 4), coefmod_col.reshape(1, 4)


def siren_forward(coords, coefmod, sp, *, first_omega, hidden_omega, hidden_layers):
    N, in_f = coords.shape
    H = sp['w0'].shape[1]
    out_f = sp['wf'].shape[1]
    out_pad = 128 * pl.cdiv(out_f, 128)              # lane-dense output width

    # Pick a large coordinate tile while keeping the grid length >= 2 so both TCs of a
    # v7x chip get a share (dimension_semantics=("parallel",)); v5e/v6e are indifferent.
    if N <= 2048:
        Np = 256 * pl.cdiv(N, 256)
        tile_n = Np // 2
    else:
        tile_n = 1024
        Np = tile_n * pl.cdiv(N, tile_n)
    coords_p = jnp.pad(coords, ((0, Np - N), (0, 0)))

    wf_pad = jnp.pad(sp['wf'], ((0, 0), (0, out_pad - out_f)))
    bf_pad = jnp.pad(sp['bf'], ((0, 0), (0, out_pad - out_f)))

    kernel = functools.partial(siren_kernel, first_omega=first_omega,
                               hidden_omega=hidden_omega, hidden_layers=hidden_layers)
    out = pl.pallas_call(
        kernel,
        out_shape=jax.ShapeDtypeStruct((Np, out_pad), jnp.float32),
        grid=(Np // tile_n,),
        in_specs=[
            pl.BlockSpec((1, 4), lambda i: (0, 0)),                        # coef (pre-exp'd)
            pl.BlockSpec((tile_n, in_f), lambda i: (i, 0)),                # coords tile
            pl.BlockSpec((in_f, H), lambda i: (0, 0)),                     # w0
            pl.BlockSpec((1, H), lambda i: (0, 0)),                        # b0
            pl.BlockSpec((hidden_layers, H, H), lambda i: (0, 0, 0)),      # hidden W
            pl.BlockSpec((hidden_layers, 1, H), lambda i: (0, 0, 0)),      # hidden b
            pl.BlockSpec((H, out_pad), lambda i: (0, 0)),                  # final W (padded)
            pl.BlockSpec((1, out_pad), lambda i: (0, 0)),                  # final b (padded)
        ],
        out_specs=pl.BlockSpec((tile_n, out_pad), lambda i: (i, 0)),
        compiler_params=pltpu.CompilerParams(dimension_semantics=("parallel",)),
    )(coefmod, coords_p, sp['w0'], sp['b0'], sp['wh'], sp['bh'], wf_pad, bf_pad)
    return out[:N, :out_f]


@functools.partial(jax.jit, static_argnames=("first_omega", "hidden_omega", "hidden_layers"))
def inr_forward(coords, gt, prep, *, first_omega, hidden_omega, hidden_layers):
    """Mirrors INR.forward for task='inpainting' (no positional encoding)."""
    coef, coefmod = fe_mlp_forward(gt, prep['fe_mlp'])        # (1,4), (1,4)
    output = siren_forward(coords, coefmod, prep['siren'],
                           first_omega=first_omega, hidden_omega=hidden_omega,
                           hidden_layers=hidden_layers)
    return [output, coef]


# ----------------------------------------------------------------------------
# Deterministic parameter construction (synthetic init mirroring the module's shapes)
# ----------------------------------------------------------------------------
def init_params(key, *, in_features, hidden_features, hidden_layers, out_features,
                first_omega, hidden_omega, mlp_bias=0.1):
    ks = list(jax.random.split(key, 24))
    ki = iter(ks)
    f32 = jnp.float32

    def u(k, shape, bound):
        return jax.random.uniform(k, shape, f32, -bound, bound)

    # ---- Custom1DFeatureExtractor (PyTorch conv weight layout (Cout, Cin/groups, k)) ----
    fe = dict(
        w1=u(next(ki), (32, 3, 3), 1.0 / np.sqrt(3 * 3)),
        b1=u(next(ki), (32, 1), 1.0 / np.sqrt(3 * 3)),
        w2=u(next(ki), (64, 1, 5), 1.0 / np.sqrt(1 * 5)),
        b2=u(next(ki), (64, 1), 1.0 / np.sqrt(1 * 5)),
        w3=u(next(ki), (64, 1, 7), 1.0 / np.sqrt(1 * 7)),
        b3=u(next(ki), (64, 1), 1.0 / np.sqrt(1 * 7)),
    )

    # ---- aux MLP: 64 -> 64 -> 32 -> 4, trunc_normal(std=0.001) weights, constant bias ----
    def tn(k, shape):
        return 0.001 * jax.random.truncated_normal(k, -2.0, 2.0, shape, f32)

    mlp = dict(
        wa=tn(next(ki), (64, 64)), ba=jnp.full((1, 64), mlp_bias, f32),
        wb=tn(next(ki), (64, 32)), bb=jnp.full((1, 32), mlp_bias, f32),
        wc=tn(next(ki), (32, 4)), bc=jnp.full((1, 4), mlp_bias, f32),
    )

    # ---- SIREN net (weights stored already transposed to (in, out)) ----
    H = hidden_features
    hid_bound = np.sqrt(6.0 / H) / hidden_omega
    siren = dict(
        w0=u(next(ki), (in_features, H), 1.0 / in_features),
        b0=u(next(ki), (1, H), 1.0 / np.sqrt(in_features)),
        wh=u(next(ki), (hidden_layers, H, H), hid_bound),
        bh=u(next(ki), (hidden_layers, 1, H), 1.0 / np.sqrt(H)),
        wf=u(next(ki), (H, out_features), np.sqrt(6.0 / H) / max(hidden_omega, 1e-12)),
        bf=u(next(ki), (1, out_features), 1.0 / np.sqrt(H)),
    )
    return dict(fe=fe, mlp=mlp, siren=siren)


# ----------------------------------------------------------------------------
if __name__ == "__main__":
    IN_FEATURES = 2
    HIDDEN_FEATURES = 32
    HIDDEN_LAYERS = 2
    OUT_FEATURES = 3
    FIRST_OMEGA = 30.0
    HIDDEN_OMEGA = 30.0
    N_COORDS = 256
    GT_LEN = 64

    key = jax.random.PRNGKey(0)
    k_par, k_coord, k_gt = jax.random.split(key, 3)

    params = init_params(k_par, in_features=IN_FEATURES, hidden_features=HIDDEN_FEATURES,
                         hidden_layers=HIDDEN_LAYERS, out_features=OUT_FEATURES,
                         first_omega=FIRST_OMEGA, hidden_omega=HIDDEN_OMEGA)
    prep = prepare_params(params, GT_LEN)               # one-time glue (constants, layouts)

    coords = jax.random.uniform(k_coord, (N_COORDS, IN_FEATURES), jnp.float32, -1.0, 1.0)
    gt = jax.random.normal(k_gt, (1, 3, GT_LEN), jnp.float32)   # NCL ground-truth signal

    output, coef = inr_forward(coords, gt, prep,
                               first_omega=FIRST_OMEGA, hidden_omega=HIDDEN_OMEGA,
                               hidden_layers=HIDDEN_LAYERS)
    jax.block_until_ready(output)
    jax.block_until_ready(coef)

    assert output.shape == (N_COORDS, OUT_FEATURES)
    assert coef.shape == (1, 4)
    print("KERNEL_OK")
</pallas_src>

<mosaic_0001>
module attributes {stable_mosaic.version = 11 : i64} {
  func.func @fe_mlp_kernel(%arg0: memref<3x66xf32, #tpu.memory_space<vmem>>, %arg1: memref<3x32x3xf32, #tpu.memory_space<vmem>>, %arg2: memref<32x1xf32, #tpu.memory_space<vmem>>, %arg3: memref<64x32xf32, #tpu.memory_space<vmem>>, %arg4: memref<64x32xf32, #tpu.memory_space<vmem>>, %arg5: memref<32x34xf32, #tpu.memory_space<vmem>>, %arg6: memref<5x64x32xf32, #tpu.memory_space<vmem>>, %arg7: memref<64x1xf32, #tpu.memory_space<vmem>>, %arg8: memref<30x15xf32, #tpu.memory_space<vmem>>, %arg9: memref<30x15xf32, #tpu.memory_space<vmem>>, %arg10: memref<15x17xf32, #tpu.memory_space<vmem>>, %arg11: memref<7x64x64xf32, #tpu.memory_space<vmem>>, %arg12: memref<64x1xf32, #tpu.memory_space<vmem>>, %arg13: memref<64x64xf32, #tpu.memory_space<vmem>>, %arg14: memref<64x1xf32, #tpu.memory_space<vmem>>, %arg15: memref<32x64xf32, #tpu.memory_space<vmem>>, %arg16: memref<32x1xf32, #tpu.memory_space<vmem>>, %arg17: memref<4x32xf32, #tpu.memory_space<vmem>>, %arg18: memref<4x1xf32, #tpu.memory_space<vmem>>, %arg19: memref<4x1xf32, #tpu.memory_space<vmem>>, %arg20: memref<4x1xf32, #tpu.memory_space<vmem>>) attributes {dimension_semantics = [], scalar_prefetch = 0 : i64, scratch_operands = 0 : i64, tpu.core_type = #tpu.core_type<tc>} {
    %c0 = arith.constant 0 : index
    %c0_0 = arith.constant 0 : index
    %0 = vector.load %arg0[%c0, %c0_0] : memref<3x66xf32, #tpu.memory_space<vmem>>, vector<3x66xf32>
    %cst = arith.constant 0.000000e+00 : f32
    %1 = vector.broadcast %cst : f32 to vector<32x64xf32>
    %c0_1 = arith.constant 0 : index
    %c0_2 = arith.constant 0 : index
    %c0_3 = arith.constant 0 : index
    %2 = vector.load %arg1[%c0_1, %c0_2, %c0_3] : memref<3x32x3xf32, #tpu.memory_space<vmem>>, vector<1x32x3xf32>
    %3 = vector.shape_cast %2 : vector<1x32x3xf32> to vector<32x3xf32>
    %4 = vector.extract_strided_slice %0 {offsets = [0, 0], sizes = [3, 64], strides = [1, 1]} : vector<3x66xf32> to vector<3x64xf32>
    %cst_4 = arith.constant dense<0.000000e+00> : vector<32x64xf32>
    %5 = tpu.matmul %3, %4, %cst_4 {dimension_numbers = #tpu.dot_dimension_numbers<[1], [0], [0], [1], [0, 0, 1, 1], [], []>} : vector<32x3xf32>, vector<3x64xf32>, vector<32x64xf32> -> vector<32x64xf32>
    %6 = arith.addf %1, %5 : vector<32x64xf32>
    %c1 = arith.constant 1 : index
    %c0_5 = arith.constant 0 : index
    %c0_6 = arith.constant 0 : index
    %7 = vector.load %arg1[%c1, %c0_5, %c0_6] : memref<3x32x3xf32, #tpu.memory_space<vmem>>, vector<1x32x3xf32>
    %8 = vector.shape_cast %7 : vector<1x32x3xf32> to vector<32x3xf32>
    %9 = vector.extract_strided_slice %0 {offsets = [0, 1], sizes = [3, 64], strides = [1, 1]} : vector<3x66xf32> to vector<3x64xf32>
    %cst_7 = arith.constant dense<0.000000e+00> : vector<32x64xf32>
    %10 = tpu.matmul %8, %9, %cst_7 {dimension_numbers = #tpu.dot_dimension_numbers<[1], [0], [0], [1], [0, 0, 1, 1], [], []>} : vector<32x3xf32>, vector<3x64xf32>, vector<32x64xf32> -> vector<32x64xf32>
    %11 = arith.addf %6, %10 : vector<32x64xf32>
    %c2 = arith.constant 2 : index
    %c0_8 = arith.constant 0 : index
    %c0_9 = arith.constant 0 : index
    %12 = vector.load %arg1[%c2, %c0_8, %c0_9] : memref<3x32x3xf32, #tpu.memory_space<vmem>>, vector<1x32x3xf32>
    %13 = vector.shape_cast %12 : vector<1x32x3xf32> to vector<32x3xf32>
    %14 = vector.extract_strided_slice %0 {offsets = [0, 2], sizes = [3, 64], strides = [1, 1]} : vector<3x66xf32> to vector<3x64xf32>
    %cst_10 = arith.constant dense<0.000000e+00> : vector<32x64xf32>
    %15 = tpu.matmul %13, %14, %cst_10 {dimension_numbers = #tpu.dot_dimension_numbers<[1], [0], [0], [1], [0, 0, 1, 1], [], []>} : vector<32x3xf32>, vector<3x64xf32>, vector<32x64xf32> -> vector<32x64xf32>
    %16 = arith.addf %11, %15 : vector<32x64xf32>
    %c0_11 = arith.constant 0 : index
    %c0_12 = arith.constant 0 : index
    %17 = vector.load %arg2[%c0_11, %c0_12] : memref<32x1xf32, #tpu.memory_space<vmem>>, vector<32x1xf32>
    %18 = vector.broadcast %17 : vector<32x1xf32> to vector<32x64xf32>
    %19 = arith.addf %16, %18 : vector<32x64xf32>
    %cst_13 = arith.constant 0.000000e+00 : f32
    %20 = vector.broadcast %cst_13 : f32 to vector<32x64xf32>
    %21 = arith.maximumf %19, %20 : vector<32x64xf32>
    %c0_14 = arith.constant 0 : index
    %c0_15 = arith.constant 0 : index
    %22 = vector.load %arg3[%c0_14, %c0_15] : memref<64x32xf32, #tpu.memory_space<vmem>>, vector<64x32xf32>
    %cst_16 = arith.constant dense<0.000000e+00> : vector<32x32xf32>
    %23 = tpu.matmul %21, %22, %cst_16 {dimension_numbers = #tpu.dot_dimension_numbers<[1], [0], [0], [1], [0, 0, 1, 1], [], []>} : vector<32x64xf32>, vector<64x32xf32>, vector<32x32xf32> -> vector<32x32xf32>
    %c0_17 = arith.constant 0 : index
    %c0_18 = arith.constant 0 : index
    %24 = vector.load %arg4[%c0_17, %c0_18] : memref<64x32xf32, #tpu.memory_space<vmem>>, vector<64x32xf32>
    %cst_19 = arith.constant dense<0.000000e+00> : vector<32x32xf32>
    %25 = tpu.matmul %21, %24, %cst_19 {dimension_numbers = #tpu.dot_dimension_numbers<[1], [0], [0], [1], [0, 0, 1, 1], [], []>} : vector<32x64xf32>, vector<64x32xf32>, vector<32x32xf32> -> vector<32x32xf32>
    %26 = arith.maximumf %23, %25 : vector<32x32xf32>
    %c0_20 = arith.constant 0 : index
    %c0_21 = arith.constant 0 : index
    %27 = vector.load %arg5[%c0_20, %c0_21] : memref<32x34xf32, #tpu.memory_space<vmem>>, vector<32x34xf32>
    %cst_22 = arith.constant dense<0.000000e+00> : vector<32x34xf32>
    %28 = tpu.matmul %26, %27, %cst_22 {dimension_numbers = #tpu.dot_dimension_numbers<[1], [0], [0], [1], [0, 0, 1, 1], [], []>} : vector<32x32xf32>, vector<32x34xf32>, vector<32x34xf32> -> vector<32x34xf32>
    %cst_23 = arith.constant 0.000000e+00 : f32
    %29 = vector.broadcast %cst_23 : f32 to vector<64x30xf32>
    %c0_24 = arith.constant 0 : index
    %c0_25 = arith.constant 0 : index
    %c0_26 = arith.constant 0 : index
    %30 = vector.load %arg6[%c0_24, %c0_25, %c0_26] : memref<5x64x32xf32, #tpu.memory_space<vmem>>, vector<1x64x32xf32>
    %31 = vector.shape_cast %30 : vector<1x64x32xf32> to vector<64x32xf32>
    %32 = vector.extract_strided_slice %28 {offsets = [0, 0], sizes = [32, 30], strides = [1, 1]} : vector<32x34xf32> to vector<32x30xf32>
    %cst_27 = arith.constant dense<0.000000e+00> : vector<64x30xf32>
    %33 = tpu.matmul %31, %32, %cst_27 {dimension_numbers = #tpu.dot_dimension_numbers<[1], [0], [0], [1], [0, 0, 1, 1], [], []>} : vector<64x32xf32>, vector<32x30xf32>, vector<64x30xf32> -> vector<64x30xf32>
    %34 = arith.addf %29, %33 : vector<64x30xf32>
    %c1_28 = arith.constant 1 : index
    %c0_29 = arith.constant 0 : index
    %c0_30 = arith.constant 0 : index
    %35 = vector.load %arg6[%c1_28, %c0_29, %c0_30] : memref<5x64x32xf32, #tpu.memory_space<vmem>>, vector<1x64x32xf32>
    %36 = vector.shape_cast %35 : vector<1x64x32xf32> to vector<64x32xf32>
    %37 = vector.extract_strided_slice %28 {offsets = [0, 1], sizes = [32, 30], strides = [1, 1]} : vector<32x34xf32> to vector<32x30xf32>
    %cst_31 = arith.constant dense<0.000000e+00> : vector<64x30xf32>
    %38 = tpu.matmul %36, %37, %cst_31 {dimension_numbers = #tpu.dot_dimension_numbers<[1], [0], [0], [1], [0, 0, 1, 1], [], []>} : vector<64x32xf32>, vector<32x30xf32>, vector<64x30xf32> -> vector<64x30xf32>
    %39 = arith.addf %34, %38 : vector<64x30xf32>
    %c2_32 = arith.constant 2 : index
    %c0_33 = arith.constant 0 : index
    %c0_34 = arith.constant 0 : index
    %40 = vector.load %arg6[%c2_32, %c0_33, %c0_34] : memref<5x64x32xf32, #tpu.memory_space<vmem>>, vector<1x64x32xf32>
    %41 = vector.shape_cast %40 : vector<1x64x32xf32> to vector<64x32xf32>
    %42 = vector.extract_strided_slice %28 {offsets = [0, 2], sizes = [32, 30], strides = [1, 1]} : vector<32x34xf32> to vector<32x30xf32>
    %cst_35 = arith.constant dense<0.000000e+00> : vector<64x30xf32>
    %43 = tpu.matmul %41, %42, %cst_35 {dimension_numbers = #tpu.dot_dimension_numbers<[1], [0], [0], [1], [0, 0, 1, 1], [], []>} : vector<64x32xf32>, vector<32x30xf32>, vector<64x30xf32> -> vector<64x30xf32>
    %44 = arith.addf %39, %43 : vector<64x30xf32>
    %c3 = arith.constant 3 : index
    %c0_36 = arith.constant 0 : index
    %c0_37 = arith.constant 0 : index
    %45 = vector.load %arg6[%c3, %c0_36, %c0_37] : memref<5x64x32xf32, #tpu.memory_space<vmem>>, vector<1x64x32xf32>
    %46 = vector.shape_cast %45 : vector<1x64x32xf32> to vector<64x32xf32>
    %47 = vector.extract_strided_slice %28 {offsets = [0, 3], sizes = [32, 30], strides = [1, 1]} : vector<32x34xf32> to vector<32x30xf32>
    %cst_38 = arith.constant dense<0.000000e+00> : vector<64x30xf32>
    %48 = tpu.matmul %46, %47, %cst_38 {dimension_numbers = #tpu.dot_dimension_numbers<[1], [0], [0], [1], [0, 0, 1, 1], [], []>} : vector<64x32xf32>, vector<32x30xf32>, vector<64x30xf32> -> vector<64x30xf32>
    %49 = arith.addf %44, %48 : vector<64x30xf32>
    %c4 = arith.constant 4 : index
    %c0_39 = arith.constant 0 : index
    %c0_40 = arith.constant 0 : index
    %50 = vector.load %arg6[%c4, %c0_39, %c0_40] : memref<5x64x32xf32, #tpu.memory_space<vmem>>, vector<1x64x32xf32>
    %51 = vector.shape_cast %50 : vector<1x64x32xf32> to vector<64x32xf32>
    %52 = vector.extract_strided_slice %28 {offsets = [0, 4], sizes = [32, 30], strides = [1, 1]} : vector<32x34xf32> to vector<32x30xf32>
    %cst_41 = arith.constant dense<0.000000e+00> : vector<64x30xf32>
    %53 = tpu.matmul %51, %52, %cst_41 {dimension_numbers = #tpu.dot_dimension_numbers<[1], [0], [0], [1], [0, 0, 1, 1], [], []>} : vector<64x32xf32>, vector<32x30xf32>, vector<64x30xf32> -> vector<64x30xf32>
    %54 = arith.addf %49, %53 : vector<64x30xf32>
    %c0_42 = arith.constant 0 : index
    %c0_43 = arith.constant 0 : index
    %55 = vector.load %arg7[%c0_42, %c0_43] : memref<64x1xf32, #tpu.memory_space<vmem>>, vector<64x1xf32>
    %56 = vector.broadcast %55 : vector<64x1xf32> to vector<64x30xf32>
    %57 = arith.addf %54, %56 : vector<64x30xf32>
    %cst_44 = arith.constant 0.000000e+00 : f32
    %58 = vector.broadcast %cst_44 : f32 to vector<64x30xf32>
    %59 = arith.maximumf %57, %58 : vector<64x30xf32>
    %c0_45 = arith.constant 0 : index
    %c0_46 = arith.constant 0 : index
    %60 = vector.load %arg8[%c0_45, %c0_46] : memref<30x15xf32, #tpu.memory_space<vmem>>, vector<30x15xf32>
    %cst_47 = arith.constant dense<0.000000e+00> : vector<64x15xf32>
    %61 = tpu.matmul %59, %60, %cst_47 {dimension_numbers = #tpu.dot_dimension_numbers<[1], [0], [0], [1], [0, 0, 1, 1], [], []>} : vector<64x30xf32>, vector<30x15xf32>, vector<64x15xf32> -> vector<64x15xf32>
    %c0_48 = arith.constant 0 : index
    %c0_49 = arith.constant 0 : index
    %62 = vector.load %arg9[%c0_48, %c0_49] : memref<30x15xf32, #tpu.memory_space<vmem>>, vector<30x15xf32>
    %cst_50 = arith.constant dense<0.000000e+00> : vector<64x15xf32>
    %63 = tpu.matmul %59, %62, %cst_50 {dimension_numbers = #tpu.dot_dimension_numbers<[1], [0], [0], [1], [0, 0, 1, 1], [], []>} : vector<64x30xf32>, vector<30x15xf32>, vector<64x15xf32> -> vector<64x15xf32>
    %64 = arith.maximumf %61, %63 : vector<64x15xf32>
    %c0_51 = arith.constant 0 : index
    %c0_52 = arith.constant 0 : index
    %65 = vector.load %arg10[%c0_51, %c0_52] : memref<15x17xf32, #tpu.memory_space<vmem>>, vector<15x17xf32>
    %cst_53 = arith.constant dense<0.000000e+00> : vector<64x17xf32>
    %66 = tpu.matmul %64, %65, %cst_53 {dimension_numbers = #tpu.dot_dimension_numbers<[1], [0], [0], [1], [0, 0, 1, 1], [], []>} : vector<64x15xf32>, vector<15x17xf32>, vector<64x17xf32> -> vector<64x17xf32>
    %cst_54 = arith.constant 0.000000e+00 : f32
    %67 = vector.broadcast %cst_54 : f32 to vector<64x11xf32>
    %c0_55 = arith.constant 0 : index
    %c0_56 = arith.constant 0 : index
    %c0_57 = arith.constant 0 : index
    %68 = vector.load %arg11[%c0_55, %c0_56, %c0_57] : memref<7x64x64xf32, #tpu.memory_space<vmem>>, vector<1x64x64xf32>
    %69 = vector.shape_cast %68 : vector<1x64x64xf32> to vector<64x64xf32>
    %70 = vector.extract_strided_slice %66 {offsets = [0, 0], sizes = [64, 11], strides = [1, 1]} : vector<64x17xf32> to vector<64x11xf32>
    %cst_58 = arith.constant dense<0.000000e+00> : vector<64x11xf32>
    %71 = tpu.matmul %69, %70, %cst_58 {dimension_numbers = #tpu.dot_dimension_numbers<[1], [0], [0], [1], [0, 0, 1, 1], [], []>} : vector<64x64xf32>, vector<64x11xf32>, vector<64x11xf32> -> vector<64x11xf32>
    %72 = arith.addf %67, %71 : vector<64x11xf32>
    %c1_59 = arith.constant 1 : index
    %c0_60 = arith.constant 0 : index
    %c0_61 = arith.constant 0 : index
    %73 = vector.load %arg11[%c1_59, %c0_60, %c0_61] : memref<7x64x64xf32, #tpu.memory_space<vmem>>, vector<1x64x64xf32>
    %74 = vector.shape_cast %73 : vector<1x64x64xf32> to vector<64x64xf32>
    %75 = vector.extract_strided_slice %66 {offsets = [0, 1], sizes = [64, 11], strides = [1, 1]} : vector<64x17xf32> to vector<64x11xf32>
    %cst_62 = arith.constant dense<0.000000e+00> : vector<64x11xf32>
    %76 = tpu.matmul %74, %75, %cst_62 {dimension_numbers = #tpu.dot_dimension_numbers<[1], [0], [0], [1], [0, 0, 1, 1], [], []>} : vector<64x64xf32>, vector<64x11xf32>, vector<64x11xf32> -> vector<64x11xf32>
    %77 = arith.addf %72, %76 : vector<64x11xf32>
    %c2_63 = arith.constant 2 : index
    %c0_64 = arith.constant 0 : index
    %c0_65 = arith.constant 0 : index
    %78 = vector.load %arg11[%c2_63, %c0_64, %c0_65] : memref<7x64x64xf32, #tpu.memory_space<vmem>>, vector<1x64x64xf32>
    %79 = vector.shape_cast %78 : vector<1x64x64xf32> to vector<64x64xf32>
    %80 = vector.extract_strided_slice %66 {offsets = [0, 2], sizes = [64, 11], strides = [1, 1]} : vector<64x17xf32> to vector<64x11xf32>
    %cst_66 = arith.constant dense<0.000000e+00> : vector<64x11xf32>
    %81 = tpu.matmul %79, %80, %cst_66 {dimension_numbers = #tpu.dot_dimension_numbers<[1], [0], [0], [1], [0, 0, 1, 1], [], []>} : vector<64x64xf32>, vector<64x11xf32>, vector<64x11xf32> -> vector<64x11xf32>
    %82 = arith.addf %77, %81 : vector<64x11xf32>
    %c3_67 = arith.constant 3 : index
    %c0_68 = arith.constant 0 : index
    %c0_69 = arith.constant 0 : index
    %83 = vector.load %arg11[%c3_67, %c0_68, %c0_69] : memref<7x64x64xf32, #tpu.memory_space<vmem>>, vector<1x64x64xf32>
    %84 = vector.shape_cast %83 : vector<1x64x64xf32> to vector<64x64xf32>
    %85 = vector.extract_strided_slice %66 {offsets = [0, 3], sizes = [64, 11], strides = [1, 1]} : vector<64x17xf32> to vector<64x11xf32>
    %cst_70 = arith.constant dense<0.000000e+00> : vector<64x11xf32>
    %86 = tpu.matmul %84, %85, %cst_70 {dimension_numbers = #tpu.dot_dimension_numbers<[1], [0], [0], [1], [0, 0, 1, 1], [], []>} : vector<64x64xf32>, vector<64x11xf32>, vector<64x11xf32> -> vector<64x11xf32>
    %87 = arith.addf %82, %86 : vector<64x11xf32>
    %c4_71 = arith.constant 4 : index
    %c0_72 = arith.constant 0 : index
    %c0_73 = arith.constant 0 : index
    %88 = vector.load %arg11[%c4_71, %c0_72, %c0_73] : memref<7x64x64xf32, #tpu.memory_space<vmem>>, vector<1x64x64xf32>
    %89 = vector.shape_cast %88 : vector<1x64x64xf32> to vector<64x64xf32>
    %90 = vector.extract_strided_slice %66 {offsets = [0, 4], sizes = [64, 11], strides = [1, 1]} : vector<64x17xf32> to vector<64x11xf32>
    %cst_74 = arith.constant dense<0.000000e+00> : vector<64x11xf32>
    %91 = tpu.matmul %89, %90, %cst_74 {dimension_numbers = #tpu.dot_dimension_numbers<[1], [0], [0], [1], [0, 0, 1, 1], [], []>} : vector<64x64xf32>, vector<64x11xf32>, vector<64x11xf32> -> vector<64x11xf32>
    %92 = arith.addf %87, %91 : vector<64x11xf32>
    %c5 = arith.constant 5 : index
    %c0_75 = arith.constant 0 : index
    %c0_76 = arith.constant 0 : index
    %93 = vector.load %arg11[%c5, %c0_75, %c0_76] : memref<7x64x64xf32, #tpu.memory_space<vmem>>, vector<1x64x64xf32>
    %94 = vector.shape_cast %93 : vector<1x64x64xf32> to vector<64x64xf32>
    %95 = vector.extract_strided_slice %66 {offsets = [0, 5], sizes = [64, 11], strides = [1, 1]} : vector<64x17xf32> to vector<64x11xf32>
    %cst_77 = arith.constant dense<0.000000e+00> : vector<64x11xf32>
    %96 = tpu.matmul %94, %95, %cst_77 {dimension_numbers = #tpu.dot_dimension_numbers<[1], [0], [0], [1], [0, 0, 1, 1], [], []>} : vector<64x64xf32>, vector<64x11xf32>, vector<64x11xf32> -> vector<64x11xf32>
    %97 = arith.addf %92, %96 : vector<64x11xf32>
    %c6 = arith.constant 6 : index
    %c0_78 = arith.constant 0 : index
    %c0_79 = arith.constant 0 : index
    %98 = vector.load %arg11[%c6, %c0_78, %c0_79] : memref<7x64x64xf32, #tpu.memory_space<vmem>>, vector<1x64x64xf32>
    %99 = vector.shape_cast %98 : vector<1x64x64xf32> to vector<64x64xf32>
    %100 = vector.extract_strided_slice %66 {offsets = [0, 6], sizes = [64, 11], strides = [1, 1]} : vector<64x17xf32> to vector<64x11xf32>
    %cst_80 = arith.constant dense<0.000000e+00> : vector<64x11xf32>
    %101 = tpu.matmul %99, %100, %cst_80 {dimension_numbers = #tpu.dot_dimension_numbers<[1], [0], [0], [1], [0, 0, 1, 1], [], []>} : vector<64x64xf32>, vector<64x11xf32>, vector<64x11xf32> -> vector<64x11xf32>
    %102 = arith.addf %97, %101 : vector<64x11xf32>
    %c0_81 = arith.constant 0 : index
    %c0_82 = arith.constant 0 : index
    %103 = vector.load %arg12[%c0_81, %c0_82] : memref<64x1xf32, #tpu.memory_space<vmem>>, vector<64x1xf32>
    %104 = vector.broadcast %103 : vector<64x1xf32> to vector<64x11xf32>
    %105 = arith.addf %102, %104 : vector<64x11xf32>
    %cst_83 = arith.constant 0.000000e+00 : f32
    %106 = vector.broadcast %cst_83 : f32 to vector<64x11xf32>
    %107 = arith.maximumf %105, %106 : vector<64x11xf32>
    %cst_84 = arith.constant dense<0.000000e+00> : vector<64xf32>
    %108 = vector.multi_reduction <add>, %107, %cst_84 [1] : vector<64x11xf32> to vector<64xf32>
    %109 = vector.shape_cast %108 : vector<64xf32> to vector<64x1xf32>
    %cst_85 = arith.constant 1.100000e+01 : f32
    %110 = vector.broadcast %cst_85 : f32 to vector<64x1xf32>
    %111 = arith.divf %109, %110 : vector<64x1xf32>
    %c0_86 = arith.constant 0 : index
    %c0_87 = arith.constant 0 : index
    %112 = vector.load %arg13[%c0_86, %c0_87] : memref<64x64xf32, #tpu.memory_space<vmem>>, vector<64x64xf32>
    %cst_88 = arith.constant dense<0.000000e+00> : vector<64x1xf32>
    %113 = tpu.matmul %112, %111, %cst_88 {dimension_numbers = #tpu.dot_dimension_numbers<[1], [0], [0], [1], [0, 0, 1, 1], [], []>} : vector<64x64xf32>, vector<64x1xf32>, vector<64x1xf32> -> vector<64x1xf32>
    %c0_89 = arith.constant 0 : index
    %c0_90 = arith.constant 0 : index
    %114 = vector.load %arg14[%c0_89, %c0_90] : memref<64x1xf32, #tpu.memory_space<vmem>>, vector<64x1xf32>
    %115 = arith.addf %113, %114 : vector<64x1xf32>
    %cst_91 = arith.constant 0.000000e+00 : f32
    %116 = vector.broadcast %cst_91 : f32 to vector<64x1xf32>
    %117 = arith.subf %116, %115 : vector<64x1xf32>
    %118 = math.exp %117 : vector<64x1xf32>
    %cst_92 = arith.constant 1.000000e+00 : f32
    %119 = vector.broadcast %cst_92 : f32 to vector<64x1xf32>
    %120 = arith.addf %119, %118 : vector<64x1xf32>
    %cst_93 = arith.constant 1.000000e+00 : f32
    %121 = vector.broadcast %cst_93 : f32 to vector<64x1xf32>
    %122 = arith.divf %121, %120 : vector<64x1xf32>
    %123 = arith.mulf %115, %122 : vector<64x1xf32>
    %c0_94 = arith.constant 0 : index
    %c0_95 = arith.constant 0 : index
    %124 = vector.load %arg15[%c0_94, %c0_95] : memref<32x64xf32, #tpu.memory_space<vmem>>, vector<32x64xf32>
    %cst_96 = arith.constant dense<0.000000e+00> : vector<32x1xf32>
    %125 = tpu.matmul %124, %123, %cst_96 {dimension_numbers = #tpu.dot_dimension_numbers<[1], [0], [0], [1], [0, 0, 1, 1], [], []>} : vector<32x64xf32>, vector<64x1xf32>, vector<32x1xf32> -> vector<32x1xf32>
    %c0_97 = arith.constant 0 : index
    %c0_98 = arith.constant 0 : index
    %126 = vector.load %arg16[%c0_97, %c0_98] : memref<32x1xf32, #tpu.memory_space<vmem>>, vector<32x1xf32>
    %127 = arith.addf %125, %126 : vector<32x1xf32>
    %cst_99 = arith.constant 0.000000e+00 : f32
    %128 = vector.broadcast %cst_99 : f32 to vector<32x1xf32>
    %129 = arith.subf %128, %127 : vector<32x1xf32>
    %130 = math.exp %129 : vector<32x1xf32>
    %cst_100 = arith.constant 1.000000e+00 : f32
    %131 = vector.broadcast %cst_100 : f32 to vector<32x1xf32>
    %132 = arith.addf %131, %130 : vector<32x1xf32>
    %cst_101 = arith.constant 1.000000e+00 : f32
    %133 = vector.broadcast %cst_101 : f32 to vector<32x1xf32>
    %134 = arith.divf %133, %132 : vector<32x1xf32>
    %135 = arith.mulf %127, %134 : vector<32x1xf32>
    %c0_102 = arith.constant 0 : index
    %c0_103 = arith.constant 0 : index
    %136 = vector.load %arg17[%c0_102, %c0_103] : memref<4x32xf32, #tpu.memory_space<vmem>>, vector<4x32xf32>
    %cst_104 = arith.constant dense<0.000000e+00> : vector<4x1xf32>
    %137 = tpu.matmul %136, %135, %cst_104 {dimension_numbers = #tpu.dot_dimension_numbers<[1], [0], [0], [1], [0, 0, 1, 1], [], []>} : vector<4x32xf32>, vector<32x1xf32>, vector<4x1xf32> -> vector<4x1xf32>
    %c0_105 = arith.constant 0 : index
    %c0_106 = arith.constant 0 : index
    %138 = vector.load %arg18[%c0_105, %c0_106] : memref<4x1xf32, #tpu.memory_space<vmem>>, vector<4x1xf32>
    %139 = arith.addf %137, %138 : vector<4x1xf32>
    %c0_107 = arith.constant 0 : index
    %c0_108 = arith.constant 0 : index
    %140 = vector.load %arg19[%c0_107, %c0_108] : memref<4x1xf32, #tpu.memory_space<vmem>>, vector<4x1xf32>
    tpu.vector_store %arg19[%c0_107, %c0_108], %139 {strides = array<i32>} : memref<4x1xf32, #tpu.memory_space<vmem>>, vector<4x1xf32>,
    %141 = tpu.iota {dimensions = array<i32: 0>} : vector<4x1xi32>
    %c2_i32 = arith.constant 2 : i32
    %142 = vector.broadcast %c2_i32 : i32 to vector<4x1xi32>
    %143 = arith.cmpi slt, %141, %142 : vector<4x1xi32>
    %144 = math.exp %139 : vector<4x1xf32>
    %145 = arith.select %143, %144, %139 : vector<4x1xi1>, vector<4x1xf32>
    %c0_109 = arith.constant 0 : index
    %c0_110 = arith.constant 0 : index
    %146 = vector.load %arg20[%c0_109, %c0_110] : memref<4x1xf32, #tpu.memory_space<vmem>>, vector<4x1xf32>
    tpu.vector_store %arg20[%c0_109, %c0_110], %145 {strides = array<i32>} : memref<4x1xf32, #tpu.memory_space<vmem>>, vector<4x1xf32>,
    return
  }
}

module attributes {stable_mosaic.version = 11 : i64} {
  func.func @siren_kernel(%arg0: i32, %arg1: memref<1x4xf32, #tpu.memory_space<vmem>>, %arg2: memref<128x2xf32, #tpu.memory_space<vmem>>, %arg3: memref<2x32xf32, #tpu.memory_space<vmem>>, %arg4: memref<1x32xf32, #tpu.memory_space<vmem>>, %arg5: memref<2x32x32xf32, #tpu.memory_space<vmem>>, %arg6: memref<2x1x32xf32, #tpu.memory_space<vmem>>, %arg7: memref<32x128xf32, #tpu.memory_space<vmem>>, %arg8: memref<1x128xf32, #tpu.memory_space<vmem>>, %arg9: memref<128x128xf32, #tpu.memory_space<vmem>>) attributes {dimension_semantics = [#tpu.dimension_semantics<parallel>], iteration_bounds = array<i64: 2>, scalar_prefetch = 0 : i64, scratch_operands = 0 : i64, tpu.core_type = #tpu.core_type<tc>, window_params = [{pipeline_mode = #tpu.pipeline_mode<synchronous>, transform_indices = @transform_0, window_bounds = array<i64: 1, 4>}, {transform_indices = @transform_1, window_bounds = array<i64: 128, 2>}, {pipeline_mode = #tpu.pipeline_mode<synchronous>, transform_indices = @transform_2, window_bounds = array<i64: 2, 32>}, {pipeline_mode = #tpu.pipeline_mode<synchronous>, transform_indices = @transform_3, window_bounds = array<i64: 1, 32>}, {pipeline_mode = #tpu.pipeline_mode<synchronous>, transform_indices = @transform_4, window_bounds = array<i64: 2, 32, 32>}, {pipeline_mode = #tpu.pipeline_mode<synchronous>, transform_indices = @transform_5, window_bounds = array<i64: 2, 1, 32>}, {pipeline_mode = #tpu.pipeline_mode<synchronous>, transform_indices = @transform_6, window_bounds = array<i64: 32, 128>}, {pipeline_mode = #tpu.pipeline_mode<synchronous>, transform_indices = @transform_7, window_bounds = array<i64: 1, 128>}, {transform_indices = @transform_8, window_bounds = array<i64: 128, 128>}]} {
    %c0 = arith.constant 0 : index
    %c0_0 = arith.constant 0 : index
    %0 = vector.load %arg1[%c0, %c0_0] : memref<1x4xf32, #tpu.memory_space<vmem>>, vector<1x4xf32>
    %1 = vector.extract_strided_slice %0 {offsets = [0, 0], sizes = [1, 1], strides = [1, 1]} : vector<1x4xf32> to vector<1x1xf32>
    %2 = vector.extract_strided_slice %0 {offsets = [0, 1], sizes = [1, 1], strides = [1, 1]} : vector<1x4xf32> to vector<1x1xf32>
    %3 = vector.extract_strided_slice %0 {offsets = [0, 2], sizes = [1, 1], strides = [1, 1]} : vector<1x4xf32> to vector<1x1xf32>
    %4 = vector.extract_strided_slice %0 {offsets = [0, 3], sizes = [1, 1], strides = [1, 1]} : vector<1x4xf32> to vector<1x1xf32>
    %5 = vector.shape_cast %1 : vector<1x1xf32> to vector<1x1xf32>
    %6 = vector.broadcast %5 : vector<1x1xf32> to vector<128x32xf32>
    %7 = vector.shape_cast %4 : vector<1x1xf32> to vector<1x1xf32>
    %8 = vector.broadcast %7 : vector<1x1xf32> to vector<128x32xf32>
    %cst = arith.constant 3.000000e+01 : f32
    %9 = vector.broadcast %cst : f32 to vector<1x1xf32>
    %10 = arith.mulf %2, %9 : vector<1x1xf32>
    %cst_1 = arith.constant 3.000000e+01 : f32
    %11 = vector.broadcast %cst_1 : f32 to vector<1x1xf32>
    %12 = arith.mulf %2, %11 : vector<1x1xf32>
    %c0_2 = arith.constant 0 : index
    %c0_3 = arith.constant 0 : index
    %13 = vector.load %arg2[%c0_2, %c0_3] : memref<128x2xf32, #tpu.memory_space<vmem>>, vector<128x2xf32>
    %c0_4 = arith.constant 0 : index
    %c0_5 = arith.constant 0 : index
    %14 = vector.load %arg3[%c0_4, %c0_5] : memref<2x32xf32, #tpu.memory_space<vmem>>, vector<2x32xf32>
    %15 = vector.broadcast %10 : vector<1x1xf32> to vector<2x32xf32>
    %16 = arith.mulf %15, %14 : vector<2x32xf32>
    %c0_6 = arith.constant 0 : index
    %c0_7 = arith.constant 0 : index
    %17 = vector.load %arg4[%c0_6, %c0_7] : memref<1x32xf32, #tpu.memory_space<vmem>>, vector<1x32xf32>
    %18 = vector.broadcast %10 : vector<1x1xf32> to vector<1x32xf32>
    %19 = arith.mulf %18, %17 : vector<1x32xf32>
    %20 = vector.broadcast %3 : vector<1x1xf32> to vector<1x32xf32>
    %21 = arith.addf %19, %20 : vector<1x32xf32>
    %22 = vector.shape_cast %21 : vector<1x32xf32> to vector<1x32xf32>
    %23 = vector.broadcast %22 : vector<1x32xf32> to vector<128x32xf32>
    %24 = vector.extract_strided_slice %13 {offsets = [0, 0], sizes = [128, 1], strides = [1, 1]} : vector<128x2xf32> to vector<128x1xf32>
    %25 = vector.extract_strided_slice %16 {offsets = [0, 0], sizes = [1, 32], strides = [1, 1]} : vector<2x32xf32> to vector<1x32xf32>
    %26 = vector.broadcast %24 : vector<128x1xf32> to vector<128x32xf32>
    %27 = vector.broadcast %25 : vector<1x32xf32> to vector<128x32xf32>
    %28 = arith.mulf %26, %27 : vector<128x32xf32>
    %29 = arith.addf %23, %28 : vector<128x32xf32>
    %30 = vector.extract_strided_slice %13 {offsets = [0, 1], sizes = [128, 1], strides = [1, 1]} : vector<128x2xf32> to vector<128x1xf32>
    %31 = vector.extract_strided_slice %16 {offsets = [1, 0], sizes = [1, 32], strides = [1, 1]} : vector<2x32xf32> to vector<1x32xf32>
    %32 = vector.broadcast %30 : vector<128x1xf32> to vector<128x32xf32>
    %33 = vector.broadcast %31 : vector<1x32xf32> to vector<128x32xf32>
    %34 = arith.mulf %32, %33 : vector<128x32xf32>
    %35 = arith.addf %29, %34 : vector<128x32xf32>
    %36 = math.sin %35 : vector<128x32xf32>
    %37 = arith.mulf %6, %36 : vector<128x32xf32>
    %38 = arith.addf %37, %8 : vector<128x32xf32>
    %c0_8 = arith.constant 0 : index
    %c0_9 = arith.constant 0 : index
    %c0_10 = arith.constant 0 : index
    %39 = vector.load %arg5[%c0_8, %c0_9, %c0_10] : memref<2x32x32xf32, #tpu.memory_space<vmem>>, vector<1x32x32xf32>
    %40 = vector.shape_cast %39 : vector<1x32x32xf32> to vector<32x32xf32>
    %41 = vector.broadcast %12 : vector<1x1xf32> to vector<32x32xf32>
    %42 = arith.mulf %41, %40 : vector<32x32xf32>
    %c0_11 = arith.constant 0 : index
    %c0_12 = arith.constant 0 : index
    %c0_13 = arith.constant 0 : index
    %43 = vector.load %arg6[%c0_11, %c0_12, %c0_13] : memref<2x1x32xf32, #tpu.memory_space<vmem>>, vector<1x1x32xf32>
    %44 = vector.shape_cast %43 : vector<1x1x32xf32> to vector<1x32xf32>
    %45 = vector.broadcast %12 : vector<1x1xf32> to vector<1x32xf32>
    %46 = arith.mulf %45, %44 : vector<1x32xf32>
    %47 = vector.broadcast %3 : vector<1x1xf32> to vector<1x32xf32>
    %48 = arith.addf %46, %47 : vector<1x32xf32>
    %cst_14 = arith.constant dense<0.000000e+00> : vector<128x32xf32>
    %49 = tpu.matmul %38, %42, %cst_14 {dimension_numbers = #tpu.dot_dimension_numbers<[1], [0], [0], [1], [0, 0, 1, 1], [], []>} : vector<128x32xf32>, vector<32x32xf32>, vector<128x32xf32> -> vector<128x32xf32>
    %50 = vector.broadcast %48 : vector<1x32xf32> to vector<128x32xf32>
    %51 = arith.addf %49, %50 : vector<128x32xf32>
    %52 = math.sin %51 : vector<128x32xf32>
    %53 = arith.mulf %6, %52 : vector<128x32xf32>
    %54 = arith.addf %53, %8 : vector<128x32xf32>
    %c1 = arith.constant 1 : index
    %c0_15 = arith.constant 0 : index
    %c0_16 = arith.constant 0 : index
    %55 = vector.load %arg5[%c1, %c0_15, %c0_16] : memref<2x32x32xf32, #tpu.memory_space<vmem>>, vector<1x32x32xf32>
    %56 = vector.shape_cast %55 : vector<1x32x32xf32> to vector<32x32xf32>
    %57 = vector.broadcast %12 : vector<1x1xf32> to vector<32x32xf32>
    %58 = arith.mulf %57, %56 : vector<32x32xf32>
    %c1_17 = arith.constant 1 : index
    %c0_18 = arith.constant 0 : index
    %c0_19 = arith.constant 0 : index
    %59 = vector.load %arg6[%c1_17, %c0_18, %c0_19] : memref<2x1x32xf32, #tpu.memory_space<vmem>>, vector<1x1x32xf32>
    %60 = vector.shape_cast %59 : vector<1x1x32xf32> to vector<1x32xf32>
    %61 = vector.broadcast %12 : vector<1x1xf32> to vector<1x32xf32>
    %62 = arith.mulf %61, %60 : vector<1x32xf32>
    %63 = vector.broadcast %3 : vector<1x1xf32> to vector<1x32xf32>
    %64 = arith.addf %62, %63 : vector<1x32xf32>
    %cst_20 = arith.constant dense<0.000000e+00> : vector<128x32xf32>
    %65 = tpu.matmul %54, %58, %cst_20 {dimension_numbers = #tpu.dot_dimension_numbers<[1], [0], [0], [1], [0, 0, 1, 1], [], []>} : vector<128x32xf32>, vector<32x32xf32>, vector<128x32xf32> -> vector<128x32xf32>
    %66 = vector.broadcast %64 : vector<1x32xf32> to vector<128x32xf32>
    %67 = arith.addf %65, %66 : vector<128x32xf32>
    %68 = math.sin %67 : vector<128x32xf32>
    %69 = arith.mulf %6, %68 : vector<128x32xf32>
    %70 = arith.addf %69, %8 : vector<128x32xf32>
    %c0_21 = arith.constant 0 : index
    %c0_22 = arith.constant 0 : index
    %71 = vector.load %arg7[%c0_21, %c0_22] : memref<32x128xf32, #tpu.memory_space<vmem>>, vector<32x128xf32>
    %cst_23 = arith.constant dense<0.000000e+00> : vector<128x128xf32>
    %72 = tpu.matmul %70, %71, %cst_23 {dimension_numbers = #tpu.dot_dimension_numbers<[1], [0], [0], [1], [0, 0, 1, 1], [], []>} : vector<128x32xf32>, vector<32x128xf32>, vector<128x128xf32> -> vector<128x128xf32>
    %c0_24 = arith.constant 0 : index
    %c0_25 = arith.constant 0 : index
    %73 = vector.load %arg8[%c0_24, %c0_25] : memref<1x128xf32, #tpu.memory_space<vmem>>, vector<1x128xf32>
    %74 = vector.broadcast %73 : vector<1x128xf32> to vector<128x128xf32>
    %75 = arith.addf %72, %74 : vector<128x128xf32>
    %c0_26 = arith.constant 0 : index
    %c0_27 = arith.constant 0 : index
    %76 = vector.load %arg9[%c0_26, %c0_27] : memref<128x128xf32, #tpu.memory_space<vmem>>, vector<128x128xf32>
    tpu.vector_store %arg9[%c0_26, %c0_27], %75 {strides = array<i32>} : memref<128x128xf32, #tpu.memory_space<vmem>>, vector<128x128xf32>,
    return
  }
  func.func @transform_0(%arg0: i32) -> (i32, i32) {
    %c0_i32 = arith.constant 0 : i32
    %c0_i32_0 = arith.constant 0 : i32
    %c0_i32_1 = arith.constant 0 : i32
    return %c0_i32, %c0_i32_0 : i32, i32
  }
  func.func @transform_1(%arg0: i32) -> (i32, i32) {
    %c0_i32 = arith.constant 0 : i32
    %c0_i32_0 = arith.constant 0 : i32
    return %arg0, %c0_i32 : i32, i32
  }
  func.func @transform_2(%arg0: i32) -> (i32, i32) {
    %c0_i32 = arith.constant 0 : i32
    %c0_i32_0 = arith.constant 0 : i32
    %c0_i32_1 = arith.constant 0 : i32
    return %c0_i32, %c0_i32_0 : i32, i32
  }
  func.func @transform_3(%arg0: i32) -> (i32, i32) {
    %c0_i32 = arith.constant 0 : i32
    %c0_i32_0 = arith.constant 0 : i32
    %c0_i32_1 = arith.constant 0 : i32
    return %c0_i32, %c0_i32_0 : i32, i32
  }
  func.func @transform_4(%arg0: i32) -> (i32, i32, i32) {
    %c0_i32 = arith.constant 0 : i32
    %c0_i32_0 = arith.constant 0 : i32
    %c0_i32_1 = arith.constant 0 : i32
    %c0_i32_2 = arith.constant 0 : i32
    return %c0_i32, %c0_i32_0, %c0_i32_1 : i32, i32, i32
  }
  func.func @transform_5(%arg0: i32) -> (i32, i32, i32) {
    %c0_i32 = arith.constant 0 : i32
    %c0_i32_0 = arith.constant 0 : i32
    %c0_i32_1 = arith.constant 0 : i32
    %c0_i32_2 = arith.constant 0 : i32
    return %c0_i32, %c0_i32_0, %c0_i32_1 : i32, i32, i32
  }
  func.func @transform_6(%arg0: i32) -> (i32, i32) {
    %c0_i32 = arith.constant 0 : i32
    %c0_i32_0 = arith.constant 0 : i32
    %c0_i32_1 = arith.constant 0 : i32
    return %c0_i32, %c0_i32_0 : i32, i32
  }
  func.func @transform_7(%arg0: i32) -> (i32, i32) {
    %c0_i32 = arith.constant 0 : i32
    %c0_i32_0 = arith.constant 0 : i32
    %c0_i32_1 = arith.constant 0 : i32
    return %c0_i32, %c0_i32_0 : i32, i32
  }
  func.func @transform_8(%arg0: i32) -> (i32, i32) {
    %c0_i32 = arith.constant 0 : i32
    %c0_i32_0 = arith.constant 0 : i32
    return %arg0, %c0_i32 : i32, i32
  }
}

</mosaic_0001>

<llo_original>
// kernel: inr_forward.3
$region0: #{inr_forward.3}
  #allocation0 [shape = 'u32[]', space=smem, size = 0x4, offset = 0x4, fixed_abs, tag = 'smem constant byte address 0x4 - core index']
  #allocation1 [shape = 'u32[144,128]{1,0:T(1,128)}', space=vmem, size = 0x12000, scoped, tag = 'internal scratch']
  %s0 = inlined_call_operand.vmem [shape: f32[1,4], index: 0, kind: input, shape index: {}]
  %s1 = inlined_call_operand.vmem [shape: f32[256,2], index: 1, kind: input, shape index: {}]
  %s2 = inlined_call_operand.vmem [shape: f32[2,32], index: 2, kind: input, shape index: {}]
  %s3 = inlined_call_operand.vmem [shape: f32[1,32], index: 3, kind: input, shape index: {}]
  %s4 = inlined_call_operand.vmem [shape: f32[2,32,32], index: 4, kind: input, shape index: {}]
  %s5 = inlined_call_operand.vmem [shape: f32[2,1,32], index: 5, kind: input, shape index: {}]
  %s6 = inlined_call_operand.vmem [shape: f32[32,128], index: 6, kind: input, shape index: {}]
  %s7 = inlined_call_operand.vmem [shape: f32[1,128], index: 7, kind: input, shape index: {}]
  %s8 = inlined_call_operand.vmem [shape: f32[256,128], index: 8, kind: output, shape index: {}]
  %s9 = sld [smem:[#allocation0]]
  $region65: #{inr_forward.3} parent=0
    _
  %s11 = ssub.s32 1, %s9
  %s12 = scalar_select 0, %s11, %s9
  loop: start=0, step=1, limit=4
  $region2: #{inr_forward.3} parent=0 // loop_pre_header
    _
  $region3: #{inr_forward.3} parent=0 // loop_header
    %s14 = sphi 0, %s18
    %p15 = scmp.ge.s32.totalorder %s14, 4
    %s22 = sphi 0, %s22
    %s24 = sphi 0, %s22
    %s25 = sphi 0, %s24
    %s39 = sphi 0, %s25
    %s45 = sphi 0, %s47
    %s48 = sphi 0, %s45
    %s49 = sphi 0, %s48
    %s65 = sphi 0, %s49
    %s69 = sphi 0, %s69
    %s71 = sphi 0, %s69
    %s72 = sphi 0, %s71
    %s86 = sphi 0, %s72
    %s90 = sphi 0, %s90
    %s92 = sphi 0, %s90
    %s93 = sphi 0, %s92
    %s107 = sphi 0, %s93
    %s111 = sphi 0, %s111
    %s113 = sphi 0, %s111
    %s114 = sphi 0, %s113
    %s128 = sphi 0, %s114
    %s132 = sphi 0, %s132
    %s134 = sphi 0, %s132
    %s135 = sphi 0, %s134
    %s149 = sphi 0, %s135
    %s153 = sphi 0, %s153
    %s155 = sphi 0, %s153
    %s156 = sphi 0, %s155
    %s170 = sphi 0, %s156
    %s174 = sphi 0, %s174
    %s176 = sphi 0, %s174
    %s177 = sphi 0, %s176
    %s191 = sphi 0, %s177
    %s197 = sphi 0, %s199
    %s200 = sphi 0, %s197
    %s201 = sphi 0, %s200
    %s217 = sphi 0, %s201
  $region4: #{inr_forward.3} parent=0 // loop_header_branch
    %17 = sbr.rel (%p15) target = $region8
  $region5: #{inr_forward.3} parent=0 // loop_body
    %s19 = ssub.s32 %s14, 1
    %s20 = ssub.s32 %s14, 2
    %s21 = sadd.s32 %s14, 1
    %s23 = sadd.s32 %s22, 1
    %p26 = scmp.eq.s32.totalorder %s14, 1
    %p27 = scmp.ne.s32.totalorder %s22, %s24
    %p28 = scmp.eq.s32.totalorder %s14, 0
    %p29 = por %p27, %p28
    %p30 = scmp.ne.s32.totalorder %s22, %s24
    %p31 = scmp.eq.s32.totalorder %s19, 1
    %p32 = por %p30, %p31
    %p33 = scmp.ne.s32.totalorder %s24, %s25
    %p34 = scmp.eq.s32.totalorder %s19, 0
    %p35 = por %p33, %p34
    %p36 = scmp.ne.s32.totalorder %s24, %s25
    %p37 = scmp.eq.s32.totalorder %s20, 1
    %p38 = por %p36, %p37
    %p40 = scmp.ne.s32.totalorder %s25, %s39
    %p41 = scmp.eq.s32.totalorder %s20, 0
    %p42 = por %p40, %p41
    %s43 = ssub.s32 %s14, %s21
    %p44 = scmp.eq.s32.totalorder %s43, 0
    %s46 = sadd.s32 %s45, 1
    %s47 = scalar_select %p44, %s45, %s46
    %p50 = pneg %p44
    %p51 = scmp.eq.s32.totalorder %s14, 1
    %p52 = por %p50, %p51
    %p53 = scmp.ne.s32.totalorder %s45, %s48
    %p54 = scmp.eq.s32.totalorder %s14, 0
    %p55 = por %p53, %p54
    %p56 = scmp.ne.s32.totalorder %s45, %s48
    %p57 = scmp.eq.s32.totalorder %s19, 1
    %p58 = por %p56, %p57
    %p59 = scmp.ne.s32.totalorder %s48, %s49
    %p60 = scmp.eq.s32.totalorder %s19, 0
    %p61 = por %p59, %p60
    %p62 = scmp.ne.s32.totalorder %s48, %s49
    %p63 = scmp.eq.s32.totalorder %s20, 1
    %p64 = por %p62, %p63
    %p66 = scmp.ne.s32.totalorder %s49, %s65
    %p67 = scmp.eq.s32.totalorder %s20, 0
    %p68 = por %p66, %p67
    %s70 = sadd.s32 %s69, 1
    %p73 = scmp.eq.s32.totalorder %s14, 1
    %p74 = scmp.ne.s32.totalorder %s69, %s71
    %p75 = scmp.eq.s32.totalorder %s14, 0
    %p76 = por %p74, %p75
    %p77 = scmp.ne.s32.totalorder %s69, %s71
    %p78 = scmp.eq.s32.totalorder %s19, 1
    %p79 = por %p77, %p78
    %p80 = scmp.ne.s32.totalorder %s71, %s72
    %p81 = scmp.eq.s32.totalorder %s19, 0
    %p82 = por %p80, %p81
    %p83 = scmp.ne.s32.totalorder %s71, %s72
    %p84 = scmp.eq.s32.totalorder %s20, 1
    %p85 = por %p83, %p84
    %p87 = scmp.ne.s32.totalorder %s72, %s86
    %p88 = scmp.eq.s32.totalorder %s20, 0
    %p89 = por %p87, %p88
    %s91 = sadd.s32 %s90, 1
    %p94 = scmp.eq.s32.totalorder %s14, 1
    %p95 = scmp.ne.s32.totalorder %s90, %s92
    %p96 = scmp.eq.s32.totalorder %s14, 0
    %p97 = por %p95, %p96
    %p98 = scmp.ne.s32.totalorder %s90, %s92
    %p99 = scmp.eq.s32.totalorder %s19, 1
    %p100 = por %p98, %p99
    %p101 = scmp.ne.s32.totalorder %s92, %s93
    %p102 = scmp.eq.s32.totalorder %s19, 0
    %p103 = por %p101, %p102
    %p104 = scmp.ne.s32.totalorder %s92, %s93
    %p105 = scmp.eq.s32.totalorder %s20, 1
    %p106 = por %p104, %p105
    %p108 = scmp.ne.s32.totalorder %s93, %s107
    %p109 = scmp.eq.s32.totalorder %s20, 0
    %p110 = por %p108, %p109
    %s112 = sadd.s32 %s111, 1
    %p115 = scmp.eq.s32.totalorder %s14, 1
    %p116 = scmp.ne.s32.totalorder %s111, %s113
    %p117 = scmp.eq.s32.totalorder %s14, 0
    %p118 = por %p116, %p117
    %p119 = scmp.ne.s32.totalorder %s111, %s113
    %p120 = scmp.eq.s32.totalorder %s19, 1
    %p121 = por %p119, %p120
    %p122 = scmp.ne.s32.totalorder %s113, %s114
    %p123 = scmp.eq.s32.totalorder %s19, 0
    %p124 = por %p122, %p123
    %p125 = scmp.ne.s32.totalorder %s113, %s114
    %p126 = scmp.eq.s32.totalorder %s20, 1
    %p127 = por %p125, %p126
    %p129 = scmp.ne.s32.totalorder %s114, %s128
    %p130 = scmp.eq.s32.totalorder %s20, 0
    %p131 = por %p129, %p130
    %s133 = sadd.s32 %s132, 1
    %p136 = scmp.eq.s32.totalorder %s14, 1
    %p137 = scmp.ne.s32.totalorder %s132, %s134
    %p138 = scmp.eq.s32.totalorder %s14, 0
    %p139 = por %p137, %p138
    %p140 = scmp.ne.s32.totalorder %s132, %s134
    %p141 = scmp.eq.s32.totalorder %s19, 1
    %p142 = por %p140, %p141
    %p143 = scmp.ne.s32.totalorder %s134, %s135
    %p144 = scmp.eq.s32.totalorder %s19, 0
    %p145 = por %p143, %p144
    %p146 = scmp.ne.s32.totalorder %s134, %s135
    %p147 = scmp.eq.s32.totalorder %s20, 1
    %p148 = por %p146, %p147
    %p150 = scmp.ne.s32.totalorder %s135, %s149
    %p151 = scmp.eq.s32.totalorder %s20, 0
    %p152 = por %p150, %p151
    %s154 = sadd.s32 %s153, 1
    %p157 = scmp.eq.s32.totalorder %s14, 1
    %p158 = scmp.ne.s32.totalorder %s153, %s155
    %p159 = scmp.eq.s32.totalorder %s14, 0
    %p160 = por %p158, %p159
    %p161 = scmp.ne.s32.totalorder %s153, %s155
    %p162 = scmp.eq.s32.totalorder %s19, 1
    %p163 = por %p161, %p162
    %p164 = scmp.ne.s32.totalorder %s155, %s156
    %p165 = scmp.eq.s32.totalorder %s19, 0
    %p166 = por %p164, %p165
    %p167 = scmp.ne.s32.totalorder %s155, %s156
    %p168 = scmp.eq.s32.totalorder %s20, 1
    %p169 = por %p167, %p168
    %p171 = scmp.ne.s32.totalorder %s156, %s170
    %p172 = scmp.eq.s32.totalorder %s20, 0
    %p173 = por %p171, %p172
    %s175 = sadd.s32 %s174, 1
    %p178 = scmp.eq.s32.totalorder %s14, 1
    %p179 = scmp.ne.s32.totalorder %s174, %s176
    %p180 = scmp.eq.s32.totalorder %s14, 0
    %p181 = por %p179, %p180
    %p182 = scmp.ne.s32.totalorder %s174, %s176
    %p183 = scmp.eq.s32.totalorder %s19, 1
    %p184 = por %p182, %p183
    %p185 = scmp.ne.s32.totalorder %s176, %s177
    %p186 = scmp.eq.s32.totalorder %s19, 0
    %p187 = por %p185, %p186
    %p188 = scmp.ne.s32.totalorder %s176, %s177
    %p189 = scmp.eq.s32.totalorder %s20, 1
    %p190 = por %p188, %p189
    %p192 = scmp.ne.s32.totalorder %s177, %s191
    %p193 = scmp.eq.s32.totalorder %s20, 0
    %p194 = por %p192, %p193
    %s195 = ssub.s32 %s14, %s21
    %p196 = scmp.eq.s32.totalorder %s195, 0
    %s198 = sadd.s32 %s197, 1
    %s199 = scalar_select %p196, %s197, %s198
    %p202 = pneg %p196
    %p203 = scmp.eq.s32.totalorder %s14, 1
    %p204 = por %p202, %p203
    %p205 = scmp.ne.s32.totalorder %s197, %s200
    %p206 = scmp.eq.s32.totalorder %s14, 0
    %p207 = por %p205, %p206
    %p208 = scmp.ne.s32.totalorder %s197, %s200
    %p209 = scmp.eq.s32.totalorder %s19, 1
    %p210 = por %p208, %p209
    %p211 = scmp.ne.s32.totalorder %s200, %s201
    %p212 = scmp.eq.s32.totalorder %s19, 0
    %p213 = por %p211, %p212
    %p214 = scmp.ne.s32.totalorder %s200, %s201
    %p215 = scmp.eq.s32.totalorder %s20, 1
    %p216 = por %p214, %p215
    %p218 = scmp.ne.s32.totalorder %s201, %s217
    %p219 = scmp.eq.s32.totalorder %s20, 0
    %p220 = por %p218, %p219
    %p221 = scmp.le.s32.totalorder 1, %s14
    %p222 = scmp.lt.s32.totalorder %s14, 3
    %p223 = pnand %p221, %p222
    %p224 = pneg %p223
    // Predicated region
    $region9: #{inr_forward.3} parent=5 // pred_check
      _
    $region10: #{inr_forward.3} parent=5 // pred_check_branch
      %226 = sbr.rel (%p223) target = $region12
    $region11: #{inr_forward.3} parent=5 // pred_region
      %s227 = ssub.s32 %s14, 1
      // Predicated region
      $region13: #{inr_forward.3} parent=11 // pred_check
        %p228 = pneg %p35
      $region14: #{inr_forward.3} parent=11 // pred_check_branch
        %230 = sbr.rel (%p228) target = $region16
      $region15: #{inr_forward.3} parent=11 // pred_region
        _
      $region16: #{inr_forward.3} parent=11 // pred_fallthru
        _
      // Predicated region
      $region17: #{inr_forward.3} parent=11 // pred_check
        %p231 = pneg %p82
      $region18: #{inr_forward.3} parent=11 // pred_check_branch
        %233 = sbr.rel (%p231) target = $region20
      $region19: #{inr_forward.3} parent=11 // pred_region
        _
      $region20: #{inr_forward.3} parent=11 // pred_fallthru
        _
      // Predicated region
      $region21: #{inr_forward.3} parent=11 // pred_check
        %p234 = pneg %p103
      $region22: #{inr_forward.3} parent=11 // pred_check_branch
        %236 = sbr.rel (%p234) target = $region24
      $region23: #{inr_forward.3} parent=11 // pred_region
        _
      $region24: #{inr_forward.3} parent=11 // pred_fallthru
        _
      // Predicated region
      $region25: #{inr_forward.3} parent=11 // pred_check
        %p237 = pneg %p124
      $region26: #{inr_forward.3} parent=11 // pred_check_branch
        %239 = sbr.rel (%p237) target = $region28
      $region27: #{inr_forward.3} parent=11 // pred_region
        _
      $region28: #{inr_forward.3} parent=11 // pred_fallthru
        _
      // Predicated region
      $region29: #{inr_forward.3} parent=11 // pred_check
        %p240 = pneg %p145
      $region30: #{inr_forward.3} parent=11 // pred_check_branch
        %242 = sbr.rel (%p240) target = $region32
      $region31: #{inr_forward.3} parent=11 // pred_region
        _
      $region32: #{inr_forward.3} parent=11 // pred_fallthru
        _
      // Predicated region
      $region33: #{inr_forward.3} parent=11 // pred_check
        %p243 = pneg %p166
      $region34: #{inr_forward.3} parent=11 // pred_check_branch
        %245 = sbr.rel (%p243) target = $region36
      $region35: #{inr_forward.3} parent=11 // pred_region
        _
      $region36: #{inr_forward.3} parent=11 // pred_fallthru
        _
      // Predicated region
      $region37: #{inr_forward.3} parent=11 // pred_check
        %p246 = pneg %p187
      $region38: #{inr_forward.3} parent=11 // pred_check_branch
        %248 = sbr.rel (%p246) target = $region40
      $region39: #{inr_forward.3} parent=11 // pred_region
        _
      $region40: #{inr_forward.3} parent=11 // pred_fallthru
        _
    $region12: #{inr_forward.3} parent=5 // pred_fallthru
      _
    %p249 = scmp.lt.s32.totalorder %s14, 2
    // Predicated region
    $region41: #{inr_forward.3} parent=5 // pred_check
      %p250 = pneg %p249
    $region42: #{inr_forward.3} parent=5 // pred_check_branch
      %252 = sbr.rel (%p250) target = $region44
    $region43: #{inr_forward.3} parent=5 // pred_region
      // Predicated region
      $region45: #{inr_forward.3} parent=43 // pred_check
        %p253 = pneg %p55
      $region46: #{inr_forward.3} parent=43 // pred_check_branch
        %255 = sbr.rel (%p253) target = $region48
      $region47: #{inr_forward.3} parent=43 // pred_region
        %s256 = smul.u32 16, %s14
        %p257 = scmp.lt.s32.totalorder %s256, 31
        %s258 = scalar_select %p257, %s256, 31
        %s259 = smul.addr %s258, 8
        %s260 = scalar_lea.vmem %s1, %s259
        %s261 = smul.u32 16, %s14
      $region48: #{inr_forward.3} parent=43 // pred_fallthru
        _
    $region44: #{inr_forward.3} parent=5 // pred_fallthru
      _
    %p262 = scmp.le.s32.totalorder 1, %s14
    %p263 = scmp.lt.s32.totalorder %s14, 3
    %p264 = pnand %p262, %p263
    %p265 = pneg %p264
    // Predicated region
    $region49: #{inr_forward.3} parent=5 // pred_check
      _
    $region50: #{inr_forward.3} parent=5 // pred_check_branch
      %267 = sbr.rel (%p264) target = $region52
    $region51: #{inr_forward.3} parent=5 // pred_region
      %s268 = ssub.s32 %s14, 1
      %p269 = pneg %p35
      %p270 = pneg %p32
      %s271 = smul.u32 16, %s19
      %p272 = scmp.lt.s32.totalorder %s271, 31
      %s273 = scalar_select %p272, %s271, 31
      %s274 = smul.addr %s273, 8
      %s275 = scalar_lea.vmem %s1, %s274
      %p276 = pneg %p61
      %p277 = pneg %p58
      %p278 = pneg %p82
      %p279 = pneg %p79
      %p280 = pneg %p103
      %p281 = pneg %p100
      %p282 = pneg %p124
      %p283 = pneg %p121
      %p284 = pneg %p145
      %p285 = pneg %p142
      %p286 = pneg %p166
      %p287 = pneg %p163
      %p288 = pneg %p187
      %p289 = pneg %p184
      %p290 = pneg %p213
      %p291 = pneg %p210
      %s292 = smul.u32 16, %s19
      %p293 = scmp.lt.s32.totalorder %s292, 31
      %s294 = scalar_select %p293, %s292, 31
      %s295 = smul.addr %s294, 8
      %s296 = scalar_lea.vmem %s8, %s295
      %s297 = smul.u32 16, %s19
      %p298 = scmp.lt.s32.totalorder %s297, 31
      %s299 = scalar_select %p298, %s297, 31
      %s300 = smul.addr %s299, 8
      %s301 = scalar_lea.vmem %s1, %s300
      %s302 = smul.u32 16, %s19
      %s303 = smul.u32 16, %s19
      %p304 = scmp.lt.s32.totalorder %s303, 31
      %s305 = scalar_select %p304, %s303, 31
      %s306 = smul.addr %s305, 8
      %s307 = scalar_lea.vmem %s8, %s306
      %s308 = smul.u32 16, %s19
      %v309 = vld [vmem:[%s0] sm:$0x1]
      %v311 = vlaneseq
      %v312 = vshrl.u32 %v311, 7
      %v313 = vsub.s32 0, %v312
      %v314 = vrot.slane %v309, %v313
      %315 = vset.pattern.permute.xlu0 0
      %316 = vperm.xlu0 %315, %v314
      %v317 = vpop.permute.xlu0 %316
      %319 = vset.pattern.permute.xlu0 3
      %320 = vperm.xlu0 %319, %v314
      %v321 = vpop.permute.xlu0 %320
      %v323 = vmul.f32 %v309, 30.0
      %v324 = vld [vmem:[%s301] sm:$0xff]
      %v325 = vld [vmem:[%s301 + $0x8] sm:$0xff]
      %v326 = vld [vmem:[%s301 + $0x10] sm:$0xff]
      %v327 = vld [vmem:[%s301 + $0x18] sm:$0xff]
      %v328 = vld [vmem:[%s301 + $0x20] sm:$0xff]
      %v329 = vld [vmem:[%s301 + $0x28] sm:$0xff]
      %v330 = vld [vmem:[%s301 + $0x30] sm:$0xff]
      %v331 = vld [vmem:[%s301 + $0x38] sm:$0xff]
      %v332 = vld [vmem:[%s301 + $0x40] sm:$0xff]
      %v333 = vld [vmem:[%s301 + $0x48] sm:$0xff]
      %v334 = vld [vmem:[%s301 + $0x50] sm:$0xff]
      %v335 = vld [vmem:[%s301 + $0x58] sm:$0xff]
      %v336 = vld [vmem:[%s301 + $0x60] sm:$0xff]
      %v337 = vld [vmem:[%s301 + $0x68] sm:$0xff]
      %v338 = vld [vmem:[%s301 + $0x70] sm:$0xff]
      %v339 = vld [vmem:[%s301 + $0x78] sm:$0xff]
      %v340 = vld [vmem:[%s2] sm:$0x3]
      %v342 = vlaneseq
      %v343 = vshrl.u32 %v342, 7
      %v344 = vsub.s32 0, %v343
      %v345 = vrot.slane %v323, %v344
      %346 = vset.pattern.permute.xlu0 1
      %347 = vperm.xlu0 %346, %v345
      %v348 = vpop.permute.xlu0 %347
      %v350 = vmul.f32 %v348, %v340
      %v351 = vld [vmem:[%s3] sm:$0x1]
      %352 = vset.pattern.permute.xlu0 1
      %353 = vperm.xlu0 %352, %v323
      %v354 = vpop.permute.xlu0 %353
      %v356 = vlaneseq
      %v357 = vshrl.u32 %v356, 7
      %v358 = vsub.s32 0, %v357
      %v359 = vrot.slane %v354, %v358
      %v360 = vmul.f32 %v359, %v351
      %361 = vset.pattern.permute.xlu0 2
      %362 = vperm.xlu0 %361, %v309
      %v363 = vpop.permute.xlu0 %362
      %v365 = vlaneseq
      %v366 = vshrl.u32 %v365, 7
      %v367 = vsub.s32 0, %v366
      %v368 = vrot.slane %v363, %v367
      %v369 = vadd.f32 %v360, %v368
      %v371 = vlaneseq
      %v372 = vshrl.u32 %v371, 7
      %v373 = vsub.s32 0, %v372
      %v374 = vrot.slane %v369, %v373
      %377 = vset.pattern.permute.xlu0 0
      %378 = vperm.xlu0 %377, %v324
      %v379 = vpop.permute.xlu0 %378
      %382 = vset.pattern.permute.xlu0 0
      %383 = vperm.xlu0 %382, %v325
      %v384 = vpop.permute.xlu0 %383
      %387 = vset.pattern.permute.xlu0 0
      %388 = vperm.xlu0 %387, %v326
      %v389 = vpop.permute.xlu0 %388
      %392 = vset.pattern.permute.xlu0 0
      %393 = vperm.xlu0 %392, %v327
      %v394 = vpop.permute.xlu0 %393
      %397 = vset.pattern.permute.xlu0 0
      %398 = vperm.xlu0 %397, %v328
      %v399 = vpop.permute.xlu0 %398
      %402 = vset.pattern.permute.xlu0 0
      %403 = vperm.xlu0 %402, %v329
      %v404 = vpop.permute.xlu0 %403
      %407 = vset.pattern.permute.xlu0 0
      %408 = vperm.xlu0 %407, %v330
      %v409 = vpop.permute.xlu0 %408
      %412 = vset.pattern.permute.xlu0 0
      %413 = vperm.xlu0 %412, %v331
      %v414 = vpop.permute.xlu0 %413
      %417 = vset.pattern.permute.xlu0 0
      %418 = vperm.xlu0 %417, %v332
      %v419 = vpop.permute.xlu0 %418
      %422 = vset.pattern.permute.xlu0 0
      %423 = vperm.xlu0 %422, %v333
      %v424 = vpop.permute.xlu0 %423
      %427 = vset.pattern.permute.xlu0 0
      %428 = vperm.xlu0 %427, %v334
      %v429 = vpop.permute.xlu0 %428
      %432 = vset.pattern.permute.xlu0 0
      %433 = vperm.xlu0 %432, %v335
      %v434 = vpop.permute.xlu0 %433
      %437 = vset.pattern.permute.xlu0 0
      %438 = vperm.xlu0 %437, %v336
      %v439 = vpop.permute.xlu0 %438
      %442 = vset.pattern.permute.xlu0 0
      %443 = vperm.xlu0 %442, %v337
      %v444 = vpop.permute.xlu0 %443
      %447 = vset.pattern.permute.xlu0 0
      %448 = vperm.xlu0 %447, %v338
      %v449 = vpop.permute.xlu0 %448
      %452 = vset.pattern.permute.xlu0 0
      %453 = vperm.xlu0 %452, %v339
      %v454 = vpop.permute.xlu0 %453
      %v456 = vlaneseq
      %v457 = vshrl.u32 %v456, 7
      %v458 = vsub.s32 0, %v457
      %v459 = vrot.slane %v350, %v458
      %v460 = vmul.f32 %v379, %v459
      %v461 = vmul.f32 %v384, %v459
      %v462 = vmul.f32 %v389, %v459
      %v463 = vmul.f32 %v394, %v459
      %v464 = vmul.f32 %v399, %v459
      %v465 = vmul.f32 %v404, %v459
      %v466 = vmul.f32 %v409, %v459
      %v467 = vmul.f32 %v414, %v459
      %v468 = vmul.f32 %v419, %v459
      %v469 = vmul.f32 %v424, %v459
      %v470 = vmul.f32 %v429, %v459
      %v471 = vmul.f32 %v434, %v459
      %v472 = vmul.f32 %v439, %v459
      %v473 = vmul.f32 %v444, %v459
      %v474 = vmul.f32 %v449, %v459
      %v475 = vmul.f32 %v454, %v459
      %v476 = vadd.f32 %v374, %v460
      %v477 = vadd.f32 %v374, %v461
      %v478 = vadd.f32 %v374, %v462
      %v479 = vadd.f32 %v374, %v463
      %v480 = vadd.f32 %v374, %v464
      %v481 = vadd.f32 %v374, %v465
      %v482 = vadd.f32 %v374, %v466
      %v483 = vadd.f32 %v374, %v467
      %v484 = vadd.f32 %v374, %v468
      %v485 = vadd.f32 %v374, %v469
      %v486 = vadd.f32 %v374, %v470
      %v487 = vadd.f32 %v374, %v471
      %v488 = vadd.f32 %v374, %v472
      %v489 = vadd.f32 %v374, %v473
      %v490 = vadd.f32 %v374, %v474
      %v491 = vadd.f32 %v374, %v475
      %492 = vset.pattern.permute.xlu0 1
      %493 = vperm.xlu0 %492, %v324
      %v494 = vpop.permute.xlu0 %493
      %496 = vset.pattern.permute.xlu0 1
      %497 = vperm.xlu0 %496, %v325
      %v498 = vpop.permute.xlu0 %497
      %500 = vset.pattern.permute.xlu0 1
      %501 = vperm.xlu0 %500, %v326
      %v502 = vpop.permute.xlu0 %501
      %504 = vset.pattern.permute.xlu0 1
      %505 = vperm.xlu0 %504, %v327
      %v506 = vpop.permute.xlu0 %505
      %508 = vset.pattern.permute.xlu0 1
      %509 = vperm.xlu0 %508, %v328
      %v510 = vpop.permute.xlu0 %509
      %512 = vset.pattern.permute.xlu0 1
      %513 = vperm.xlu0 %512, %v329
      %v514 = vpop.permute.xlu0 %513
      %516 = vset.pattern.permute.xlu0 1
      %517 = vperm.xlu0 %516, %v330
      %v518 = vpop.permute.xlu0 %517
      %520 = vset.pattern.permute.xlu0 1
      %521 = vperm.xlu0 %520, %v331
      %v522 = vpop.permute.xlu0 %521
      %524 = vset.pattern.permute.xlu0 1
      %525 = vperm.xlu0 %524, %v332
      %v526 = vpop.permute.xlu0 %525
      %528 = vset.pattern.permute.xlu0 1
      %529 = vperm.xlu0 %528, %v333
      %v530 = vpop.permute.xlu0 %529
      %532 = vset.pattern.permute.xlu0 1
      %533 = vperm.xlu0 %532, %v334
      %v534 = vpop.permute.xlu0 %533
      %536 = vset.pattern.permute.xlu0 1
      %537 = vperm.xlu0 %536, %v335
      %v538 = vpop.permute.xlu0 %537
      %540 = vset.pattern.permute.xlu0 1
      %541 = vperm.xlu0 %540, %v336
      %v542 = vpop.permute.xlu0 %541
      %544 = vset.pattern.permute.xlu0 1
      %545 = vperm.xlu0 %544, %v337
      %v546 = vpop.permute.xlu0 %545
      %548 = vset.pattern.permute.xlu0 1
      %549 = vperm.xlu0 %548, %v338
      %v550 = vpop.permute.xlu0 %549
      %552 = vset.pattern.permute.xlu0 1
      %553 = vperm.xlu0 %552, %v339
      %v554 = vpop.permute.xlu0 %553
      %v556 = vlaneseq
      %v557 = vshrl.u32 %v556, 7
      %v558 = vsub.s32 1, %v557
      %v559 = vrot.slane %v350, %v558
      %v560 = vmul.f32 %v494, %v559
      %v561 = vmul.f32 %v498, %v559
      %v562 = vmul.f32 %v502, %v559
      %v563 = vmul.f32 %v506, %v559
      %v564 = vmul.f32 %v510, %v559
      %v565 = vmul.f32 %v514, %v559
      %v566 = vmul.f32 %v518, %v559
      %v567 = vmul.f32 %v522, %v559
      %v568 = vmul.f32 %v526, %v559
      %v569 = vmul.f32 %v530, %v559
      %v570 = vmul.f32 %v534, %v559
      %v571 = vmul.f32 %v538, %v559
      %v572 = vmul.f32 %v542, %v559
      %v573 = vmul.f32 %v546, %v559
      %v574 = vmul.f32 %v550, %v559
      %v575 = vmul.f32 %v554, %v559
      %v576 = vadd.f32 %v476, %v560
      %v577 = vadd.f32 %v477, %v561
      %v578 = vadd.f32 %v478, %v562
      %v579 = vadd.f32 %v479, %v563
      %v580 = vadd.f32 %v480, %v564
      %v581 = vadd.f32 %v481, %v565
      %v582 = vadd.f32 %v482, %v566
      %v583 = vadd.f32 %v483, %v567
      %v584 = vadd.f32 %v484, %v568
      %v585 = vadd.f32 %v485, %v569
      %v586 = vadd.f32 %v486, %v570
      %v587 = vadd.f32 %v487, %v571
      %v588 = vadd.f32 %v488, %v572
      %v589 = vadd.f32 %v489, %v573
      %v590 = vadd.f32 %v490, %v574
      %v591 = vadd.f32 %v491, %v575
      %v592 = vand.u32 2147483647, %v576
      %vm593 = vcmp.le.f32.partialorder %v592, 0.7853982
      %vm594 = vcmp.lt.s32.totalorder %v576, 0
      %v595 = vand.u32 %v576, 2139095040
      %v596 = vshrl.u32 %v595, 23
      %v597 = vsub.s32 %v596, 127
      %v598 = vand.u32 2147483647, %v576
      %v599 = vand.u32 %v598, 8388607
      %v600 = vor.u32 %v599, 8388608
      %v601 = vsub.s32 0, %v600
      %v602 = vadd.s32 %v597, 1
      %vm603 = vcmp.gt.s32.totalorder %v602, 0
      %v604 = vsel %vm603, %v602, 0
      %v605 = vshrl.u32 %v604, 5
      %v606 = vand.u32 %v604, 31
      %v607 = vsub.s32 32, %v606
      %v608 = vshrl.u32 683565275, %v607
      %v609 = vshll.u32 683565275, %v606
      %v610 = vshrl.u32 2475754826, %v607
      %v611 = vor.u32 %v609, %v610
      %v612 = vshll.u32 2475754826, %v606
      %v613 = vshrl.u32 2131351028, %v607
      %v614 = vor.u32 %v612, %v613
      %v615 = vshll.u32 2131351028, %v606
      %v616 = vshrl.u32 2102212464, %v607
      %v617 = vor.u32 %v615, %v616
      %v618 = vshll.u32 2102212464, %v606
      %v619 = vshrl.u32 920167782, %v607
      %v620 = vor.u32 %v618, %v619
      %v621 = vshll.u32 920167782, %v606
      %v622 = vshrl.u32 1326507024, %v607
      %v623 = vor.u32 %v621, %v622
      %vm624 = vcmp.lt.s32.totalorder %v605, 1
      %vm625 = vcmp.lt.s32.totalorder %v605, 2
      %vm626 = vcmp.lt.s32.totalorder %v605, 3
      %vm627 = vcmp.lt.s32.totalorder %v605, 4
      %v628 = vsel %vm624, %v608, %v611
      %v629 = vsel %vm627, %v617, 2102212464
      %v630 = vsel %vm626, %v614, %v629
      %v631 = vsel %vm625, %v628, %v630
      %v632 = vsel %vm624, %v611, %v614
      %v633 = vsel %vm627, %v620, 920167782
      %v634 = vsel %vm626, %v617, %v633
      %v635 = vsel %vm625, %v632, %v634
      %v636 = vsel %vm624, %v614, %v617
      %v637 = vsel %vm627, %v623, 1326507024
      %v638 = vsel %vm626, %v620, %v637
      %v639 = vsel %vm625, %v636, %v638
      %v640 = vshll.u32 %v600, 8
      %v641 = vmul.u32.u64.compose %v640, %v639
      %v642 = vextract.low.u32 %v641
      %v643 = vextract.high.u32 %v641
      %v644 = vmul.u32.u64.compose %v640, %v635
      %v645 = vextract.low.u32 %v644
      %v646 = vextract.high.u32 %v644
      %v647 = vmul.u32 %v640, %v631
      %v648 = vadd.s32 %v643, %v645
      %vm649 = vc.u32 %v643, %v645
      %v650 = vadd.s32 %v646, 1
      %v651 = vsel %vm649, %v650, %v646
      %v652 = vadd.s32 %v647, %v651
      %v653 = vadd.s32 %v652, 536870912
      %v654 = vshrl.u32 %v653, 30
      %v655 = vshll.u32 %v654, 30
      %v656 = vsub.s32 %v652, %v655
      %vm657 = vcmp.lt.s32.totalorder %v656, 0
      %v658 = vsub.s32 0, %v656
      %v659 = vsel %vm657, %v658, %v656
      %v660 = vclz %v659
      %v661 = vsub.s32 %v660, 2
      %vm662 = vcmp.gt.s32.totalorder 0, %v661
      %v663 = vsel %vm662, 0, %v661
      %v664 = vsub.s32 32, %v663
      %v665 = vshll.u32 %v656, %v663
      %v666 = vshrl.u32 %v648, %v664
      %v667 = vor.u32 %v665, %v666
      %v668 = vsub.s32 4294967266, %v663
      %v669 = vadd.s32 %v668, 127
      %v670 = vshll.u32 %v669, 23
      %v671 = vor.u32 4788187, %v670
      %v672 = vand.u32 2147483647, %v671
      %v674 = vcvt.s32.f32 %v667
      %v675 = vmul.f32 %v674, %v672
      %v676 = vxor.u32 %v675, 2147483648
      %v677 = vsel %vm594, %v676, %v675
      %v678 = vsub.s32 4, %v654
      %v679 = vsel %vm594, %v678, %v654
      %v680 = vsel %vm593, %v576, %v677
      %v681 = vsel %vm593, 0, %v679
      %v682 = vcosq.f32.pop %v680
      %v683 = vsinq.f32.pop %v680
      %vm684 = vweird.f32 %v576
      %v685 = vadd.s32 %v681, 3
      %v686 = vand.u32 %v685, 3
      %vm687 = vcmp.lt.s32.totalorder %v686, 2
      %vm688 = vcmp.eq.s32.totalorder %v686, 0
      %v689 = vxor.u32 %v683, 2147483648
      %v690 = vsel %vm688, %v682, %v689
      %vm691 = vcmp.eq.s32.totalorder %v686, 2
      %v692 = vxor.u32 %v682, 2147483648
      %v693 = vsel %vm691, %v692, %v683
      %v694 = vsel %vm687, %v690, %v693
      %v695 = vsel %vm684, nan, %v694
      %v696 = vand.u32 2147483647, %v577
      %vm697 = vcmp.le.f32.partialorder %v696, 0.7853982
      %vm698 = vcmp.lt.s32.totalorder %v577, 0
      %v699 = vand.u32 %v577, 2139095040
      %v700 = vshrl.u32 %v699, 23
      %v701 = vsub.s32 %v700, 127
      %v702 = vand.u32 2147483647, %v577
      %v703 = vand.u32 %v702, 8388607
      %v704 = vor.u32 %v703, 8388608
      %v705 = vsub.s32 0, %v704
      %v706 = vadd.s32 %v701, 1
      %vm707 = vcmp.gt.s32.totalorder %v706, 0
      %v708 = vsel %vm707, %v706, 0
      %v709 = vshrl.u32 %v708, 5
      %v710 = vand.u32 %v708, 31
      %v711 = vsub.s32 32, %v710
      %v712 = vshrl.u32 683565275, %v711
      %v713 = vshll.u32 683565275, %v710
      %v714 = vshrl.u32 2475754826, %v711
      %v715 = vor.u32 %v713, %v714
      %v716 = vshll.u32 2475754826, %v710
      %v717 = vshrl.u32 2131351028, %v711
      %v718 = vor.u32 %v716, %v717
      %v719 = vshll.u32 2131351028, %v710
      %v720 = vshrl.u32 2102212464, %v711
      %v721 = vor.u32 %v719, %v720
      %v722 = vshll.u32 2102212464, %v710
      %v723 = vshrl.u32 920167782, %v711
      %v724 = vor.u32 %v722, %v723
      %v725 = vshll.u32 920167782, %v710
      %v726 = vshrl.u32 1326507024, %v711
      %v727 = vor.u32 %v725, %v726
      %vm728 = vcmp.lt.s32.totalorder %v709, 1
      %vm729 = vcmp.lt.s32.totalorder %v709, 2
      %vm730 = vcmp.lt.s32.totalorder %v709, 3
      %vm731 = vcmp.lt.s32.totalorder %v709, 4
      %v732 = vsel %vm728, %v712, %v715
      %v733 = vsel %vm731, %v721, 2102212464
      %v734 = vsel %vm730, %v718, %v733
      %v735 = vsel %vm729, %v732, %v734
      %v736 = vsel %vm728, %v715, %v718
      %v737 = vsel %vm731, %v724, 920167782
      %v738 = vsel %vm730, %v721, %v737
      %v739 = vsel %vm729, %v736, %v738
      %v740 = vsel %vm728, %v718, %v721
      %v741 = vsel %vm731, %v727, 1326507024
      %v742 = vsel %vm730, %v724, %v741
      %v743 = vsel %vm729, %v740, %v742
      %v744 = vshll.u32 %v704, 8
      %v745 = vmul.u32.u64.compose %v744, %v743
      %v746 = vextract.low.u32 %v745
      %v747 = vextract.high.u32 %v745
      %v748 = vmul.u32.u64.compose %v744, %v739
      %v749 = vextract.low.u32 %v748
      %v750 = vextract.high.u32 %v748
      %v751 = vmul.u32 %v744, %v735
      %v752 = vadd.s32 %v747, %v749
      %vm753 = vc.u32 %v747, %v749
      %v754 = vadd.s32 %v750, 1
      %v755 = vsel %vm753, %v754, %v750
      %v756 = vadd.s32 %v751, %v755
      %v757 = vadd.s32 %v756, 536870912
      %v758 = vshrl.u32 %v757, 30
      %v759 = vshll.u32 %v758, 30
      %v760 = vsub.s32 %v756, %v759
      %vm761 = vcmp.lt.s32.totalorder %v760, 0
      %v762 = vsub.s32 0, %v760
      %v763 = vsel %vm761, %v762, %v760
      %v764 = vclz %v763
      %v765 = vsub.s32 %v764, 2
      %vm766 = vcmp.gt.s32.totalorder 0, %v765
      %v767 = vsel %vm766, 0, %v765
      %v768 = vsub.s32 32, %v767
      %v769 = vshll.u32 %v760, %v767
      %v770 = vshrl.u32 %v752, %v768
      %v771 = vor.u32 %v769, %v770
      %v772 = vsub.s32 4294967266, %v767
      %v773 = vadd.s32 %v772, 127
      %v774 = vshll.u32 %v773, 23
      %v775 = vor.u32 4788187, %v774
      %v776 = vand.u32 2147483647, %v775
      %v778 = vcvt.s32.f32 %v771
      %v779 = vmul.f32 %v778, %v776
      %v780 = vxor.u32 %v779, 2147483648
      %v781 = vsel %vm698, %v780, %v779
      %v782 = vsub.s32 4, %v758
      %v783 = vsel %vm698, %v782, %v758
      %v784 = vsel %vm697, %v577, %v781
      %v785 = vsel %vm697, 0, %v783
      %v786 = vcosq.f32.pop %v784
      %v787 = vsinq.f32.pop %v784
      %vm788 = vweird.f32 %v577
      %v789 = vadd.s32 %v785, 3
      %v790 = vand.u32 %v789, 3
      %vm791 = vcmp.lt.s32.totalorder %v790, 2
      %vm792 = vcmp.eq.s32.totalorder %v790, 0
      %v793 = vxor.u32 %v787, 2147483648
      %v794 = vsel %vm792, %v786, %v793
      %vm795 = vcmp.eq.s32.totalorder %v790, 2
      %v796 = vxor.u32 %v786, 2147483648
      %v797 = vsel %vm795, %v796, %v787
      %v798 = vsel %vm791, %v794, %v797
      %v799 = vsel %vm788, nan, %v798
      %v800 = vand.u32 2147483647, %v578
      %vm801 = vcmp.le.f32.partialorder %v800, 0.7853982
      %vm802 = vcmp.lt.s32.totalorder %v578, 0
      %v803 = vand.u32 %v578, 2139095040
      %v804 = vshrl.u32 %v803, 23
      %v805 = vsub.s32 %v804, 127
      %v806 = vand.u32 2147483647, %v578
      %v807 = vand.u32 %v806, 8388607
      %v808 = vor.u32 %v807, 8388608
      %v809 = vsub.s32 0, %v808
      %v810 = vadd.s32 %v805, 1
      %vm811 = vcmp.gt.s32.totalorder %v810, 0
      %v812 = vsel %vm811, %v810, 0
      %v813 = vshrl.u32 %v812, 5
      %v814 = vand.u32 %v812, 31
      %v815 = vsub.s32 32, %v814
      %v816 = vshrl.u32 683565275, %v815
      %v817 = vshll.u32 683565275, %v814
      %v818 = vshrl.u32 2475754826, %v815
      %v819 = vor.u32 %v817, %v818
      %v820 = vshll.u32 2475754826, %v814
      %v821 = vshrl.u32 2131351028, %v815
      %v822 = vor.u32 %v820, %v821
      %v823 = vshll.u32 2131351028, %v814
      %v824 = vshrl.u32 2102212464, %v815
      %v825 = vor.u32 %v823, %v824
      %v826 = vshll.u32 2102212464, %v814
      %v827 = vshrl.u32 920167782, %v815
      %v828 = vor.u32 %v826, %v827
      %v829 = vshll.u32 920167782, %v814
      %v830 = vshrl.u32 1326507024, %v815
      %v831 = vor.u32 %v829, %v830
      %vm832 = vcmp.lt.s32.totalorder %v813, 1
      %vm833 = vcmp.lt.s32.totalorder %v813, 2
      %vm834 = vcmp.lt.s32.totalorder %v813, 3
      %vm835 = vcmp.lt.s32.totalorder %v813, 4
      %v836 = vsel %vm832, %v816, %v819
      %v837 = vsel %vm835, %v825, 2102212464
      %v838 = vsel %vm834, %v822, %v837
      %v839 = vsel %vm833, %v836, %v838
      %v840 = vsel %vm832, %v819, %v822
      %v841 = vsel %vm835, %v828, 920167782
      %v842 = vsel %vm834, %v825, %v841
      %v843 = vsel %vm833, %v840, %v842
      %v844 = vsel %vm832, %v822, %v825
      %v845 = vsel %vm835, %v831, 1326507024
      %v846 = vsel %vm834, %v828, %v845
      %v847 = vsel %vm833, %v844, %v846
      %v848 = vshll.u32 %v808, 8
      %v849 = vmul.u32.u64.compose %v848, %v847
      %v850 = vextract.low.u32 %v849
      %v851 = vextract.high.u32 %v849
      %v852 = vmul.u32.u64.compose %v848, %v843
      %v853 = vextract.low.u32 %v852
      %v854 = vextract.high.u32 %v852
      %v855 = vmul.u32 %v848, %v839
      %v856 = vadd.s32 %v851, %v853
      %vm857 = vc.u32 %v851, %v853
      %v858 = vadd.s32 %v854, 1
      %v859 = vsel %vm857, %v858, %v854
      %v860 = vadd.s32 %v855, %v859
      %v861 = vadd.s32 %v860, 536870912
      %v862 = vshrl.u32 %v861, 30
      %v863 = vshll.u32 %v862, 30
      %v864 = vsub.s32 %v860, %v863
      %vm865 = vcmp.lt.s32.totalorder %v864, 0
      %v866 = vsub.s32 0, %v864
      %v867 = vsel %vm865, %v866, %v864
      %v868 = vclz %v867
      %v869 = vsub.s32 %v868, 2
      %vm870 = vcmp.gt.s32.totalorder 0, %v869
      %v871 = vsel %vm870, 0, %v869
      %v872 = vsub.s32 32, %v871
      %v873 = vshll.u32 %v864, %v871
      %v874 = vshrl.u32 %v856, %v872
      %v875 = vor.u32 %v873, %v874
      %v876 = vsub.s32 4294967266, %v871
      %v877 = vadd.s32 %v876, 127
      %v878 = vshll.u32 %v877, 23
      %v879 = vor.u32 4788187, %v878
      %v880 = vand.u32 2147483647, %v879
      %v882 = vcvt.s32.f32 %v875
      %v883 = vmul.f32 %v882, %v880
      %v884 = vxor.u32 %v883, 2147483648
      %v885 = vsel %vm802, %v884, %v883
      %v886 = vsub.s32 4, %v862
      %v887 = vsel %vm802, %v886, %v862
      %v888 = vsel %vm801, %v578, %v885
      %v889 = vsel %vm801, 0, %v887
      %v890 = vcosq.f32.pop %v888
      %v891 = vsinq.f32.pop %v888
      %vm892 = vweird.f32 %v578
      %v893 = vadd.s32 %v889, 3
      %v894 = vand.u32 %v893, 3
      %vm895 = vcmp.lt.s32.totalorder %v894, 2
      %vm896 = vcmp.eq.s32.totalorder %v894, 0
      %v897 = vxor.u32 %v891, 2147483648
      %v898 = vsel %vm896, %v890, %v897
      %vm899 = vcmp.eq.s32.totalorder %v894, 2
      %v900 = vxor.u32 %v890, 2147483648
      %v901 = vsel %vm899, %v900, %v891
      %v902 = vsel %vm895, %v898, %v901
      %v903 = vsel %vm892, nan, %v902
      %v904 = vand.u32 2147483647, %v579
      %vm905 = vcmp.le.f32.partialorder %v904, 0.7853982
      %vm906 = vcmp.lt.s32.totalorder %v579, 0
      %v907 = vand.u32 %v579, 2139095040
      %v908 = vshrl.u32 %v907, 23
      %v909 = vsub.s32 %v908, 127
      %v910 = vand.u32 2147483647, %v579
      %v911 = vand.u32 %v910, 8388607
      %v912 = vor.u32 %v911, 8388608
      %v913 = vsub.s32 0, %v912
      %v914 = vadd.s32 %v909, 1
      %vm915 = vcmp.gt.s32.totalorder %v914, 0
      %v916 = vsel %vm915, %v914, 0
      %v917 = vshrl.u32 %v916, 5
      %v918 = vand.u32 %v916, 31
      %v919 = vsub.s32 32, %v918
      %v920 = vshrl.u32 683565275, %v919
      %v921 = vshll.u32 683565275, %v918
      %v922 = vshrl.u32 2475754826, %v919
      %v923 = vor.u32 %v921, %v922
      %v924 = vshll.u32 2475754826, %v918
      %v925 = vshrl.u32 2131351028, %v919
      %v926 = vor.u32 %v924, %v925
      %v927 = vshll.u32 2131351028, %v918
      %v928 = vshrl.u32 2102212464, %v919
      %v929 = vor.u32 %v927, %v928
      %v930 = vshll.u32 2102212464, %v918
      %v931 = vshrl.u32 920167782, %v919
      %v932 = vor.u32 %v930, %v931
      %v933 = vshll.u32 920167782, %v918
      %v934 = vshrl.u32 1326507024, %v919
      %v935 = vor.u32 %v933, %v934
      %vm936 = vcmp.lt.s32.totalorder %v917, 1
      %vm937 = vcmp.lt.s32.totalorder %v917, 2
      %vm938 = vcmp.lt.s32.totalorder %v917, 3
      %vm939 = vcmp.lt.s32.totalorder %v917, 4
      %v940 = vsel %vm936, %v920, %v923
      %v941 = vsel %vm939, %v929, 2102212464
      %v942 = vsel %vm938, %v926, %v941
      %v943 = vsel %vm937, %v940, %v942
      %v944 = vsel %vm936, %v923, %v926
      %v945 = vsel %vm939, %v932, 920167782
      %v946 = vsel %vm938, %v929, %v945
      %v947 = vsel %vm937, %v944, %v946
      %v948 = vsel %vm936, %v926, %v929
      %v949 = vsel %vm939, %v935, 1326507024
      %v950 = vsel %vm938, %v932, %v949
      %v951 = vsel %vm937, %v948, %v950
      %v952 = vshll.u32 %v912, 8
      %v953 = vmul.u32.u64.compose %v952, %v951
      %v954 = vextract.low.u32 %v953
      %v955 = vextract.high.u32 %v953
      %v956 = vmul.u32.u64.compose %v952, %v947
      %v957 = vextract.low.u32 %v956
      %v958 = vextract.high.u32 %v956
      %v959 = vmul.u32 %v952, %v943
      %v960 = vadd.s32 %v955, %v957
      %vm961 = vc.u32 %v955, %v957
      %v962 = vadd.s32 %v958, 1
      %v963 = vsel %vm961, %v962, %v958
      %v964 = vadd.s32 %v959, %v963
      %v965 = vadd.s32 %v964, 536870912
      %v966 = vshrl.u32 %v965, 30
      %v967 = vshll.u32 %v966, 30
      %v968 = vsub.s32 %v964, %v967
      %vm969 = vcmp.lt.s32.totalorder %v968, 0
      %v970 = vsub.s32 0, %v968
      %v971 = vsel %vm969, %v970, %v968
      %v972 = vclz %v971
      %v973 = vsub.s32 %v972, 2
      %vm974 = vcmp.gt.s32.totalorder 0, %v973
      %v975 = vsel %vm974, 0, %v973
      %v976 = vsub.s32 32, %v975
      %v977 = vshll.u32 %v968, %v975
      %v978 = vshrl.u32 %v960, %v976
      %v979 = vor.u32 %v977, %v978
      %v980 = vsub.s32 4294967266, %v975
      %v981 = vadd.s32 %v980, 127
      %v982 = vshll.u32 %v981, 23
      %v983 = vor.u32 4788187, %v982
      %v984 = vand.u32 2147483647, %v983
      %v986 = vcvt.s32.f32 %v979
      %v987 = vmul.f32 %v986, %v984
      %v988 = vxor.u32 %v987, 2147483648
      %v989 = vsel %vm906, %v988, %v987
      %v990 = vsub.s32 4, %v966
      %v991 = vsel %vm906, %v990, %v966
      %v992 = vsel %vm905, %v579, %v989
      %v993 = vsel %vm905, 0, %v991
      %v994 = vcosq.f32.pop %v992
      %v995 = vsinq.f32.pop %v992
      %vm996 = vweird.f32 %v579
      %v997 = vadd.s32 %v993, 3
      %v998 = vand.u32 %v997, 3
      %vm999 = vcmp.lt.s32.totalorder %v998, 2
      %vm1000 = vcmp.eq.s32.totalorder %v998, 0
      %v1001 = vxor.u32 %v995, 2147483648
      %v1002 = vsel %vm1000, %v994, %v1001
      %vm1003 = vcmp.eq.s32.totalorder %v998, 2
      %v1004 = vxor.u32 %v994, 2147483648
      %v1005 = vsel %vm1003, %v1004, %v995
      %v1006 = vsel %vm999, %v1002, %v1005
      %v1007 = vsel %vm996, nan, %v1006
      %v1008 = vand.u32 2147483647, %v580
      %vm1009 = vcmp.le.f32.partialorder %v1008, 0.7853982
      %vm1010 = vcmp.lt.s32.totalorder %v580, 0
      %v1011 = vand.u32 %v580, 2139095040
      %v1012 = vshrl.u32 %v1011, 23
      %v1013 = vsub.s32 %v1012, 127
      %v1014 = vand.u32 2147483647, %v580
      %v1015 = vand.u32 %v1014, 8388607
      %v1016 = vor.u32 %v1015, 8388608
      %v1017 = vsub.s32 0, %v1016
      %v1018 = vadd.s32 %v1013, 1
      %vm1019 = vcmp.gt.s32.totalorder %v1018, 0
      %v1020 = vsel %vm1019, %v1018, 0
      %v1021 = vshrl.u32 %v1020, 5
      %v1022 = vand.u32 %v1020, 31
      %v1023 = vsub.s32 32, %v1022
      %v1024 = vshrl.u32 683565275, %v1023
      %v1025 = vshll.u32 683565275, %v1022
      %v1026 = vshrl.u32 2475754826, %v1023
      %v1027 = vor.u32 %v1025, %v1026
      %v1028 = vshll.u32 2475754826, %v1022
      %v1029 = vshrl.u32 2131351028, %v1023
      %v1030 = vor.u32 %v1028, %v1029
      %v1031 = vshll.u32 2131351028, %v1022
      %v1032 = vshrl.u32 2102212464, %v1023
      %v1033 = vor.u32 %v1031, %v1032
      %v1034 = vshll.u32 2102212464, %v1022
      %v1035 = vshrl.u32 920167782, %v1023
      %v1036 = vor.u32 %v1034, %v1035
      %v1037 = vshll.u32 920167782, %v1022
      %v1038 = vshrl.u32 1326507024, %v1023
      %v1039 = vor.u32 %v1037, %v1038
      %vm1040 = vcmp.lt.s32.totalorder %v1021, 1
      %vm1041 = vcmp.lt.s32.totalorder %v1021, 2
      %vm1042 = vcmp.lt.s32.totalorder %v1021, 3
      %vm1043 = vcmp.lt.s32.totalorder %v1021, 4
      %v1044 = vsel %vm1040, %v1024, %v1027
      %v1045 = vsel %vm1043, %v1033, 2102212464
      %v1046 = vsel %vm1042, %v1030, %v1045
      %v1047 = vsel %vm1041, %v1044, %v1046
      %v1048 = vsel %vm1040, %v1027, %v1030
      %v1049 = vsel %vm1043, %v1036, 920167782
      %v1050 = vsel %vm1042, %v1033, %v1049
      %v1051 = vsel %vm1041, %v1048, %v1050
      %v1052 = vsel %vm1040, %v1030, %v1033
      %v1053 = vsel %vm1043, %v1039, 1326507024
      %v1054 = vsel %vm1042, %v1036, %v1053
      %v1055 = vsel %vm1041, %v1052, %v1054
      %v1056 = vshll.u32 %v1016, 8
      %v1057 = vmul.u32.u64.compose %v1056, %v1055
      %v1058 = vextract.low.u32 %v1057
      %v1059 = vextract.high.u32 %v1057
      %v1060 = vmul.u32.u64.compose %v1056, %v1051
      %v1061 = vextract.low.u32 %v1060
      %v1062 = vextract.high.u32 %v1060
      %v1063 = vmul.u32 %v1056, %v1047
      %v1064 = vadd.s32 %v1059, %v1061
      %vm1065 = vc.u32 %v1059, %v1061
      %v1066 = vadd.s32 %v1062, 1
      %v1067 = vsel %vm1065, %v1066, %v1062
      %v1068 = vadd.s32 %v1063, %v1067
      %v1069 = vadd.s32 %v1068, 536870912
      %v1070 = vshrl.u32 %v1069, 30
      %v1071 = vshll.u32 %v1070, 30
      %v1072 = vsub.s32 %v1068, %v1071
      %vm1073 = vcmp.lt.s32.totalorder %v1072, 0
      %v1074 = vsub.s32 0, %v1072
      %v1075 = vsel %vm1073, %v1074, %v1072
      %v1076 = vclz %v1075
      %v1077 = vsub.s32 %v1076, 2
      %vm1078 = vcmp.gt.s32.totalorder 0, %v1077
      %v1079 = vsel %vm1078, 0, %v1077
      %v1080 = vsub.s32 32, %v1079
      %v1081 = vshll.u32 %v1072, %v1079
      %v1082 = vshrl.u32 %v1064, %v1080
      %v1083 = vor.u32 %v1081, %v1082
      %v1084 = vsub.s32 4294967266, %v1079
      %v1085 = vadd.s32 %v1084, 127
      %v1086 = vshll.u32 %v1085, 23
      %v1087 = vor.u32 4788187, %v1086
      %v1088 = vand.u32 2147483647, %v1087
      %v1090 = vcvt.s32.f32 %v1083
      %v1091 = vmul.f32 %v1090, %v1088
      %v1092 = vxor.u32 %v1091, 2147483648
      %v1093 = vsel %vm1010, %v1092, %v1091
      %v1094 = vsub.s32 4, %v1070
      %v1095 = vsel %vm1010, %v1094, %v1070
      %v1096 = vsel %vm1009, %v580, %v1093
      %v1097 = vsel %vm1009, 0, %v1095
      %v1098 = vcosq.f32.pop %v1096
      %v1099 = vsinq.f32.pop %v1096
      %vm1100 = vweird.f32 %v580
      %v1101 = vadd.s32 %v1097, 3
      %v1102 = vand.u32 %v1101, 3
      %vm1103 = vcmp.lt.s32.totalorder %v1102, 2
      %vm1104 = vcmp.eq.s32.totalorder %v1102, 0
      %v1105 = vxor.u32 %v1099, 2147483648
      %v1106 = vsel %vm1104, %v1098, %v1105
      %vm1107 = vcmp.eq.s32.totalorder %v1102, 2
      %v1108 = vxor.u32 %v1098, 2147483648
      %v1109 = vsel %vm1107, %v1108, %v1099
      %v1110 = vsel %vm1103, %v1106, %v1109
      %v1111 = vsel %vm1100, nan, %v1110
      %v1112 = vand.u32 2147483647, %v581
      %vm1113 = vcmp.le.f32.partialorder %v1112, 0.7853982
      %vm1114 = vcmp.lt.s32.totalorder %v581, 0
      %v1115 = vand.u32 %v581, 2139095040
      %v1116 = vshrl.u32 %v1115, 23
      %v1117 = vsub.s32 %v1116, 127
      %v1118 = vand.u32 2147483647, %v581
      %v1119 = vand.u32 %v1118, 8388607
      %v1120 = vor.u32 %v1119, 8388608
      %v1121 = vsub.s32 0, %v1120
      %v1122 = vadd.s32 %v1117, 1
      %vm1123 = vcmp.gt.s32.totalorder %v1122, 0
      %v1124 = vsel %vm1123, %v1122, 0
      %v1125 = vshrl.u32 %v1124, 5
      %v1126 = vand.u32 %v1124, 31
      %v1127 = vsub.s32 32, %v1126
      %v1128 = vshrl.u32 683565275, %v1127
      %v1129 = vshll.u32 683565275, %v1126
      %v1130 = vshrl.u32 2475754826, %v1127
      %v1131 = vor.u32 %v1129, %v1130
      %v1132 = vshll.u32 2475754826, %v1126
      %v1133 = vshrl.u32 2131351028, %v1127
      %v1134 = vor.u32 %v1132, %v1133
      %v1135 = vshll.u32 2131351028, %v1126
      %v1136 = vshrl.u32 2102212464, %v1127
      %v1137 = vor.u32 %v1135, %v1136
      %v1138 = vshll.u32 2102212464, %v1126
      %v1139 = vshrl.u32 920167782, %v1127
      %v1140 = vor.u32 %v1138, %v1139
      %v1141 = vshll.u32 920167782, %v1126
      %v1142 = vshrl.u32 1326507024, %v1127
      %v1143 = vor.u32 %v1141, %v1142
      %vm1144 = vcmp.lt.s32.totalorder %v1125, 1
      %vm1145 = vcmp.lt.s32.totalorder %v1125, 2
      %vm1146 = vcmp.lt.s32.totalorder %v1125, 3
      %vm1147 = vcmp.lt.s32.totalorder %v1125, 4
      %v1148 = vsel %vm1144, %v1128, %v1131
      %v1149 = vsel %vm1147, %v1137, 2102212464
      %v1150 = vsel %vm1146, %v1134, %v1149
      %v1151 = vsel %vm1145, %v1148, %v1150
      %v1152 = vsel %vm1144, %v1131, %v1134
      %v1153 = vsel %vm1147, %v1140, 920167782
      %v1154 = vsel %vm1146, %v1137, %v1153
      %v1155 = vsel %vm1145, %v1152, %v1154
      %v1156 = vsel %vm1144, %v1134, %v1137
      %v1157 = vsel %vm1147, %v1143, 1326507024
      %v1158 = vsel %vm1146, %v1140, %v1157
      %v1159 = vsel %vm1145, %v1156, %v1158
      %v1160 = vshll.u32 %v1120, 8
      %v1161 = vmul.u32.u64.compose %v1160, %v1159
      %v1162 = vextract.low.u32 %v1161
      %v1163 = vextract.high.u32 %v1161
      %v1164 = vmul.u32.u64.compose %v1160, %v1155
      %v1165 = vextract.low.u32 %v1164
      %v1166 = vextract.high.u32 %v1164
      %v1167 = vmul.u32 %v1160, %v1151
      %v1168 = vadd.s32 %v1163, %v1165
      %vm1169 = vc.u32 %v1163, %v1165
      %v1170 = vadd.s32 %v1166, 1
      %v1171 = vsel %vm1169, %v1170, %v1166
      %v1172 = vadd.s32 %v1167, %v1171
      %v1173 = vadd.s32 %v1172, 536870912
      %v1174 = vshrl.u32 %v1173, 30
      %v1175 = vshll.u32 %v1174, 30
      %v1176 = vsub.s32 %v1172, %v1175
      %vm1177 = vcmp.lt.s32.totalorder %v1176, 0
      %v1178 = vsub.s32 0, %v1176
      %v1179 = vsel %vm1177, %v1178, %v1176
      %v1180 = vclz %v1179
      %v1181 = vsub.s32 %v1180, 2
      %vm1182 = vcmp.gt.s32.totalorder 0, %v1181
      %v1183 = vsel %vm1182, 0, %v1181
      %v1184 = vsub.s32 32, %v1183
      %v1185 = vshll.u32 %v1176, %v1183
      %v1186 = vshrl.u32 %v1168, %v1184
      %v1187 = vor.u32 %v1185, %v1186
      %v1188 = vsub.s32 4294967266, %v1183
      %v1189 = vadd.s32 %v1188, 127
      %v1190 = vshll.u32 %v1189, 23
      %v1191 = vor.u32 4788187, %v1190
      %v1192 = vand.u32 2147483647, %v1191
      %v1194 = vcvt.s32.f32 %v1187
      %v1195 = vmul.f32 %v1194, %v1192
      %v1196 = vxor.u32 %v1195, 2147483648
      %v1197 = vsel %vm1114, %v1196, %v1195
      %v1198 = vsub.s32 4, %v1174
      %v1199 = vsel %vm1114, %v1198, %v1174
      %v1200 = vsel %vm1113, %v581, %v1197
      %v1201 = vsel %vm1113, 0, %v1199
      %v1202 = vcosq.f32.pop %v1200
      %v1203 = vsinq.f32.pop %v1200
      %vm1204 = vweird.f32 %v581
      %v1205 = vadd.s32 %v1201, 3
      %v1206 = vand.u32 %v1205, 3
      %vm1207 = vcmp.lt.s32.totalorder %v1206, 2
      %vm1208 = vcmp.eq.s32.totalorder %v1206, 0
      %v1209 = vxor.u32 %v1203, 2147483648
      %v1210 = vsel %vm1208, %v1202, %v1209
      %vm1211 = vcmp.eq.s32.totalorder %v1206, 2
      %v1212 = vxor.u32 %v1202, 2147483648
      %v1213 = vsel %vm1211, %v1212, %v1203
      %v1214 = vsel %vm1207, %v1210, %v1213
      %v1215 = vsel %vm1204, nan, %v1214
      %v1216 = vand.u32 2147483647, %v582
      %vm1217 = vcmp.le.f32.partialorder %v1216, 0.7853982
      %vm1218 = vcmp.lt.s32.totalorder %v582, 0
      %v1219 = vand.u32 %v582, 2139095040
      %v1220 = vshrl.u32 %v1219, 23
      %v1221 = vsub.s32 %v1220, 127
      %v1222 = vand.u32 2147483647, %v582
      %v1223 = vand.u32 %v1222, 8388607
      %v1224 = vor.u32 %v1223, 8388608
      %v1225 = vsub.s32 0, %v1224
      %v1226 = vadd.s32 %v1221, 1
      %vm1227 = vcmp.gt.s32.totalorder %v1226, 0
      %v1228 = vsel %vm1227, %v1226, 0
      %v1229 = vshrl.u32 %v1228, 5
      %v1230 = vand.u32 %v1228, 31
      %v1231 = vsub.s32 32, %v1230
      %v1232 = vshrl.u32 683565275, %v1231
      %v1233 = vshll.u32 683565275, %v1230
      %v1234 = vshrl.u32 2475754826, %v1231
      %v1235 = vor.u32 %v1233, %v1234
      %v1236 = vshll.u32 2475754826, %v1230
      %v1237 = vshrl.u32 2131351028, %v1231
      %v1238 = vor.u32 %v1236, %v1237
      %v1239 = vshll.u32 2131351028, %v1230
      %v1240 = vshrl.u32 2102212464, %v1231
      %v1241 = vor.u32 %v1239, %v1240
      %v1242 = vshll.u32 2102212464, %v1230
      %v1243 = vshrl.u32 920167782, %v1231
      %v1244 = vor.u32 %v1242, %v1243
      %v1245 = vshll.u32 920167782, %v1230
      %v1246 = vshrl.u32 1326507024, %v1231
      %v1247 = vor.u32 %v1245, %v1246
      %vm1248 = vcmp.lt.s32.totalorder %v1229, 1
      %vm1249 = vcmp.lt.s32.totalorder %v1229, 2
      %vm1250 = vcmp.lt.s32.totalorder %v1229, 3
      %vm1251 = vcmp.lt.s32.totalorder %v1229, 4
      %v1252 = vsel %vm1248, %v1232, %v1235
      %v1253 = vsel %vm1251, %v1241, 2102212464
      %v1254 = vsel %vm1250, %v1238, %v1253
      %v1255 = vsel %vm1249, %v1252, %v1254
      %v1256 = vsel %vm1248, %v1235, %v1238
      %v1257 = vsel %vm1251, %v1244, 920167782
      %v1258 = vsel %vm1250, %v1241, %v1257
      %v1259 = vsel %vm1249, %v1256, %v1258
      %v1260 = vsel %vm1248, %v1238, %v1241
      %v1261 = vsel %vm1251, %v1247, 1326507024
      %v1262 = vsel %vm1250, %v1244, %v1261
      %v1263 = vsel %vm1249, %v1260, %v1262
      %v1264 = vshll.u32 %v1224, 8
      %v1265 = vmul.u32.u64.compose %v1264, %v1263
      %v1266 = vextract.low.u32 %v1265
      %v1267 = vextract.high.u32 %v1265
      %v1268 = vmul.u32.u64.compose %v1264, %v1259
      %v1269 = vextract.low.u32 %v1268
      %v1270 = vextract.high.u32 %v1268
      %v1271 = vmul.u32 %v1264, %v1255
      %v1272 = vadd.s32 %v1267, %v1269
      %vm1273 = vc.u32 %v1267, %v1269
      %v1274 = vadd.s32 %v1270, 1
      %v1275 = vsel %vm1273, %v1274, %v1270
      %v1276 = vadd.s32 %v1271, %v1275
      %v1277 = vadd.s32 %v1276, 536870912
      %v1278 = vshrl.u32 %v1277, 30
      %v1279 = vshll.u32 %v1278, 30
      %v1280 = vsub.s32 %v1276, %v1279
      %vm1281 = vcmp.lt.s32.totalorder %v1280, 0
      %v1282 = vsub.s32 0, %v1280
      %v1283 = vsel %vm1281, %v1282, %v1280
      %v1284 = vclz %v1283
      %v1285 = vsub.s32 %v1284, 2
      %vm1286 = vcmp.gt.s32.totalorder 0, %v1285
      %v1287 = vsel %vm1286, 0, %v1285
      %v1288 = vsub.s32 32, %v1287
      %v1289 = vshll.u32 %v1280, %v1287
      %v1290 = vshrl.u32 %v1272, %v1288
      %v1291 = vor.u32 %v1289, %v1290
      %v1292 = vsub.s32 4294967266, %v1287
      %v1293 = vadd.s32 %v1292, 127
      %v1294 = vshll.u32 %v1293, 23
      %v1295 = vor.u32 4788187, %v1294
      %v1296 = vand.u32 2147483647, %v1295
      %v1298 = vcvt.s32.f32 %v1291
      %v1299 = vmul.f32 %v1298, %v1296
      %v1300 = vxor.u32 %v1299, 2147483648
      %v1301 = vsel %vm1218, %v1300, %v1299
      %v1302 = vsub.s32 4, %v1278
      %v1303 = vsel %vm1218, %v1302, %v1278
      %v1304 = vsel %vm1217, %v582, %v1301
      %v1305 = vsel %vm1217, 0, %v1303
      %v1306 = vcosq.f32.pop %v1304
      %v1307 = vsinq.f32.pop %v1304
      %vm1308 = vweird.f32 %v582
      %v1309 = vadd.s32 %v1305, 3
      %v1310 = vand.u32 %v1309, 3
      %vm1311 = vcmp.lt.s32.totalorder %v1310, 2
      %vm1312 = vcmp.eq.s32.totalorder %v1310, 0
      %v1313 = vxor.u32 %v1307, 2147483648
      %v1314 = vsel %vm1312, %v1306, %v1313
      %vm1315 = vcmp.eq.s32.totalorder %v1310, 2
      %v1316 = vxor.u32 %v1306, 2147483648
      %v1317 = vsel %vm1315, %v1316, %v1307
      %v1318 = vsel %vm1311, %v1314, %v1317
      %v1319 = vsel %vm1308, nan, %v1318
      %v1320 = vand.u32 2147483647, %v583
      %vm1321 = vcmp.le.f32.partialorder %v1320, 0.7853982
      %vm1322 = vcmp.lt.s32.totalorder %v583, 0
      %v1323 = vand.u32 %v583, 2139095040
      %v1324 = vshrl.u32 %v1323, 23
      %v1325 = vsub.s32 %v1324, 127
      %v1326 = vand.u32 2147483647, %v583
      %v1327 = vand.u32 %v1326, 8388607
      %v1328 = vor.u32 %v1327, 8388608
      %v1329 = vsub.s32 0, %v1328
      %v1330 = vadd.s32 %v1325, 1
      %vm1331 = vcmp.gt.s32.totalorder %v1330, 0
      %v1332 = vsel %vm1331, %v1330, 0
      %v1333 = vshrl.u32 %v1332, 5
      %v1334 = vand.u32 %v1332, 31
      %v1335 = vsub.s32 32, %v1334
      %v1336 = vshrl.u32 683565275, %v1335
      %v1337 = vshll.u32 683565275, %v1334
      %v1338 = vshrl.u32 2475754826, %v1335
      %v1339 = vor.u32 %v1337, %v1338
      %v1340 = vshll.u32 2475754826, %v1334
      %v1341 = vshrl.u32 2131351028, %v1335
      %v1342 = vor.u32 %v1340, %v1341
      %v1343 = vshll.u32 2131351028, %v1334
      %v1344 = vshrl.u32 2102212464, %v1335
      %v1345 = vor.u32 %v1343, %v1344
      %v1346 = vshll.u32 2102212464, %v1334
      %v1347 = vshrl.u32 920167782, %v1335
      %v1348 = vor.u32 %v1346, %v1347
      %v1349 = vshll.u32 920167782, %v1334
      %v1350 = vshrl.u32 1326507024, %v1335
      %v1351 = vor.u32 %v1349, %v1350
      %vm1352 = vcmp.lt.s32.totalorder %v1333, 1
      %vm1353 = vcmp.lt.s32.totalorder %v1333, 2
      %vm1354 = vcmp.lt.s32.totalorder %v1333, 3
      %vm1355 = vcmp.lt.s32.totalorder %v1333, 4
      %v1356 = vsel %vm1352, %v1336, %v1339
      %v1357 = vsel %vm1355, %v1345, 2102212464
      %v1358 = vsel %vm1354, %v1342, %v1357
      %v1359 = vsel %vm1353, %v1356, %v1358
      %v1360 = vsel %vm1352, %v1339, %v1342
      %v1361 = vsel %vm1355, %v1348, 920167782
      %v1362 = vsel %vm1354, %v1345, %v1361
      %v1363 = vsel %vm1353, %v1360, %v1362
      %v1364 = vsel %vm1352, %v1342, %v1345
      %v1365 = vsel %vm1355, %v1351, 1326507024
      %v1366 = vsel %vm1354, %v1348, %v1365
      %v1367 = vsel %vm1353, %v1364, %v1366
      %v1368 = vshll.u32 %v1328, 8
      %v1369 = vmul.u32.u64.compose %v1368, %v1367
      %v1370 = vextract.low.u32 %v1369
      %v1371 = vextract.high.u32 %v1369
      %v1372 = vmul.u32.u64.compose %v1368, %v1363
      %v1373 = vextract.low.u32 %v1372
      %v1374 = vextract.high.u32 %v1372
      %v1375 = vmul.u32 %v1368, %v1359
      %v1376 = vadd.s32 %v1371, %v1373
      %vm1377 = vc.u32 %v1371, %v1373
      %v1378 = vadd.s32 %v1374, 1
      %v1379 = vsel %vm1377, %v1378, %v1374
      %v1380 = vadd.s32 %v1375, %v1379
      %v1381 = vadd.s32 %v1380, 536870912
      %v1382 = vshrl.u32 %v1381, 30
      %v1383 = vshll.u32 %v1382, 30
      %v1384 = vsub.s32 %v1380, %v1383
      %vm1385 = vcmp.lt.s32.totalorder %v1384, 0
      %v1386 = vsub.s32 0, %v1384
      %v1387 = vsel %vm1385, %v1386, %v1384
      %v1388 = vclz %v1387
      %v1389 = vsub.s32 %v1388, 2
      %vm1390 = vcmp.gt.s32.totalorder 0, %v1389
      %v1391 = vsel %vm1390, 0, %v1389
      %v1392 = vsub.s32 32, %v1391
      %v1393 = vshll.u32 %v1384, %v1391
      %v1394 = vshrl.u32 %v1376, %v1392
      %v1395 = vor.u32 %v1393, %v1394
      %v1396 = vsub.s32 4294967266, %v1391
      %v1397 = vadd.s32 %v1396, 127
      %v1398 = vshll.u32 %v1397, 23
      %v1399 = vor.u32 4788187, %v1398
      %v1400 = vand.u32 2147483647, %v1399
      %v1402 = vcvt.s32.f32 %v1395
      %v1403 = vmul.f32 %v1402, %v1400
      %v1404 = vxor.u32 %v1403, 2147483648
      %v1405 = vsel %vm1322, %v1404, %v1403
      %v1406 = vsub.s32 4, %v1382
      %v1407 = vsel %vm1322, %v1406, %v1382
      %v1408 = vsel %vm1321, %v583, %v1405
      %v1409 = vsel %vm1321, 0, %v1407
      %v1410 = vcosq.f32.pop %v1408
      %v1411 = vsinq.f32.pop %v1408
      %vm1412 = vweird.f32 %v583
      %v1413 = vadd.s32 %v1409, 3
      %v1414 = vand.u32 %v1413, 3
      %vm1415 = vcmp.lt.s32.totalorder %v1414, 2
      %vm1416 = vcmp.eq.s32.totalorder %v1414, 0
      %v1417 = vxor.u32 %v1411, 2147483648
      %v1418 = vsel %vm1416, %v1410, %v1417
      %vm1419 = vcmp.eq.s32.totalorder %v1414, 2
      %v1420 = vxor.u32 %v1410, 2147483648
      %v1421 = vsel %vm1419, %v1420, %v1411
      %v1422 = vsel %vm1415, %v1418, %v1421
      %v1423 = vsel %vm1412, nan, %v1422
      %v1424 = vand.u32 2147483647, %v584
      %vm1425 = vcmp.le.f32.partialorder %v1424, 0.7853982
      %vm1426 = vcmp.lt.s32.totalorder %v584, 0
      %v1427 = vand.u32 %v584, 2139095040
      %v1428 = vshrl.u32 %v1427, 23
      %v1429 = vsub.s32 %v1428, 127
      %v1430 = vand.u32 2147483647, %v584
      %v1431 = vand.u32 %v1430, 8388607
      %v1432 = vor.u32 %v1431, 8388608
      %v1433 = vsub.s32 0, %v1432
      %v1434 = vadd.s32 %v1429, 1
      %vm1435 = vcmp.gt.s32.totalorder %v1434, 0
      %v1436 = vsel %vm1435, %v1434, 0
      %v1437 = vshrl.u32 %v1436, 5
      %v1438 = vand.u32 %v1436, 31
      %v1439 = vsub.s32 32, %v1438
      %v1440 = vshrl.u32 683565275, %v1439
      %v1441 = vshll.u32 683565275, %v1438
      %v1442 = vshrl.u32 2475754826, %v1439
      %v1443 = vor.u32 %v1441, %v1442
      %v1444 = vshll.u32 2475754826, %v1438
      %v1445 = vshrl.u32 2131351028, %v1439
      %v1446 = vor.u32 %v1444, %v1445
      %v1447 = vshll.u32 2131351028, %v1438
      %v1448 = vshrl.u32 2102212464, %v1439
      %v1449 = vor.u32 %v1447, %v1448
      %v1450 = vshll.u32 2102212464, %v1438
      %v1451 = vshrl.u32 920167782, %v1439
      %v1452 = vor.u32 %v1450, %v1451
      %v1453 = vshll.u32 920167782, %v1438
      %v1454 = vshrl.u32 1326507024, %v1439
      %v1455 = vor.u32 %v1453, %v1454
      %vm1456 = vcmp.lt.s32.totalorder %v1437, 1
      %vm1457 = vcmp.lt.s32.totalorder %v1437, 2
      %vm1458 = vcmp.lt.s32.totalorder %v1437, 3
      %vm1459 = vcmp.lt.s32.totalorder %v1437, 4
      %v1460 = vsel %vm1456, %v1440, %v1443
      %v1461 = vsel %vm1459, %v1449, 2102212464
      %v1462 = vsel %vm1458, %v1446, %v1461
      %v1463 = vsel %vm1457, %v1460, %v1462
      %v1464 = vsel %vm1456, %v1443, %v1446
      %v1465 = vsel %vm1459, %v1452, 920167782
      %v1466 = vsel %vm1458, %v1449, %v1465
      %v1467 = vsel %vm1457, %v1464, %v1466
      %v1468 = vsel %vm1456, %v1446, %v1449
      %v1469 = vsel %vm1459, %v1455, 1326507024
      %v1470 = vsel %vm1458, %v1452, %v1469
      %v1471 = vsel %vm1457, %v1468, %v1470
      %v1472 = vshll.u32 %v1432, 8
      %v1473 = vmul.u32.u64.compose %v1472, %v1471
      %v1474 = vextract.low.u32 %v1473
      %v1475 = vextract.high.u32 %v1473
      %v1476 = vmul.u32.u64.compose %v1472, %v1467
      %v1477 = vextract.low.u32 %v1476
      %v1478 = vextract.high.u32 %v1476
      %v1479 = vmul.u32 %v1472, %v1463
      %v1480 = vadd.s32 %v1475, %v1477
      %vm1481 = vc.u32 %v1475, %v1477
      %v1482 = vadd.s32 %v1478, 1
      %v1483 = vsel %vm1481, %v1482, %v1478
      %v1484 = vadd.s32 %v1479, %v1483
      %v1485 = vadd.s32 %v1484, 536870912
      %v1486 = vshrl.u32 %v1485, 30
      %v1487 = vshll.u32 %v1486, 30
      %v1488 = vsub.s32 %v1484, %v1487
      %vm1489 = vcmp.lt.s32.totalorder %v1488, 0
      %v1490 = vsub.s32 0, %v1488
      %v1491 = vsel %vm1489, %v1490, %v1488
      %v1492 = vclz %v1491
      %v1493 = vsub.s32 %v1492, 2
      %vm1494 = vcmp.gt.s32.totalorder 0, %v1493
      %v1495 = vsel %vm1494, 0, %v1493
      %v1496 = vsub.s32 32, %v1495
      %v1497 = vshll.u32 %v1488, %v1495
      %v1498 = vshrl.u32 %v1480, %v1496
      %v1499 = vor.u32 %v1497, %v1498
      %v1500 = vsub.s32 4294967266, %v1495
      %v1501 = vadd.s32 %v1500, 127
      %v1502 = vshll.u32 %v1501, 23
      %v1503 = vor.u32 4788187, %v1502
      %v1504 = vand.u32 2147483647, %v1503
      %v1506 = vcvt.s32.f32 %v1499
      %v1507 = vmul.f32 %v1506, %v1504
      %v1508 = vxor.u32 %v1507, 2147483648
      %v1509 = vsel %vm1426, %v1508, %v1507
      %v1510 = vsub.s32 4, %v1486
      %v1511 = vsel %vm1426, %v1510, %v1486
      %v1512 = vsel %vm1425, %v584, %v1509
      %v1513 = vsel %vm1425, 0, %v1511
      %v1514 = vcosq.f32.pop %v1512
      %v1515 = vsinq.f32.pop %v1512
      %vm1516 = vweird.f32 %v584
      %v1517 = vadd.s32 %v1513, 3
      %v1518 = vand.u32 %v1517, 3
      %vm1519 = vcmp.lt.s32.totalorder %v1518, 2
      %vm1520 = vcmp.eq.s32.totalorder %v1518, 0
      %v1521 = vxor.u32 %v1515, 2147483648
      %v1522 = vsel %vm1520, %v1514, %v1521
      %vm1523 = vcmp.eq.s32.totalorder %v1518, 2
      %v1524 = vxor.u32 %v1514, 2147483648
      %v1525 = vsel %vm1523, %v1524, %v1515
      %v1526 = vsel %vm1519, %v1522, %v1525
      %v1527 = vsel %vm1516, nan, %v1526
      %v1528 = vand.u32 2147483647, %v585
      %vm1529 = vcmp.le.f32.partialorder %v1528, 0.7853982
      %vm1530 = vcmp.lt.s32.totalorder %v585, 0
      %v1531 = vand.u32 %v585, 2139095040
      %v1532 = vshrl.u32 %v1531, 23
      %v1533 = vsub.s32 %v1532, 127
      %v1534 = vand.u32 2147483647, %v585
      %v1535 = vand.u32 %v1534, 8388607
      %v1536 = vor.u32 %v1535, 8388608
      %v1537 = vsub.s32 0, %v1536
      %v1538 = vadd.s32 %v1533, 1
      %vm1539 = vcmp.gt.s32.totalorder %v1538, 0
      %v1540 = vsel %vm1539, %v1538, 0
      %v1541 = vshrl.u32 %v1540, 5
      %v1542 = vand.u32 %v1540, 31
      %v1543 = vsub.s32 32, %v1542
      %v1544 = vshrl.u32 683565275, %v1543
      %v1545 = vshll.u32 683565275, %v1542
      %v1546 = vshrl.u32 2475754826, %v1543
      %v1547 = vor.u32 %v1545, %v1546
      %v1548 = vshll.u32 2475754826, %v1542
      %v1549 = vshrl.u32 2131351028, %v1543
      %v1550 = vor.u32 %v1548, %v1549
      %v1551 = vshll.u32 2131351028, %v1542
      %v1552 = vshrl.u32 2102212464, %v1543
      %v1553 = vor.u32 %v1551, %v1552
      %v1554 = vshll.u32 2102212464, %v1542
      %v1555 = vshrl.u32 920167782, %v1543
      %v1556 = vor.u32 %v1554, %v1555
      %v1557 = vshll.u32 920167782, %v1542
      %v1558 = vshrl.u32 1326507024, %v1543
      %v1559 = vor.u32 %v1557, %v1558
      %vm1560 = vcmp.lt.s32.totalorder %v1541, 1
      %vm1561 = vcmp.lt.s32.totalorder %v1541, 2
      %vm1562 = vcmp.lt.s32.totalorder %v1541, 3
      %vm1563 = vcmp.lt.s32.totalorder %v1541, 4
      %v1564 = vsel %vm1560, %v1544, %v1547
      %v1565 = vsel %vm1563, %v1553, 2102212464
      %v1566 = vsel %vm1562, %v1550, %v1565
      %v1567 = vsel %vm1561, %v1564, %v1566
      %v1568 = vsel %vm1560, %v1547, %v1550
      %v1569 = vsel %vm1563, %v1556, 920167782
      %v1570 = vsel %vm1562, %v1553, %v1569
      %v1571 = vsel %vm1561, %v1568, %v1570
      %v1572 = vsel %vm1560, %v1550, %v1553
      %v1573 = vsel %vm1563, %v1559, 1326507024
      %v1574 = vsel %vm1562, %v1556, %v1573
      %v1575 = vsel %vm1561, %v1572, %v1574
      %v1576 = vshll.u32 %v1536, 8
      %v1577 = vmul.u32.u64.compose %v1576, %v1575
      %v1578 = vextract.low.u32 %v1577
      %v1579 = vextract.high.u32 %v1577
      %v1580 = vmul.u32.u64.compose %v1576, %v1571
      %v1581 = vextract.low.u32 %v1580
      %v1582 = vextract.high.u32 %v1580
      %v1583 = vmul.u32 %v1576, %v1567
      %v1584 = vadd.s32 %v1579, %v1581
      %vm1585 = vc.u32 %v1579, %v1581
      %v1586 = vadd.s32 %v1582, 1
      %v1587 = vsel %vm1585, %v1586, %v1582
      %v1588 = vadd.s32 %v1583, %v1587
      %v1589 = vadd.s32 %v1588, 536870912
      %v1590 = vshrl.u32 %v1589, 30
      %v1591 = vshll.u32 %v1590, 30
      %v1592 = vsub.s32 %v1588, %v1591
      %vm1593 = vcmp.lt.s32.totalorder %v1592, 0
      %v1594 = vsub.s32 0, %v1592
      %v1595 = vsel %vm1593, %v1594, %v1592
      %v1596 = vclz %v1595
      %v1597 = vsub.s32 %v1596, 2
      %vm1598 = vcmp.gt.s32.totalorder 0, %v1597
      %v1599 = vsel %vm1598, 0, %v1597
      %v1600 = vsub.s32 32, %v1599
      %v1601 = vshll.u32 %v1592, %v1599
      %v1602 = vshrl.u32 %v1584, %v1600
      %v1603 = vor.u32 %v1601, %v1602
      %v1604 = vsub.s32 4294967266, %v1599
      %v1605 = vadd.s32 %v1604, 127
      %v1606 = vshll.u32 %v1605, 23
      %v1607 = vor.u32 4788187, %v1606
      %v1608 = vand.u32 2147483647, %v1607
      %v1610 = vcvt.s32.f32 %v1603
      %v1611 = vmul.f32 %v1610, %v1608
      %v1612 = vxor.u32 %v1611, 2147483648
      %v1613 = vsel %vm1530, %v1612, %v1611
      %v1614 = vsub.s32 4, %v1590
      %v1615 = vsel %vm1530, %v1614, %v1590
      %v1616 = vsel %vm1529, %v585, %v1613
      %v1617 = vsel %vm1529, 0, %v1615
      %v1618 = vcosq.f32.pop %v1616
      %v1619 = vsinq.f32.pop %v1616
      %vm1620 = vweird.f32 %v585
      %v1621 = vadd.s32 %v1617, 3
      %v1622 = vand.u32 %v1621, 3
      %vm1623 = vcmp.lt.s32.totalorder %v1622, 2
      %vm1624 = vcmp.eq.s32.totalorder %v1622, 0
      %v1625 = vxor.u32 %v1619, 2147483648
      %v1626 = vsel %vm1624, %v1618, %v1625
      %vm1627 = vcmp.eq.s32.totalorder %v1622, 2
      %v1628 = vxor.u32 %v1618, 2147483648
      %v1629 = vsel %vm1627, %v1628, %v1619
      %v1630 = vsel %vm1623, %v1626, %v1629
      %v1631 = vsel %vm1620, nan, %v1630
      %v1632 = vand.u32 2147483647, %v586
      %vm1633 = vcmp.le.f32.partialorder %v1632, 0.7853982
      %vm1634 = vcmp.lt.s32.totalorder %v586, 0
      %v1635 = vand.u32 %v586, 2139095040
      %v1636 = vshrl.u32 %v1635, 23
      %v1637 = vsub.s32 %v1636, 127
      %v1638 = vand.u32 2147483647, %v586
      %v1639 = vand.u32 %v1638, 8388607
      %v1640 = vor.u32 %v1639, 8388608
      %v1641 = vsub.s32 0, %v1640
      %v1642 = vadd.s32 %v1637, 1
      %vm1643 = vcmp.gt.s32.totalorder %v1642, 0
      %v1644 = vsel %vm1643, %v1642, 0
      %v1645 = vshrl.u32 %v1644, 5
      %v1646 = vand.u32 %v1644, 31
      %v1647 = vsub.s32 32, %v1646
      %v1648 = vshrl.u32 683565275, %v1647
      %v1649 = vshll.u32 683565275, %v1646
      %v1650 = vshrl.u32 2475754826, %v1647
      %v1651 = vor.u32 %v1649, %v1650
      %v1652 = vshll.u32 2475754826, %v1646
      %v1653 = vshrl.u32 2131351028, %v1647
      %v1654 = vor.u32 %v1652, %v1653
      %v1655 = vshll.u32 2131351028, %v1646
      %v1656 = vshrl.u32 2102212464, %v1647
      %v1657 = vor.u32 %v1655, %v1656
      %v1658 = vshll.u32 2102212464, %v1646
      %v1659 = vshrl.u32 920167782, %v1647
      %v1660 = vor.u32 %v1658, %v1659
      %v1661 = vshll.u32 920167782, %v1646
      %v1662 = vshrl.u32 1326507024, %v1647
      %v1663 = vor.u32 %v1661, %v1662
      %vm1664 = vcmp.lt.s32.totalorder %v1645, 1
      %vm1665 = vcmp.lt.s32.totalorder %v1645, 2
      %vm1666 = vcmp.lt.s32.totalorder %v1645, 3
      %vm1667 = vcmp.lt.s32.totalorder %v1645, 4
      %v1668 = vsel %vm1664, %v1648, %v1651
      %v1669 = vsel %vm1667, %v1657, 2102212464
      %v1670 = vsel %vm1666, %v1654, %v1669
      %v1671 = vsel %vm1665, %v1668, %v1670
      %v1672 = vsel %vm1664, %v1651, %v1654
      %v1673 = vsel %vm1667, %v1660, 920167782
      %v1674 = vsel %vm1666, %v1657, %v1673
      %v1675 = vsel %vm1665, %v1672, %v1674
      %v1676 = vsel %vm1664, %v1654, %v1657
      %v1677 = vsel %vm1667, %v1663, 1326507024
      %v1678 = vsel %vm1666, %v1660, %v1677
      %v1679 = vsel %vm1665, %v1676, %v1678
      %v1680 = vshll.u32 %v1640, 8
      %v1681 = vmul.u32.u64.compose %v1680, %v1679
      %v1682 = vextract.low.u32 %v1681
      %v1683 = vextract.high.u32 %v1681
      %v1684 = vmul.u32.u64.compose %v1680, %v1675
      %v1685 = vextract.low.u32 %v1684
      %v1686 = vextract.high.u32 %v1684
      %v1687 = vmul.u32 %v1680, %v1671
      %v1688 = vadd.s32 %v1683, %v1685
      %vm1689 = vc.u32 %v1683, %v1685
      %v1690 = vadd.s32 %v1686, 1
      %v1691 = vsel %vm1689, %v1690, %v1686
      %v1692 = vadd.s32 %v1687, %v1691
      %v1693 = vadd.s32 %v1692, 536870912
      %v1694 = vshrl.u32 %v1693, 30
      %v1695 = vshll.u32 %v1694, 30
      %v1696 = vsub.s32 %v1692, %v1695
      %vm1697 = vcmp.lt.s32.totalorder %v1696, 0
      %v1698 = vsub.s32 0, %v1696
      %v1699 = vsel %vm1697, %v1698, %v1696
      %v1700 = vclz %v1699
      %v1701 = vsub.s32 %v1700, 2
      %vm1702 = vcmp.gt.s32.totalorder 0, %v1701
      %v1703 = vsel %vm1702, 0, %v1701
      %v1704 = vsub.s32 32, %v1703
      %v1705 = vshll.u32 %v1696, %v1703
      %v1706 = vshrl.u32 %v1688, %v1704
      %v1707 = vor.u32 %v1705, %v1706
      %v1708 = vsub.s32 4294967266, %v1703
      %v1709 = vadd.s32 %v1708, 127
      %v1710 = vshll.u32 %v1709, 23
      %v1711 = vor.u32 4788187, %v1710
      %v1712 = vand.u32 2147483647, %v1711
      %v1714 = vcvt.s32.f32 %v1707
      %v1715 = vmul.f32 %v1714, %v1712
      %v1716 = vxor.u32 %v1715, 2147483648
      %v1717 = vsel %vm1634, %v1716, %v1715
      %v1718 = vsub.s32 4, %v1694
      %v1719 = vsel %vm1634, %v1718, %v1694
      %v1720 = vsel %vm1633, %v586, %v1717
      %v1721 = vsel %vm1633, 0, %v1719
      %v1722 = vcosq.f32.pop %v1720
      %v1723 = vsinq.f32.pop %v1720
      %vm1724 = vweird.f32 %v586
      %v1725 = vadd.s32 %v1721, 3
      %v1726 = vand.u32 %v1725, 3
      %vm1727 = vcmp.lt.s32.totalorder %v1726, 2
      %vm1728 = vcmp.eq.s32.totalorder %v1726, 0
      %v1729 = vxor.u32 %v1723, 2147483648
      %v1730 = vsel %vm1728, %v1722, %v1729
      %vm1731 = vcmp.eq.s32.totalorder %v1726, 2
      %v1732 = vxor.u32 %v1722, 2147483648
      %v1733 = vsel %vm1731, %v1732, %v1723
      %v1734 = vsel %vm1727, %v1730, %v1733
      %v1735 = vsel %vm1724, nan, %v1734
      %v1736 = vand.u32 2147483647, %v587
      %vm1737 = vcmp.le.f32.partialorder %v1736, 0.7853982
      %vm1738 = vcmp.lt.s32.totalorder %v587, 0
      %v1739 = vand.u32 %v587, 2139095040
      %v1740 = vshrl.u32 %v1739, 23
      %v1741 = vsub.s32 %v1740, 127
      %v1742 = vand.u32 2147483647, %v587
      %v1743 = vand.u32 %v1742, 8388607
      %v1744 = vor.u32 %v1743, 8388608
      %v1745 = vsub.s32 0, %v1744
      %v1746 = vadd.s32 %v1741, 1
      %vm1747 = vcmp.gt.s32.totalorder %v1746, 0
      %v1748 = vsel %vm1747, %v1746, 0
      %v1749 = vshrl.u32 %v1748, 5
      %v1750 = vand.u32 %v1748, 31
      %v1751 = vsub.s32 32, %v1750
      %v1752 = vshrl.u32 683565275, %v1751
      %v1753 = vshll.u32 683565275, %v1750
      %v1754 = vshrl.u32 2475754826, %v1751
      %v1755 = vor.u32 %v1753, %v1754
      %v1756 = vshll.u32 2475754826, %v1750
      %v1757 = vshrl.u32 2131351028, %v1751
      %v1758 = vor.u32 %v1756, %v1757
      %v1759 = vshll.u32 2131351028, %v1750
      %v1760 = vshrl.u32 2102212464, %v1751
      %v1761 = vor.u32 %v1759, %v1760
      %v1762 = vshll.u32 2102212464, %v1750
      %v1763 = vshrl.u32 920167782, %v1751
      %v1764 = vor.u32 %v1762, %v1763
      %v1765 = vshll.u32 920167782, %v1750
      %v1766 = vshrl.u32 1326507024, %v1751
      %v1767 = vor.u32 %v1765, %v1766
      %vm1768 = vcmp.lt.s32.totalorder %v1749, 1
      %vm1769 = vcmp.lt.s32.totalorder %v1749, 2
      %vm1770 = vcmp.lt.s32.totalorder %v1749, 3
      %vm1771 = vcmp.lt.s32.totalorder %v1749, 4
      %v1772 = vsel %vm1768, %v1752, %v1755
      %v1773 = vsel %vm1771, %v1761, 2102212464
      %v1774 = vsel %vm1770, %v1758, %v1773
      %v1775 = vsel %vm1769, %v1772, %v1774
      %v1776 = vsel %vm1768, %v1755, %v1758
      %v1777 = vsel %vm1771, %v1764, 920167782
      %v1778 = vsel %vm1770, %v1761, %v1777
      %v1779 = vsel %vm1769, %v1776, %v1778
      %v1780 = vsel %vm1768, %v1758, %v1761
      %v1781 = vsel %vm1771, %v1767, 1326507024
      %v1782 = vsel %vm1770, %v1764, %v1781
      %v1783 = vsel %vm1769, %v1780, %v1782
      %v1784 = vshll.u32 %v1744, 8
      %v1785 = vmul.u32.u64.compose %v1784, %v1783
      %v1786 = vextract.low.u32 %v1785
      %v1787 = vextract.high.u32 %v1785
      %v1788 = vmul.u32.u64.compose %v1784, %v1779
      %v1789 = vextract.low.u32 %v1788
      %v1790 = vextract.high.u32 %v1788
      %v1791 = vmul.u32 %v1784, %v1775
      %v1792 = vadd.s32 %v1787, %v1789
      %vm1793 = vc.u32 %v1787, %v1789
      %v1794 = vadd.s32 %v1790, 1
      %v1795 = vsel %vm1793, %v1794, %v1790
      %v1796 = vadd.s32 %v1791, %v1795
      %v1797 = vadd.s32 %v1796, 536870912
      %v1798 = vshrl.u32 %v1797, 30
      %v1799 = vshll.u32 %v1798, 30
      %v1800 = vsub.s32 %v1796, %v1799
      %vm1801 = vcmp.lt.s32.totalorder %v1800, 0
      %v1802 = vsub.s32 0, %v1800
      %v1803 = vsel %vm1801, %v1802, %v1800
      %v1804 = vclz %v1803
      %v1805 = vsub.s32 %v1804, 2
      %vm1806 = vcmp.gt.s32.totalorder 0, %v1805
      %v1807 = vsel %vm1806, 0, %v1805
      %v1808 = vsub.s32 32, %v1807
      %v1809 = vshll.u32 %v1800, %v1807
      %v1810 = vshrl.u32 %v1792, %v1808
      %v1811 = vor.u32 %v1809, %v1810
      %v1812 = vsub.s32 4294967266, %v1807
      %v1813 = vadd.s32 %v1812, 127
      %v1814 = vshll.u32 %v1813, 23
      %v1815 = vor.u32 4788187, %v1814
      %v1816 = vand.u32 2147483647, %v1815
      %v1818 = vcvt.s32.f32 %v1811
      %v1819 = vmul.f32 %v1818, %v1816
      %v1820 = vxor.u32 %v1819, 2147483648
      %v1821 = vsel %vm1738, %v1820, %v1819
      %v1822 = vsub.s32 4, %v1798
      %v1823 = vsel %vm1738, %v1822, %v1798
      %v1824 = vsel %vm1737, %v587, %v1821
      %v1825 = vsel %vm1737, 0, %v1823
      %v1826 = vcosq.f32.pop %v1824
      %v1827 = vsinq.f32.pop %v1824
      %vm1828 = vweird.f32 %v587
      %v1829 = vadd.s32 %v1825, 3
      %v1830 = vand.u32 %v1829, 3
      %vm1831 = vcmp.lt.s32.totalorder %v1830, 2
      %vm1832 = vcmp.eq.s32.totalorder %v1830, 0
      %v1833 = vxor.u32 %v1827, 2147483648
      %v1834 = vsel %vm1832, %v1826, %v1833
      %vm1835 = vcmp.eq.s32.totalorder %v1830, 2
      %v1836 = vxor.u32 %v1826, 2147483648
      %v1837 = vsel %vm1835, %v1836, %v1827
      %v1838 = vsel %vm1831, %v1834, %v1837
      %v1839 = vsel %vm1828, nan, %v1838
      %v1840 = vand.u32 2147483647, %v588
      %vm1841 = vcmp.le.f32.partialorder %v1840, 0.7853982
      %vm1842 = vcmp.lt.s32.totalorder %v588, 0
      %v1843 = vand.u32 %v588, 2139095040
      %v1844 = vshrl.u32 %v1843, 23
      %v1845 = vsub.s32 %v1844, 127
      %v1846 = vand.u32 2147483647, %v588
      %v1847 = vand.u32 %v1846, 8388607
      %v1848 = vor.u32 %v1847, 8388608
      %v1849 = vsub.s32 0, %v1848
      %v1850 = vadd.s32 %v1845, 1
      %vm1851 = vcmp.gt.s32.totalorder %v1850, 0
      %v1852 = vsel %vm1851, %v1850, 0
      %v1853 = vshrl.u32 %v1852, 5
      %v1854 = vand.u32 %v1852, 31
      %v1855 = vsub.s32 32, %v1854
      %v1856 = vshrl.u32 683565275, %v1855
      %v1857 = vshll.u32 683565275, %v1854
      %v1858 = vshrl.u32 2475754826, %v1855
      %v1859 = vor.u32 %v1857, %v1858
      %v1860 = vshll.u32 2475754826, %v1854
      %v1861 = vshrl.u32 2131351028, %v1855
      %v1862 = vor.u32 %v1860, %v1861
      %v1863 = vshll.u32 2131351028, %v1854
      %v1864 = vshrl.u32 2102212464, %v1855
      %v1865 = vor.u32 %v1863, %v1864
      %v1866 = vshll.u32 2102212464, %v1854
      %v1867 = vshrl.u32 920167782, %v1855
      %v1868 = vor.u32 %v1866, %v1867
      %v1869 = vshll.u32 920167782, %v1854
      %v1870 = vshrl.u32 1326507024, %v1855
      %v1871 = vor.u32 %v1869, %v1870
      %vm1872 = vcmp.lt.s32.totalorder %v1853, 1
      %vm1873 = vcmp.lt.s32.totalorder %v1853, 2
      %vm1874 = vcmp.lt.s32.totalorder %v1853, 3
      %vm1875 = vcmp.lt.s32.totalorder %v1853, 4
      %v1876 = vsel %vm1872, %v1856, %v1859
      %v1877 = vsel %vm1875, %v1865, 2102212464
      %v1878 = vsel %vm1874, %v1862, %v1877
      %v1879 = vsel %vm1873, %v1876, %v1878
      %v1880 = vsel %vm1872, %v1859, %v1862
      %v1881 = vsel %vm1875, %v1868, 920167782
      %v1882 = vsel %vm1874, %v1865, %v1881
      %v1883 = vsel %vm1873, %v1880, %v1882
      %v1884 = vsel %vm1872, %v1862, %v1865
      %v1885 = vsel %vm1875, %v1871, 1326507024
      %v1886 = vsel %vm1874, %v1868, %v1885
      %v1887 = vsel %vm1873, %v1884, %v1886
      %v1888 = vshll.u32 %v1848, 8
      %v1889 = vmul.u32.u64.compose %v1888, %v1887
      %v1890 = vextract.low.u32 %v1889
      %v1891 = vextract.high.u32 %v1889
      %v1892 = vmul.u32.u64.compose %v1888, %v1883
      %v1893 = vextract.low.u32 %v1892
      %v1894 = vextract.high.u32 %v1892
      %v1895 = vmul.u32 %v1888, %v1879
      %v1896 = vadd.s32 %v1891, %v1893
      %vm1897 = vc.u32 %v1891, %v1893
      %v1898 = vadd.s32 %v1894, 1
      %v1899 = vsel %vm1897, %v1898, %v1894
      %v1900 = vadd.s32 %v1895, %v1899
      %v1901 = vadd.s32 %v1900, 536870912
      %v1902 = vshrl.u32 %v1901, 30
      %v1903 = vshll.u32 %v1902, 30
      %v1904 = vsub.s32 %v1900, %v1903
      %vm1905 = vcmp.lt.s32.totalorder %v1904, 0
      %v1906 = vsub.s32 0, %v1904
      %v1907 = vsel %vm1905, %v1906, %v1904
      %v1908 = vclz %v1907
      %v1909 = vsub.s32 %v1908, 2
      %vm1910 = vcmp.gt.s32.totalorder 0, %v1909
      %v1911 = vsel %vm1910, 0, %v1909
      %v1912 = vsub.s32 32, %v1911
      %v1913 = vshll.u32 %v1904, %v1911
      %v1914 = vshrl.u32 %v1896, %v1912
      %v1915 = vor.u32 %v1913, %v1914
      %v1916 = vsub.s32 4294967266, %v1911
      %v1917 = vadd.s32 %v1916, 127
      %v1918 = vshll.u32 %v1917, 23
      %v1919 = vor.u32 4788187, %v1918
      %v1920 = vand.u32 2147483647, %v1919
      %v1922 = vcvt.s32.f32 %v1915
      %v1923 = vmul.f32 %v1922, %v1920
      %v1924 = vxor.u32 %v1923, 2147483648
      %v1925 = vsel %vm1842, %v1924, %v1923
      %v1926 = vsub.s32 4, %v1902
      %v1927 = vsel %vm1842, %v1926, %v1902
      %v1928 = vsel %vm1841, %v588, %v1925
      %v1929 = vsel %vm1841, 0, %v1927
      %v1930 = vcosq.f32.pop %v1928
      %v1931 = vsinq.f32.pop %v1928
      %vm1932 = vweird.f32 %v588
      %v1933 = vadd.s32 %v1929, 3
      %v1934 = vand.u32 %v1933, 3
      %vm1935 = vcmp.lt.s32.totalorder %v1934, 2
      %vm1936 = vcmp.eq.s32.totalorder %v1934, 0
      %v1937 = vxor.u32 %v1931, 2147483648
      %v1938 = vsel %vm1936, %v1930, %v1937
      %vm1939 = vcmp.eq.s32.totalorder %v1934, 2
      %v1940 = vxor.u32 %v1930, 2147483648
      %v1941 = vsel %vm1939, %v1940, %v1931
      %v1942 = vsel %vm1935, %v1938, %v1941
      %v1943 = vsel %vm1932, nan, %v1942
      %v1944 = vand.u32 2147483647, %v589
      %vm1945 = vcmp.le.f32.partialorder %v1944, 0.7853982
      %vm1946 = vcmp.lt.s32.totalorder %v589, 0
      %v1947 = vand.u32 %v589, 2139095040
      %v1948 = vshrl.u32 %v1947, 23
      %v1949 = vsub.s32 %v1948, 127
      %v1950 = vand.u32 2147483647, %v589
      %v1951 = vand.u32 %v1950, 8388607
      %v1952 = vor.u32 %v1951, 8388608
      %v1953 = vsub.s32 0, %v1952
      %v1954 = vadd.s32 %v1949, 1
      %vm1955 = vcmp.gt.s32.totalorder %v1954, 0
      %v1956 = vsel %vm1955, %v1954, 0
      %v1957 = vshrl.u32 %v1956, 5
      %v1958 = vand.u32 %v1956, 31
      %v1959 = vsub.s32 32, %v1958
      %v1960 = vshrl.u32 683565275, %v1959
      %v1961 = vshll.u32 683565275, %v1958
      %v1962 = vshrl.u32 2475754826, %v1959
      %v1963 = vor.u32 %v1961, %v1962
      %v1964 = vshll.u32 2475754826, %v1958
      %v1965 = vshrl.u32 2131351028, %v1959
      %v1966 = vor.u32 %v1964, %v1965
      %v1967 = vshll.u32 2131351028, %v1958
      %v1968 = vshrl.u32 2102212464, %v1959
      %v1969 = vor.u32 %v1967, %v1968
      %v1970 = vshll.u32 2102212464, %v1958
      %v1971 = vshrl.u32 920167782, %v1959
      %v1972 = vor.u32 %v1970, %v1971
      %v1973 = vshll.u32 920167782, %v1958
      %v1974 = vshrl.u32 1326507024, %v1959
      %v1975 = vor.u32 %v1973, %v1974
      %vm1976 = vcmp.lt.s32.totalorder %v1957, 1
      %vm1977 = vcmp.lt.s32.totalorder %v1957, 2
      %vm1978 = vcmp.lt.s32.totalorder %v1957, 3
      %vm1979 = vcmp.lt.s32.totalorder %v1957, 4
      %v1980 = vsel %vm1976, %v1960, %v1963
      %v1981 = vsel %vm1979, %v1969, 2102212464
      %v1982 = vsel %vm1978, %v1966, %v1981
      %v1983 = vsel %vm1977, %v1980, %v1982
      %v1984 = vsel %vm1976, %v1963, %v1966
      %v1985 = vsel %vm1979, %v1972, 920167782
      %v1986 = vsel %vm1978, %v1969, %v1985
      %v1987 = vsel %vm1977, %v1984, %v1986
      %v1988 = vsel %vm1976, %v1966, %v1969
      %v1989 = vsel %vm1979, %v1975, 1326507024
      %v1990 = vsel %vm1978, %v1972, %v1989
      %v1991 = vsel %vm1977, %v1988, %v1990
      %v1992 = vshll.u32 %v1952, 8
      %v1993 = vmul.u32.u64.compose %v1992, %v1991
      %v1994 = vextract.low.u32 %v1993
      %v1995 = vextract.high.u32 %v1993
      %v1996 = vmul.u32.u64.compose %v1992, %v1987
      %v1997 = vextract.low.u32 %v1996
      %v1998 = vextract.high.u32 %v1996
      %v1999 = vmul.u32 %v1992, %v1983
      %v2000 = vadd.s32 %v1995, %v1997
      %vm2001 = vc.u32 %v1995, %v1997
      %v2002 = vadd.s32 %v1998, 1
      %v2003 = vsel %vm2001, %v2002, %v1998
      %v2004 = vadd.s32 %v1999, %v2003
      %v2005 = vadd.s32 %v2004, 536870912
      %v2006 = vshrl.u32 %v2005, 30
      %v2007 = vshll.u32 %v2006, 30
      %v2008 = vsub.s32 %v2004, %v2007
      %vm2009 = vcmp.lt.s32.totalorder %v2008, 0
      %v2010 = vsub.s32 0, %v2008
      %v2011 = vsel %vm2009, %v2010, %v2008
      %v2012 = vclz %v2011
      %v2013 = vsub.s32 %v2012, 2
      %vm2014 = vcmp.gt.s32.totalorder 0, %v2013
      %v2015 = vsel %vm2014, 0, %v2013
      %v2016 = vsub.s32 32, %v2015
      %v2017 = vshll.u32 %v2008, %v2015
      %v2018 = vshrl.u32 %v2000, %v2016
      %v2019 = vor.u32 %v2017, %v2018
      %v2020 = vsub.s32 4294967266, %v2015
      %v2021 = vadd.s32 %v2020, 127
      %v2022 = vshll.u32 %v2021, 23
      %v2023 = vor.u32 4788187, %v2022
      %v2024 = vand.u32 2147483647, %v2023
      %v2026 = vcvt.s32.f32 %v2019
      %v2027 = vmul.f32 %v2026, %v2024
      %v2028 = vxor.u32 %v2027, 2147483648
      %v2029 = vsel %vm1946, %v2028, %v2027
      %v2030 = vsub.s32 4, %v2006
      %v2031 = vsel %vm1946, %v2030, %v2006
      %v2032 = vsel %vm1945, %v589, %v2029
      %v2033 = vsel %vm1945, 0, %v2031
      %v2034 = vcosq.f32.pop %v2032
      %v2035 = vsinq.f32.pop %v2032
      %vm2036 = vweird.f32 %v589
      %v2037 = vadd.s32 %v2033, 3
      %v2038 = vand.u32 %v2037, 3
      %vm2039 = vcmp.lt.s32.totalorder %v2038, 2
      %vm2040 = vcmp.eq.s32.totalorder %v2038, 0
      %v2041 = vxor.u32 %v2035, 2147483648
      %v2042 = vsel %vm2040, %v2034, %v2041
      %vm2043 = vcmp.eq.s32.totalorder %v2038, 2
      %v2044 = vxor.u32 %v2034, 2147483648
      %v2045 = vsel %vm2043, %v2044, %v2035
      %v2046 = vsel %vm2039, %v2042, %v2045
      %v2047 = vsel %vm2036, nan, %v2046
      %v2048 = vand.u32 2147483647, %v590
      %vm2049 = vcmp.le.f32.partialorder %v2048, 0.7853982
      %vm2050 = vcmp.lt.s32.totalorder %v590, 0
      %v2051 = vand.u32 %v590, 2139095040
      %v2052 = vshrl.u32 %v2051, 23
      %v2053 = vsub.s32 %v2052, 127
      %v2054 = vand.u32 2147483647, %v590
      %v2055 = vand.u32 %v2054, 8388607
      %v2056 = vor.u32 %v2055, 8388608
      %v2057 = vsub.s32 0, %v2056
      %v2058 = vadd.s32 %v2053, 1
      %vm2059 = vcmp.gt.s32.totalorder %v2058, 0
      %v2060 = vsel %vm2059, %v2058, 0
      %v2061 = vshrl.u32 %v2060, 5
      %v2062 = vand.u32 %v2060, 31
      %v2063 = vsub.s32 32, %v2062
      %v2064 = vshrl.u32 683565275, %v2063
      %v2065 = vshll.u32 683565275, %v2062
      %v2066 = vshrl.u32 2475754826, %v2063
      %v2067 = vor.u32 %v2065, %v2066
      %v2068 = vshll.u32 2475754826, %v2062
      %v2069 = vshrl.u32 2131351028, %v2063
      %v2070 = vor.u32 %v2068, %v2069
      %v2071 = vshll.u32 2131351028, %v2062
      %v2072 = vshrl.u32 2102212464, %v2063
      %v2073 = vor.u32 %v2071, %v2072
      %v2074 = vshll.u32 2102212464, %v2062
      %v2075 = vshrl.u32 920167782, %v2063
      %v2076 = vor.u32 %v2074, %v2075
      %v2077 = vshll.u32 920167782, %v2062
      %v2078 = vshrl.u32 1326507024, %v2063
      %v2079 = vor.u32 %v2077, %v2078
      %vm2080 = vcmp.lt.s32.totalorder %v2061, 1
      %vm2081 = vcmp.lt.s32.totalorder %v2061, 2
      %vm2082 = vcmp.lt.s32.totalorder %v2061, 3
      %vm2083 = vcmp.lt.s32.totalorder %v2061, 4
      %v2084 = vsel %vm2080, %v2064, %v2067
      %v2085 = vsel %vm2083, %v2073, 2102212464
      %v2086 = vsel %vm2082, %v2070, %v2085
      %v2087 = vsel %vm2081, %v2084, %v2086
      %v2088 = vsel %vm2080, %v2067, %v2070
      %v2089 = vsel %vm2083, %v2076, 920167782
      %v2090 = vsel %vm2082, %v2073, %v2089
      %v2091 = vsel %vm2081, %v2088, %v2090
      %v2092 = vsel %vm2080, %v2070, %v2073
      %v2093 = vsel %vm2083, %v2079, 1326507024
      %v2094 = vsel %vm2082, %v2076, %v2093
      %v2095 = vsel %vm2081, %v2092, %v2094
      %v2096 = vshll.u32 %v2056, 8
      %v2097 = vmul.u32.u64.compose %v2096, %v2095
      %v2098 = vextract.low.u32 %v2097
      %v2099 = vextract.high.u32 %v2097
      %v2100 = vmul.u32.u64.compose %v2096, %v2091
      %v2101 = vextract.low.u32 %v2100
      %v2102 = vextract.high.u32 %v2100
      %v2103 = vmul.u32 %v2096, %v2087
      %v2104 = vadd.s32 %v2099, %v2101
      %vm2105 = vc.u32 %v2099, %v2101
      %v2106 = vadd.s32 %v2102, 1
      %v2107 = vsel %vm2105, %v2106, %v2102
      %v2108 = vadd.s32 %v2103, %v2107
      %v2109 = vadd.s32 %v2108, 536870912
      %v2110 = vshrl.u32 %v2109, 30
      %v2111 = vshll.u32 %v2110, 30
      %v2112 = vsub.s32 %v2108, %v2111
      %vm2113 = vcmp.lt.s32.totalorder %v2112, 0
      %v2114 = vsub.s32 0, %v2112
      %v2115 = vsel %vm2113, %v2114, %v2112
      %v2116 = vclz %v2115
      %v2117 = vsub.s32 %v2116, 2
      %vm2118 = vcmp.gt.s32.totalorder 0, %v2117
      %v2119 = vsel %vm2118, 0, %v2117
      %v2120 = vsub.s32 32, %v2119
      %v2121 = vshll.u32 %v2112, %v2119
      %v2122 = vshrl.u32 %v2104, %v2120
      %v2123 = vor.u32 %v2121, %v2122
      %v2124 = vsub.s32 4294967266, %v2119
      %v2125 = vadd.s32 %v2124, 127
      %v2126 = vshll.u32 %v2125, 23
      %v2127 = vor.u32 4788187, %v2126
      %v2128 = vand.u32 2147483647, %v2127
      %v2130 = vcvt.s32.f32 %v2123
      %v2131 = vmul.f32 %v2130, %v2128
      %v2132 = vxor.u32 %v2131, 2147483648
      %v2133 = vsel %vm2050, %v2132, %v2131
      %v2134 = vsub.s32 4, %v2110
      %v2135 = vsel %vm2050, %v2134, %v2110
      %v2136 = vsel %vm2049, %v590, %v2133
      %v2137 = vsel %vm2049, 0, %v2135
      %v2138 = vcosq.f32.pop %v2136
      %v2139 = vsinq.f32.pop %v2136
      %vm2140 = vweird.f32 %v590
      %v2141 = vadd.s32 %v2137, 3
      %v2142 = vand.u32 %v2141, 3
      %vm2143 = vcmp.lt.s32.totalorder %v2142, 2
      %vm2144 = vcmp.eq.s32.totalorder %v2142, 0
      %v2145 = vxor.u32 %v2139, 2147483648
      %v2146 = vsel %vm2144, %v2138, %v2145
      %vm2147 = vcmp.eq.s32.totalorder %v2142, 2
      %v2148 = vxor.u32 %v2138, 2147483648
      %v2149 = vsel %vm2147, %v2148, %v2139
      %v2150 = vsel %vm2143, %v2146, %v2149
      %v2151 = vsel %vm2140, nan, %v2150
      %v2152 = vand.u32 2147483647, %v591
      %vm2153 = vcmp.le.f32.partialorder %v2152, 0.7853982
      %vm2154 = vcmp.lt.s32.totalorder %v591, 0
      %v2155 = vand.u32 %v591, 2139095040
      %v2156 = vshrl.u32 %v2155, 23
      %v2157 = vsub.s32 %v2156, 127
      %v2158 = vand.u32 2147483647, %v591
      %v2159 = vand.u32 %v2158, 8388607
      %v2160 = vor.u32 %v2159, 8388608
      %v2161 = vsub.s32 0, %v2160
      %v2162 = vadd.s32 %v2157, 1
      %vm2163 = vcmp.gt.s32.totalorder %v2162, 0
      %v2164 = vsel %vm2163, %v2162, 0
      %v2165 = vshrl.u32 %v2164, 5
      %v2166 = vand.u32 %v2164, 31
      %v2167 = vsub.s32 32, %v2166
      %v2168 = vshrl.u32 683565275, %v2167
      %v2169 = vshll.u32 683565275, %v2166
      %v2170 = vshrl.u32 2475754826, %v2167
      %v2171 = vor.u32 %v2169, %v2170
      %v2172 = vshll.u32 2475754826, %v2166
      %v2173 = vshrl.u32 2131351028, %v2167
      %v2174 = vor.u32 %v2172, %v2173
      %v2175 = vshll.u32 2131351028, %v2166
      %v2176 = vshrl.u32 2102212464, %v2167
      %v2177 = vor.u32 %v2175, %v2176
      %v2178 = vshll.u32 2102212464, %v2166
      %v2179 = vshrl.u32 920167782, %v2167
      %v2180 = vor.u32 %v2178, %v2179
      %v2181 = vshll.u32 920167782, %v2166
      %v2182 = vshrl.u32 1326507024, %v2167
      %v2183 = vor.u32 %v2181, %v2182
      %vm2184 = vcmp.lt.s32.totalorder %v2165, 1
      %vm2185 = vcmp.lt.s32.totalorder %v2165, 2
      %vm2186 = vcmp.lt.s32.totalorder %v2165, 3
      %vm2187 = vcmp.lt.s32.totalorder %v2165, 4
      %v2188 = vsel %vm2184, %v2168, %v2171
      %v2189 = vsel %vm2187, %v2177, 2102212464
      %v2190 = vsel %vm2186, %v2174, %v2189
      %v2191 = vsel %vm2185, %v2188, %v2190
      %v2192 = vsel %vm2184, %v2171, %v2174
      %v2193 = vsel %vm2187, %v2180, 920167782
      %v2194 = vsel %vm2186, %v2177, %v2193
      %v2195 = vsel %vm2185, %v2192, %v2194
      %v2196 = vsel %vm2184, %v2174, %v2177
      %v2197 = vsel %vm2187, %v2183, 1326507024
      %v2198 = vsel %vm2186, %v2180, %v2197
      %v2199 = vsel %vm2185, %v2196, %v2198
      %v2200 = vshll.u32 %v2160, 8
      %v2201 = vmul.u32.u64.compose %v2200, %v2199
      %v2202 = vextract.low.u32 %v2201
      %v2203 = vextract.high.u32 %v2201
      %v2204 = vmul.u32.u64.compose %v2200, %v2195
      %v2205 = vextract.low.u32 %v2204
      %v2206 = vextract.high.u32 %v2204
      %v2207 = vmul.u32 %v2200, %v2191
      %v2208 = vadd.s32 %v2203, %v2205
      %vm2209 = vc.u32 %v2203, %v2205
      %v2210 = vadd.s32 %v2206, 1
      %v2211 = vsel %vm2209, %v2210, %v2206
      %v2212 = vadd.s32 %v2207, %v2211
      %v2213 = vadd.s32 %v2212, 536870912
      %v2214 = vshrl.u32 %v2213, 30
      %v2215 = vshll.u32 %v2214, 30
      %v2216 = vsub.s32 %v2212, %v2215
      %vm2217 = vcmp.lt.s32.totalorder %v2216, 0
      %v2218 = vsub.s32 0, %v2216
      %v2219 = vsel %vm2217, %v2218, %v2216
      %v2220 = vclz %v2219
      %v2221 = vsub.s32 %v2220, 2
      %vm2222 = vcmp.gt.s32.totalorder 0, %v2221
      %v2223 = vsel %vm2222, 0, %v2221
      %v2224 = vsub.s32 32, %v2223
      %v2225 = vshll.u32 %v2216, %v2223
      %v2226 = vshrl.u32 %v2208, %v2224
      %v2227 = vor.u32 %v2225, %v2226
      %v2228 = vsub.s32 4294967266, %v2223
      %v2229 = vadd.s32 %v2228, 127
      %v2230 = vshll.u32 %v2229, 23
      %v2231 = vor.u32 4788187, %v2230
      %v2232 = vand.u32 2147483647, %v2231
      %v2234 = vcvt.s32.f32 %v2227
      %v2235 = vmul.f32 %v2234, %v2232
      %v2236 = vxor.u32 %v2235, 2147483648
      %v2237 = vsel %vm2154, %v2236, %v2235
      %v2238 = vsub.s32 4, %v2214
      %v2239 = vsel %vm2154, %v2238, %v2214
      %v2240 = vsel %vm2153, %v591, %v2237
      %v2241 = vsel %vm2153, 0, %v2239
      %v2242 = vcosq.f32.pop %v2240
      %v2243 = vsinq.f32.pop %v2240
      %vm2244 = vweird.f32 %v591
      %v2245 = vadd.s32 %v2241, 3
      %v2246 = vand.u32 %v2245, 3
      %vm2247 = vcmp.lt.s32.totalorder %v2246, 2
      %vm2248 = vcmp.eq.s32.totalorder %v2246, 0
      %v2249 = vxor.u32 %v2243, 2147483648
      %v2250 = vsel %vm2248, %v2242, %v2249
      %vm2251 = vcmp.eq.s32.totalorder %v2246, 2
      %v2252 = vxor.u32 %v2242, 2147483648
      %v2253 = vsel %vm2251, %v2252, %v2243
      %v2254 = vsel %vm2247, %v2250, %v2253
      %v2255 = vsel %vm2244, nan, %v2254
      %v2256 = vmul.f32 %v317, %v695
      %v2257 = vmul.f32 %v317, %v799
      %v2258 = vmul.f32 %v317, %v903
      %v2259 = vmul.f32 %v317, %v1007
      %v2260 = vmul.f32 %v317, %v1111
      %v2261 = vmul.f32 %v317, %v1215
      %v2262 = vmul.f32 %v317, %v1319
      %v2263 = vmul.f32 %v317, %v1423
      %v2264 = vmul.f32 %v317, %v1527
      %v2265 = vmul.f32 %v317, %v1631
      %v2266 = vmul.f32 %v317, %v1735
      %v2267 = vmul.f32 %v317, %v1839
      %v2268 = vmul.f32 %v317, %v1943
      %v2269 = vmul.f32 %v317, %v2047
      %v2270 = vmul.f32 %v317, %v2151
      %v2271 = vmul.f32 %v317, %v2255
      %v2272 = vadd.f32 %v2256, %v321
      %v2273 = vadd.f32 %v2257, %v321
      %v2274 = vadd.f32 %v2258, %v321
      %v2275 = vadd.f32 %v2259, %v321
      %v2276 = vadd.f32 %v2260, %v321
      %v2277 = vadd.f32 %v2261, %v321
      %v2278 = vadd.f32 %v2262, %v321
      %v2279 = vadd.f32 %v2263, %v321
      %v2280 = vadd.f32 %v2264, %v321
      %v2281 = vadd.f32 %v2265, %v321
      %v2282 = vadd.f32 %v2266, %v321
      %v2283 = vadd.f32 %v2267, %v321
      %v2284 = vadd.f32 %v2268, %v321
      %v2285 = vadd.f32 %v2269, %v321
      %v2286 = vadd.f32 %v2270, %v321
      %v2287 = vadd.f32 %v2271, %v321
      %v2288 = vld [vmem:[%s4] sm:$0xff]
      %v2289 = vld [vmem:[%s4 + $0x8] sm:$0xff]
      %v2290 = vld [vmem:[%s4 + $0x10] sm:$0xff]
      %v2291 = vld [vmem:[%s4 + $0x18] sm:$0xff]
      %v2292 = vmul.f32 %v348, %v2288
      %v2293 = vmul.f32 %v348, %v2289
      %v2294 = vmul.f32 %v348, %v2290
      %v2295 = vmul.f32 %v348, %v2291
      %v2296 = vld [vmem:[%s5] sm:$0x1]
      %v2297 = vmul.f32 %v359, %v2296
      %v2298 = vadd.f32 %v2297, %v368
      %v2300 = vlaneseq
      %v2301 = vshrl.u32 %v2300, 7
      %v2302 = vsub.s32 0, %v2301
      %v2303 = vrot.slane %v2298, %v2302
      %vm2305 = vcmask 261120
      %v2307 = vsel %vm2305, %v2272, 0
      %v2310 = vsel %vm2305, %v2273, 0
      %v2313 = vsel %vm2305, %v2274, 0
      %v2316 = vsel %vm2305, %v2275, 0
      %v2319 = vsel %vm2305, %v2276, 0
      %v2322 = vsel %vm2305, %v2277, 0
      %v2325 = vsel %vm2305, %v2278, 0
      %v2328 = vsel %vm2305, %v2279, 0
      %v2331 = vsel %vm2305, %v2280, 0
      %v2334 = vsel %vm2305, %v2281, 0
      %v2337 = vsel %vm2305, %v2282, 0
      %v2340 = vsel %vm2305, %v2283, 0
      %v2343 = vsel %vm2305, %v2284, 0
      %v2346 = vsel %vm2305, %v2285, 0
      %v2349 = vsel %vm2305, %v2286, 0
      %v2352 = vsel %vm2305, %v2287, 0
      %2354 = vmatprep.subr.mxu0 0.0
      %2355 = vmatpush1.msra.mxu0 %v2292
      %2356 = vmatprep.subr.mxu0 0.0
      %2357 = vmatpush1.msra.mxu0 %v2293
      %2358 = vmatprep.subr.mxu0 0.0
      %2359 = vmatpush1.msra.mxu0 %v2294
      %2360 = vmatprep.subr.mxu0 0.0
      %2361 = vmatpush1.msra.mxu0 %v2295
      %2362 = vmatprep.subr.mxu0 0.0
      %2363 = vmatpush1.msra.mxu0 0.0
      %2364 = vmatprep.subr.mxu0 0.0
      %2365 = vmatpush1.msra.mxu0 0.0
      %2366 = vmatprep.subr.mxu0 0.0
      %2367 = vmatpush1.msra.mxu0 0.0
      %2368 = vmatprep.subr.mxu0 0.0
      %2369 = vmatpush1.msra.mxu0 0.0
      %2370 = vmatprep.subr.mxu0 0.0
      %2371 = vmatpush1.msra.mxu0 0.0
      %2372 = vmatprep.subr.mxu0 0.0
      %2373 = vmatpush1.msra.mxu0 0.0
      %2374 = vmatprep.subr.mxu0 0.0
      %2375 = vmatpush1.msra.mxu0 0.0
      %2376 = vmatprep.subr.mxu0 0.0
      %2377 = vmatpush1.msra.mxu0 0.0
      %2378 = vmatprep.subr.mxu0 0.0
      %2379 = vmatpush1.msra.mxu0 0.0
      %2380 = vmatprep.subr.mxu0 0.0
      %2381 = vmatpush1.msra.mxu0 0.0
      %2382 = vmatprep.subr.mxu0 0.0
      %2383 = vmatpush1.msra.mxu0 0.0
      %2384 = vmatprep.subr.mxu0 0.0
      %2385 = vmatpush1.msra.mxu0 0.0
      %2386 = vmatprep.subr.mxu0 0.0
      %2387 = vmatpush1.msra.mxu0 0.0
      %2388 = vmatprep.subr.mxu0 0.0
      %2389 = vmatpush1.msra.mxu0 0.0
      %2390 = vmatprep.subr.mxu0 0.0
      %2391 = vmatpush1.msra.mxu0 0.0
      %2392 = vmatprep.subr.mxu0 0.0
      %2393 = vmatpush1.msra.mxu0 0.0
      %2394 = vmatprep.subr.mxu0 0.0
      %2395 = vmatpush1.msra.mxu0 0.0
      %2396 = vmatprep.subr.mxu0 0.0
      %2397 = vmatpush1.msra.mxu0 0.0
      %2398 = vmatprep.subr.mxu0 0.0
      %2399 = vmatpush1.msra.mxu0 0.0
      %2400 = vmatprep.subr.mxu0 0.0
      %2401 = vmatpush1.msra.mxu0 0.0
      %2402 = vmatprep.subr.mxu0 0.0
      %2403 = vmatpush1.msra.mxu0 0.0
      %2404 = vmatprep.subr.mxu0 0.0
      %2405 = vmatpush1.msra.mxu0 0.0
      %2406 = vmatprep.subr.mxu0 0.0
      %2407 = vmatpush1.msra.mxu0 0.0
      %2408 = vmatprep.subr.mxu0 0.0
      %2409 = vmatpush1.msra.mxu0 0.0
      %2410 = vmatprep.subr.mxu0 0.0
      %2411 = vmatpush1.msra.mxu0 0.0
      %2412 = vmatprep.subr.mxu0 0.0
      %2413 = vmatpush1.msra.mxu0 0.0
      %2414 = vmatprep.subr.mxu0 0.0
      %2415 = vmatpush1.msra.mxu0 0.0
      %2416 = vmatprep.subr.mxu0 0.0
      %2417 = vmatpush1.msra.mxu0 0.0
      %2418 = vmatprep.mubr.f32.mxu0 0.0
      %2419 = vmatmul.mubr.f32.gmra.mrb[0].mxu0 %v2307
      %v2420 = vpop.f32.mrb[0].mxu0
      %v2421 = vadd.f32 %v2303, %v2420
      %v2422 = vpop.f32.mrb[0].mxu0
      %2423 = vmatprep.mubr.f32.mxu0 0.0
      %2424 = vmatmul.mubr.f32.gmra.mrb[0].mxu0 %v2310
      %v2425 = vpop.f32.mrb[0].mxu0
      %v2426 = vadd.f32 %v2303, %v2425
      %v2427 = vpop.f32.mrb[0].mxu0
      %2428 = vmatprep.mubr.f32.mxu0 0.0
      %2429 = vmatmul.mubr.f32.gmra.mrb[0].mxu0 %v2313
      %v2430 = vpop.f32.mrb[0].mxu0
      %v2431 = vadd.f32 %v2303, %v2430
      %v2432 = vpop.f32.mrb[0].mxu0
      %2433 = vmatprep.mubr.f32.mxu0 0.0
      %2434 = vmatmul.mubr.f32.gmra.mrb[0].mxu0 %v2316
      %v2435 = vpop.f32.mrb[0].mxu0
      %v2436 = vadd.f32 %v2303, %v2435
      %v2437 = vpop.f32.mrb[0].mxu0
      %2438 = vmatprep.mubr.f32.mxu0 0.0
      %2439 = vmatmul.mubr.f32.gmra.mrb[0].mxu0 %v2319
      %v2440 = vpop.f32.mrb[0].mxu0
      %v2441 = vadd.f32 %v2303, %v2440
      %v2442 = vpop.f32.mrb[0].mxu0
      %2443 = vmatprep.mubr.f32.mxu0 0.0
      %2444 = vmatmul.mubr.f32.gmra.mrb[0].mxu0 %v2322
      %v2445 = vpop.f32.mrb[0].mxu0
      %v2446 = vadd.f32 %v2303, %v2445
      %v2447 = vpop.f32.mrb[0].mxu0
      %2448 = vmatprep.mubr.f32.mxu0 0.0
      %2449 = vmatmul.mubr.f32.gmra.mrb[0].mxu0 %v2325
      %v2450 = vpop.f32.mrb[0].mxu0
      %v2451 = vadd.f32 %v2303, %v2450
      %v2452 = vpop.f32.mrb[0].mxu0
      %2453 = vmatprep.mubr.f32.mxu0 0.0
      %2454 = vmatmul.mubr.f32.gmra.mrb[0].mxu0 %v2328
      %v2455 = vpop.f32.mrb[0].mxu0
      %v2456 = vadd.f32 %v2303, %v2455
      %v2457 = vpop.f32.mrb[0].mxu0
      %2458 = vmatprep.mubr.f32.mxu0 0.0
      %2459 = vmatmul.mubr.f32.gmra.mrb[0].mxu0 %v2331
      %v2460 = vpop.f32.mrb[0].mxu0
      %v2461 = vadd.f32 %v2303, %v2460
      %v2462 = vpop.f32.mrb[0].mxu0
      %2463 = vmatprep.mubr.f32.mxu0 0.0
      %2464 = vmatmul.mubr.f32.gmra.mrb[0].mxu0 %v2334
      %v2465 = vpop.f32.mrb[0].mxu0
      %v2466 = vadd.f32 %v2303, %v2465
      %v2467 = vpop.f32.mrb[0].mxu0
      %2468 = vmatprep.mubr.f32.mxu0 0.0
      %2469 = vmatmul.mubr.f32.gmra.mrb[0].mxu0 %v2337
      %v2470 = vpop.f32.mrb[0].mxu0
      %v2471 = vadd.f32 %v2303, %v2470
      %v2472 = vpop.f32.mrb[0].mxu0
      %2473 = vmatprep.mubr.f32.mxu0 0.0
      %2474 = vmatmul.mubr.f32.gmra.mrb[0].mxu0 %v2340
      %v2475 = vpop.f32.mrb[0].mxu0
      %v2476 = vadd.f32 %v2303, %v2475
      %v2477 = vpop.f32.mrb[0].mxu0
      %2478 = vmatprep.mubr.f32.mxu0 0.0
      %2479 = vmatmul.mubr.f32.gmra.mrb[0].mxu0 %v2343
      %v2480 = vpop.f32.mrb[0].mxu0
      %v2481 = vadd.f32 %v2303, %v2480
      %v2482 = vpop.f32.mrb[0].mxu0
      %2483 = vmatprep.mubr.f32.mxu0 0.0
      %2484 = vmatmul.mubr.f32.gmra.mrb[0].mxu0 %v2346
      %v2485 = vpop.f32.mrb[0].mxu0
      %v2486 = vadd.f32 %v2303, %v2485
      %v2487 = vpop.f32.mrb[0].mxu0
      %2488 = vmatprep.mubr.f32.mxu0 0.0
      %2489 = vmatmul.mubr.f32.gmra.mrb[0].mxu0 %v2349
      %v2490 = vpop.f32.mrb[0].mxu0
      %v2491 = vadd.f32 %v2303, %v2490
      %v2492 = vpop.f32.mrb[0].mxu0
      %2493 = vmatprep.mubr.f32.mxu0 0.0
      %2494 = vmatmul.mubr.f32.gmra.mrb[0].mxu0 %v2352
      %v2495 = vpop.f32.mrb[0].mxu0
      %v2496 = vadd.f32 %v2303, %v2495
      %v2497 = vpop.f32.mrb[0].mxu0
      %2498 = vdwg.mxu0
      %v2499 = vand.u32 2147483647, %v2421
      %vm2500 = vcmp.le.f32.partialorder %v2499, 0.7853982
      %vm2501 = vcmp.lt.s32.totalorder %v2421, 0
      %v2502 = vand.u32 %v2421, 2139095040
      %v2503 = vshrl.u32 %v2502, 23
      %v2504 = vsub.s32 %v2503, 127
      %v2505 = vand.u32 2147483647, %v2421
      %v2506 = vand.u32 %v2505, 8388607
      %v2507 = vor.u32 %v2506, 8388608
      %v2508 = vsub.s32 0, %v2507
      %v2509 = vadd.s32 %v2504, 1
      %vm2510 = vcmp.gt.s32.totalorder %v2509, 0
      %v2511 = vsel %vm2510, %v2509, 0
      %v2512 = vshrl.u32 %v2511, 5
      %v2513 = vand.u32 %v2511, 31
      %v2514 = vsub.s32 32, %v2513
      %v2515 = vshrl.u32 683565275, %v2514
      %v2516 = vshll.u32 683565275, %v2513
      %v2517 = vshrl.u32 2475754826, %v2514
      %v2518 = vor.u32 %v2516, %v2517
      %v2519 = vshll.u32 2475754826, %v2513
      %v2520 = vshrl.u32 2131351028, %v2514
      %v2521 = vor.u32 %v2519, %v2520
      %v2522 = vshll.u32 2131351028, %v2513
      %v2523 = vshrl.u32 2102212464, %v2514
      %v2524 = vor.u32 %v2522, %v2523
      %v2525 = vshll.u32 2102212464, %v2513
      %v2526 = vshrl.u32 920167782, %v2514
      %v2527 = vor.u32 %v2525, %v2526
      %v2528 = vshll.u32 920167782, %v2513
      %v2529 = vshrl.u32 1326507024, %v2514
      %v2530 = vor.u32 %v2528, %v2529
      %vm2531 = vcmp.lt.s32.totalorder %v2512, 1
      %vm2532 = vcmp.lt.s32.totalorder %v2512, 2
      %vm2533 = vcmp.lt.s32.totalorder %v2512, 3
      %vm2534 = vcmp.lt.s32.totalorder %v2512, 4
      %v2535 = vsel %vm2531, %v2515, %v2518
      %v2536 = vsel %vm2534, %v2524, 2102212464
      %v2537 = vsel %vm2533, %v2521, %v2536
      %v2538 = vsel %vm2532, %v2535, %v2537
      %v2539 = vsel %vm2531, %v2518, %v2521
      %v2540 = vsel %vm2534, %v2527, 920167782
      %v2541 = vsel %vm2533, %v2524, %v2540
      %v2542 = vsel %vm2532, %v2539, %v2541
      %v2543 = vsel %vm2531, %v2521, %v2524
      %v2544 = vsel %vm2534, %v2530, 1326507024
      %v2545 = vsel %vm2533, %v2527, %v2544
      %v2546 = vsel %vm2532, %v2543, %v2545
      %v2547 = vshll.u32 %v2507, 8
      %v2548 = vmul.u32.u64.compose %v2547, %v2546
      %v2549 = vextract.low.u32 %v2548
      %v2550 = vextract.high.u32 %v2548
      %v2551 = vmul.u32.u64.compose %v2547, %v2542
      %v2552 = vextract.low.u32 %v2551
      %v2553 = vextract.high.u32 %v2551
      %v2554 = vmul.u32 %v2547, %v2538
      %v2555 = vadd.s32 %v2550, %v2552
      %vm2556 = vc.u32 %v2550, %v2552
      %v2557 = vadd.s32 %v2553, 1
      %v2558 = vsel %vm2556, %v2557, %v2553
      %v2559 = vadd.s32 %v2554, %v2558
      %v2560 = vadd.s32 %v2559, 536870912
      %v2561 = vshrl.u32 %v2560, 30
      %v2562 = vshll.u32 %v2561, 30
      %v2563 = vsub.s32 %v2559, %v2562
      %vm2564 = vcmp.lt.s32.totalorder %v2563, 0
      %v2565 = vsub.s32 0, %v2563
      %v2566 = vsel %vm2564, %v2565, %v2563
      %v2567 = vclz %v2566
      %v2568 = vsub.s32 %v2567, 2
      %vm2569 = vcmp.gt.s32.totalorder 0, %v2568
      %v2570 = vsel %vm2569, 0, %v2568
      %v2571 = vsub.s32 32, %v2570
      %v2572 = vshll.u32 %v2563, %v2570
      %v2573 = vshrl.u32 %v2555, %v2571
      %v2574 = vor.u32 %v2572, %v2573
      %v2575 = vsub.s32 4294967266, %v2570
      %v2576 = vadd.s32 %v2575, 127
      %v2577 = vshll.u32 %v2576, 23
      %v2578 = vor.u32 4788187, %v2577
      %v2579 = vand.u32 2147483647, %v2578
      %v2581 = vcvt.s32.f32 %v2574
      %v2582 = vmul.f32 %v2581, %v2579
      %v2583 = vxor.u32 %v2582, 2147483648
      %v2584 = vsel %vm2501, %v2583, %v2582
      %v2585 = vsub.s32 4, %v2561
      %v2586 = vsel %vm2501, %v2585, %v2561
      %v2587 = vsel %vm2500, %v2421, %v2584
      %v2588 = vsel %vm2500, 0, %v2586
      %v2589 = vcosq.f32.pop %v2587
      %v2590 = vsinq.f32.pop %v2587
      %vm2591 = vweird.f32 %v2421
      %v2592 = vadd.s32 %v2588, 3
      %v2593 = vand.u32 %v2592, 3
      %vm2594 = vcmp.lt.s32.totalorder %v2593, 2
      %vm2595 = vcmp.eq.s32.totalorder %v2593, 0
      %v2596 = vxor.u32 %v2590, 2147483648
      %v2597 = vsel %vm2595, %v2589, %v2596
      %vm2598 = vcmp.eq.s32.totalorder %v2593, 2
      %v2599 = vxor.u32 %v2589, 2147483648
      %v2600 = vsel %vm2598, %v2599, %v2590
      %v2601 = vsel %vm2594, %v2597, %v2600
      %v2602 = vsel %vm2591, nan, %v2601
      %v2603 = vand.u32 2147483647, %v2426
      %vm2604 = vcmp.le.f32.partialorder %v2603, 0.7853982
      %vm2605 = vcmp.lt.s32.totalorder %v2426, 0
      %v2606 = vand.u32 %v2426, 2139095040
      %v2607 = vshrl.u32 %v2606, 23
      %v2608 = vsub.s32 %v2607, 127
      %v2609 = vand.u32 2147483647, %v2426
      %v2610 = vand.u32 %v2609, 8388607
      %v2611 = vor.u32 %v2610, 8388608
      %v2612 = vsub.s32 0, %v2611
      %v2613 = vadd.s32 %v2608, 1
      %vm2614 = vcmp.gt.s32.totalorder %v2613, 0
      %v2615 = vsel %vm2614, %v2613, 0
      %v2616 = vshrl.u32 %v2615, 5
      %v2617 = vand.u32 %v2615, 31
      %v2618 = vsub.s32 32, %v2617
      %v2619 = vshrl.u32 683565275, %v2618
      %v2620 = vshll.u32 683565275, %v2617
      %v2621 = vshrl.u32 2475754826, %v2618
      %v2622 = vor.u32 %v2620, %v2621
      %v2623 = vshll.u32 2475754826, %v2617
      %v2624 = vshrl.u32 2131351028, %v2618
      %v2625 = vor.u32 %v2623, %v2624
      %v2626 = vshll.u32 2131351028, %v2617
      %v2627 = vshrl.u32 2102212464, %v2618
      %v2628 = vor.u32 %v2626, %v2627
      %v2629 = vshll.u32 2102212464, %v2617
      %v2630 = vshrl.u32 920167782, %v2618
      %v2631 = vor.u32 %v2629, %v2630
      %v2632 = vshll.u32 920167782, %v2617
      %v2633 = vshrl.u32 1326507024, %v2618
      %v2634 = vor.u32 %v2632, %v2633
      %vm2635 = vcmp.lt.s32.totalorder %v2616, 1
      %vm2636 = vcmp.lt.s32.totalorder %v2616, 2
      %vm2637 = vcmp.lt.s32.totalorder %v2616, 3
      %vm2638 = vcmp.lt.s32.totalorder %v2616, 4
      %v2639 = vsel %vm2635, %v2619, %v2622
      %v2640 = vsel %vm2638, %v2628, 2102212464
      %v2641 = vsel %vm2637, %v2625, %v2640
      %v2642 = vsel %vm2636, %v2639, %v2641
      %v2643 = vsel %vm2635, %v2622, %v2625
      %v2644 = vsel %vm2638, %v2631, 920167782
      %v2645 = vsel %vm2637, %v2628, %v2644
      %v2646 = vsel %vm2636, %v2643, %v2645
      %v2647 = vsel %vm2635, %v2625, %v2628
      %v2648 = vsel %vm2638, %v2634, 1326507024
      %v2649 = vsel %vm2637, %v2631, %v2648
      %v2650 = vsel %vm2636, %v2647, %v2649
      %v2651 = vshll.u32 %v2611, 8
      %v2652 = vmul.u32.u64.compose %v2651, %v2650
      %v2653 = vextract.low.u32 %v2652
      %v2654 = vextract.high.u32 %v2652
      %v2655 = vmul.u32.u64.compose %v2651, %v2646
      %v2656 = vextract.low.u32 %v2655
      %v2657 = vextract.high.u32 %v2655
      %v2658 = vmul.u32 %v2651, %v2642
      %v2659 = vadd.s32 %v2654, %v2656
      %vm2660 = vc.u32 %v2654, %v2656
      %v2661 = vadd.s32 %v2657, 1
      %v2662 = vsel %vm2660, %v2661, %v2657
      %v2663 = vadd.s32 %v2658, %v2662
      %v2664 = vadd.s32 %v2663, 536870912
      %v2665 = vshrl.u32 %v2664, 30
      %v2666 = vshll.u32 %v2665, 30
      %v2667 = vsub.s32 %v2663, %v2666
      %vm2668 = vcmp.lt.s32.totalorder %v2667, 0
      %v2669 = vsub.s32 0, %v2667
      %v2670 = vsel %vm2668, %v2669, %v2667
      %v2671 = vclz %v2670
      %v2672 = vsub.s32 %v2671, 2
      %vm2673 = vcmp.gt.s32.totalorder 0, %v2672
      %v2674 = vsel %vm2673, 0, %v2672
      %v2675 = vsub.s32 32, %v2674
      %v2676 = vshll.u32 %v2667, %v2674
      %v2677 = vshrl.u32 %v2659, %v2675
      %v2678 = vor.u32 %v2676, %v2677
      %v2679 = vsub.s32 4294967266, %v2674
      %v2680 = vadd.s32 %v2679, 127
      %v2681 = vshll.u32 %v2680, 23
      %v2682 = vor.u32 4788187, %v2681
      %v2683 = vand.u32 2147483647, %v2682
      %v2685 = vcvt.s32.f32 %v2678
      %v2686 = vmul.f32 %v2685, %v2683
      %v2687 = vxor.u32 %v2686, 2147483648
      %v2688 = vsel %vm2605, %v2687, %v2686
      %v2689 = vsub.s32 4, %v2665
      %v2690 = vsel %vm2605, %v2689, %v2665
      %v2691 = vsel %vm2604, %v2426, %v2688
      %v2692 = vsel %vm2604, 0, %v2690
      %v2693 = vcosq.f32.pop %v2691
      %v2694 = vsinq.f32.pop %v2691
      %vm2695 = vweird.f32 %v2426
      %v2696 = vadd.s32 %v2692, 3
      %v2697 = vand.u32 %v2696, 3
      %vm2698 = vcmp.lt.s32.totalorder %v2697, 2
      %vm2699 = vcmp.eq.s32.totalorder %v2697, 0
      %v2700 = vxor.u32 %v2694, 2147483648
      %v2701 = vsel %vm2699, %v2693, %v2700
      %vm2702 = vcmp.eq.s32.totalorder %v2697, 2
      %v2703 = vxor.u32 %v2693, 2147483648
      %v2704 = vsel %vm2702, %v2703, %v2694
      %v2705 = vsel %vm2698, %v2701, %v2704
      %v2706 = vsel %vm2695, nan, %v2705
      %v2707 = vand.u32 2147483647, %v2431
      %vm2708 = vcmp.le.f32.partialorder %v2707, 0.7853982
      %vm2709 = vcmp.lt.s32.totalorder %v2431, 0
      %v2710 = vand.u32 %v2431, 2139095040
      %v2711 = vshrl.u32 %v2710, 23
      %v2712 = vsub.s32 %v2711, 127
      %v2713 = vand.u32 2147483647, %v2431
      %v2714 = vand.u32 %v2713, 8388607
      %v2715 = vor.u32 %v2714, 8388608
      %v2716 = vsub.s32 0, %v2715
      %v2717 = vadd.s32 %v2712, 1
      %vm2718 = vcmp.gt.s32.totalorder %v2717, 0
      %v2719 = vsel %vm2718, %v2717, 0
      %v2720 = vshrl.u32 %v2719, 5
      %v2721 = vand.u32 %v2719, 31
      %v2722 = vsub.s32 32, %v2721
      %v2723 = vshrl.u32 683565275, %v2722
      %v2724 = vshll.u32 683565275, %v2721
      %v2725 = vshrl.u32 2475754826, %v2722
      %v2726 = vor.u32 %v2724, %v2725
      %v2727 = vshll.u32 2475754826, %v2721
      %v2728 = vshrl.u32 2131351028, %v2722
      %v2729 = vor.u32 %v2727, %v2728
      %v2730 = vshll.u32 2131351028, %v2721
      %v2731 = vshrl.u32 2102212464, %v2722
      %v2732 = vor.u32 %v2730, %v2731
      %v2733 = vshll.u32 2102212464, %v2721
      %v2734 = vshrl.u32 920167782, %v2722
      %v2735 = vor.u32 %v2733, %v2734
      %v2736 = vshll.u32 920167782, %v2721
      %v2737 = vshrl.u32 1326507024, %v2722
      %v2738 = vor.u32 %v2736, %v2737
      %vm2739 = vcmp.lt.s32.totalorder %v2720, 1
      %vm2740 = vcmp.lt.s32.totalorder %v2720, 2
      %vm2741 = vcmp.lt.s32.totalorder %v2720, 3
      %vm2742 = vcmp.lt.s32.totalorder %v2720, 4
      %v2743 = vsel %vm2739, %v2723, %v2726
      %v2744 = vsel %vm2742, %v2732, 2102212464
      %v2745 = vsel %vm2741, %v2729, %v2744
      %v2746 = vsel %vm2740, %v2743, %v2745
      %v2747 = vsel %vm2739, %v2726, %v2729
      %v2748 = vsel %vm2742, %v2735, 920167782
      %v2749 = vsel %vm2741, %v2732, %v2748
      %v2750 = vsel %vm2740, %v2747, %v2749
      %v2751 = vsel %vm2739, %v2729, %v2732
      %v2752 = vsel %vm2742, %v2738, 1326507024
      %v2753 = vsel %vm2741, %v2735, %v2752
      %v2754 = vsel %vm2740, %v2751, %v2753
      %v2755 = vshll.u32 %v2715, 8
      %v2756 = vmul.u32.u64.compose %v2755, %v2754
      %v2757 = vextract.low.u32 %v2756
      %v2758 = vextract.high.u32 %v2756
      %v2759 = vmul.u32.u64.compose %v2755, %v2750
      %v2760 = vextract.low.u32 %v2759
      %v2761 = vextract.high.u32 %v2759
      %v2762 = vmul.u32 %v2755, %v2746
      %v2763 = vadd.s32 %v2758, %v2760
      %vm2764 = vc.u32 %v2758, %v2760
      %v2765 = vadd.s32 %v2761, 1
      %v2766 = vsel %vm2764, %v2765, %v2761
      %v2767 = vadd.s32 %v2762, %v2766
      %v2768 = vadd.s32 %v2767, 536870912
      %v2769 = vshrl.u32 %v2768, 30
      %v2770 = vshll.u32 %v2769, 30
      %v2771 = vsub.s32 %v2767, %v2770
      %vm2772 = vcmp.lt.s32.totalorder %v2771, 0
      %v2773 = vsub.s32 0, %v2771
      %v2774 = vsel %vm2772, %v2773, %v2771
      %v2775 = vclz %v2774
      %v2776 = vsub.s32 %v2775, 2
      %vm2777 = vcmp.gt.s32.totalorder 0, %v2776
      %v2778 = vsel %vm2777, 0, %v2776
      %v2779 = vsub.s32 32, %v2778
      %v2780 = vshll.u32 %v2771, %v2778
      %v2781 = vshrl.u32 %v2763, %v2779
      %v2782 = vor.u32 %v2780, %v2781
      %v2783 = vsub.s32 4294967266, %v2778
      %v2784 = vadd.s32 %v2783, 127
      %v2785 = vshll.u32 %v2784, 23
      %v2786 = vor.u32 4788187, %v2785
      %v2787 = vand.u32 2147483647, %v2786
      %v2789 = vcvt.s32.f32 %v2782
      %v2790 = vmul.f32 %v2789, %v2787
      %v2791 = vxor.u32 %v2790, 2147483648
      %v2792 = vsel %vm2709, %v2791, %v2790
      %v2793 = vsub.s32 4, %v2769
      %v2794 = vsel %vm2709, %v2793, %v2769
      %v2795 = vsel %vm2708, %v2431, %v2792
      %v2796 = vsel %vm2708, 0, %v2794
      %v2797 = vcosq.f32.pop %v2795
      %v2798 = vsinq.f32.pop %v2795
      %vm2799 = vweird.f32 %v2431
      %v2800 = vadd.s32 %v2796, 3
      %v2801 = vand.u32 %v2800, 3
      %vm2802 = vcmp.lt.s32.totalorder %v2801, 2
      %vm2803 = vcmp.eq.s32.totalorder %v2801, 0
      %v2804 = vxor.u32 %v2798, 2147483648
      %v2805 = vsel %vm2803, %v2797, %v2804
      %vm2806 = vcmp.eq.s32.totalorder %v2801, 2
      %v2807 = vxor.u32 %v2797, 2147483648
      %v2808 = vsel %vm2806, %v2807, %v2798
      %v2809 = vsel %vm2802, %v2805, %v2808
      %v2810 = vsel %vm2799, nan, %v2809
      %v2811 = vand.u32 2147483647, %v2436
      %vm2812 = vcmp.le.f32.partialorder %v2811, 0.7853982
      %vm2813 = vcmp.lt.s32.totalorder %v2436, 0
      %v2814 = vand.u32 %v2436, 2139095040
      %v2815 = vshrl.u32 %v2814, 23
      %v2816 = vsub.s32 %v2815, 127
      %v2817 = vand.u32 2147483647, %v2436
      %v2818 = vand.u32 %v2817, 8388607
      %v2819 = vor.u32 %v2818, 8388608
      %v2820 = vsub.s32 0, %v2819
      %v2821 = vadd.s32 %v2816, 1
      %vm2822 = vcmp.gt.s32.totalorder %v2821, 0
      %v2823 = vsel %vm2822, %v2821, 0
      %v2824 = vshrl.u32 %v2823, 5
      %v2825 = vand.u32 %v2823, 31
      %v2826 = vsub.s32 32, %v2825
      %v2827 = vshrl.u32 683565275, %v2826
      %v2828 = vshll.u32 683565275, %v2825
      %v2829 = vshrl.u32 2475754826, %v2826
      %v2830 = vor.u32 %v2828, %v2829
      %v2831 = vshll.u32 2475754826, %v2825
      %v2832 = vshrl.u32 2131351028, %v2826
      %v2833 = vor.u32 %v2831, %v2832
      %v2834 = vshll.u32 2131351028, %v2825
      %v2835 = vshrl.u32 2102212464, %v2826
      %v2836 = vor.u32 %v2834, %v2835
      %v2837 = vshll.u32 2102212464, %v2825
      %v2838 = vshrl.u32 920167782, %v2826
      %v2839 = vor.u32 %v2837, %v2838
      %v2840 = vshll.u32 920167782, %v2825
      %v2841 = vshrl.u32 1326507024, %v2826
      %v2842 = vor.u32 %v2840, %v2841
      %vm2843 = vcmp.lt.s32.totalorder %v2824, 1
      %vm2844 = vcmp.lt.s32.totalorder %v2824, 2
      %vm2845 = vcmp.lt.s32.totalorder %v2824, 3
      %vm2846 = vcmp.lt.s32.totalorder %v2824, 4
      %v2847 = vsel %vm2843, %v2827, %v2830
      %v2848 = vsel %vm2846, %v2836, 2102212464
      %v2849 = vsel %vm2845, %v2833, %v2848
      %v2850 = vsel %vm2844, %v2847, %v2849
      %v2851 = vsel %vm2843, %v2830, %v2833
      %v2852 = vsel %vm2846, %v2839, 920167782
      %v2853 = vsel %vm2845, %v2836, %v2852
      %v2854 = vsel %vm2844, %v2851, %v2853
      %v2855 = vsel %vm2843, %v2833, %v2836
      %v2856 = vsel %vm2846, %v2842, 1326507024
      %v2857 = vsel %vm2845, %v2839, %v2856
      %v2858 = vsel %vm2844, %v2855, %v2857
      %v2859 = vshll.u32 %v2819, 8
      %v2860 = vmul.u32.u64.compose %v2859, %v2858
      %v2861 = vextract.low.u32 %v2860
      %v2862 = vextract.high.u32 %v2860
      %v2863 = vmul.u32.u64.compose %v2859, %v2854
      %v2864 = vextract.low.u32 %v2863
      %v2865 = vextract.high.u32 %v2863
      %v2866 = vmul.u32 %v2859, %v2850
      %v2867 = vadd.s32 %v2862, %v2864
      %vm2868 = vc.u32 %v2862, %v2864
      %v2869 = vadd.s32 %v2865, 1
      %v2870 = vsel %vm2868, %v2869, %v2865
      %v2871 = vadd.s32 %v2866, %v2870
      %v2872 = vadd.s32 %v2871, 536870912
      %v2873 = vshrl.u32 %v2872, 30
      %v2874 = vshll.u32 %v2873, 30
      %v2875 = vsub.s32 %v2871, %v2874
      %vm2876 = vcmp.lt.s32.totalorder %v2875, 0
      %v2877 = vsub.s32 0, %v2875
      %v2878 = vsel %vm2876, %v2877, %v2875
      %v2879 = vclz %v2878
      %v2880 = vsub.s32 %v2879, 2
      %vm2881 = vcmp.gt.s32.totalorder 0, %v2880
      %v2882 = vsel %vm2881, 0, %v2880
      %v2883 = vsub.s32 32, %v2882
      %v2884 = vshll.u32 %v2875, %v2882
      %v2885 = vshrl.u32 %v2867, %v2883
      %v2886 = vor.u32 %v2884, %v2885
      %v2887 = vsub.s32 4294967266, %v2882
      %v2888 = vadd.s32 %v2887, 127
      %v2889 = vshll.u32 %v2888, 23
      %v2890 = vor.u32 4788187, %v2889
      %v2891 = vand.u32 2147483647, %v2890
      %v2893 = vcvt.s32.f32 %v2886
      %v2894 = vmul.f32 %v2893, %v2891
      %v2895 = vxor.u32 %v2894, 2147483648
      %v2896 = vsel %vm2813, %v2895, %v2894
      %v2897 = vsub.s32 4, %v2873
      %v2898 = vsel %vm2813, %v2897, %v2873
      %v2899 = vsel %vm2812, %v2436, %v2896
      %v2900 = vsel %vm2812, 0, %v2898
      %v2901 = vcosq.f32.pop %v2899
      %v2902 = vsinq.f32.pop %v2899
      %vm2903 = vweird.f32 %v2436
      %v2904 = vadd.s32 %v2900, 3
      %v2905 = vand.u32 %v2904, 3
      %vm2906 = vcmp.lt.s32.totalorder %v2905, 2
      %vm2907 = vcmp.eq.s32.totalorder %v2905, 0
      %v2908 = vxor.u32 %v2902, 2147483648
      %v2909 = vsel %vm2907, %v2901, %v2908
      %vm2910 = vcmp.eq.s32.totalorder %v2905, 2
      %v2911 = vxor.u32 %v2901, 2147483648
      %v2912 = vsel %vm2910, %v2911, %v2902
      %v2913 = vsel %vm2906, %v2909, %v2912
      %v2914 = vsel %vm2903, nan, %v2913
      %v2915 = vand.u32 2147483647, %v2441
      %vm2916 = vcmp.le.f32.partialorder %v2915, 0.7853982
      %vm2917 = vcmp.lt.s32.totalorder %v2441, 0
      %v2918 = vand.u32 %v2441, 2139095040
      %v2919 = vshrl.u32 %v2918, 23
      %v2920 = vsub.s32 %v2919, 127
      %v2921 = vand.u32 2147483647, %v2441
      %v2922 = vand.u32 %v2921, 8388607
      %v2923 = vor.u32 %v2922, 8388608
      %v2924 = vsub.s32 0, %v2923
      %v2925 = vadd.s32 %v2920, 1
      %vm2926 = vcmp.gt.s32.totalorder %v2925, 0
      %v2927 = vsel %vm2926, %v2925, 0
      %v2928 = vshrl.u32 %v2927, 5
      %v2929 = vand.u32 %v2927, 31
      %v2930 = vsub.s32 32, %v2929
      %v2931 = vshrl.u32 683565275, %v2930
      %v2932 = vshll.u32 683565275, %v2929
      %v2933 = vshrl.u32 2475754826, %v2930
      %v2934 = vor.u32 %v2932, %v2933
      %v2935 = vshll.u32 2475754826, %v2929
      %v2936 = vshrl.u32 2131351028, %v2930
      %v2937 = vor.u32 %v2935, %v2936
      %v2938 = vshll.u32 2131351028, %v2929
      %v2939 = vshrl.u32 2102212464, %v2930
      %v2940 = vor.u32 %v2938, %v2939
      %v2941 = vshll.u32 2102212464, %v2929
      %v2942 = vshrl.u32 920167782, %v2930
      %v2943 = vor.u32 %v2941, %v2942
      %v2944 = vshll.u32 920167782, %v2929
      %v2945 = vshrl.u32 1326507024, %v2930
      %v2946 = vor.u32 %v2944, %v2945
      %vm2947 = vcmp.lt.s32.totalorder %v2928, 1
      %vm2948 = vcmp.lt.s32.totalorder %v2928, 2
      %vm2949 = vcmp.lt.s32.totalorder %v2928, 3
      %vm2950 = vcmp.lt.s32.totalorder %v2928, 4
      %v2951 = vsel %vm2947, %v2931, %v2934
      %v2952 = vsel %vm2950, %v2940, 2102212464
      %v2953 = vsel %vm2949, %v2937, %v2952
      %v2954 = vsel %vm2948, %v2951, %v2953
      %v2955 = vsel %vm2947, %v2934, %v2937
      %v2956 = vsel %vm2950, %v2943, 920167782
      %v2957 = vsel %vm2949, %v2940, %v2956
      %v2958 = vsel %vm2948, %v2955, %v2957
      %v2959 = vsel %vm2947, %v2937, %v2940
      %v2960 = vsel %vm2950, %v2946, 1326507024
      %v2961 = vsel %vm2949, %v2943, %v2960
      %v2962 = vsel %vm2948, %v2959, %v2961
      %v2963 = vshll.u32 %v2923, 8
      %v2964 = vmul.u32.u64.compose %v2963, %v2962
      %v2965 = vextract.low.u32 %v2964
      %v2966 = vextract.high.u32 %v2964
      %v2967 = vmul.u32.u64.compose %v2963, %v2958
      %v2968 = vextract.low.u32 %v2967
      %v2969 = vextract.high.u32 %v2967
      %v2970 = vmul.u32 %v2963, %v2954
      %v2971 = vadd.s32 %v2966, %v2968
      %vm2972 = vc.u32 %v2966, %v2968
      %v2973 = vadd.s32 %v2969, 1
      %v2974 = vsel %vm2972, %v2973, %v2969
      %v2975 = vadd.s32 %v2970, %v2974
      %v2976 = vadd.s32 %v2975, 536870912
      %v2977 = vshrl.u32 %v2976, 30
      %v2978 = vshll.u32 %v2977, 30
      %v2979 = vsub.s32 %v2975, %v2978
      %vm2980 = vcmp.lt.s32.totalorder %v2979, 0
      %v2981 = vsub.s32 0, %v2979
      %v2982 = vsel %vm2980, %v2981, %v2979
      %v2983 = vclz %v2982
      %v2984 = vsub.s32 %v2983, 2
      %vm2985 = vcmp.gt.s32.totalorder 0, %v2984
      %v2986 = vsel %vm2985, 0, %v2984
      %v2987 = vsub.s32 32, %v2986
      %v2988 = vshll.u32 %v2979, %v2986
      %v2989 = vshrl.u32 %v2971, %v2987
      %v2990 = vor.u32 %v2988, %v2989
      %v2991 = vsub.s32 4294967266, %v2986
      %v2992 = vadd.s32 %v2991, 127
      %v2993 = vshll.u32 %v2992, 23
      %v2994 = vor.u32 4788187, %v2993
      %v2995 = vand.u32 2147483647, %v2994
      %v2997 = vcvt.s32.f32 %v2990
      %v2998 = vmul.f32 %v2997, %v2995
      %v2999 = vxor.u32 %v2998, 2147483648
      %v3000 = vsel %vm2917, %v2999, %v2998
      %v3001 = vsub.s32 4, %v2977
      %v3002 = vsel %vm2917, %v3001, %v2977
      %v3003 = vsel %vm2916, %v2441, %v3000
      %v3004 = vsel %vm2916, 0, %v3002
      %v3005 = vcosq.f32.pop %v3003
      %v3006 = vsinq.f32.pop %v3003
      %vm3007 = vweird.f32 %v2441
      %v3008 = vadd.s32 %v3004, 3
      %v3009 = vand.u32 %v3008, 3
      %vm3010 = vcmp.lt.s32.totalorder %v3009, 2
      %vm3011 = vcmp.eq.s32.totalorder %v3009, 0
      %v3012 = vxor.u32 %v3006, 2147483648
      %v3013 = vsel %vm3011, %v3005, %v3012
      %vm3014 = vcmp.eq.s32.totalorder %v3009, 2
      %v3015 = vxor.u32 %v3005, 2147483648
      %v3016 = vsel %vm3014, %v3015, %v3006
      %v3017 = vsel %vm3010, %v3013, %v3016
      %v3018 = vsel %vm3007, nan, %v3017
      %v3019 = vand.u32 2147483647, %v2446
      %vm3020 = vcmp.le.f32.partialorder %v3019, 0.7853982
      %vm3021 = vcmp.lt.s32.totalorder %v2446, 0
      %v3022 = vand.u32 %v2446, 2139095040
      %v3023 = vshrl.u32 %v3022, 23
      %v3024 = vsub.s32 %v3023, 127
      %v3025 = vand.u32 2147483647, %v2446
      %v3026 = vand.u32 %v3025, 8388607
      %v3027 = vor.u32 %v3026, 8388608
      %v3028 = vsub.s32 0, %v3027
      %v3029 = vadd.s32 %v3024, 1
      %vm3030 = vcmp.gt.s32.totalorder %v3029, 0
      %v3031 = vsel %vm3030, %v3029, 0
      %v3032 = vshrl.u32 %v3031, 5
      %v3033 = vand.u32 %v3031, 31
      %v3034 = vsub.s32 32, %v3033
      %v3035 = vshrl.u32 683565275, %v3034
      %v3036 = vshll.u32 683565275, %v3033
      %v3037 = vshrl.u32 2475754826, %v3034
      %v3038 = vor.u32 %v3036, %v3037
      %v3039 = vshll.u32 2475754826, %v3033
      %v3040 = vshrl.u32 2131351028, %v3034
      %v3041 = vor.u32 %v3039, %v3040
      %v3042 = vshll.u32 2131351028, %v3033
      %v3043 = vshrl.u32 2102212464, %v3034
      %v3044 = vor.u32 %v3042, %v3043
      %v3045 = vshll.u32 2102212464, %v3033
      %v3046 = vshrl.u32 920167782, %v3034
      %v3047 = vor.u32 %v3045, %v3046
      %v3048 = vshll.u32 920167782, %v3033
      %v3049 = vshrl.u32 1326507024, %v3034
      %v3050 = vor.u32 %v3048, %v3049
      %vm3051 = vcmp.lt.s32.totalorder %v3032, 1
      %vm3052 = vcmp.lt.s32.totalorder %v3032, 2
      %vm3053 = vcmp.lt.s32.totalorder %v3032, 3
      %vm3054 = vcmp.lt.s32.totalorder %v3032, 4
      %v3055 = vsel %vm3051, %v3035, %v3038
      %v3056 = vsel %vm3054, %v3044, 2102212464
      %v3057 = vsel %vm3053, %v3041, %v3056
      %v3058 = vsel %vm3052, %v3055, %v3057
      %v3059 = vsel %vm3051, %v3038, %v3041
      %v3060 = vsel %vm3054, %v3047, 920167782
      %v3061 = vsel %vm3053, %v3044, %v3060
      %v3062 = vsel %vm3052, %v3059, %v3061
      %v3063 = vsel %vm3051, %v3041, %v3044
      %v3064 = vsel %vm3054, %v3050, 1326507024
      %v3065 = vsel %vm3053, %v3047, %v3064
      %v3066 = vsel %vm3052, %v3063, %v3065
      %v3067 = vshll.u32 %v3027, 8
      %v3068 = vmul.u32.u64.compose %v3067, %v3066
      %v3069 = vextract.low.u32 %v3068
      %v3070 = vextract.high.u32 %v3068
      %v3071 = vmul.u32.u64.compose %v3067, %v3062
      %v3072 = vextract.low.u32 %v3071
      %v3073 = vextract.high.u32 %v3071
      %v3074 = vmul.u32 %v3067, %v3058
      %v3075 = vadd.s32 %v3070, %v3072
      %vm3076 = vc.u32 %v3070, %v3072
      %v3077 = vadd.s32 %v3073, 1
      %v3078 = vsel %vm3076, %v3077, %v3073
      %v3079 = vadd.s32 %v3074, %v3078
      %v3080 = vadd.s32 %v3079, 536870912
      %v3081 = vshrl.u32 %v3080, 30
      %v3082 = vshll.u32 %v3081, 30
      %v3083 = vsub.s32 %v3079, %v3082
      %vm3084 = vcmp.lt.s32.totalorder %v3083, 0
      %v3085 = vsub.s32 0, %v3083
      %v3086 = vsel %vm3084, %v3085, %v3083
      %v3087 = vclz %v3086
      %v3088 = vsub.s32 %v3087, 2
      %vm3089 = vcmp.gt.s32.totalorder 0, %v3088
      %v3090 = vsel %vm3089, 0, %v3088
      %v3091 = vsub.s32 32, %v3090
      %v3092 = vshll.u32 %v3083, %v3090
      %v3093 = vshrl.u32 %v3075, %v3091
      %v3094 = vor.u32 %v3092, %v3093
      %v3095 = vsub.s32 4294967266, %v3090
      %v3096 = vadd.s32 %v3095, 127
      %v3097 = vshll.u32 %v3096, 23
      %v3098 = vor.u32 4788187, %v3097
      %v3099 = vand.u32 2147483647, %v3098
      %v3101 = vcvt.s32.f32 %v3094
      %v3102 = vmul.f32 %v3101, %v3099
      %v3103 = vxor.u32 %v3102, 2147483648
      %v3104 = vsel %vm3021, %v3103, %v3102
      %v3105 = vsub.s32 4, %v3081
      %v3106 = vsel %vm3021, %v3105, %v3081
      %v3107 = vsel %vm3020, %v2446, %v3104
      %v3108 = vsel %vm3020, 0, %v3106
      %v3109 = vcosq.f32.pop %v3107
      %v3110 = vsinq.f32.pop %v3107
      %vm3111 = vweird.f32 %v2446
      %v3112 = vadd.s32 %v3108, 3
      %v3113 = vand.u32 %v3112, 3
      %vm3114 = vcmp.lt.s32.totalorder %v3113, 2
      %vm3115 = vcmp.eq.s32.totalorder %v3113, 0
      %v3116 = vxor.u32 %v3110, 2147483648
      %v3117 = vsel %vm3115, %v3109, %v3116
      %vm3118 = vcmp.eq.s32.totalorder %v3113, 2
      %v3119 = vxor.u32 %v3109, 2147483648
      %v3120 = vsel %vm3118, %v3119, %v3110
      %v3121 = vsel %vm3114, %v3117, %v3120
      %v3122 = vsel %vm3111, nan, %v3121
      %v3123 = vand.u32 2147483647, %v2451
      %vm3124 = vcmp.le.f32.partialorder %v3123, 0.7853982
      %vm3125 = vcmp.lt.s32.totalorder %v2451, 0
      %v3126 = vand.u32 %v2451, 2139095040
      %v3127 = vshrl.u32 %v3126, 23
      %v3128 = vsub.s32 %v3127, 127
      %v3129 = vand.u32 2147483647, %v2451
      %v3130 = vand.u32 %v3129, 8388607
      %v3131 = vor.u32 %v3130, 8388608
      %v3132 = vsub.s32 0, %v3131
      %v3133 = vadd.s32 %v3128, 1
      %vm3134 = vcmp.gt.s32.totalorder %v3133, 0
      %v3135 = vsel %vm3134, %v3133, 0
      %v3136 = vshrl.u32 %v3135, 5
      %v3137 = vand.u32 %v3135, 31
      %v3138 = vsub.s32 32, %v3137
      %v3139 = vshrl.u32 683565275, %v3138
      %v3140 = vshll.u32 683565275, %v3137
      %v3141 = vshrl.u32 2475754826, %v3138
      %v3142 = vor.u32 %v3140, %v3141
      %v3143 = vshll.u32 2475754826, %v3137
      %v3144 = vshrl.u32 2131351028, %v3138
      %v3145 = vor.u32 %v3143, %v3144
      %v3146 = vshll.u32 2131351028, %v3137
      %v3147 = vshrl.u32 2102212464, %v3138
      %v3148 = vor.u32 %v3146, %v3147
      %v3149 = vshll.u32 2102212464, %v3137
      %v3150 = vshrl.u32 920167782, %v3138
      %v3151 = vor.u32 %v3149, %v3150
      %v3152 = vshll.u32 920167782, %v3137
      %v3153 = vshrl.u32 1326507024, %v3138
      %v3154 = vor.u32 %v3152, %v3153
      %vm3155 = vcmp.lt.s32.totalorder %v3136, 1
      %vm3156 = vcmp.lt.s32.totalorder %v3136, 2
      %vm3157 = vcmp.lt.s32.totalorder %v3136, 3
      %vm3158 = vcmp.lt.s32.totalorder %v3136, 4
      %v3159 = vsel %vm3155, %v3139, %v3142
      %v3160 = vsel %vm3158, %v3148, 2102212464
      %v3161 = vsel %vm3157, %v3145, %v3160
      %v3162 = vsel %vm3156, %v3159, %v3161
      %v3163 = vsel %vm3155, %v3142, %v3145
      %v3164 = vsel %vm3158, %v3151, 920167782
      %v3165 = vsel %vm3157, %v3148, %v3164
      %v3166 = vsel %vm3156, %v3163, %v3165
      %v3167 = vsel %vm3155, %v3145, %v3148
      %v3168 = vsel %vm3158, %v3154, 1326507024
      %v3169 = vsel %vm3157, %v3151, %v3168
      %v3170 = vsel %vm3156, %v3167, %v3169
      %v3171 = vshll.u32 %v3131, 8
      %v3172 = vmul.u32.u64.compose %v3171, %v3170
      %v3173 = vextract.low.u32 %v3172
      %v3174 = vextract.high.u32 %v3172
      %v3175 = vmul.u32.u64.compose %v3171, %v3166
      %v3176 = vextract.low.u32 %v3175
      %v3177 = vextract.high.u32 %v3175
      %v3178 = vmul.u32 %v3171, %v3162
      %v3179 = vadd.s32 %v3174, %v3176
      %vm3180 = vc.u32 %v3174, %v3176
      %v3181 = vadd.s32 %v3177, 1
      %v3182 = vsel %vm3180, %v3181, %v3177
      %v3183 = vadd.s32 %v3178, %v3182
      %v3184 = vadd.s32 %v3183, 536870912
      %v3185 = vshrl.u32 %v3184, 30
      %v3186 = vshll.u32 %v3185, 30
      %v3187 = vsub.s32 %v3183, %v3186
      %vm3188 = vcmp.lt.s32.totalorder %v3187, 0
      %v3189 = vsub.s32 0, %v3187
      %v3190 = vsel %vm3188, %v3189, %v3187
      %v3191 = vclz %v3190
      %v3192 = vsub.s32 %v3191, 2
      %vm3193 = vcmp.gt.s32.totalorder 0, %v3192
      %v3194 = vsel %vm3193, 0, %v3192
      %v3195 = vsub.s32 32, %v3194
      %v3196 = vshll.u32 %v3187, %v3194
      %v3197 = vshrl.u32 %v3179, %v3195
      %v3198 = vor.u32 %v3196, %v3197
      %v3199 = vsub.s32 4294967266, %v3194
      %v3200 = vadd.s32 %v3199, 127
      %v3201 = vshll.u32 %v3200, 23
      %v3202 = vor.u32 4788187, %v3201
      %v3203 = vand.u32 2147483647, %v3202
      %v3205 = vcvt.s32.f32 %v3198
      %v3206 = vmul.f32 %v3205, %v3203
      %v3207 = vxor.u32 %v3206, 2147483648
      %v3208 = vsel %vm3125, %v3207, %v3206
      %v3209 = vsub.s32 4, %v3185
      %v3210 = vsel %vm3125, %v3209, %v3185
      %v3211 = vsel %vm3124, %v2451, %v3208
      %v3212 = vsel %vm3124, 0, %v3210
      %v3213 = vcosq.f32.pop %v3211
      %v3214 = vsinq.f32.pop %v3211
      %vm3215 = vweird.f32 %v2451
      %v3216 = vadd.s32 %v3212, 3
      %v3217 = vand.u32 %v3216, 3
      %vm3218 = vcmp.lt.s32.totalorder %v3217, 2
      %vm3219 = vcmp.eq.s32.totalorder %v3217, 0
      %v3220 = vxor.u32 %v3214, 2147483648
      %v3221 = vsel %vm3219, %v3213, %v3220
      %vm3222 = vcmp.eq.s32.totalorder %v3217, 2
      %v3223 = vxor.u32 %v3213, 2147483648
      %v3224 = vsel %vm3222, %v3223, %v3214
      %v3225 = vsel %vm3218, %v3221, %v3224
      %v3226 = vsel %vm3215, nan, %v3225
      %v3227 = vand.u32 2147483647, %v2456
      %vm3228 = vcmp.le.f32.partialorder %v3227, 0.7853982
      %vm3229 = vcmp.lt.s32.totalorder %v2456, 0
      %v3230 = vand.u32 %v2456, 2139095040
      %v3231 = vshrl.u32 %v3230, 23
      %v3232 = vsub.s32 %v3231, 127
      %v3233 = vand.u32 2147483647, %v2456
      %v3234 = vand.u32 %v3233, 8388607
      %v3235 = vor.u32 %v3234, 8388608
      %v3236 = vsub.s32 0, %v3235
      %v3237 = vadd.s32 %v3232, 1
      %vm3238 = vcmp.gt.s32.totalorder %v3237, 0
      %v3239 = vsel %vm3238, %v3237, 0
      %v3240 = vshrl.u32 %v3239, 5
      %v3241 = vand.u32 %v3239, 31
      %v3242 = vsub.s32 32, %v3241
      %v3243 = vshrl.u32 683565275, %v3242
      %v3244 = vshll.u32 683565275, %v3241
      %v3245 = vshrl.u32 2475754826, %v3242
      %v3246 = vor.u32 %v3244, %v3245
      %v3247 = vshll.u32 2475754826, %v3241
      %v3248 = vshrl.u32 2131351028, %v3242
      %v3249 = vor.u32 %v3247, %v3248
      %v3250 = vshll.u32 2131351028, %v3241
      %v3251 = vshrl.u32 2102212464, %v3242
      %v3252 = vor.u32 %v3250, %v3251
      %v3253 = vshll.u32 2102212464, %v3241
      %v3254 = vshrl.u32 920167782, %v3242
      %v3255 = vor.u32 %v3253, %v3254
      %v3256 = vshll.u32 920167782, %v3241
      %v3257 = vshrl.u32 1326507024, %v3242
      %v3258 = vor.u32 %v3256, %v3257
      %vm3259 = vcmp.lt.s32.totalorder %v3240, 1
      %vm3260 = vcmp.lt.s32.totalorder %v3240, 2
      %vm3261 = vcmp.lt.s32.totalorder %v3240, 3
      %vm3262 = vcmp.lt.s32.totalorder %v3240, 4
      %v3263 = vsel %vm3259, %v3243, %v3246
      %v3264 = vsel %vm3262, %v3252, 2102212464
      %v3265 = vsel %vm3261, %v3249, %v3264
      %v3266 = vsel %vm3260, %v3263, %v3265
      %v3267 = vsel %vm3259, %v3246, %v3249
      %v3268 = vsel %vm3262, %v3255, 920167782
      %v3269 = vsel %vm3261, %v3252, %v3268
      %v3270 = vsel %vm3260, %v3267, %v3269
      %v3271 = vsel %vm3259, %v3249, %v3252
      %v3272 = vsel %vm3262, %v3258, 1326507024
      %v3273 = vsel %vm3261, %v3255, %v3272
      %v3274 = vsel %vm3260, %v3271, %v3273
      %v3275 = vshll.u32 %v3235, 8
      %v3276 = vmul.u32.u64.compose %v3275, %v3274
      %v3277 = vextract.low.u32 %v3276
      %v3278 = vextract.high.u32 %v3276
      %v3279 = vmul.u32.u64.compose %v3275, %v3270
      %v3280 = vextract.low.u32 %v3279
      %v3281 = vextract.high.u32 %v3279
      %v3282 = vmul.u32 %v3275, %v3266
      %v3283 = vadd.s32 %v3278, %v3280
      %vm3284 = vc.u32 %v3278, %v3280
      %v3285 = vadd.s32 %v3281, 1
      %v3286 = vsel %vm3284, %v3285, %v3281
      %v3287 = vadd.s32 %v3282, %v3286
      %v3288 = vadd.s32 %v3287, 536870912
      %v3289 = vshrl.u32 %v3288, 30
      %v3290 = vshll.u32 %v3289, 30
      %v3291 = vsub.s32 %v3287, %v3290
      %vm3292 = vcmp.lt.s32.totalorder %v3291, 0
      %v3293 = vsub.s32 0, %v3291
      %v3294 = vsel %vm3292, %v3293, %v3291
      %v3295 = vclz %v3294
      %v3296 = vsub.s32 %v3295, 2
      %vm3297 = vcmp.gt.s32.totalorder 0, %v3296
      %v3298 = vsel %vm3297, 0, %v3296
      %v3299 = vsub.s32 32, %v3298
      %v3300 = vshll.u32 %v3291, %v3298
      %v3301 = vshrl.u32 %v3283, %v3299
      %v3302 = vor.u32 %v3300, %v3301
      %v3303 = vsub.s32 4294967266, %v3298
      %v3304 = vadd.s32 %v3303, 127
      %v3305 = vshll.u32 %v3304, 23
      %v3306 = vor.u32 4788187, %v3305
      %v3307 = vand.u32 2147483647, %v3306
      %v3309 = vcvt.s32.f32 %v3302
      %v3310 = vmul.f32 %v3309, %v3307
      %v3311 = vxor.u32 %v3310, 2147483648
      %v3312 = vsel %vm3229, %v3311, %v3310
      %v3313 = vsub.s32 4, %v3289
      %v3314 = vsel %vm3229, %v3313, %v3289
      %v3315 = vsel %vm3228, %v2456, %v3312
      %v3316 = vsel %vm3228, 0, %v3314
      %v3317 = vcosq.f32.pop %v3315
      %v3318 = vsinq.f32.pop %v3315
      %vm3319 = vweird.f32 %v2456
      %v3320 = vadd.s32 %v3316, 3
      %v3321 = vand.u32 %v3320, 3
      %vm3322 = vcmp.lt.s32.totalorder %v3321, 2
      %vm3323 = vcmp.eq.s32.totalorder %v3321, 0
      %v3324 = vxor.u32 %v3318, 2147483648
      %v3325 = vsel %vm3323, %v3317, %v3324
      %vm3326 = vcmp.eq.s32.totalorder %v3321, 2
      %v3327 = vxor.u32 %v3317, 2147483648
      %v3328 = vsel %vm3326, %v3327, %v3318
      %v3329 = vsel %vm3322, %v3325, %v3328
      %v3330 = vsel %vm3319, nan, %v3329
      %v3331 = vand.u32 2147483647, %v2461
      %vm3332 = vcmp.le.f32.partialorder %v3331, 0.7853982
      %vm3333 = vcmp.lt.s32.totalorder %v2461, 0
      %v3334 = vand.u32 %v2461, 2139095040
      %v3335 = vshrl.u32 %v3334, 23
      %v3336 = vsub.s32 %v3335, 127
      %v3337 = vand.u32 2147483647, %v2461
      %v3338 = vand.u32 %v3337, 8388607
      %v3339 = vor.u32 %v3338, 8388608
      %v3340 = vsub.s32 0, %v3339
      %v3341 = vadd.s32 %v3336, 1
      %vm3342 = vcmp.gt.s32.totalorder %v3341, 0
      %v3343 = vsel %vm3342, %v3341, 0
      %v3344 = vshrl.u32 %v3343, 5
      %v3345 = vand.u32 %v3343, 31
      %v3346 = vsub.s32 32, %v3345
      %v3347 = vshrl.u32 683565275, %v3346
      %v3348 = vshll.u32 683565275, %v3345
      %v3349 = vshrl.u32 2475754826, %v3346
      %v3350 = vor.u32 %v3348, %v3349
      %v3351 = vshll.u32 2475754826, %v3345
      %v3352 = vshrl.u32 2131351028, %v3346
      %v3353 = vor.u32 %v3351, %v3352
      %v3354 = vshll.u32 2131351028, %v3345
      %v3355 = vshrl.u32 2102212464, %v3346
      %v3356 = vor.u32 %v3354, %v3355
      %v3357 = vshll.u32 2102212464, %v3345
      %v3358 = vshrl.u32 920167782, %v3346
      %v3359 = vor.u32 %v3357, %v3358
      %v3360 = vshll.u32 920167782, %v3345
      %v3361 = vshrl.u32 1326507024, %v3346
      %v3362 = vor.u32 %v3360, %v3361
      %vm3363 = vcmp.lt.s32.totalorder %v3344, 1
      %vm3364 = vcmp.lt.s32.totalorder %v3344, 2
      %vm3365 = vcmp.lt.s32.totalorder %v3344, 3
      %vm3366 = vcmp.lt.s32.totalorder %v3344, 4
      %v3367 = vsel %vm3363, %v3347, %v3350
      %v3368 = vsel %vm3366, %v3356, 2102212464
      %v3369 = vsel %vm3365, %v3353, %v3368
      %v3370 = vsel %vm3364, %v3367, %v3369
      %v3371 = vsel %vm3363, %v3350, %v3353
      %v3372 = vsel %vm3366, %v3359, 920167782
      %v3373 = vsel %vm3365, %v3356, %v3372
      %v3374 = vsel %vm3364, %v3371, %v3373
      %v3375 = vsel %vm3363, %v3353, %v3356
      %v3376 = vsel %vm3366, %v3362, 1326507024
      %v3377 = vsel %vm3365, %v3359, %v3376
      %v3378 = vsel %vm3364, %v3375, %v3377
      %v3379 = vshll.u32 %v3339, 8
      %v3380 = vmul.u32.u64.compose %v3379, %v3378
      %v3381 = vextract.low.u32 %v3380
      %v3382 = vextract.high.u32 %v3380
      %v3383 = vmul.u32.u64.compose %v3379, %v3374
      %v3384 = vextract.low.u32 %v3383
      %v3385 = vextract.high.u32 %v3383
      %v3386 = vmul.u32 %v3379, %v3370
      %v3387 = vadd.s32 %v3382, %v3384
      %vm3388 = vc.u32 %v3382, %v3384
      %v3389 = vadd.s32 %v3385, 1
      %v3390 = vsel %vm3388, %v3389, %v3385
      %v3391 = vadd.s32 %v3386, %v3390
      %v3392 = vadd.s32 %v3391, 536870912
      %v3393 = vshrl.u32 %v3392, 30
      %v3394 = vshll.u32 %v3393, 30
      %v3395 = vsub.s32 %v3391, %v3394
      %vm3396 = vcmp.lt.s32.totalorder %v3395, 0
      %v3397 = vsub.s32 0, %v3395
      %v3398 = vsel %vm3396, %v3397, %v3395
      %v3399 = vclz %v3398
      %v3400 = vsub.s32 %v3399, 2
      %vm3401 = vcmp.gt.s32.totalorder 0, %v3400
      %v3402 = vsel %vm3401, 0, %v3400
      %v3403 = vsub.s32 32, %v3402
      %v3404 = vshll.u32 %v3395, %v3402
      %v3405 = vshrl.u32 %v3387, %v3403
      %v3406 = vor.u32 %v3404, %v3405
      %v3407 = vsub.s32 4294967266, %v3402
      %v3408 = vadd.s32 %v3407, 127
      %v3409 = vshll.u32 %v3408, 23
      %v3410 = vor.u32 4788187, %v3409
      %v3411 = vand.u32 2147483647, %v3410
      %v3413 = vcvt.s32.f32 %v3406
      %v3414 = vmul.f32 %v3413, %v3411
      %v3415 = vxor.u32 %v3414, 2147483648
      %v3416 = vsel %vm3333, %v3415, %v3414
      %v3417 = vsub.s32 4, %v3393
      %v3418 = vsel %vm3333, %v3417, %v3393
      %v3419 = vsel %vm3332, %v2461, %v3416
      %v3420 = vsel %vm3332, 0, %v3418
      %v3421 = vcosq.f32.pop %v3419
      %v3422 = vsinq.f32.pop %v3419
      %vm3423 = vweird.f32 %v2461
      %v3424 = vadd.s32 %v3420, 3
      %v3425 = vand.u32 %v3424, 3
      %vm3426 = vcmp.lt.s32.totalorder %v3425, 2
      %vm3427 = vcmp.eq.s32.totalorder %v3425, 0
      %v3428 = vxor.u32 %v3422, 2147483648
      %v3429 = vsel %vm3427, %v3421, %v3428
      %vm3430 = vcmp.eq.s32.totalorder %v3425, 2
      %v3431 = vxor.u32 %v3421, 2147483648
      %v3432 = vsel %vm3430, %v3431, %v3422
      %v3433 = vsel %vm3426, %v3429, %v3432
      %v3434 = vsel %vm3423, nan, %v3433
      %v3435 = vand.u32 2147483647, %v2466
      %vm3436 = vcmp.le.f32.partialorder %v3435, 0.7853982
      %vm3437 = vcmp.lt.s32.totalorder %v2466, 0
      %v3438 = vand.u32 %v2466, 2139095040
      %v3439 = vshrl.u32 %v3438, 23
      %v3440 = vsub.s32 %v3439, 127
      %v3441 = vand.u32 2147483647, %v2466
      %v3442 = vand.u32 %v3441, 8388607
      %v3443 = vor.u32 %v3442, 8388608
      %v3444 = vsub.s32 0, %v3443
      %v3445 = vadd.s32 %v3440, 1
      %vm3446 = vcmp.gt.s32.totalorder %v3445, 0
      %v3447 = vsel %vm3446, %v3445, 0
      %v3448 = vshrl.u32 %v3447, 5
      %v3449 = vand.u32 %v3447, 31
      %v3450 = vsub.s32 32, %v3449
      %v3451 = vshrl.u32 683565275, %v3450
      %v3452 = vshll.u32 683565275, %v3449
      %v3453 = vshrl.u32 2475754826, %v3450
      %v3454 = vor.u32 %v3452, %v3453
      %v3455 = vshll.u32 2475754826, %v3449
      %v3456 = vshrl.u32 2131351028, %v3450
      %v3457 = vor.u32 %v3455, %v3456
      %v3458 = vshll.u32 2131351028, %v3449
      %v3459 = vshrl.u32 2102212464, %v3450
      %v3460 = vor.u32 %v3458, %v3459
      %v3461 = vshll.u32 2102212464, %v3449
      %v3462 = vshrl.u32 920167782, %v3450
      %v3463 = vor.u32 %v3461, %v3462
      %v3464 = vshll.u32 920167782, %v3449
      %v3465 = vshrl.u32 1326507024, %v3450
      %v3466 = vor.u32 %v3464, %v3465
      %vm3467 = vcmp.lt.s32.totalorder %v3448, 1
      %vm3468 = vcmp.lt.s32.totalorder %v3448, 2
      %vm3469 = vcmp.lt.s32.totalorder %v3448, 3
      %vm3470 = vcmp.lt.s32.totalorder %v3448, 4
      %v3471 = vsel %vm3467, %v3451, %v3454
      %v3472 = vsel %vm3470, %v3460, 2102212464
      %v3473 = vsel %vm3469, %v3457, %v3472
      %v3474 = vsel %vm3468, %v3471, %v3473
      %v3475 = vsel %vm3467, %v3454, %v3457
      %v3476 = vsel %vm3470, %v3463, 920167782
      %v3477 = vsel %vm3469, %v3460, %v3476
      %v3478 = vsel %vm3468, %v3475, %v3477
      %v3479 = vsel %vm3467, %v3457, %v3460
      %v3480 = vsel %vm3470, %v3466, 1326507024
      %v3481 = vsel %vm3469, %v3463, %v3480
      %v3482 = vsel %vm3468, %v3479, %v3481
      %v3483 = vshll.u32 %v3443, 8
      %v3484 = vmul.u32.u64.compose %v3483, %v3482
      %v3485 = vextract.low.u32 %v3484
      %v3486 = vextract.high.u32 %v3484
      %v3487 = vmul.u32.u64.compose %v3483, %v3478
      %v3488 = vextract.low.u32 %v3487
      %v3489 = vextract.high.u32 %v3487
      %v3490 = vmul.u32 %v3483, %v3474
      %v3491 = vadd.s32 %v3486, %v3488
      %vm3492 = vc.u32 %v3486, %v3488
      %v3493 = vadd.s32 %v3489, 1
      %v3494 = vsel %vm3492, %v3493, %v3489
      %v3495 = vadd.s32 %v3490, %v3494
      %v3496 = vadd.s32 %v3495, 536870912
      %v3497 = vshrl.u32 %v3496, 30
      %v3498 = vshll.u32 %v3497, 30
      %v3499 = vsub.s32 %v3495, %v3498
      %vm3500 = vcmp.lt.s32.totalorder %v3499, 0
      %v3501 = vsub.s32 0, %v3499
      %v3502 = vsel %vm3500, %v3501, %v3499
      %v3503 = vclz %v3502
      %v3504 = vsub.s32 %v3503, 2
      %vm3505 = vcmp.gt.s32.totalorder 0, %v3504
      %v3506 = vsel %vm3505, 0, %v3504
      %v3507 = vsub.s32 32, %v3506
      %v3508 = vshll.u32 %v3499, %v3506
      %v3509 = vshrl.u32 %v3491, %v3507
      %v3510 = vor.u32 %v3508, %v3509
      %v3511 = vsub.s32 4294967266, %v3506
      %v3512 = vadd.s32 %v3511, 127
      %v3513 = vshll.u32 %v3512, 23
      %v3514 = vor.u32 4788187, %v3513
      %v3515 = vand.u32 2147483647, %v3514
      %v3517 = vcvt.s32.f32 %v3510
      %v3518 = vmul.f32 %v3517, %v3515
      %v3519 = vxor.u32 %v3518, 2147483648
      %v3520 = vsel %vm3437, %v3519, %v3518
      %v3521 = vsub.s32 4, %v3497
      %v3522 = vsel %vm3437, %v3521, %v3497
      %v3523 = vsel %vm3436, %v2466, %v3520
      %v3524 = vsel %vm3436, 0, %v3522
      %v3525 = vcosq.f32.pop %v3523
      %v3526 = vsinq.f32.pop %v3523
      %vm3527 = vweird.f32 %v2466
      %v3528 = vadd.s32 %v3524, 3
      %v3529 = vand.u32 %v3528, 3
      %vm3530 = vcmp.lt.s32.totalorder %v3529, 2
      %vm3531 = vcmp.eq.s32.totalorder %v3529, 0
      %v3532 = vxor.u32 %v3526, 2147483648
      %v3533 = vsel %vm3531, %v3525, %v3532
      %vm3534 = vcmp.eq.s32.totalorder %v3529, 2
      %v3535 = vxor.u32 %v3525, 2147483648
      %v3536 = vsel %vm3534, %v3535, %v3526
      %v3537 = vsel %vm3530, %v3533, %v3536
      %v3538 = vsel %vm3527, nan, %v3537
      %v3539 = vand.u32 2147483647, %v2471
      %vm3540 = vcmp.le.f32.partialorder %v3539, 0.7853982
      %vm3541 = vcmp.lt.s32.totalorder %v2471, 0
      %v3542 = vand.u32 %v2471, 2139095040
      %v3543 = vshrl.u32 %v3542, 23
      %v3544 = vsub.s32 %v3543, 127
      %v3545 = vand.u32 2147483647, %v2471
      %v3546 = vand.u32 %v3545, 8388607
      %v3547 = vor.u32 %v3546, 8388608
      %v3548 = vsub.s32 0, %v3547
      %v3549 = vadd.s32 %v3544, 1
      %vm3550 = vcmp.gt.s32.totalorder %v3549, 0
      %v3551 = vsel %vm3550, %v3549, 0
      %v3552 = vshrl.u32 %v3551, 5
      %v3553 = vand.u32 %v3551, 31
      %v3554 = vsub.s32 32, %v3553
      %v3555 = vshrl.u32 683565275, %v3554
      %v3556 = vshll.u32 683565275, %v3553
      %v3557 = vshrl.u32 2475754826, %v3554
      %v3558 = vor.u32 %v3556, %v3557
      %v3559 = vshll.u32 2475754826, %v3553
      %v3560 = vshrl.u32 2131351028, %v3554
      %v3561 = vor.u32 %v3559, %v3560
      %v3562 = vshll.u32 2131351028, %v3553
      %v3563 = vshrl.u32 2102212464, %v3554
      %v3564 = vor.u32 %v3562, %v3563
      %v3565 = vshll.u32 2102212464, %v3553
      %v3566 = vshrl.u32 920167782, %v3554
      %v3567 = vor.u32 %v3565, %v3566
      %v3568 = vshll.u32 920167782, %v3553
      %v3569 = vshrl.u32 1326507024, %v3554
      %v3570 = vor.u32 %v3568, %v3569
      %vm3571 = vcmp.lt.s32.totalorder %v3552, 1
      %vm3572 = vcmp.lt.s32.totalorder %v3552, 2
      %vm3573 = vcmp.lt.s32.totalorder %v3552, 3
      %vm3574 = vcmp.lt.s32.totalorder %v3552, 4
      %v3575 = vsel %vm3571, %v3555, %v3558
      %v3576 = vsel %vm3574, %v3564, 2102212464
      %v3577 = vsel %vm3573, %v3561, %v3576
      %v3578 = vsel %vm3572, %v3575, %v3577
      %v3579 = vsel %vm3571, %v3558, %v3561
      %v3580 = vsel %vm3574, %v3567, 920167782
      %v3581 = vsel %vm3573, %v3564, %v3580
      %v3582 = vsel %vm3572, %v3579, %v3581
      %v3583 = vsel %vm3571, %v3561, %v3564
      %v3584 = vsel %vm3574, %v3570, 1326507024
      %v3585 = vsel %vm3573, %v3567, %v3584
      %v3586 = vsel %vm3572, %v3583, %v3585
      %v3587 = vshll.u32 %v3547, 8
      %v3588 = vmul.u32.u64.compose %v3587, %v3586
      %v3589 = vextract.low.u32 %v3588
      %v3590 = vextract.high.u32 %v3588
      %v3591 = vmul.u32.u64.compose %v3587, %v3582
      %v3592 = vextract.low.u32 %v3591
      %v3593 = vextract.high.u32 %v3591
      %v3594 = vmul.u32 %v3587, %v3578
      %v3595 = vadd.s32 %v3590, %v3592
      %vm3596 = vc.u32 %v3590, %v3592
      %v3597 = vadd.s32 %v3593, 1
      %v3598 = vsel %vm3596, %v3597, %v3593
      %v3599 = vadd.s32 %v3594, %v3598
      %v3600 = vadd.s32 %v3599, 536870912
      %v3601 = vshrl.u32 %v3600, 30
      %v3602 = vshll.u32 %v3601, 30
      %v3603 = vsub.s32 %v3599, %v3602
      %vm3604 = vcmp.lt.s32.totalorder %v3603, 0
      %v3605 = vsub.s32 0, %v3603
      %v3606 = vsel %vm3604, %v3605, %v3603
      %v3607 = vclz %v3606
      %v3608 = vsub.s32 %v3607, 2
      %vm3609 = vcmp.gt.s32.totalorder 0, %v3608
      %v3610 = vsel %vm3609, 0, %v3608
      %v3611 = vsub.s32 32, %v3610
      %v3612 = vshll.u32 %v3603, %v3610
      %v3613 = vshrl.u32 %v3595, %v3611
      %v3614 = vor.u32 %v3612, %v3613
      %v3615 = vsub.s32 4294967266, %v3610
      %v3616 = vadd.s32 %v3615, 127
      %v3617 = vshll.u32 %v3616, 23
      %v3618 = vor.u32 4788187, %v3617
      %v3619 = vand.u32 2147483647, %v3618
      %v3621 = vcvt.s32.f32 %v3614
      %v3622 = vmul.f32 %v3621, %v3619
      %v3623 = vxor.u32 %v3622, 2147483648
      %v3624 = vsel %vm3541, %v3623, %v3622
      %v3625 = vsub.s32 4, %v3601
      %v3626 = vsel %vm3541, %v3625, %v3601
      %v3627 = vsel %vm3540, %v2471, %v3624
      %v3628 = vsel %vm3540, 0, %v3626
      %v3629 = vcosq.f32.pop %v3627
      %v3630 = vsinq.f32.pop %v3627
      %vm3631 = vweird.f32 %v2471
      %v3632 = vadd.s32 %v3628, 3
      %v3633 = vand.u32 %v3632, 3
      %vm3634 = vcmp.lt.s32.totalorder %v3633, 2
      %vm3635 = vcmp.eq.s32.totalorder %v3633, 0
      %v3636 = vxor.u32 %v3630, 2147483648
      %v3637 = vsel %vm3635, %v3629, %v3636
      %vm3638 = vcmp.eq.s32.totalorder %v3633, 2
      %v3639 = vxor.u32 %v3629, 2147483648
      %v3640 = vsel %vm3638, %v3639, %v3630
      %v3641 = vsel %vm3634, %v3637, %v3640
      %v3642 = vsel %vm3631, nan, %v3641
      %v3643 = vand.u32 2147483647, %v2476
      %vm3644 = vcmp.le.f32.partialorder %v3643, 0.7853982
      %vm3645 = vcmp.lt.s32.totalorder %v2476, 0
      %v3646 = vand.u32 %v2476, 2139095040
      %v3647 = vshrl.u32 %v3646, 23
      %v3648 = vsub.s32 %v3647, 127
      %v3649 = vand.u32 2147483647, %v2476
      %v3650 = vand.u32 %v3649, 8388607
      %v3651 = vor.u32 %v3650, 8388608
      %v3652 = vsub.s32 0, %v3651
      %v3653 = vadd.s32 %v3648, 1
      %vm3654 = vcmp.gt.s32.totalorder %v3653, 0
      %v3655 = vsel %vm3654, %v3653, 0
      %v3656 = vshrl.u32 %v3655, 5
      %v3657 = vand.u32 %v3655, 31
      %v3658 = vsub.s32 32, %v3657
      %v3659 = vshrl.u32 683565275, %v3658
      %v3660 = vshll.u32 683565275, %v3657
      %v3661 = vshrl.u32 2475754826, %v3658
      %v3662 = vor.u32 %v3660, %v3661
      %v3663 = vshll.u32 2475754826, %v3657
      %v3664 = vshrl.u32 2131351028, %v3658
      %v3665 = vor.u32 %v3663, %v3664
      %v3666 = vshll.u32 2131351028, %v3657
      %v3667 = vshrl.u32 2102212464, %v3658
      %v3668 = vor.u32 %v3666, %v3667
      %v3669 = vshll.u32 2102212464, %v3657
      %v3670 = vshrl.u32 920167782, %v3658
      %v3671 = vor.u32 %v3669, %v3670
      %v3672 = vshll.u32 920167782, %v3657
      %v3673 = vshrl.u32 1326507024, %v3658
      %v3674 = vor.u32 %v3672, %v3673
      %vm3675 = vcmp.lt.s32.totalorder %v3656, 1
      %vm3676 = vcmp.lt.s32.totalorder %v3656, 2
      %vm3677 = vcmp.lt.s32.totalorder %v3656, 3
      %vm3678 = vcmp.lt.s32.totalorder %v3656, 4
      %v3679 = vsel %vm3675, %v3659, %v3662
      %v3680 = vsel %vm3678, %v3668, 2102212464
      %v3681 = vsel %vm3677, %v3665, %v3680
      %v3682 = vsel %vm3676, %v3679, %v3681
      %v3683 = vsel %vm3675, %v3662, %v3665
      %v3684 = vsel %vm3678, %v3671, 920167782
      %v3685 = vsel %vm3677, %v3668, %v3684
      %v3686 = vsel %vm3676, %v3683, %v3685
      %v3687 = vsel %vm3675, %v3665, %v3668
      %v3688 = vsel %vm3678, %v3674, 1326507024
      %v3689 = vsel %vm3677, %v3671, %v3688
      %v3690 = vsel %vm3676, %v3687, %v3689
      %v3691 = vshll.u32 %v3651, 8
      %v3692 = vmul.u32.u64.compose %v3691, %v3690
      %v3693 = vextract.low.u32 %v3692
      %v3694 = vextract.high.u32 %v3692
      %v3695 = vmul.u32.u64.compose %v3691, %v3686
      %v3696 = vextract.low.u32 %v3695
      %v3697 = vextract.high.u32 %v3695
      %v3698 = vmul.u32 %v3691, %v3682
      %v3699 = vadd.s32 %v3694, %v3696
      %vm3700 = vc.u32 %v3694, %v3696
      %v3701 = vadd.s32 %v3697, 1
      %v3702 = vsel %vm3700, %v3701, %v3697
      %v3703 = vadd.s32 %v3698, %v3702
      %v3704 = vadd.s32 %v3703, 536870912
      %v3705 = vshrl.u32 %v3704, 30
      %v3706 = vshll.u32 %v3705, 30
      %v3707 = vsub.s32 %v3703, %v3706
      %vm3708 = vcmp.lt.s32.totalorder %v3707, 0
      %v3709 = vsub.s32 0, %v3707
      %v3710 = vsel %vm3708, %v3709, %v3707
      %v3711 = vclz %v3710
      %v3712 = vsub.s32 %v3711, 2
      %vm3713 = vcmp.gt.s32.totalorder 0, %v3712
      %v3714 = vsel %vm3713, 0, %v3712
      %v3715 = vsub.s32 32, %v3714
      %v3716 = vshll.u32 %v3707, %v3714
      %v3717 = vshrl.u32 %v3699, %v3715
      %v3718 = vor.u32 %v3716, %v3717
      %v3719 = vsub.s32 4294967266, %v3714
      %v3720 = vadd.s32 %v3719, 127
      %v3721 = vshll.u32 %v3720, 23
      %v3722 = vor.u32 4788187, %v3721
      %v3723 = vand.u32 2147483647, %v3722
      %v3725 = vcvt.s32.f32 %v3718
      %v3726 = vmul.f32 %v3725, %v3723
      %v3727 = vxor.u32 %v3726, 2147483648
      %v3728 = vsel %vm3645, %v3727, %v3726
      %v3729 = vsub.s32 4, %v3705
      %v3730 = vsel %vm3645, %v3729, %v3705
      %v3731 = vsel %vm3644, %v2476, %v3728
      %v3732 = vsel %vm3644, 0, %v3730
      %v3733 = vcosq.f32.pop %v3731
      %v3734 = vsinq.f32.pop %v3731
      %vm3735 = vweird.f32 %v2476
      %v3736 = vadd.s32 %v3732, 3
      %v3737 = vand.u32 %v3736, 3
      %vm3738 = vcmp.lt.s32.totalorder %v3737, 2
      %vm3739 = vcmp.eq.s32.totalorder %v3737, 0
      %v3740 = vxor.u32 %v3734, 2147483648
      %v3741 = vsel %vm3739, %v3733, %v3740
      %vm3742 = vcmp.eq.s32.totalorder %v3737, 2
      %v3743 = vxor.u32 %v3733, 2147483648
      %v3744 = vsel %vm3742, %v3743, %v3734
      %v3745 = vsel %vm3738, %v3741, %v3744
      %v3746 = vsel %vm3735, nan, %v3745
      %v3747 = vand.u32 2147483647, %v2481
      %vm3748 = vcmp.le.f32.partialorder %v3747, 0.7853982
      %vm3749 = vcmp.lt.s32.totalorder %v2481, 0
      %v3750 = vand.u32 %v2481, 2139095040
      %v3751 = vshrl.u32 %v3750, 23
      %v3752 = vsub.s32 %v3751, 127
      %v3753 = vand.u32 2147483647, %v2481
      %v3754 = vand.u32 %v3753, 8388607
      %v3755 = vor.u32 %v3754, 8388608
      %v3756 = vsub.s32 0, %v3755
      %v3757 = vadd.s32 %v3752, 1
      %vm3758 = vcmp.gt.s32.totalorder %v3757, 0
      %v3759 = vsel %vm3758, %v3757, 0
      %v3760 = vshrl.u32 %v3759, 5
      %v3761 = vand.u32 %v3759, 31
      %v3762 = vsub.s32 32, %v3761
      %v3763 = vshrl.u32 683565275, %v3762
      %v3764 = vshll.u32 683565275, %v3761
      %v3765 = vshrl.u32 2475754826, %v3762
      %v3766 = vor.u32 %v3764, %v3765
      %v3767 = vshll.u32 2475754826, %v3761
      %v3768 = vshrl.u32 2131351028, %v3762
      %v3769 = vor.u32 %v3767, %v3768
      %v3770 = vshll.u32 2131351028, %v3761
      %v3771 = vshrl.u32 2102212464, %v3762
      %v3772 = vor.u32 %v3770, %v3771
      %v3773 = vshll.u32 2102212464, %v3761
      %v3774 = vshrl.u32 920167782, %v3762
      %v3775 = vor.u32 %v3773, %v3774
      %v3776 = vshll.u32 920167782, %v3761
      %v3777 = vshrl.u32 1326507024, %v3762
      %v3778 = vor.u32 %v3776, %v3777
      %vm3779 = vcmp.lt.s32.totalorder %v3760, 1
      %vm3780 = vcmp.lt.s32.totalorder %v3760, 2
      %vm3781 = vcmp.lt.s32.totalorder %v3760, 3
      %vm3782 = vcmp.lt.s32.totalorder %v3760, 4
      %v3783 = vsel %vm3779, %v3763, %v3766
      %v3784 = vsel %vm3782, %v3772, 2102212464
      %v3785 = vsel %vm3781, %v3769, %v3784
      %v3786 = vsel %vm3780, %v3783, %v3785
      %v3787 = vsel %vm3779, %v3766, %v3769
      %v3788 = vsel %vm3782, %v3775, 920167782
      %v3789 = vsel %vm3781, %v3772, %v3788
      %v3790 = vsel %vm3780, %v3787, %v3789
      %v3791 = vsel %vm3779, %v3769, %v3772
      %v3792 = vsel %vm3782, %v3778, 1326507024
      %v3793 = vsel %vm3781, %v3775, %v3792
      %v3794 = vsel %vm3780, %v3791, %v3793
      %v3795 = vshll.u32 %v3755, 8
      %v3796 = vmul.u32.u64.compose %v3795, %v3794
      %v3797 = vextract.low.u32 %v3796
      %v3798 = vextract.high.u32 %v3796
      %v3799 = vmul.u32.u64.compose %v3795, %v3790
      %v3800 = vextract.low.u32 %v3799
      %v3801 = vextract.high.u32 %v3799
      %v3802 = vmul.u32 %v3795, %v3786
      %v3803 = vadd.s32 %v3798, %v3800
      %vm3804 = vc.u32 %v3798, %v3800
      %v3805 = vadd.s32 %v3801, 1
      %v3806 = vsel %vm3804, %v3805, %v3801
      %v3807 = vadd.s32 %v3802, %v3806
      %v3808 = vadd.s32 %v3807, 536870912
      %v3809 = vshrl.u32 %v3808, 30
      %v3810 = vshll.u32 %v3809, 30
      %v3811 = vsub.s32 %v3807, %v3810
      %vm3812 = vcmp.lt.s32.totalorder %v3811, 0
      %v3813 = vsub.s32 0, %v3811
      %v3814 = vsel %vm3812, %v3813, %v3811
      %v3815 = vclz %v3814
      %v3816 = vsub.s32 %v3815, 2
      %vm3817 = vcmp.gt.s32.totalorder 0, %v3816
      %v3818 = vsel %vm3817, 0, %v3816
      %v3819 = vsub.s32 32, %v3818
      %v3820 = vshll.u32 %v3811, %v3818
      %v3821 = vshrl.u32 %v3803, %v3819
      %v3822 = vor.u32 %v3820, %v3821
      %v3823 = vsub.s32 4294967266, %v3818
      %v3824 = vadd.s32 %v3823, 127
      %v3825 = vshll.u32 %v3824, 23
      %v3826 = vor.u32 4788187, %v3825
      %v3827 = vand.u32 2147483647, %v3826
      %v3829 = vcvt.s32.f32 %v3822
      %v3830 = vmul.f32 %v3829, %v3827
      %v3831 = vxor.u32 %v3830, 2147483648
      %v3832 = vsel %vm3749, %v3831, %v3830
      %v3833 = vsub.s32 4, %v3809
      %v3834 = vsel %vm3749, %v3833, %v3809
      %v3835 = vsel %vm3748, %v2481, %v3832
      %v3836 = vsel %vm3748, 0, %v3834
      %v3837 = vcosq.f32.pop %v3835
      %v3838 = vsinq.f32.pop %v3835
      %vm3839 = vweird.f32 %v2481
      %v3840 = vadd.s32 %v3836, 3
      %v3841 = vand.u32 %v3840, 3
      %vm3842 = vcmp.lt.s32.totalorder %v3841, 2
      %vm3843 = vcmp.eq.s32.totalorder %v3841, 0
      %v3844 = vxor.u32 %v3838, 2147483648
      %v3845 = vsel %vm3843, %v3837, %v3844
      %vm3846 = vcmp.eq.s32.totalorder %v3841, 2
      %v3847 = vxor.u32 %v3837, 2147483648
      %v3848 = vsel %vm3846, %v3847, %v3838
      %v3849 = vsel %vm3842, %v3845, %v3848
      %v3850 = vsel %vm3839, nan, %v3849
      %v3851 = vand.u32 2147483647, %v2486
      %vm3852 = vcmp.le.f32.partialorder %v3851, 0.7853982
      %vm3853 = vcmp.lt.s32.totalorder %v2486, 0
      %v3854 = vand.u32 %v2486, 2139095040
      %v3855 = vshrl.u32 %v3854, 23
      %v3856 = vsub.s32 %v3855, 127
      %v3857 = vand.u32 2147483647, %v2486
      %v3858 = vand.u32 %v3857, 8388607
      %v3859 = vor.u32 %v3858, 8388608
      %v3860 = vsub.s32 0, %v3859
      %v3861 = vadd.s32 %v3856, 1
      %vm3862 = vcmp.gt.s32.totalorder %v3861, 0
      %v3863 = vsel %vm3862, %v3861, 0
      %v3864 = vshrl.u32 %v3863, 5
      %v3865 = vand.u32 %v3863, 31
      %v3866 = vsub.s32 32, %v3865
      %v3867 = vshrl.u32 683565275, %v3866
      %v3868 = vshll.u32 683565275, %v3865
      %v3869 = vshrl.u32 2475754826, %v3866
      %v3870 = vor.u32 %v3868, %v3869
      %v3871 = vshll.u32 2475754826, %v3865
      %v3872 = vshrl.u32 2131351028, %v3866
      %v3873 = vor.u32 %v3871, %v3872
      %v3874 = vshll.u32 2131351028, %v3865
      %v3875 = vshrl.u32 2102212464, %v3866
      %v3876 = vor.u32 %v3874, %v3875
      %v3877 = vshll.u32 2102212464, %v3865
      %v3878 = vshrl.u32 920167782, %v3866
      %v3879 = vor.u32 %v3877, %v3878
      %v3880 = vshll.u32 920167782, %v3865
      %v3881 = vshrl.u32 1326507024, %v3866
      %v3882 = vor.u32 %v3880, %v3881
      %vm3883 = vcmp.lt.s32.totalorder %v3864, 1
      %vm3884 = vcmp.lt.s32.totalorder %v3864, 2
      %vm3885 = vcmp.lt.s32.totalorder %v3864, 3
      %vm3886 = vcmp.lt.s32.totalorder %v3864, 4
      %v3887 = vsel %vm3883, %v3867, %v3870
      %v3888 = vsel %vm3886, %v3876, 2102212464
      %v3889 = vsel %vm3885, %v3873, %v3888
      %v3890 = vsel %vm3884, %v3887, %v3889
      %v3891 = vsel %vm3883, %v3870, %v3873
      %v3892 = vsel %vm3886, %v3879, 920167782
      %v3893 = vsel %vm3885, %v3876, %v3892
      %v3894 = vsel %vm3884, %v3891, %v3893
      %v3895 = vsel %vm3883, %v3873, %v3876
      %v3896 = vsel %vm3886, %v3882, 1326507024
      %v3897 = vsel %vm3885, %v3879, %v3896
      %v3898 = vsel %vm3884, %v3895, %v3897
      %v3899 = vshll.u32 %v3859, 8
      %v3900 = vmul.u32.u64.compose %v3899, %v3898
      %v3901 = vextract.low.u32 %v3900
      %v3902 = vextract.high.u32 %v3900
      %v3903 = vmul.u32.u64.compose %v3899, %v3894
      %v3904 = vextract.low.u32 %v3903
      %v3905 = vextract.high.u32 %v3903
      %v3906 = vmul.u32 %v3899, %v3890
      %v3907 = vadd.s32 %v3902, %v3904
      %vm3908 = vc.u32 %v3902, %v3904
      %v3909 = vadd.s32 %v3905, 1
      %v3910 = vsel %vm3908, %v3909, %v3905
      %v3911 = vadd.s32 %v3906, %v3910
      %v3912 = vadd.s32 %v3911, 536870912
      %v3913 = vshrl.u32 %v3912, 30
      %v3914 = vshll.u32 %v3913, 30
      %v3915 = vsub.s32 %v3911, %v3914
      %vm3916 = vcmp.lt.s32.totalorder %v3915, 0
      %v3917 = vsub.s32 0, %v3915
      %v3918 = vsel %vm3916, %v3917, %v3915
      %v3919 = vclz %v3918
      %v3920 = vsub.s32 %v3919, 2
      %vm3921 = vcmp.gt.s32.totalorder 0, %v3920
      %v3922 = vsel %vm3921, 0, %v3920
      %v3923 = vsub.s32 32, %v3922
      %v3924 = vshll.u32 %v3915, %v3922
      %v3925 = vshrl.u32 %v3907, %v3923
      %v3926 = vor.u32 %v3924, %v3925
      %v3927 = vsub.s32 4294967266, %v3922
      %v3928 = vadd.s32 %v3927, 127
      %v3929 = vshll.u32 %v3928, 23
      %v3930 = vor.u32 4788187, %v3929
      %v3931 = vand.u32 2147483647, %v3930
      %v3933 = vcvt.s32.f32 %v3926
      %v3934 = vmul.f32 %v3933, %v3931
      %v3935 = vxor.u32 %v3934, 2147483648
      %v3936 = vsel %vm3853, %v3935, %v3934
      %v3937 = vsub.s32 4, %v3913
      %v3938 = vsel %vm3853, %v3937, %v3913
      %v3939 = vsel %vm3852, %v2486, %v3936
      %v3940 = vsel %vm3852, 0, %v3938
      %v3941 = vcosq.f32.pop %v3939
      %v3942 = vsinq.f32.pop %v3939
      %vm3943 = vweird.f32 %v2486
      %v3944 = vadd.s32 %v3940, 3
      %v3945 = vand.u32 %v3944, 3
      %vm3946 = vcmp.lt.s32.totalorder %v3945, 2
      %vm3947 = vcmp.eq.s32.totalorder %v3945, 0
      %v3948 = vxor.u32 %v3942, 2147483648
      %v3949 = vsel %vm3947, %v3941, %v3948
      %vm3950 = vcmp.eq.s32.totalorder %v3945, 2
      %v3951 = vxor.u32 %v3941, 2147483648
      %v3952 = vsel %vm3950, %v3951, %v3942
      %v3953 = vsel %vm3946, %v3949, %v3952
      %v3954 = vsel %vm3943, nan, %v3953
      %v3955 = vand.u32 2147483647, %v2491
      %vm3956 = vcmp.le.f32.partialorder %v3955, 0.7853982
      %vm3957 = vcmp.lt.s32.totalorder %v2491, 0
      %v3958 = vand.u32 %v2491, 2139095040
      %v3959 = vshrl.u32 %v3958, 23
      %v3960 = vsub.s32 %v3959, 127
      %v3961 = vand.u32 2147483647, %v2491
      %v3962 = vand.u32 %v3961, 8388607
      %v3963 = vor.u32 %v3962, 8388608
      %v3964 = vsub.s32 0, %v3963
      %v3965 = vadd.s32 %v3960, 1
      %vm3966 = vcmp.gt.s32.totalorder %v3965, 0
      %v3967 = vsel %vm3966, %v3965, 0
      %v3968 = vshrl.u32 %v3967, 5
      %v3969 = vand.u32 %v3967, 31
      %v3970 = vsub.s32 32, %v3969
      %v3971 = vshrl.u32 683565275, %v3970
      %v3972 = vshll.u32 683565275, %v3969
      %v3973 = vshrl.u32 2475754826, %v3970
      %v3974 = vor.u32 %v3972, %v3973
      %v3975 = vshll.u32 2475754826, %v3969
      %v3976 = vshrl.u32 2131351028, %v3970
      %v3977 = vor.u32 %v3975, %v3976
      %v3978 = vshll.u32 2131351028, %v3969
      %v3979 = vshrl.u32 2102212464, %v3970
      %v3980 = vor.u32 %v3978, %v3979
      %v3981 = vshll.u32 2102212464, %v3969
      %v3982 = vshrl.u32 920167782, %v3970
      %v3983 = vor.u32 %v3981, %v3982
      %v3984 = vshll.u32 920167782, %v3969
      %v3985 = vshrl.u32 1326507024, %v3970
      %v3986 = vor.u32 %v3984, %v3985
      %vm3987 = vcmp.lt.s32.totalorder %v3968, 1
      %vm3988 = vcmp.lt.s32.totalorder %v3968, 2
      %vm3989 = vcmp.lt.s32.totalorder %v3968, 3
      %vm3990 = vcmp.lt.s32.totalorder %v3968, 4
      %v3991 = vsel %vm3987, %v3971, %v3974
      %v3992 = vsel %vm3990, %v3980, 2102212464
      %v3993 = vsel %vm3989, %v3977, %v3992
      %v3994 = vsel %vm3988, %v3991, %v3993
      %v3995 = vsel %vm3987, %v3974, %v3977
      %v3996 = vsel %vm3990, %v3983, 920167782
      %v3997 = vsel %vm3989, %v3980, %v3996
      %v3998 = vsel %vm3988, %v3995, %v3997
      %v3999 = vsel %vm3987, %v3977, %v3980
      %v4000 = vsel %vm3990, %v3986, 1326507024
      %v4001 = vsel %vm3989, %v3983, %v4000
      %v4002 = vsel %vm3988, %v3999, %v4001
      %v4003 = vshll.u32 %v3963, 8
      %v4004 = vmul.u32.u64.compose %v4003, %v4002
      %v4005 = vextract.low.u32 %v4004
      %v4006 = vextract.high.u32 %v4004
      %v4007 = vmul.u32.u64.compose %v4003, %v3998
      %v4008 = vextract.low.u32 %v4007
      %v4009 = vextract.high.u32 %v4007
      %v4010 = vmul.u32 %v4003, %v3994
      %v4011 = vadd.s32 %v4006, %v4008
      %vm4012 = vc.u32 %v4006, %v4008
      %v4013 = vadd.s32 %v4009, 1
      %v4014 = vsel %vm4012, %v4013, %v4009
      %v4015 = vadd.s32 %v4010, %v4014
      %v4016 = vadd.s32 %v4015, 536870912
      %v4017 = vshrl.u32 %v4016, 30
      %v4018 = vshll.u32 %v4017, 30
      %v4019 = vsub.s32 %v4015, %v4018
      %vm4020 = vcmp.lt.s32.totalorder %v4019, 0
      %v4021 = vsub.s32 0, %v4019
      %v4022 = vsel %vm4020, %v4021, %v4019
      %v4023 = vclz %v4022
      %v4024 = vsub.s32 %v4023, 2
      %vm4025 = vcmp.gt.s32.totalorder 0, %v4024
      %v4026 = vsel %vm4025, 0, %v4024
      %v4027 = vsub.s32 32, %v4026
      %v4028 = vshll.u32 %v4019, %v4026
      %v4029 = vshrl.u32 %v4011, %v4027
      %v4030 = vor.u32 %v4028, %v4029
      %v4031 = vsub.s32 4294967266, %v4026
      %v4032 = vadd.s32 %v4031, 127
      %v4033 = vshll.u32 %v4032, 23
      %v4034 = vor.u32 4788187, %v4033
      %v4035 = vand.u32 2147483647, %v4034
      %v4037 = vcvt.s32.f32 %v4030
      %v4038 = vmul.f32 %v4037, %v4035
      %v4039 = vxor.u32 %v4038, 2147483648
      %v4040 = vsel %vm3957, %v4039, %v4038
      %v4041 = vsub.s32 4, %v4017
      %v4042 = vsel %vm3957, %v4041, %v4017
      %v4043 = vsel %vm3956, %v2491, %v4040
      %v4044 = vsel %vm3956, 0, %v4042
      %v4045 = vcosq.f32.pop %v4043
      %v4046 = vsinq.f32.pop %v4043
      %vm4047 = vweird.f32 %v2491
      %v4048 = vadd.s32 %v4044, 3
      %v4049 = vand.u32 %v4048, 3
      %vm4050 = vcmp.lt.s32.totalorder %v4049, 2
      %vm4051 = vcmp.eq.s32.totalorder %v4049, 0
      %v4052 = vxor.u32 %v4046, 2147483648
      %v4053 = vsel %vm4051, %v4045, %v4052
      %vm4054 = vcmp.eq.s32.totalorder %v4049, 2
      %v4055 = vxor.u32 %v4045, 2147483648
      %v4056 = vsel %vm4054, %v4055, %v4046
      %v4057 = vsel %vm4050, %v4053, %v4056
      %v4058 = vsel %vm4047, nan, %v4057
      %v4059 = vand.u32 2147483647, %v2496
      %vm4060 = vcmp.le.f32.partialorder %v4059, 0.7853982
      %vm4061 = vcmp.lt.s32.totalorder %v2496, 0
      %v4062 = vand.u32 %v2496, 2139095040
      %v4063 = vshrl.u32 %v4062, 23
      %v4064 = vsub.s32 %v4063, 127
      %v4065 = vand.u32 2147483647, %v2496
      %v4066 = vand.u32 %v4065, 8388607
      %v4067 = vor.u32 %v4066, 8388608
      %v4068 = vsub.s32 0, %v4067
      %v4069 = vadd.s32 %v4064, 1
      %vm4070 = vcmp.gt.s32.totalorder %v4069, 0
      %v4071 = vsel %vm4070, %v4069, 0
      %v4072 = vshrl.u32 %v4071, 5
      %v4073 = vand.u32 %v4071, 31
      %v4074 = vsub.s32 32, %v4073
      %v4075 = vshrl.u32 683565275, %v4074
      %v4076 = vshll.u32 683565275, %v4073
      %v4077 = vshrl.u32 2475754826, %v4074
      %v4078 = vor.u32 %v4076, %v4077
      %v4079 = vshll.u32 2475754826, %v4073
      %v4080 = vshrl.u32 2131351028, %v4074
      %v4081 = vor.u32 %v4079, %v4080
      %v4082 = vshll.u32 2131351028, %v4073
      %v4083 = vshrl.u32 2102212464, %v4074
      %v4084 = vor.u32 %v4082, %v4083
      %v4085 = vshll.u32 2102212464, %v4073
      %v4086 = vshrl.u32 920167782, %v4074
      %v4087 = vor.u32 %v4085, %v4086
      %v4088 = vshll.u32 920167782, %v4073
      %v4089 = vshrl.u32 1326507024, %v4074
      %v4090 = vor.u32 %v4088, %v4089
      %vm4091 = vcmp.lt.s32.totalorder %v4072, 1
      %vm4092 = vcmp.lt.s32.totalorder %v4072, 2
      %vm4093 = vcmp.lt.s32.totalorder %v4072, 3
      %vm4094 = vcmp.lt.s32.totalorder %v4072, 4
      %v4095 = vsel %vm4091, %v4075, %v4078
      %v4096 = vsel %vm4094, %v4084, 2102212464
      %v4097 = vsel %vm4093, %v4081, %v4096
      %v4098 = vsel %vm4092, %v4095, %v4097
      %v4099 = vsel %vm4091, %v4078, %v4081
      %v4100 = vsel %vm4094, %v4087, 920167782
      %v4101 = vsel %vm4093, %v4084, %v4100
      %v4102 = vsel %vm4092, %v4099, %v4101
      %v4103 = vsel %vm4091, %v4081, %v4084
      %v4104 = vsel %vm4094, %v4090, 1326507024
      %v4105 = vsel %vm4093, %v4087, %v4104
      %v4106 = vsel %vm4092, %v4103, %v4105
      %v4107 = vshll.u32 %v4067, 8
      %v4108 = vmul.u32.u64.compose %v4107, %v4106
      %v4109 = vextract.low.u32 %v4108
      %v4110 = vextract.high.u32 %v4108
      %v4111 = vmul.u32.u64.compose %v4107, %v4102
      %v4112 = vextract.low.u32 %v4111
      %v4113 = vextract.high.u32 %v4111
      %v4114 = vmul.u32 %v4107, %v4098
      %v4115 = vadd.s32 %v4110, %v4112
      %vm4116 = vc.u32 %v4110, %v4112
      %v4117 = vadd.s32 %v4113, 1
      %v4118 = vsel %vm4116, %v4117, %v4113
      %v4119 = vadd.s32 %v4114, %v4118
      %v4120 = vadd.s32 %v4119, 536870912
      %v4121 = vshrl.u32 %v4120, 30
      %v4122 = vshll.u32 %v4121, 30
      %v4123 = vsub.s32 %v4119, %v4122
      %vm4124 = vcmp.lt.s32.totalorder %v4123, 0
      %v4125 = vsub.s32 0, %v4123
      %v4126 = vsel %vm4124, %v4125, %v4123
      %v4127 = vclz %v4126
      %v4128 = vsub.s32 %v4127, 2
      %vm4129 = vcmp.gt.s32.totalorder 0, %v4128
      %v4130 = vsel %vm4129, 0, %v4128
      %v4131 = vsub.s32 32, %v4130
      %v4132 = vshll.u32 %v4123, %v4130
      %v4133 = vshrl.u32 %v4115, %v4131
      %v4134 = vor.u32 %v4132, %v4133
      %v4135 = vsub.s32 4294967266, %v4130
      %v4136 = vadd.s32 %v4135, 127
      %v4137 = vshll.u32 %v4136, 23
      %v4138 = vor.u32 4788187, %v4137
      %v4139 = vand.u32 2147483647, %v4138
      %v4141 = vcvt.s32.f32 %v4134
      %v4142 = vmul.f32 %v4141, %v4139
      %v4143 = vxor.u32 %v4142, 2147483648
      %v4144 = vsel %vm4061, %v4143, %v4142
      %v4145 = vsub.s32 4, %v4121
      %v4146 = vsel %vm4061, %v4145, %v4121
      %v4147 = vsel %vm4060, %v2496, %v4144
      %v4148 = vsel %vm4060, 0, %v4146
      %v4149 = vcosq.f32.pop %v4147
      %v4150 = vsinq.f32.pop %v4147
      %vm4151 = vweird.f32 %v2496
      %v4152 = vadd.s32 %v4148, 3
      %v4153 = vand.u32 %v4152, 3
      %vm4154 = vcmp.lt.s32.totalorder %v4153, 2
      %vm4155 = vcmp.eq.s32.totalorder %v4153, 0
      %v4156 = vxor.u32 %v4150, 2147483648
      %v4157 = vsel %vm4155, %v4149, %v4156
      %vm4158 = vcmp.eq.s32.totalorder %v4153, 2
      %v4159 = vxor.u32 %v4149, 2147483648
      %v4160 = vsel %vm4158, %v4159, %v4150
      %v4161 = vsel %vm4154, %v4157, %v4160
      %v4162 = vsel %vm4151, nan, %v4161
      %v4163 = vmul.f32 %v317, %v2602
      %v4164 = vmul.f32 %v317, %v2706
      %v4165 = vmul.f32 %v317, %v2810
      %v4166 = vmul.f32 %v317, %v2914
      %v4167 = vmul.f32 %v317, %v3018
      %v4168 = vmul.f32 %v317, %v3122
      %v4169 = vmul.f32 %v317, %v3226
      %v4170 = vmul.f32 %v317, %v3330
      %v4171 = vmul.f32 %v317, %v3434
      %v4172 = vmul.f32 %v317, %v3538
      %v4173 = vmul.f32 %v317, %v3642
      %v4174 = vmul.f32 %v317, %v3746
      %v4175 = vmul.f32 %v317, %v3850
      %v4176 = vmul.f32 %v317, %v3954
      %v4177 = vmul.f32 %v317, %v4058
      %v4178 = vmul.f32 %v317, %v4162
      %v4179 = vadd.f32 %v4163, %v321
      %v4180 = vadd.f32 %v4164, %v321
      %v4181 = vadd.f32 %v4165, %v321
      %v4182 = vadd.f32 %v4166, %v321
      %v4183 = vadd.f32 %v4167, %v321
      %v4184 = vadd.f32 %v4168, %v321
      %v4185 = vadd.f32 %v4169, %v321
      %v4186 = vadd.f32 %v4170, %v321
      %v4187 = vadd.f32 %v4171, %v321
      %v4188 = vadd.f32 %v4172, %v321
      %v4189 = vadd.f32 %v4173, %v321
      %v4190 = vadd.f32 %v4174, %v321
      %v4191 = vadd.f32 %v4175, %v321
      %v4192 = vadd.f32 %v4176, %v321
      %v4193 = vadd.f32 %v4177, %v321
      %v4194 = vadd.f32 %v4178, %v321
      %s4195 = scalar_lea.vmem %s4, 32
      %v4196 = vld [vmem:[%s4195] sm:$0xff]
      %v4197 = vld [vmem:[%s4195 + $0x8] sm:$0xff]
      %v4198 = vld [vmem:[%s4195 + $0x10] sm:$0xff]
      %v4199 = vld [vmem:[%s4195 + $0x18] sm:$0xff]
      %v4200 = vmul.f32 %v348, %v4196
      %v4201 = vmul.f32 %v348, %v4197
      %v4202 = vmul.f32 %v348, %v4198
      %v4203 = vmul.f32 %v348, %v4199
      %s4204 = scalar_lea.vmem %s5, 1
      %v4205 = vld [vmem:[%s4204] sm:$0x1]
      %v4206 = vmul.f32 %v359, %v4205
      %v4207 = vadd.f32 %v4206, %v368
      %v4209 = vlaneseq
      %v4210 = vshrl.u32 %v4209, 7
      %v4211 = vsub.s32 0, %v4210
      %v4212 = vrot.slane %v4207, %v4211
      %v4215 = vsel %vm2305, %v4179, 0
      %v4218 = vsel %vm2305, %v4180, 0
      %v4221 = vsel %vm2305, %v4181, 0
      %v4224 = vsel %vm2305, %v4182, 0
      %v4227 = vsel %vm2305, %v4183, 0
      %v4230 = vsel %vm2305, %v4184, 0
      %v4233 = vsel %vm2305, %v4185, 0
      %v4236 = vsel %vm2305, %v4186, 0
      %v4239 = vsel %vm2305, %v4187, 0
      %v4242 = vsel %vm2305, %v4188, 0
      %v4245 = vsel %vm2305, %v4189, 0
      %v4248 = vsel %vm2305, %v4190, 0
      %v4251 = vsel %vm2305, %v4191, 0
      %v4254 = vsel %vm2305, %v4192, 0
      %v4257 = vsel %vm2305, %v4193, 0
      %v4260 = vsel %vm2305, %v4194, 0
      %4262 = vmatprep.subr.mxu0 0.0
      %4263 = vmatpush1.msra.mxu0 %v4200
      %4264 = vmatprep.subr.mxu0 0.0
      %4265 = vmatpush1.msra.mxu0 %v4201
      %4266 = vmatprep.subr.mxu0 0.0
      %4267 = vmatpush1.msra.mxu0 %v4202
      %4268 = vmatprep.subr.mxu0 0.0
      %4269 = vmatpush1.msra.mxu0 %v4203
      %4270 = vmatprep.subr.mxu0 0.0
      %4271 = vmatpush1.msra.mxu0 0.0
      %4272 = vmatprep.subr.mxu0 0.0
      %4273 = vmatpush1.msra.mxu0 0.0
      %4274 = vmatprep.subr.mxu0 0.0
      %4275 = vmatpush1.msra.mxu0 0.0
      %4276 = vmatprep.subr.mxu0 0.0
      %4277 = vmatpush1.msra.mxu0 0.0
      %4278 = vmatprep.subr.mxu0 0.0
      %4279 = vmatpush1.msra.mxu0 0.0
      %4280 = vmatprep.subr.mxu0 0.0
      %4281 = vmatpush1.msra.mxu0 0.0
      %4282 = vmatprep.subr.mxu0 0.0
      %4283 = vmatpush1.msra.mxu0 0.0
      %4284 = vmatprep.subr.mxu0 0.0
      %4285 = vmatpush1.msra.mxu0 0.0
      %4286 = vmatprep.subr.mxu0 0.0
      %4287 = vmatpush1.msra.mxu0 0.0
      %4288 = vmatprep.subr.mxu0 0.0
      %4289 = vmatpush1.msra.mxu0 0.0
      %4290 = vmatprep.subr.mxu0 0.0
      %4291 = vmatpush1.msra.mxu0 0.0
      %4292 = vmatprep.subr.mxu0 0.0
      %4293 = vmatpush1.msra.mxu0 0.0
      %4294 = vmatprep.subr.mxu0 0.0
      %4295 = vmatpush1.msra.mxu0 0.0
      %4296 = vmatprep.subr.mxu0 0.0
      %4297 = vmatpush1.msra.mxu0 0.0
      %4298 = vmatprep.subr.mxu0 0.0
      %4299 = vmatpush1.msra.mxu0 0.0
      %4300 = vmatprep.subr.mxu0 0.0
      %4301 = vmatpush1.msra.mxu0 0.0
      %4302 = vmatprep.subr.mxu0 0.0
      %4303 = vmatpush1.msra.mxu0 0.0
      %4304 = vmatprep.subr.mxu0 0.0
      %4305 = vmatpush1.msra.mxu0 0.0
      %4306 = vmatprep.subr.mxu0 0.0
      %4307 = vmatpush1.msra.mxu0 0.0
      %4308 = vmatprep.subr.mxu0 0.0
      %4309 = vmatpush1.msra.mxu0 0.0
      %4310 = vmatprep.subr.mxu0 0.0
      %4311 = vmatpush1.msra.mxu0 0.0
      %4312 = vmatprep.subr.mxu0 0.0
      %4313 = vmatpush1.msra.mxu0 0.0
      %4314 = vmatprep.subr.mxu0 0.0
      %4315 = vmatpush1.msra.mxu0 0.0
      %4316 = vmatprep.subr.mxu0 0.0
      %4317 = vmatpush1.msra.mxu0 0.0
      %4318 = vmatprep.subr.mxu0 0.0
      %4319 = vmatpush1.msra.mxu0 0.0
      %4320 = vmatprep.subr.mxu0 0.0
      %4321 = vmatpush1.msra.mxu0 0.0
      %4322 = vmatprep.subr.mxu0 0.0
      %4323 = vmatpush1.msra.mxu0 0.0
      %4324 = vmatprep.subr.mxu0 0.0
      %4325 = vmatpush1.msra.mxu0 0.0
      %4326 = vmatprep.mubr.f32.mxu0 0.0
      %4327 = vmatmul.mubr.f32.gmra.mrb[0].mxu0 %v4215
      %v4328 = vpop.f32.mrb[0].mxu0
      %v4329 = vadd.f32 %v4212, %v4328
      %v4330 = vpop.f32.mrb[0].mxu0
      %4331 = vmatprep.mubr.f32.mxu0 0.0
      %4332 = vmatmul.mubr.f32.gmra.mrb[0].mxu0 %v4218
      %v4333 = vpop.f32.mrb[0].mxu0
      %v4334 = vadd.f32 %v4212, %v4333
      %v4335 = vpop.f32.mrb[0].mxu0
      %4336 = vmatprep.mubr.f32.mxu0 0.0
      %4337 = vmatmul.mubr.f32.gmra.mrb[0].mxu0 %v4221
      %v4338 = vpop.f32.mrb[0].mxu0
      %v4339 = vadd.f32 %v4212, %v4338
      %v4340 = vpop.f32.mrb[0].mxu0
      %4341 = vmatprep.mubr.f32.mxu0 0.0
      %4342 = vmatmul.mubr.f32.gmra.mrb[0].mxu0 %v4224
      %v4343 = vpop.f32.mrb[0].mxu0
      %v4344 = vadd.f32 %v4212, %v4343
      %v4345 = vpop.f32.mrb[0].mxu0
      %4346 = vmatprep.mubr.f32.mxu0 0.0
      %4347 = vmatmul.mubr.f32.gmra.mrb[0].mxu0 %v4227
      %v4348 = vpop.f32.mrb[0].mxu0
      %v4349 = vadd.f32 %v4212, %v4348
      %v4350 = vpop.f32.mrb[0].mxu0
      %4351 = vmatprep.mubr.f32.mxu0 0.0
      %4352 = vmatmul.mubr.f32.gmra.mrb[0].mxu0 %v4230
      %v4353 = vpop.f32.mrb[0].mxu0
      %v4354 = vadd.f32 %v4212, %v4353
      %v4355 = vpop.f32.mrb[0].mxu0
      %4356 = vmatprep.mubr.f32.mxu0 0.0
      %4357 = vmatmul.mubr.f32.gmra.mrb[0].mxu0 %v4233
      %v4358 = vpop.f32.mrb[0].mxu0
      %v4359 = vadd.f32 %v4212, %v4358
      %v4360 = vpop.f32.mrb[0].mxu0
      %4361 = vmatprep.mubr.f32.mxu0 0.0
      %4362 = vmatmul.mubr.f32.gmra.mrb[0].mxu0 %v4236
      %v4363 = vpop.f32.mrb[0].mxu0
      %v4364 = vadd.f32 %v4212, %v4363
      %v4365 = vpop.f32.mrb[0].mxu0
      %4366 = vmatprep.mubr.f32.mxu0 0.0
      %4367 = vmatmul.mubr.f32.gmra.mrb[0].mxu0 %v4239
      %v4368 = vpop.f32.mrb[0].mxu0
      %v4369 = vadd.f32 %v4212, %v4368
      %v4370 = vpop.f32.mrb[0].mxu0
      %4371 = vmatprep.mubr.f32.mxu0 0.0
      %4372 = vmatmul.mubr.f32.gmra.mrb[0].mxu0 %v4242
      %v4373 = vpop.f32.mrb[0].mxu0
      %v4374 = vadd.f32 %v4212, %v4373
      %v4375 = vpop.f32.mrb[0].mxu0
      %4376 = vmatprep.mubr.f32.mxu0 0.0
      %4377 = vmatmul.mubr.f32.gmra.mrb[0].mxu0 %v4245
      %v4378 = vpop.f32.mrb[0].mxu0
      %v4379 = vadd.f32 %v4212, %v4378
      %v4380 = vpop.f32.mrb[0].mxu0
      %4381 = vmatprep.mubr.f32.mxu0 0.0
      %4382 = vmatmul.mubr.f32.gmra.mrb[0].mxu0 %v4248
      %v4383 = vpop.f32.mrb[0].mxu0
      %v4384 = vadd.f32 %v4212, %v4383
      %v4385 = vpop.f32.mrb[0].mxu0
      %4386 = vmatprep.mubr.f32.mxu0 0.0
      %4387 = vmatmul.mubr.f32.gmra.mrb[0].mxu0 %v4251
      %v4388 = vpop.f32.mrb[0].mxu0
      %v4389 = vadd.f32 %v4212, %v4388
      %v4390 = vpop.f32.mrb[0].mxu0
      %4391 = vmatprep.mubr.f32.mxu0 0.0
      %4392 = vmatmul.mubr.f32.gmra.mrb[0].mxu0 %v4254
      %v4393 = vpop.f32.mrb[0].mxu0
      %v4394 = vadd.f32 %v4212, %v4393
      %v4395 = vpop.f32.mrb[0].mxu0
      %4396 = vmatprep.mubr.f32.mxu0 0.0
      %4397 = vmatmul.mubr.f32.gmra.mrb[0].mxu0 %v4257
      %v4398 = vpop.f32.mrb[0].mxu0
      %v4399 = vadd.f32 %v4212, %v4398
      %v4400 = vpop.f32.mrb[0].mxu0
      %4401 = vmatprep.mubr.f32.mxu0 0.0
      %4402 = vmatmul.mubr.f32.gmra.mrb[0].mxu0 %v4260
      %v4403 = vpop.f32.mrb[0].mxu0
      %v4404 = vadd.f32 %v4212, %v4403
      %v4405 = vpop.f32.mrb[0].mxu0
      %4406 = vdwg.mxu0
      %v4407 = vand.u32 2147483647, %v4329
      %vm4408 = vcmp.le.f32.partialorder %v4407, 0.7853982
      %vm4409 = vcmp.lt.s32.totalorder %v4329, 0
      %v4410 = vand.u32 %v4329, 2139095040
      %v4411 = vshrl.u32 %v4410, 23
      %v4412 = vsub.s32 %v4411, 127
      %v4413 = vand.u32 2147483647, %v4329
      %v4414 = vand.u32 %v4413, 8388607
      %v4415 = vor.u32 %v4414, 8388608
      %v4416 = vsub.s32 0, %v4415
      %v4417 = vadd.s32 %v4412, 1
      %vm4418 = vcmp.gt.s32.totalorder %v4417, 0
      %v4419 = vsel %vm4418, %v4417, 0
      %v4420 = vshrl.u32 %v4419, 5
      %v4421 = vand.u32 %v4419, 31
      %v4422 = vsub.s32 32, %v4421
      %v4423 = vshrl.u32 683565275, %v4422
      %v4424 = vshll.u32 683565275, %v4421
      %v4425 = vshrl.u32 2475754826, %v4422
      %v4426 = vor.u32 %v4424, %v4425
      %v4427 = vshll.u32 2475754826, %v4421
      %v4428 = vshrl.u32 2131351028, %v4422
      %v4429 = vor.u32 %v4427, %v4428
      %v4430 = vshll.u32 2131351028, %v4421
      %v4431 = vshrl.u32 2102212464, %v4422
      %v4432 = vor.u32 %v4430, %v4431
      %v4433 = vshll.u32 2102212464, %v4421
      %v4434 = vshrl.u32 920167782, %v4422
      %v4435 = vor.u32 %v4433, %v4434
      %v4436 = vshll.u32 920167782, %v4421
      %v4437 = vshrl.u32 1326507024, %v4422
      %v4438 = vor.u32 %v4436, %v4437
      %vm4439 = vcmp.lt.s32.totalorder %v4420, 1
      %vm4440 = vcmp.lt.s32.totalorder %v4420, 2
      %vm4441 = vcmp.lt.s32.totalorder %v4420, 3
      %vm4442 = vcmp.lt.s32.totalorder %v4420, 4
      %v4443 = vsel %vm4439, %v4423, %v4426
      %v4444 = vsel %vm4442, %v4432, 2102212464
      %v4445 = vsel %vm4441, %v4429, %v4444
      %v4446 = vsel %vm4440, %v4443, %v4445
      %v4447 = vsel %vm4439, %v4426, %v4429
      %v4448 = vsel %vm4442, %v4435, 920167782
      %v4449 = vsel %vm4441, %v4432, %v4448
      %v4450 = vsel %vm4440, %v4447, %v4449
      %v4451 = vsel %vm4439, %v4429, %v4432
      %v4452 = vsel %vm4442, %v4438, 1326507024
      %v4453 = vsel %vm4441, %v4435, %v4452
      %v4454 = vsel %vm4440, %v4451, %v4453
      %v4455 = vshll.u32 %v4415, 8
      %v4456 = vmul.u32.u64.compose %v4455, %v4454
      %v4457 = vextract.low.u32 %v4456
      %v4458 = vextract.high.u32 %v4456
      %v4459 = vmul.u32.u64.compose %v4455, %v4450
      %v4460 = vextract.low.u32 %v4459
      %v4461 = vextract.high.u32 %v4459
      %v4462 = vmul.u32 %v4455, %v4446
      %v4463 = vadd.s32 %v4458, %v4460
      %vm4464 = vc.u32 %v4458, %v4460
      %v4465 = vadd.s32 %v4461, 1
      %v4466 = vsel %vm4464, %v4465, %v4461
      %v4467 = vadd.s32 %v4462, %v4466
      %v4468 = vadd.s32 %v4467, 536870912
      %v4469 = vshrl.u32 %v4468, 30
      %v4470 = vshll.u32 %v4469, 30
      %v4471 = vsub.s32 %v4467, %v4470
      %vm4472 = vcmp.lt.s32.totalorder %v4471, 0
      %v4473 = vsub.s32 0, %v4471
      %v4474 = vsel %vm4472, %v4473, %v4471
      %v4475 = vclz %v4474
      %v4476 = vsub.s32 %v4475, 2
      %vm4477 = vcmp.gt.s32.totalorder 0, %v4476
      %v4478 = vsel %vm4477, 0, %v4476
      %v4479 = vsub.s32 32, %v4478
      %v4480 = vshll.u32 %v4471, %v4478
      %v4481 = vshrl.u32 %v4463, %v4479
      %v4482 = vor.u32 %v4480, %v4481
      %v4483 = vsub.s32 4294967266, %v4478
      %v4484 = vadd.s32 %v4483, 127
      %v4485 = vshll.u32 %v4484, 23
      %v4486 = vor.u32 4788187, %v4485
      %v4487 = vand.u32 2147483647, %v4486
      %v4489 = vcvt.s32.f32 %v4482
      %v4490 = vmul.f32 %v4489, %v4487
      %v4491 = vxor.u32 %v4490, 2147483648
      %v4492 = vsel %vm4409, %v4491, %v4490
      %v4493 = vsub.s32 4, %v4469
      %v4494 = vsel %vm4409, %v4493, %v4469
      %v4495 = vsel %vm4408, %v4329, %v4492
      %v4496 = vsel %vm4408, 0, %v4494
      %v4497 = vcosq.f32.pop %v4495
      %v4498 = vsinq.f32.pop %v4495
      %vm4499 = vweird.f32 %v4329
      %v4500 = vadd.s32 %v4496, 3
      %v4501 = vand.u32 %v4500, 3
      %vm4502 = vcmp.lt.s32.totalorder %v4501, 2
      %vm4503 = vcmp.eq.s32.totalorder %v4501, 0
      %v4504 = vxor.u32 %v4498, 2147483648
      %v4505 = vsel %vm4503, %v4497, %v4504
      %vm4506 = vcmp.eq.s32.totalorder %v4501, 2
      %v4507 = vxor.u32 %v4497, 2147483648
      %v4508 = vsel %vm4506, %v4507, %v4498
      %v4509 = vsel %vm4502, %v4505, %v4508
      %v4510 = vsel %vm4499, nan, %v4509
      %v4511 = vand.u32 2147483647, %v4334
      %vm4512 = vcmp.le.f32.partialorder %v4511, 0.7853982
      %vm4513 = vcmp.lt.s32.totalorder %v4334, 0
      %v4514 = vand.u32 %v4334, 2139095040
      %v4515 = vshrl.u32 %v4514, 23
      %v4516 = vsub.s32 %v4515, 127
      %v4517 = vand.u32 2147483647, %v4334
      %v4518 = vand.u32 %v4517, 8388607
      %v4519 = vor.u32 %v4518, 8388608
      %v4520 = vsub.s32 0, %v4519
      %v4521 = vadd.s32 %v4516, 1
      %vm4522 = vcmp.gt.s32.totalorder %v4521, 0
      %v4523 = vsel %vm4522, %v4521, 0
      %v4524 = vshrl.u32 %v4523, 5
      %v4525 = vand.u32 %v4523, 31
      %v4526 = vsub.s32 32, %v4525
      %v4527 = vshrl.u32 683565275, %v4526
      %v4528 = vshll.u32 683565275, %v4525
      %v4529 = vshrl.u32 2475754826, %v4526
      %v4530 = vor.u32 %v4528, %v4529
      %v4531 = vshll.u32 2475754826, %v4525
      %v4532 = vshrl.u32 2131351028, %v4526
      %v4533 = vor.u32 %v4531, %v4532
      %v4534 = vshll.u32 2131351028, %v4525
      %v4535 = vshrl.u32 2102212464, %v4526
      %v4536 = vor.u32 %v4534, %v4535
      %v4537 = vshll.u32 2102212464, %v4525
      %v4538 = vshrl.u32 920167782, %v4526
      %v4539 = vor.u32 %v4537, %v4538
      %v4540 = vshll.u32 920167782, %v4525
      %v4541 = vshrl.u32 1326507024, %v4526
      %v4542 = vor.u32 %v4540, %v4541
      %vm4543 = vcmp.lt.s32.totalorder %v4524, 1
      %vm4544 = vcmp.lt.s32.totalorder %v4524, 2
      %vm4545 = vcmp.lt.s32.totalorder %v4524, 3
      %vm4546 = vcmp.lt.s32.totalorder %v4524, 4
      %v4547 = vsel %vm4543, %v4527, %v4530
      %v4548 = vsel %vm4546, %v4536, 2102212464
      %v4549 = vsel %vm4545, %v4533, %v4548
      %v4550 = vsel %vm4544, %v4547, %v4549
      %v4551 = vsel %vm4543, %v4530, %v4533
      %v4552 = vsel %vm4546, %v4539, 920167782
      %v4553 = vsel %vm4545, %v4536, %v4552
      %v4554 = vsel %vm4544, %v4551, %v4553
      %v4555 = vsel %vm4543, %v4533, %v4536
      %v4556 = vsel %vm4546, %v4542, 1326507024
      %v4557 = vsel %vm4545, %v4539, %v4556
      %v4558 = vsel %vm4544, %v4555, %v4557
      %v4559 = vshll.u32 %v4519, 8
      %v4560 = vmul.u32.u64.compose %v4559, %v4558
      %v4561 = vextract.low.u32 %v4560
      %v4562 = vextract.high.u32 %v4560
      %v4563 = vmul.u32.u64.compose %v4559, %v4554
      %v4564 = vextract.low.u32 %v4563
      %v4565 = vextract.high.u32 %v4563
      %v4566 = vmul.u32 %v4559, %v4550
      %v4567 = vadd.s32 %v4562, %v4564
      %vm4568 = vc.u32 %v4562, %v4564
      %v4569 = vadd.s32 %v4565, 1
      %v4570 = vsel %vm4568, %v4569, %v4565
      %v4571 = vadd.s32 %v4566, %v4570
      %v4572 = vadd.s32 %v4571, 536870912
      %v4573 = vshrl.u32 %v4572, 30
      %v4574 = vshll.u32 %v4573, 30
      %v4575 = vsub.s32 %v4571, %v4574
      %vm4576 = vcmp.lt.s32.totalorder %v4575, 0
      %v4577 = vsub.s32 0, %v4575
      %v4578 = vsel %vm4576, %v4577, %v4575
      %v4579 = vclz %v4578
      %v4580 = vsub.s32 %v4579, 2
      %vm4581 = vcmp.gt.s32.totalorder 0, %v4580
      %v4582 = vsel %vm4581, 0, %v4580
      %v4583 = vsub.s32 32, %v4582
      %v4584 = vshll.u32 %v4575, %v4582
      %v4585 = vshrl.u32 %v4567, %v4583
      %v4586 = vor.u32 %v4584, %v4585
      %v4587 = vsub.s32 4294967266, %v4582
      %v4588 = vadd.s32 %v4587, 127
      %v4589 = vshll.u32 %v4588, 23
      %v4590 = vor.u32 4788187, %v4589
      %v4591 = vand.u32 2147483647, %v4590
      %v4593 = vcvt.s32.f32 %v4586
      %v4594 = vmul.f32 %v4593, %v4591
      %v4595 = vxor.u32 %v4594, 2147483648
      %v4596 = vsel %vm4513, %v4595, %v4594
      %v4597 = vsub.s32 4, %v4573
      %v4598 = vsel %vm4513, %v4597, %v4573
      %v4599 = vsel %vm4512, %v4334, %v4596
      %v4600 = vsel %vm4512, 0, %v4598
      %v4601 = vcosq.f32.pop %v4599
      %v4602 = vsinq.f32.pop %v4599
      %vm4603 = vweird.f32 %v4334
      %v4604 = vadd.s32 %v4600, 3
      %v4605 = vand.u32 %v4604, 3
      %vm4606 = vcmp.lt.s32.totalorder %v4605, 2
      %vm4607 = vcmp.eq.s32.totalorder %v4605, 0
      %v4608 = vxor.u32 %v4602, 2147483648
      %v4609 = vsel %vm4607, %v4601, %v4608
      %vm4610 = vcmp.eq.s32.totalorder %v4605, 2
      %v4611 = vxor.u32 %v4601, 2147483648
      %v4612 = vsel %vm4610, %v4611, %v4602
      %v4613 = vsel %vm4606, %v4609, %v4612
      %v4614 = vsel %vm4603, nan, %v4613
      %v4615 = vand.u32 2147483647, %v4339
      %vm4616 = vcmp.le.f32.partialorder %v4615, 0.7853982
      %vm4617 = vcmp.lt.s32.totalorder %v4339, 0
      %v4618 = vand.u32 %v4339, 2139095040
      %v4619 = vshrl.u32 %v4618, 23
      %v4620 = vsub.s32 %v4619, 127
      %v4621 = vand.u32 2147483647, %v4339
      %v4622 = vand.u32 %v4621, 8388607
      %v4623 = vor.u32 %v4622, 8388608
      %v4624 = vsub.s32 0, %v4623
      %v4625 = vadd.s32 %v4620, 1
      %vm4626 = vcmp.gt.s32.totalorder %v4625, 0
      %v4627 = vsel %vm4626, %v4625, 0
      %v4628 = vshrl.u32 %v4627, 5
      %v4629 = vand.u32 %v4627, 31
      %v4630 = vsub.s32 32, %v4629
      %v4631 = vshrl.u32 683565275, %v4630
      %v4632 = vshll.u32 683565275, %v4629
      %v4633 = vshrl.u32 2475754826, %v4630
      %v4634 = vor.u32 %v4632, %v4633
      %v4635 = vshll.u32 2475754826, %v4629
      %v4636 = vshrl.u32 2131351028, %v4630
      %v4637 = vor.u32 %v4635, %v4636
      %v4638 = vshll.u32 2131351028, %v4629
      %v4639 = vshrl.u32 2102212464, %v4630
      %v4640 = vor.u32 %v4638, %v4639
      %v4641 = vshll.u32 2102212464, %v4629
      %v4642 = vshrl.u32 920167782, %v4630
      %v4643 = vor.u32 %v4641, %v4642
      %v4644 = vshll.u32 920167782, %v4629
      %v4645 = vshrl.u32 1326507024, %v4630
      %v4646 = vor.u32 %v4644, %v4645
      %vm4647 = vcmp.lt.s32.totalorder %v4628, 1
      %vm4648 = vcmp.lt.s32.totalorder %v4628, 2
      %vm4649 = vcmp.lt.s32.totalorder %v4628, 3
      %vm4650 = vcmp.lt.s32.totalorder %v4628, 4
      %v4651 = vsel %vm4647, %v4631, %v4634
      %v4652 = vsel %vm4650, %v4640, 2102212464
      %v4653 = vsel %vm4649, %v4637, %v4652
      %v4654 = vsel %vm4648, %v4651, %v4653
      %v4655 = vsel %vm4647, %v4634, %v4637
      %v4656 = vsel %vm4650, %v4643, 920167782
      %v4657 = vsel %vm4649, %v4640, %v4656
      %v4658 = vsel %vm4648, %v4655, %v4657
      %v4659 = vsel %vm4647, %v4637, %v4640
      %v4660 = vsel %vm4650, %v4646, 1326507024
      %v4661 = vsel %vm4649, %v4643, %v4660
      %v4662 = vsel %vm4648, %v4659, %v4661
      %v4663 = vshll.u32 %v4623, 8
      %v4664 = vmul.u32.u64.compose %v4663, %v4662
      %v4665 = vextract.low.u32 %v4664
      %v4666 = vextract.high.u32 %v4664
      %v4667 = vmul.u32.u64.compose %v4663, %v4658
      %v4668 = vextract.low.u32 %v4667
      %v4669 = vextract.high.u32 %v4667
      %v4670 = vmul.u32 %v4663, %v4654
      %v4671 = vadd.s32 %v4666, %v4668
      %vm4672 = vc.u32 %v4666, %v4668
      %v4673 = vadd.s32 %v4669, 1
      %v4674 = vsel %vm4672, %v4673, %v4669
      %v4675 = vadd.s32 %v4670, %v4674
      %v4676 = vadd.s32 %v4675, 536870912
      %v4677 = vshrl.u32 %v4676, 30
      %v4678 = vshll.u32 %v4677, 30
      %v4679 = vsub.s32 %v4675, %v4678
      %vm4680 = vcmp.lt.s32.totalorder %v4679, 0
      %v4681 = vsub.s32 0, %v4679
      %v4682 = vsel %vm4680, %v4681, %v4679
      %v4683 = vclz %v4682
      %v4684 = vsub.s32 %v4683, 2
      %vm4685 = vcmp.gt.s32.totalorder 0, %v4684
      %v4686 = vsel %vm4685, 0, %v4684
      %v4687 = vsub.s32 32, %v4686
      %v4688 = vshll.u32 %v4679, %v4686
      %v4689 = vshrl.u32 %v4671, %v4687
      %v4690 = vor.u32 %v4688, %v4689
      %v4691 = vsub.s32 4294967266, %v4686
      %v4692 = vadd.s32 %v4691, 127
      %v4693 = vshll.u32 %v4692, 23
      %v4694 = vor.u32 4788187, %v4693
      %v4695 = vand.u32 2147483647, %v4694
      %v4697 = vcvt.s32.f32 %v4690
      %v4698 = vmul.f32 %v4697, %v4695
      %v4699 = vxor.u32 %v4698, 2147483648
      %v4700 = vsel %vm4617, %v4699, %v4698
      %v4701 = vsub.s32 4, %v4677
      %v4702 = vsel %vm4617, %v4701, %v4677
      %v4703 = vsel %vm4616, %v4339, %v4700
      %v4704 = vsel %vm4616, 0, %v4702
      %v4705 = vcosq.f32.pop %v4703
      %v4706 = vsinq.f32.pop %v4703
      %vm4707 = vweird.f32 %v4339
      %v4708 = vadd.s32 %v4704, 3
      %v4709 = vand.u32 %v4708, 3
      %vm4710 = vcmp.lt.s32.totalorder %v4709, 2
      %vm4711 = vcmp.eq.s32.totalorder %v4709, 0
      %v4712 = vxor.u32 %v4706, 2147483648
      %v4713 = vsel %vm4711, %v4705, %v4712
      %vm4714 = vcmp.eq.s32.totalorder %v4709, 2
      %v4715 = vxor.u32 %v4705, 2147483648
      %v4716 = vsel %vm4714, %v4715, %v4706
      %v4717 = vsel %vm4710, %v4713, %v4716
      %v4718 = vsel %vm4707, nan, %v4717
      %v4719 = vand.u32 2147483647, %v4344
      %vm4720 = vcmp.le.f32.partialorder %v4719, 0.7853982
      %vm4721 = vcmp.lt.s32.totalorder %v4344, 0
      %v4722 = vand.u32 %v4344, 2139095040
      %v4723 = vshrl.u32 %v4722, 23
      %v4724 = vsub.s32 %v4723, 127
      %v4725 = vand.u32 2147483647, %v4344
      %v4726 = vand.u32 %v4725, 8388607
      %v4727 = vor.u32 %v4726, 8388608
      %v4728 = vsub.s32 0, %v4727
      %v4729 = vadd.s32 %v4724, 1
      %vm4730 = vcmp.gt.s32.totalorder %v4729, 0
      %v4731 = vsel %vm4730, %v4729, 0
      %v4732 = vshrl.u32 %v4731, 5
      %v4733 = vand.u32 %v4731, 31
      %v4734 = vsub.s32 32, %v4733
      %v4735 = vshrl.u32 683565275, %v4734
      %v4736 = vshll.u32 683565275, %v4733
      %v4737 = vshrl.u32 2475754826, %v4734
      %v4738 = vor.u32 %v4736, %v4737
      %v4739 = vshll.u32 2475754826, %v4733
      %v4740 = vshrl.u32 2131351028, %v4734
      %v4741 = vor.u32 %v4739, %v4740
      %v4742 = vshll.u32 2131351028, %v4733
      %v4743 = vshrl.u32 2102212464, %v4734
      %v4744 = vor.u32 %v4742, %v4743
      %v4745 = vshll.u32 2102212464, %v4733
      %v4746 = vshrl.u32 920167782, %v4734
      %v4747 = vor.u32 %v4745, %v4746
      %v4748 = vshll.u32 920167782, %v4733
      %v4749 = vshrl.u32 1326507024, %v4734
      %v4750 = vor.u32 %v4748, %v4749
      %vm4751 = vcmp.lt.s32.totalorder %v4732, 1
      %vm4752 = vcmp.lt.s32.totalorder %v4732, 2
      %vm4753 = vcmp.lt.s32.totalorder %v4732, 3
      %vm4754 = vcmp.lt.s32.totalorder %v4732, 4
      %v4755 = vsel %vm4751, %v4735, %v4738
      %v4756 = vsel %vm4754, %v4744, 2102212464
      %v4757 = vsel %vm4753, %v4741, %v4756
      %v4758 = vsel %vm4752, %v4755, %v4757
      %v4759 = vsel %vm4751, %v4738, %v4741
      %v4760 = vsel %vm4754, %v4747, 920167782
      %v4761 = vsel %vm4753, %v4744, %v4760
      %v4762 = vsel %vm4752, %v4759, %v4761
      %v4763 = vsel %vm4751, %v4741, %v4744
      %v4764 = vsel %vm4754, %v4750, 1326507024
      %v4765 = vsel %vm4753, %v4747, %v4764
      %v4766 = vsel %vm4752, %v4763, %v4765
      %v4767 = vshll.u32 %v4727, 8
      %v4768 = vmul.u32.u64.compose %v4767, %v4766
      %v4769 = vextract.low.u32 %v4768
      %v4770 = vextract.high.u32 %v4768
      %v4771 = vmul.u32.u64.compose %v4767, %v4762
      %v4772 = vextract.low.u32 %v4771
      %v4773 = vextract.high.u32 %v4771
      %v4774 = vmul.u32 %v4767, %v4758
      %v4775 = vadd.s32 %v4770, %v4772
      %vm4776 = vc.u32 %v4770, %v4772
      %v4777 = vadd.s32 %v4773, 1
      %v4778 = vsel %vm4776, %v4777, %v4773
      %v4779 = vadd.s32 %v4774, %v4778
      %v4780 = vadd.s32 %v4779, 536870912
      %v4781 = vshrl.u32 %v4780, 30
      %v4782 = vshll.u32 %v4781, 30
      %v4783 = vsub.s32 %v4779, %v4782
      %vm4784 = vcmp.lt.s32.totalorder %v4783, 0
      %v4785 = vsub.s32 0, %v4783
      %v4786 = vsel %vm4784, %v4785, %v4783
      %v4787 = vclz %v4786
      %v4788 = vsub.s32 %v4787, 2
      %vm4789 = vcmp.gt.s32.totalorder 0, %v4788
      %v4790 = vsel %vm4789, 0, %v4788
      %v4791 = vsub.s32 32, %v4790
      %v4792 = vshll.u32 %v4783, %v4790
      %v4793 = vshrl.u32 %v4775, %v4791
      %v4794 = vor.u32 %v4792, %v4793
      %v4795 = vsub.s32 4294967266, %v4790
      %v4796 = vadd.s32 %v4795, 127
      %v4797 = vshll.u32 %v4796, 23
      %v4798 = vor.u32 4788187, %v4797
      %v4799 = vand.u32 2147483647, %v4798
      %v4801 = vcvt.s32.f32 %v4794
      %v4802 = vmul.f32 %v4801, %v4799
      %v4803 = vxor.u32 %v4802, 2147483648
      %v4804 = vsel %vm4721, %v4803, %v4802
      %v4805 = vsub.s32 4, %v4781
      %v4806 = vsel %vm4721, %v4805, %v4781
      %v4807 = vsel %vm4720, %v4344, %v4804
      %v4808 = vsel %vm4720, 0, %v4806
      %v4809 = vcosq.f32.pop %v4807
      %v4810 = vsinq.f32.pop %v4807
      %vm4811 = vweird.f32 %v4344
      %v4812 = vadd.s32 %v4808, 3
      %v4813 = vand.u32 %v4812, 3
      %vm4814 = vcmp.lt.s32.totalorder %v4813, 2
      %vm4815 = vcmp.eq.s32.totalorder %v4813, 0
      %v4816 = vxor.u32 %v4810, 2147483648
      %v4817 = vsel %vm4815, %v4809, %v4816
      %vm4818 = vcmp.eq.s32.totalorder %v4813, 2
      %v4819 = vxor.u32 %v4809, 2147483648
      %v4820 = vsel %vm4818, %v4819, %v4810
      %v4821 = vsel %vm4814, %v4817, %v4820
      %v4822 = vsel %vm4811, nan, %v4821
      %v4823 = vand.u32 2147483647, %v4349
      %vm4824 = vcmp.le.f32.partialorder %v4823, 0.7853982
      %vm4825 = vcmp.lt.s32.totalorder %v4349, 0
      %v4826 = vand.u32 %v4349, 2139095040
      %v4827 = vshrl.u32 %v4826, 23
      %v4828 = vsub.s32 %v4827, 127
      %v4829 = vand.u32 2147483647, %v4349
      %v4830 = vand.u32 %v4829, 8388607
      %v4831 = vor.u32 %v4830, 8388608
      %v4832 = vsub.s32 0, %v4831
      %v4833 = vadd.s32 %v4828, 1
      %vm4834 = vcmp.gt.s32.totalorder %v4833, 0
      %v4835 = vsel %vm4834, %v4833, 0
      %v4836 = vshrl.u32 %v4835, 5
      %v4837 = vand.u32 %v4835, 31
      %v4838 = vsub.s32 32, %v4837
      %v4839 = vshrl.u32 683565275, %v4838
      %v4840 = vshll.u32 683565275, %v4837
      %v4841 = vshrl.u32 2475754826, %v4838
      %v4842 = vor.u32 %v4840, %v4841
      %v4843 = vshll.u32 2475754826, %v4837
      %v4844 = vshrl.u32 2131351028, %v4838
      %v4845 = vor.u32 %v4843, %v4844
      %v4846 = vshll.u32 2131351028, %v4837
      %v4847 = vshrl.u32 2102212464, %v4838
      %v4848 = vor.u32 %v4846, %v4847
      %v4849 = vshll.u32 2102212464, %v4837
      %v4850 = vshrl.u32 920167782, %v4838
      %v4851 = vor.u32 %v4849, %v4850
      %v4852 = vshll.u32 920167782, %v4837
      %v4853 = vshrl.u32 1326507024, %v4838
      %v4854 = vor.u32 %v4852, %v4853
      %vm4855 = vcmp.lt.s32.totalorder %v4836, 1
      %vm4856 = vcmp.lt.s32.totalorder %v4836, 2
      %vm4857 = vcmp.lt.s32.totalorder %v4836, 3
      %vm4858 = vcmp.lt.s32.totalorder %v4836, 4
      %v4859 = vsel %vm4855, %v4839, %v4842
      %v4860 = vsel %vm4858, %v4848, 2102212464
      %v4861 = vsel %vm4857, %v4845, %v4860
      %v4862 = vsel %vm4856, %v4859, %v4861
      %v4863 = vsel %vm4855, %v4842, %v4845
      %v4864 = vsel %vm4858, %v4851, 920167782
      %v4865 = vsel %vm4857, %v4848, %v4864
      %v4866 = vsel %vm4856, %v4863, %v4865
      %v4867 = vsel %vm4855, %v4845, %v4848
      %v4868 = vsel %vm4858, %v4854, 1326507024
      %v4869 = vsel %vm4857, %v4851, %v4868
      %v4870 = vsel %vm4856, %v4867, %v4869
      %v4871 = vshll.u32 %v4831, 8
      %v4872 = vmul.u32.u64.compose %v4871, %v4870
      %v4873 = vextract.low.u32 %v4872
      %v4874 = vextract.high.u32 %v4872
      %v4875 = vmul.u32.u64.compose %v4871, %v4866
      %v4876 = vextract.low.u32 %v4875
      %v4877 = vextract.high.u32 %v4875
      %v4878 = vmul.u32 %v4871, %v4862
      %v4879 = vadd.s32 %v4874, %v4876
      %vm4880 = vc.u32 %v4874, %v4876
      %v4881 = vadd.s32 %v4877, 1
      %v4882 = vsel %vm4880, %v4881, %v4877
      %v4883 = vadd.s32 %v4878, %v4882
      %v4884 = vadd.s32 %v4883, 536870912
      %v4885 = vshrl.u32 %v4884, 30
      %v4886 = vshll.u32 %v4885, 30
      %v4887 = vsub.s32 %v4883, %v4886
      %vm4888 = vcmp.lt.s32.totalorder %v4887, 0
      %v4889 = vsub.s32 0, %v4887
      %v4890 = vsel %vm4888, %v4889, %v4887
      %v4891 = vclz %v4890
      %v4892 = vsub.s32 %v4891, 2
      %vm4893 = vcmp.gt.s32.totalorder 0, %v4892
      %v4894 = vsel %vm4893, 0, %v4892
      %v4895 = vsub.s32 32, %v4894
      %v4896 = vshll.u32 %v4887, %v4894
      %v4897 = vshrl.u32 %v4879, %v4895
      %v4898 = vor.u32 %v4896, %v4897
      %v4899 = vsub.s32 4294967266, %v4894
      %v4900 = vadd.s32 %v4899, 127
      %v4901 = vshll.u32 %v4900, 23
      %v4902 = vor.u32 4788187, %v4901
      %v4903 = vand.u32 2147483647, %v4902
      %v4905 = vcvt.s32.f32 %v4898
      %v4906 = vmul.f32 %v4905, %v4903
      %v4907 = vxor.u32 %v4906, 2147483648
      %v4908 = vsel %vm4825, %v4907, %v4906
      %v4909 = vsub.s32 4, %v4885
      %v4910 = vsel %vm4825, %v4909, %v4885
      %v4911 = vsel %vm4824, %v4349, %v4908
      %v4912 = vsel %vm4824, 0, %v4910
      %v4913 = vcosq.f32.pop %v4911
      %v4914 = vsinq.f32.pop %v4911
      %vm4915 = vweird.f32 %v4349
      %v4916 = vadd.s32 %v4912, 3
      %v4917 = vand.u32 %v4916, 3
      %vm4918 = vcmp.lt.s32.totalorder %v4917, 2
      %vm4919 = vcmp.eq.s32.totalorder %v4917, 0
      %v4920 = vxor.u32 %v4914, 2147483648
      %v4921 = vsel %vm4919, %v4913, %v4920
      %vm4922 = vcmp.eq.s32.totalorder %v4917, 2
      %v4923 = vxor.u32 %v4913, 2147483648
      %v4924 = vsel %vm4922, %v4923, %v4914
      %v4925 = vsel %vm4918, %v4921, %v4924
      %v4926 = vsel %vm4915, nan, %v4925
      %v4927 = vand.u32 2147483647, %v4354
      %vm4928 = vcmp.le.f32.partialorder %v4927, 0.7853982
      %vm4929 = vcmp.lt.s32.totalorder %v4354, 0
      %v4930 = vand.u32 %v4354, 2139095040
      %v4931 = vshrl.u32 %v4930, 23
      %v4932 = vsub.s32 %v4931, 127
      %v4933 = vand.u32 2147483647, %v4354
      %v4934 = vand.u32 %v4933, 8388607
      %v4935 = vor.u32 %v4934, 8388608
      %v4936 = vsub.s32 0, %v4935
      %v4937 = vadd.s32 %v4932, 1
      %vm4938 = vcmp.gt.s32.totalorder %v4937, 0
      %v4939 = vsel %vm4938, %v4937, 0
      %v4940 = vshrl.u32 %v4939, 5
      %v4941 = vand.u32 %v4939, 31
      %v4942 = vsub.s32 32, %v4941
      %v4943 = vshrl.u32 683565275, %v4942
      %v4944 = vshll.u32 683565275, %v4941
      %v4945 = vshrl.u32 2475754826, %v4942
      %v4946 = vor.u32 %v4944, %v4945
      %v4947 = vshll.u32 2475754826, %v4941
      %v4948 = vshrl.u32 2131351028, %v4942
      %v4949 = vor.u32 %v4947, %v4948
      %v4950 = vshll.u32 2131351028, %v4941
      %v4951 = vshrl.u32 2102212464, %v4942
      %v4952 = vor.u32 %v4950, %v4951
      %v4953 = vshll.u32 2102212464, %v4941
      %v4954 = vshrl.u32 920167782, %v4942
      %v4955 = vor.u32 %v4953, %v4954
      %v4956 = vshll.u32 920167782, %v4941
      %v4957 = vshrl.u32 1326507024, %v4942
      %v4958 = vor.u32 %v4956, %v4957
      %vm4959 = vcmp.lt.s32.totalorder %v4940, 1
      %vm4960 = vcmp.lt.s32.totalorder %v4940, 2
      %vm4961 = vcmp.lt.s32.totalorder %v4940, 3
      %vm4962 = vcmp.lt.s32.totalorder %v4940, 4
      %v4963 = vsel %vm4959, %v4943, %v4946
      %v4964 = vsel %vm4962, %v4952, 2102212464
      %v4965 = vsel %vm4961, %v4949, %v4964
      %v4966 = vsel %vm4960, %v4963, %v4965
      %v4967 = vsel %vm4959, %v4946, %v4949
      %v4968 = vsel %vm4962, %v4955, 920167782
      %v4969 = vsel %vm4961, %v4952, %v4968
      %v4970 = vsel %vm4960, %v4967, %v4969
      %v4971 = vsel %vm4959, %v4949, %v4952
      %v4972 = vsel %vm4962, %v4958, 1326507024
      %v4973 = vsel %vm4961, %v4955, %v4972
      %v4974 = vsel %vm4960, %v4971, %v4973
      %v4975 = vshll.u32 %v4935, 8
      %v4976 = vmul.u32.u64.compose %v4975, %v4974
      %v4977 = vextract.low.u32 %v4976
      %v4978 = vextract.high.u32 %v4976
      %v4979 = vmul.u32.u64.compose %v4975, %v4970
      %v4980 = vextract.low.u32 %v4979
      %v4981 = vextract.high.u32 %v4979
      %v4982 = vmul.u32 %v4975, %v4966
      %v4983 = vadd.s32 %v4978, %v4980
      %vm4984 = vc.u32 %v4978, %v4980
      %v4985 = vadd.s32 %v4981, 1
      %v4986 = vsel %vm4984, %v4985, %v4981
      %v4987 = vadd.s32 %v4982, %v4986
      %v4988 = vadd.s32 %v4987, 536870912
      %v4989 = vshrl.u32 %v4988, 30
      %v4990 = vshll.u32 %v4989, 30
      %v4991 = vsub.s32 %v4987, %v4990
      %vm4992 = vcmp.lt.s32.totalorder %v4991, 0
      %v4993 = vsub.s32 0, %v4991
      %v4994 = vsel %vm4992, %v4993, %v4991
      %v4995 = vclz %v4994
      %v4996 = vsub.s32 %v4995, 2
      %vm4997 = vcmp.gt.s32.totalorder 0, %v4996
      %v4998 = vsel %vm4997, 0, %v4996
      %v4999 = vsub.s32 32, %v4998
      %v5000 = vshll.u32 %v4991, %v4998
      %v5001 = vshrl.u32 %v4983, %v4999
      %v5002 = vor.u32 %v5000, %v5001
      %v5003 = vsub.s32 4294967266, %v4998
      %v5004 = vadd.s32 %v5003, 127
      %v5005 = vshll.u32 %v5004, 23
      %v5006 = vor.u32 4788187, %v5005
      %v5007 = vand.u32 2147483647, %v5006
      %v5009 = vcvt.s32.f32 %v5002
      %v5010 = vmul.f32 %v5009, %v5007
      %v5011 = vxor.u32 %v5010, 2147483648
      %v5012 = vsel %vm4929, %v5011, %v5010
      %v5013 = vsub.s32 4, %v4989
      %v5014 = vsel %vm4929, %v5013, %v4989
      %v5015 = vsel %vm4928, %v4354, %v5012
      %v5016 = vsel %vm4928, 0, %v5014
      %v5017 = vcosq.f32.pop %v5015
      %v5018 = vsinq.f32.pop %v5015
      %vm5019 = vweird.f32 %v4354
      %v5020 = vadd.s32 %v5016, 3
      %v5021 = vand.u32 %v5020, 3
      %vm5022 = vcmp.lt.s32.totalorder %v5021, 2
      %vm5023 = vcmp.eq.s32.totalorder %v5021, 0
      %v5024 = vxor.u32 %v5018, 2147483648
      %v5025 = vsel %vm5023, %v5017, %v5024
      %vm5026 = vcmp.eq.s32.totalorder %v5021, 2
      %v5027 = vxor.u32 %v5017, 2147483648
      %v5028 = vsel %vm5026, %v5027, %v5018
      %v5029 = vsel %vm5022, %v5025, %v5028
      %v5030 = vsel %vm5019, nan, %v5029
      %v5031 = vand.u32 2147483647, %v4359
      %vm5032 = vcmp.le.f32.partialorder %v5031, 0.7853982
      %vm5033 = vcmp.lt.s32.totalorder %v4359, 0
      %v5034 = vand.u32 %v4359, 2139095040
      %v5035 = vshrl.u32 %v5034, 23
      %v5036 = vsub.s32 %v5035, 127
      %v5037 = vand.u32 2147483647, %v4359
      %v5038 = vand.u32 %v5037, 8388607
      %v5039 = vor.u32 %v5038, 8388608
      %v5040 = vsub.s32 0, %v5039
      %v5041 = vadd.s32 %v5036, 1
      %vm5042 = vcmp.gt.s32.totalorder %v5041, 0
      %v5043 = vsel %vm5042, %v5041, 0
      %v5044 = vshrl.u32 %v5043, 5
      %v5045 = vand.u32 %v5043, 31
      %v5046 = vsub.s32 32, %v5045
      %v5047 = vshrl.u32 683565275, %v5046
      %v5048 = vshll.u32 683565275, %v5045
      %v5049 = vshrl.u32 2475754826, %v5046
      %v5050 = vor.u32 %v5048, %v5049
      %v5051 = vshll.u32 2475754826, %v5045
      %v5052 = vshrl.u32 2131351028, %v5046
      %v5053 = vor.u32 %v5051, %v5052
      %v5054 = vshll.u32 2131351028, %v5045
      %v5055 = vshrl.u32 2102212464, %v5046
      %v5056 = vor.u32 %v5054, %v5055
      %v5057 = vshll.u32 2102212464, %v5045
      %v5058 = vshrl.u32 920167782, %v5046
      %v5059 = vor.u32 %v5057, %v5058
      %v5060 = vshll.u32 920167782, %v5045
      %v5061 = vshrl.u32 1326507024, %v5046
      %v5062 = vor.u32 %v5060, %v5061
      %vm5063 = vcmp.lt.s32.totalorder %v5044, 1
      %vm5064 = vcmp.lt.s32.totalorder %v5044, 2
      %vm5065 = vcmp.lt.s32.totalorder %v5044, 3
      %vm5066 = vcmp.lt.s32.totalorder %v5044, 4
      %v5067 = vsel %vm5063, %v5047, %v5050
      %v5068 = vsel %vm5066, %v5056, 2102212464
      %v5069 = vsel %vm5065, %v5053, %v5068
      %v5070 = vsel %vm5064, %v5067, %v5069
      %v5071 = vsel %vm5063, %v5050, %v5053
      %v5072 = vsel %vm5066, %v5059, 920167782
      %v5073 = vsel %vm5065, %v5056, %v5072
      %v5074 = vsel %vm5064, %v5071, %v5073
      %v5075 = vsel %vm5063, %v5053, %v5056
      %v5076 = vsel %vm5066, %v5062, 1326507024
      %v5077 = vsel %vm5065, %v5059, %v5076
      %v5078 = vsel %vm5064, %v5075, %v5077
      %v5079 = vshll.u32 %v5039, 8
      %v5080 = vmul.u32.u64.compose %v5079, %v5078
      %v5081 = vextract.low.u32 %v5080
      %v5082 = vextract.high.u32 %v5080
      %v5083 = vmul.u32.u64.compose %v5079, %v5074
      %v5084 = vextract.low.u32 %v5083
      %v5085 = vextract.high.u32 %v5083
      %v5086 = vmul.u32 %v5079, %v5070
      %v5087 = vadd.s32 %v5082, %v5084
      %vm5088 = vc.u32 %v5082, %v5084
      %v5089 = vadd.s32 %v5085, 1
      %v5090 = vsel %vm5088, %v5089, %v5085
      %v5091 = vadd.s32 %v5086, %v5090
      %v5092 = vadd.s32 %v5091, 536870912
      %v5093 = vshrl.u32 %v5092, 30
      %v5094 = vshll.u32 %v5093, 30
      %v5095 = vsub.s32 %v5091, %v5094
      %vm5096 = vcmp.lt.s32.totalorder %v5095, 0
      %v5097 = vsub.s32 0, %v5095
      %v5098 = vsel %vm5096, %v5097, %v5095
      %v5099 = vclz %v5098
      %v5100 = vsub.s32 %v5099, 2
      %vm5101 = vcmp.gt.s32.totalorder 0, %v5100
      %v5102 = vsel %vm5101, 0, %v5100
      %v5103 = vsub.s32 32, %v5102
      %v5104 = vshll.u32 %v5095, %v5102
      %v5105 = vshrl.u32 %v5087, %v5103
      %v5106 = vor.u32 %v5104, %v5105
      %v5107 = vsub.s32 4294967266, %v5102
      %v5108 = vadd.s32 %v5107, 127
      %v5109 = vshll.u32 %v5108, 23
      %v5110 = vor.u32 4788187, %v5109
      %v5111 = vand.u32 2147483647, %v5110
      %v5113 = vcvt.s32.f32 %v5106
      %v5114 = vmul.f32 %v5113, %v5111
      %v5115 = vxor.u32 %v5114, 2147483648
      %v5116 = vsel %vm5033, %v5115, %v5114
      %v5117 = vsub.s32 4, %v5093
      %v5118 = vsel %vm5033, %v5117, %v5093
      %v5119 = vsel %vm5032, %v4359, %v5116
      %v5120 = vsel %vm5032, 0, %v5118
      %v5121 = vcosq.f32.pop %v5119
      %v5122 = vsinq.f32.pop %v5119
      %vm5123 = vweird.f32 %v4359
      %v5124 = vadd.s32 %v5120, 3
      %v5125 = vand.u32 %v5124, 3
      %vm5126 = vcmp.lt.s32.totalorder %v5125, 2
      %vm5127 = vcmp.eq.s32.totalorder %v5125, 0
      %v5128 = vxor.u32 %v5122, 2147483648
      %v5129 = vsel %vm5127, %v5121, %v5128
      %vm5130 = vcmp.eq.s32.totalorder %v5125, 2
      %v5131 = vxor.u32 %v5121, 2147483648
      %v5132 = vsel %vm5130, %v5131, %v5122
      %v5133 = vsel %vm5126, %v5129, %v5132
      %v5134 = vsel %vm5123, nan, %v5133
      %v5135 = vand.u32 2147483647, %v4364
      %vm5136 = vcmp.le.f32.partialorder %v5135, 0.7853982
      %vm5137 = vcmp.lt.s32.totalorder %v4364, 0
      %v5138 = vand.u32 %v4364, 2139095040
      %v5139 = vshrl.u32 %v5138, 23
      %v5140 = vsub.s32 %v5139, 127
      %v5141 = vand.u32 2147483647, %v4364
      %v5142 = vand.u32 %v5141, 8388607
      %v5143 = vor.u32 %v5142, 8388608
      %v5144 = vsub.s32 0, %v5143
      %v5145 = vadd.s32 %v5140, 1
      %vm5146 = vcmp.gt.s32.totalorder %v5145, 0
      %v5147 = vsel %vm5146, %v5145, 0
      %v5148 = vshrl.u32 %v5147, 5
      %v5149 = vand.u32 %v5147, 31
      %v5150 = vsub.s32 32, %v5149
      %v5151 = vshrl.u32 683565275, %v5150
      %v5152 = vshll.u32 683565275, %v5149
      %v5153 = vshrl.u32 2475754826, %v5150
      %v5154 = vor.u32 %v5152, %v5153
      %v5155 = vshll.u32 2475754826, %v5149
      %v5156 = vshrl.u32 2131351028, %v5150
      %v5157 = vor.u32 %v5155, %v5156
      %v5158 = vshll.u32 2131351028, %v5149
      %v5159 = vshrl.u32 2102212464, %v5150
      %v5160 = vor.u32 %v5158, %v5159
      %v5161 = vshll.u32 2102212464, %v5149
      %v5162 = vshrl.u32 920167782, %v5150
      %v5163 = vor.u32 %v5161, %v5162
      %v5164 = vshll.u32 920167782, %v5149
      %v5165 = vshrl.u32 1326507024, %v5150
      %v5166 = vor.u32 %v5164, %v5165
      %vm5167 = vcmp.lt.s32.totalorder %v5148, 1
      %vm5168 = vcmp.lt.s32.totalorder %v5148, 2
      %vm5169 = vcmp.lt.s32.totalorder %v5148, 3
      %vm5170 = vcmp.lt.s32.totalorder %v5148, 4
      %v5171 = vsel %vm5167, %v5151, %v5154
      %v5172 = vsel %vm5170, %v5160, 2102212464
      %v5173 = vsel %vm5169, %v5157, %v5172
      %v5174 = vsel %vm5168, %v5171, %v5173
      %v5175 = vsel %vm5167, %v5154, %v5157
      %v5176 = vsel %vm5170, %v5163, 920167782
      %v5177 = vsel %vm5169, %v5160, %v5176
      %v5178 = vsel %vm5168, %v5175, %v5177
      %v5179 = vsel %vm5167, %v5157, %v5160
      %v5180 = vsel %vm5170, %v5166, 1326507024
      %v5181 = vsel %vm5169, %v5163, %v5180
      %v5182 = vsel %vm5168, %v5179, %v5181
      %v5183 = vshll.u32 %v5143, 8
      %v5184 = vmul.u32.u64.compose %v5183, %v5182
      %v5185 = vextract.low.u32 %v5184
      %v5186 = vextract.high.u32 %v5184
      %v5187 = vmul.u32.u64.compose %v5183, %v5178
      %v5188 = vextract.low.u32 %v5187
      %v5189 = vextract.high.u32 %v5187
      %v5190 = vmul.u32 %v5183, %v5174
      %v5191 = vadd.s32 %v5186, %v5188
      %vm5192 = vc.u32 %v5186, %v5188
      %v5193 = vadd.s32 %v5189, 1
      %v5194 = vsel %vm5192, %v5193, %v5189
      %v5195 = vadd.s32 %v5190, %v5194
      %v5196 = vadd.s32 %v5195, 536870912
      %v5197 = vshrl.u32 %v5196, 30
      %v5198 = vshll.u32 %v5197, 30
      %v5199 = vsub.s32 %v5195, %v5198
      %vm5200 = vcmp.lt.s32.totalorder %v5199, 0
      %v5201 = vsub.s32 0, %v5199
      %v5202 = vsel %vm5200, %v5201, %v5199
      %v5203 = vclz %v5202
      %v5204 = vsub.s32 %v5203, 2
      %vm5205 = vcmp.gt.s32.totalorder 0, %v5204
      %v5206 = vsel %vm5205, 0, %v5204
      %v5207 = vsub.s32 32, %v5206
      %v5208 = vshll.u32 %v5199, %v5206
      %v5209 = vshrl.u32 %v5191, %v5207
      %v5210 = vor.u32 %v5208, %v5209
      %v5211 = vsub.s32 4294967266, %v5206
      %v5212 = vadd.s32 %v5211, 127
      %v5213 = vshll.u32 %v5212, 23
      %v5214 = vor.u32 4788187, %v5213
      %v5215 = vand.u32 2147483647, %v5214
      %v5217 = vcvt.s32.f32 %v5210
      %v5218 = vmul.f32 %v5217, %v5215
      %v5219 = vxor.u32 %v5218, 2147483648
      %v5220 = vsel %vm5137, %v5219, %v5218
      %v5221 = vsub.s32 4, %v5197
      %v5222 = vsel %vm5137, %v5221, %v5197
      %v5223 = vsel %vm5136, %v4364, %v5220
      %v5224 = vsel %vm5136, 0, %v5222
      %v5225 = vcosq.f32.pop %v5223
      %v5226 = vsinq.f32.pop %v5223
      %vm5227 = vweird.f32 %v4364
      %v5228 = vadd.s32 %v5224, 3
      %v5229 = vand.u32 %v5228, 3
      %vm5230 = vcmp.lt.s32.totalorder %v5229, 2
      %vm5231 = vcmp.eq.s32.totalorder %v5229, 0
      %v5232 = vxor.u32 %v5226, 2147483648
      %v5233 = vsel %vm5231, %v5225, %v5232
      %vm5234 = vcmp.eq.s32.totalorder %v5229, 2
      %v5235 = vxor.u32 %v5225, 2147483648
      %v5236 = vsel %vm5234, %v5235, %v5226
      %v5237 = vsel %vm5230, %v5233, %v5236
      %v5238 = vsel %vm5227, nan, %v5237
      %v5239 = vand.u32 2147483647, %v4369
      %vm5240 = vcmp.le.f32.partialorder %v5239, 0.7853982
      %vm5241 = vcmp.lt.s32.totalorder %v4369, 0
      %v5242 = vand.u32 %v4369, 2139095040
      %v5243 = vshrl.u32 %v5242, 23
      %v5244 = vsub.s32 %v5243, 127
      %v5245 = vand.u32 2147483647, %v4369
      %v5246 = vand.u32 %v5245, 8388607
      %v5247 = vor.u32 %v5246, 8388608
      %v5248 = vsub.s32 0, %v5247
      %v5249 = vadd.s32 %v5244, 1
      %vm5250 = vcmp.gt.s32.totalorder %v5249, 0
      %v5251 = vsel %vm5250, %v5249, 0
      %v5252 = vshrl.u32 %v5251, 5
      %v5253 = vand.u32 %v5251, 31
      %v5254 = vsub.s32 32, %v5253
      %v5255 = vshrl.u32 683565275, %v5254
      %v5256 = vshll.u32 683565275, %v5253
      %v5257 = vshrl.u32 2475754826, %v5254
      %v5258 = vor.u32 %v5256, %v5257
      %v5259 = vshll.u32 2475754826, %v5253
      %v5260 = vshrl.u32 2131351028, %v5254
      %v5261 = vor.u32 %v5259, %v5260
      %v5262 = vshll.u32 2131351028, %v5253
      %v5263 = vshrl.u32 2102212464, %v5254
      %v5264 = vor.u32 %v5262, %v5263
      %v5265 = vshll.u32 2102212464, %v5253
      %v5266 = vshrl.u32 920167782, %v5254
      %v5267 = vor.u32 %v5265, %v5266
      %v5268 = vshll.u32 920167782, %v5253
      %v5269 = vshrl.u32 1326507024, %v5254
      %v5270 = vor.u32 %v5268, %v5269
      %vm5271 = vcmp.lt.s32.totalorder %v5252, 1
      %vm5272 = vcmp.lt.s32.totalorder %v5252, 2
      %vm5273 = vcmp.lt.s32.totalorder %v5252, 3
      %vm5274 = vcmp.lt.s32.totalorder %v5252, 4
      %v5275 = vsel %vm5271, %v5255, %v5258
      %v5276 = vsel %vm5274, %v5264, 2102212464
      %v5277 = vsel %vm5273, %v5261, %v5276
      %v5278 = vsel %vm5272, %v5275, %v5277
      %v5279 = vsel %vm5271, %v5258, %v5261
      %v5280 = vsel %vm5274, %v5267, 920167782
      %v5281 = vsel %vm5273, %v5264, %v5280
      %v5282 = vsel %vm5272, %v5279, %v5281
      %v5283 = vsel %vm5271, %v5261, %v5264
      %v5284 = vsel %vm5274, %v5270, 1326507024
      %v5285 = vsel %vm5273, %v5267, %v5284
      %v5286 = vsel %vm5272, %v5283, %v5285
      %v5287 = vshll.u32 %v5247, 8
      %v5288 = vmul.u32.u64.compose %v5287, %v5286
      %v5289 = vextract.low.u32 %v5288
      %v5290 = vextract.high.u32 %v5288
      %v5291 = vmul.u32.u64.compose %v5287, %v5282
      %v5292 = vextract.low.u32 %v5291
      %v5293 = vextract.high.u32 %v5291
      %v5294 = vmul.u32 %v5287, %v5278
      %v5295 = vadd.s32 %v5290, %v5292
      %vm5296 = vc.u32 %v5290, %v5292
      %v5297 = vadd.s32 %v5293, 1
      %v5298 = vsel %vm5296, %v5297, %v5293
      %v5299 = vadd.s32 %v5294, %v5298
      %v5300 = vadd.s32 %v5299, 536870912
      %v5301 = vshrl.u32 %v5300, 30
      %v5302 = vshll.u32 %v5301, 30
      %v5303 = vsub.s32 %v5299, %v5302
      %vm5304 = vcmp.lt.s32.totalorder %v5303, 0
      %v5305 = vsub.s32 0, %v5303
      %v5306 = vsel %vm5304, %v5305, %v5303
      %v5307 = vclz %v5306
      %v5308 = vsub.s32 %v5307, 2
      %vm5309 = vcmp.gt.s32.totalorder 0, %v5308
      %v5310 = vsel %vm5309, 0, %v5308
      %v5311 = vsub.s32 32, %v5310
      %v5312 = vshll.u32 %v5303, %v5310
      %v5313 = vshrl.u32 %v5295, %v5311
      %v5314 = vor.u32 %v5312, %v5313
      %v5315 = vsub.s32 4294967266, %v5310
      %v5316 = vadd.s32 %v5315, 127
      %v5317 = vshll.u32 %v5316, 23
      %v5318 = vor.u32 4788187, %v5317
      %v5319 = vand.u32 2147483647, %v5318
      %v5321 = vcvt.s32.f32 %v5314
      %v5322 = vmul.f32 %v5321, %v5319
      %v5323 = vxor.u32 %v5322, 2147483648
      %v5324 = vsel %vm5241, %v5323, %v5322
      %v5325 = vsub.s32 4, %v5301
      %v5326 = vsel %vm5241, %v5325, %v5301
      %v5327 = vsel %vm5240, %v4369, %v5324
      %v5328 = vsel %vm5240, 0, %v5326
      %v5329 = vcosq.f32.pop %v5327
      %v5330 = vsinq.f32.pop %v5327
      %vm5331 = vweird.f32 %v4369
      %v5332 = vadd.s32 %v5328, 3
      %v5333 = vand.u32 %v5332, 3
      %vm5334 = vcmp.lt.s32.totalorder %v5333, 2
      %vm5335 = vcmp.eq.s32.totalorder %v5333, 0
      %v5336 = vxor.u32 %v5330, 2147483648
      %v5337 = vsel %vm5335, %v5329, %v5336
      %vm5338 = vcmp.eq.s32.totalorder %v5333, 2
      %v5339 = vxor.u32 %v5329, 2147483648
      %v5340 = vsel %vm5338, %v5339, %v5330
      %v5341 = vsel %vm5334, %v5337, %v5340
      %v5342 = vsel %vm5331, nan, %v5341
      %v5343 = vand.u32 2147483647, %v4374
      %vm5344 = vcmp.le.f32.partialorder %v5343, 0.7853982
      %vm5345 = vcmp.lt.s32.totalorder %v4374, 0
      %v5346 = vand.u32 %v4374, 2139095040
      %v5347 = vshrl.u32 %v5346, 23
      %v5348 = vsub.s32 %v5347, 127
      %v5349 = vand.u32 2147483647, %v4374
      %v5350 = vand.u32 %v5349, 8388607
      %v5351 = vor.u32 %v5350, 8388608
      %v5352 = vsub.s32 0, %v5351
      %v5353 = vadd.s32 %v5348, 1
      %vm5354 = vcmp.gt.s32.totalorder %v5353, 0
      %v5355 = vsel %vm5354, %v5353, 0
      %v5356 = vshrl.u32 %v5355, 5
      %v5357 = vand.u32 %v5355, 31
      %v5358 = vsub.s32 32, %v5357
      %v5359 = vshrl.u32 683565275, %v5358
      %v5360 = vshll.u32 683565275, %v5357
      %v5361 = vshrl.u32 2475754826, %v5358
      %v5362 = vor.u32 %v5360, %v5361
      %v5363 = vshll.u32 2475754826, %v5357
      %v5364 = vshrl.u32 2131351028, %v5358
      %v5365 = vor.u32 %v5363, %v5364
      %v5366 = vshll.u32 2131351028, %v5357
      %v5367 = vshrl.u32 2102212464, %v5358
      %v5368 = vor.u32 %v5366, %v5367
      %v5369 = vshll.u32 2102212464, %v5357
      %v5370 = vshrl.u32 920167782, %v5358
      %v5371 = vor.u32 %v5369, %v5370
      %v5372 = vshll.u32 920167782, %v5357
      %v5373 = vshrl.u32 1326507024, %v5358
      %v5374 = vor.u32 %v5372, %v5373
      %vm5375 = vcmp.lt.s32.totalorder %v5356, 1
      %vm5376 = vcmp.lt.s32.totalorder %v5356, 2
      %vm5377 = vcmp.lt.s32.totalorder %v5356, 3
      %vm5378 = vcmp.lt.s32.totalorder %v5356, 4
      %v5379 = vsel %vm5375, %v5359, %v5362
      %v5380 = vsel %vm5378, %v5368, 2102212464
      %v5381 = vsel %vm5377, %v5365, %v5380
      %v5382 = vsel %vm5376, %v5379, %v5381
      %v5383 = vsel %vm5375, %v5362, %v5365
      %v5384 = vsel %vm5378, %v5371, 920167782
      %v5385 = vsel %vm5377, %v5368, %v5384
      %v5386 = vsel %vm5376, %v5383, %v5385
      %v5387 = vsel %vm5375, %v5365, %v5368
      %v5388 = vsel %vm5378, %v5374, 1326507024
      %v5389 = vsel %vm5377, %v5371, %v5388
      %v5390 = vsel %vm5376, %v5387, %v5389
      %v5391 = vshll.u32 %v5351, 8
      %v5392 = vmul.u32.u64.compose %v5391, %v5390
      %v5393 = vextract.low.u32 %v5392
      %v5394 = vextract.high.u32 %v5392
      %v5395 = vmul.u32.u64.compose %v5391, %v5386
      %v5396 = vextract.low.u32 %v5395
      %v5397 = vextract.high.u32 %v5395
      %v5398 = vmul.u32 %v5391, %v5382
      %v5399 = vadd.s32 %v5394, %v5396
      %vm5400 = vc.u32 %v5394, %v5396
      %v5401 = vadd.s32 %v5397, 1
      %v5402 = vsel %vm5400, %v5401, %v5397
      %v5403 = vadd.s32 %v5398, %v5402
      %v5404 = vadd.s32 %v5403, 536870912
      %v5405 = vshrl.u32 %v5404, 30
      %v5406 = vshll.u32 %v5405, 30
      %v5407 = vsub.s32 %v5403, %v5406
      %vm5408 = vcmp.lt.s32.totalorder %v5407, 0
      %v5409 = vsub.s32 0, %v5407
      %v5410 = vsel %vm5408, %v5409, %v5407
      %v5411 = vclz %v5410
      %v5412 = vsub.s32 %v5411, 2
      %vm5413 = vcmp.gt.s32.totalorder 0, %v5412
      %v5414 = vsel %vm5413, 0, %v5412
      %v5415 = vsub.s32 32, %v5414
      %v5416 = vshll.u32 %v5407, %v5414
      %v5417 = vshrl.u32 %v5399, %v5415
      %v5418 = vor.u32 %v5416, %v5417
      %v5419 = vsub.s32 4294967266, %v5414
      %v5420 = vadd.s32 %v5419, 127
      %v5421 = vshll.u32 %v5420, 23
      %v5422 = vor.u32 4788187, %v5421
      %v5423 = vand.u32 2147483647, %v5422
      %v5425 = vcvt.s32.f32 %v5418
      %v5426 = vmul.f32 %v5425, %v5423
      %v5427 = vxor.u32 %v5426, 2147483648
      %v5428 = vsel %vm5345, %v5427, %v5426
      %v5429 = vsub.s32 4, %v5405
      %v5430 = vsel %vm5345, %v5429, %v5405
      %v5431 = vsel %vm5344, %v4374, %v5428
      %v5432 = vsel %vm5344, 0, %v5430
      %v5433 = vcosq.f32.pop %v5431
      %v5434 = vsinq.f32.pop %v5431
      %vm5435 = vweird.f32 %v4374
      %v5436 = vadd.s32 %v5432, 3
      %v5437 = vand.u32 %v5436, 3
      %vm5438 = vcmp.lt.s32.totalorder %v5437, 2
      %vm5439 = vcmp.eq.s32.totalorder %v5437, 0
      %v5440 = vxor.u32 %v5434, 2147483648
      %v5441 = vsel %vm5439, %v5433, %v5440
      %vm5442 = vcmp.eq.s32.totalorder %v5437, 2
      %v5443 = vxor.u32 %v5433, 2147483648
      %v5444 = vsel %vm5442, %v5443, %v5434
      %v5445 = vsel %vm5438, %v5441, %v5444
      %v5446 = vsel %vm5435, nan, %v5445
      %v5447 = vand.u32 2147483647, %v4379
      %vm5448 = vcmp.le.f32.partialorder %v5447, 0.7853982
      %vm5449 = vcmp.lt.s32.totalorder %v4379, 0
      %v5450 = vand.u32 %v4379, 2139095040
      %v5451 = vshrl.u32 %v5450, 23
      %v5452 = vsub.s32 %v5451, 127
      %v5453 = vand.u32 2147483647, %v4379
      %v5454 = vand.u32 %v5453, 8388607
      %v5455 = vor.u32 %v5454, 8388608
      %v5456 = vsub.s32 0, %v5455
      %v5457 = vadd.s32 %v5452, 1
      %vm5458 = vcmp.gt.s32.totalorder %v5457, 0
      %v5459 = vsel %vm5458, %v5457, 0
      %v5460 = vshrl.u32 %v5459, 5
      %v5461 = vand.u32 %v5459, 31
      %v5462 = vsub.s32 32, %v5461
      %v5463 = vshrl.u32 683565275, %v5462
      %v5464 = vshll.u32 683565275, %v5461
      %v5465 = vshrl.u32 2475754826, %v5462
      %v5466 = vor.u32 %v5464, %v5465
      %v5467 = vshll.u32 2475754826, %v5461
      %v5468 = vshrl.u32 2131351028, %v5462
      %v5469 = vor.u32 %v5467, %v5468
      %v5470 = vshll.u32 2131351028, %v5461
      %v5471 = vshrl.u32 2102212464, %v5462
      %v5472 = vor.u32 %v5470, %v5471
      %v5473 = vshll.u32 2102212464, %v5461
      %v5474 = vshrl.u32 920167782, %v5462
      %v5475 = vor.u32 %v5473, %v5474
      %v5476 = vshll.u32 920167782, %v5461
      %v5477 = vshrl.u32 1326507024, %v5462
      %v5478 = vor.u32 %v5476, %v5477
      %vm5479 = vcmp.lt.s32.totalorder %v5460, 1
      %vm5480 = vcmp.lt.s32.totalorder %v5460, 2
      %vm5481 = vcmp.lt.s32.totalorder %v5460, 3
      %vm5482 = vcmp.lt.s32.totalorder %v5460, 4
      %v5483 = vsel %vm5479, %v5463, %v5466
      %v5484 = vsel %vm5482, %v5472, 2102212464
      %v5485 = vsel %vm5481, %v5469, %v5484
      %v5486 = vsel %vm5480, %v5483, %v5485
      %v5487 = vsel %vm5479, %v5466, %v5469
      %v5488 = vsel %vm5482, %v5475, 920167782
      %v5489 = vsel %vm5481, %v5472, %v5488
      %v5490 = vsel %vm5480, %v5487, %v5489
      %v5491 = vsel %vm5479, %v5469, %v5472
      %v5492 = vsel %vm5482, %v5478, 1326507024
      %v5493 = vsel %vm5481, %v5475, %v5492
      %v5494 = vsel %vm5480, %v5491, %v5493
      %v5495 = vshll.u32 %v5455, 8
      %v5496 = vmul.u32.u64.compose %v5495, %v5494
      %v5497 = vextract.low.u32 %v5496
      %v5498 = vextract.high.u32 %v5496
      %v5499 = vmul.u32.u64.compose %v5495, %v5490
      %v5500 = vextract.low.u32 %v5499
      %v5501 = vextract.high.u32 %v5499
      %v5502 = vmul.u32 %v5495, %v5486
      %v5503 = vadd.s32 %v5498, %v5500
      %vm5504 = vc.u32 %v5498, %v5500
      %v5505 = vadd.s32 %v5501, 1
      %v5506 = vsel %vm5504, %v5505, %v5501
      %v5507 = vadd.s32 %v5502, %v5506
      %v5508 = vadd.s32 %v5507, 536870912
      %v5509 = vshrl.u32 %v5508, 30
      %v5510 = vshll.u32 %v5509, 30
      %v5511 = vsub.s32 %v5507, %v5510
      %vm5512 = vcmp.lt.s32.totalorder %v5511, 0
      %v5513 = vsub.s32 0, %v5511
      %v5514 = vsel %vm5512, %v5513, %v5511
      %v5515 = vclz %v5514
      %v5516 = vsub.s32 %v5515, 2
      %vm5517 = vcmp.gt.s32.totalorder 0, %v5516
      %v5518 = vsel %vm5517, 0, %v5516
      %v5519 = vsub.s32 32, %v5518
      %v5520 = vshll.u32 %v5511, %v5518
      %v5521 = vshrl.u32 %v5503, %v5519
      %v5522 = vor.u32 %v5520, %v5521
      %v5523 = vsub.s32 4294967266, %v5518
      %v5524 = vadd.s32 %v5523, 127
      %v5525 = vshll.u32 %v5524, 23
      %v5526 = vor.u32 4788187, %v5525
      %v5527 = vand.u32 2147483647, %v5526
      %v5529 = vcvt.s32.f32 %v5522
      %v5530 = vmul.f32 %v5529, %v5527
      %v5531 = vxor.u32 %v5530, 2147483648
      %v5532 = vsel %vm5449, %v5531, %v5530
      %v5533 = vsub.s32 4, %v5509
      %v5534 = vsel %vm5449, %v5533, %v5509
      %v5535 = vsel %vm5448, %v4379, %v5532
      %v5536 = vsel %vm5448, 0, %v5534
      %v5537 = vcosq.f32.pop %v5535
      %v5538 = vsinq.f32.pop %v5535
      %vm5539 = vweird.f32 %v4379
      %v5540 = vadd.s32 %v5536, 3
      %v5541 = vand.u32 %v5540, 3
      %vm5542 = vcmp.lt.s32.totalorder %v5541, 2
      %vm5543 = vcmp.eq.s32.totalorder %v5541, 0
      %v5544 = vxor.u32 %v5538, 2147483648
      %v5545 = vsel %vm5543, %v5537, %v5544
      %vm5546 = vcmp.eq.s32.totalorder %v5541, 2
      %v5547 = vxor.u32 %v5537, 2147483648
      %v5548 = vsel %vm5546, %v5547, %v5538
      %v5549 = vsel %vm5542, %v5545, %v5548
      %v5550 = vsel %vm5539, nan, %v5549
      %v5551 = vand.u32 2147483647, %v4384
      %vm5552 = vcmp.le.f32.partialorder %v5551, 0.7853982
      %vm5553 = vcmp.lt.s32.totalorder %v4384, 0
      %v5554 = vand.u32 %v4384, 2139095040
      %v5555 = vshrl.u32 %v5554, 23
      %v5556 = vsub.s32 %v5555, 127
      %v5557 = vand.u32 2147483647, %v4384
      %v5558 = vand.u32 %v5557, 8388607
      %v5559 = vor.u32 %v5558, 8388608
      %v5560 = vsub.s32 0, %v5559
      %v5561 = vadd.s32 %v5556, 1
      %vm5562 = vcmp.gt.s32.totalorder %v5561, 0
      %v5563 = vsel %vm5562, %v5561, 0
      %v5564 = vshrl.u32 %v5563, 5
      %v5565 = vand.u32 %v5563, 31
      %v5566 = vsub.s32 32, %v5565
      %v5567 = vshrl.u32 683565275, %v5566
      %v5568 = vshll.u32 683565275, %v5565
      %v5569 = vshrl.u32 2475754826, %v5566
      %v5570 = vor.u32 %v5568, %v5569
      %v5571 = vshll.u32 2475754826, %v5565
      %v5572 = vshrl.u32 2131351028, %v5566
      %v5573 = vor.u32 %v5571, %v5572
      %v5574 = vshll.u32 2131351028, %v5565
      %v5575 = vshrl.u32 2102212464, %v5566
      %v5576 = vor.u32 %v5574, %v5575
      %v5577 = vshll.u32 2102212464, %v5565
      %v5578 = vshrl.u32 920167782, %v5566
      %v5579 = vor.u32 %v5577, %v5578
      %v5580 = vshll.u32 920167782, %v5565
      %v5581 = vshrl.u32 1326507024, %v5566
      %v5582 = vor.u32 %v5580, %v5581
      %vm5583 = vcmp.lt.s32.totalorder %v5564, 1
      %vm5584 = vcmp.lt.s32.totalorder %v5564, 2
      %vm5585 = vcmp.lt.s32.totalorder %v5564, 3
      %vm5586 = vcmp.lt.s32.totalorder %v5564, 4
      %v5587 = vsel %vm5583, %v5567, %v5570
      %v5588 = vsel %vm5586, %v5576, 2102212464
      %v5589 = vsel %vm5585, %v5573, %v5588
      %v5590 = vsel %vm5584, %v5587, %v5589
      %v5591 = vsel %vm5583, %v5570, %v5573
      %v5592 = vsel %vm5586, %v5579, 920167782
      %v5593 = vsel %vm5585, %v5576, %v5592
      %v5594 = vsel %vm5584, %v5591, %v5593
      %v5595 = vsel %vm5583, %v5573, %v5576
      %v5596 = vsel %vm5586, %v5582, 1326507024
      %v5597 = vsel %vm5585, %v5579, %v5596
      %v5598 = vsel %vm5584, %v5595, %v5597
      %v5599 = vshll.u32 %v5559, 8
      %v5600 = vmul.u32.u64.compose %v5599, %v5598
      %v5601 = vextract.low.u32 %v5600
      %v5602 = vextract.high.u32 %v5600
      %v5603 = vmul.u32.u64.compose %v5599, %v5594
      %v5604 = vextract.low.u32 %v5603
      %v5605 = vextract.high.u32 %v5603
      %v5606 = vmul.u32 %v5599, %v5590
      %v5607 = vadd.s32 %v5602, %v5604
      %vm5608 = vc.u32 %v5602, %v5604
      %v5609 = vadd.s32 %v5605, 1
      %v5610 = vsel %vm5608, %v5609, %v5605
      %v5611 = vadd.s32 %v5606, %v5610
      %v5612 = vadd.s32 %v5611, 536870912
      %v5613 = vshrl.u32 %v5612, 30
      %v5614 = vshll.u32 %v5613, 30
      %v5615 = vsub.s32 %v5611, %v5614
      %vm5616 = vcmp.lt.s32.totalorder %v5615, 0
      %v5617 = vsub.s32 0, %v5615
      %v5618 = vsel %vm5616, %v5617, %v5615
      %v5619 = vclz %v5618
      %v5620 = vsub.s32 %v5619, 2
      %vm5621 = vcmp.gt.s32.totalorder 0, %v5620
      %v5622 = vsel %vm5621, 0, %v5620
      %v5623 = vsub.s32 32, %v5622
      %v5624 = vshll.u32 %v5615, %v5622
      %v5625 = vshrl.u32 %v5607, %v5623
      %v5626 = vor.u32 %v5624, %v5625
      %v5627 = vsub.s32 4294967266, %v5622
      %v5628 = vadd.s32 %v5627, 127
      %v5629 = vshll.u32 %v5628, 23
      %v5630 = vor.u32 4788187, %v5629
      %v5631 = vand.u32 2147483647, %v5630
      %v5633 = vcvt.s32.f32 %v5626
      %v5634 = vmul.f32 %v5633, %v5631
      %v5635 = vxor.u32 %v5634, 2147483648
      %v5636 = vsel %vm5553, %v5635, %v5634
      %v5637 = vsub.s32 4, %v5613
      %v5638 = vsel %vm5553, %v5637, %v5613
      %v5639 = vsel %vm5552, %v4384, %v5636
      %v5640 = vsel %vm5552, 0, %v5638
      %v5641 = vcosq.f32.pop %v5639
      %v5642 = vsinq.f32.pop %v5639
      %vm5643 = vweird.f32 %v4384
      %v5644 = vadd.s32 %v5640, 3
      %v5645 = vand.u32 %v5644, 3
      %vm5646 = vcmp.lt.s32.totalorder %v5645, 2
      %vm5647 = vcmp.eq.s32.totalorder %v5645, 0
      %v5648 = vxor.u32 %v5642, 2147483648
      %v5649 = vsel %vm5647, %v5641, %v5648
      %vm5650 = vcmp.eq.s32.totalorder %v5645, 2
      %v5651 = vxor.u32 %v5641, 2147483648
      %v5652 = vsel %vm5650, %v5651, %v5642
      %v5653 = vsel %vm5646, %v5649, %v5652
      %v5654 = vsel %vm5643, nan, %v5653
      %v5655 = vand.u32 2147483647, %v4389
      %vm5656 = vcmp.le.f32.partialorder %v5655, 0.7853982
      %vm5657 = vcmp.lt.s32.totalorder %v4389, 0
      %v5658 = vand.u32 %v4389, 2139095040
      %v5659 = vshrl.u32 %v5658, 23
      %v5660 = vsub.s32 %v5659, 127
      %v5661 = vand.u32 2147483647, %v4389
      %v5662 = vand.u32 %v5661, 8388607
      %v5663 = vor.u32 %v5662, 8388608
      %v5664 = vsub.s32 0, %v5663
      %v5665 = vadd.s32 %v5660, 1
      %vm5666 = vcmp.gt.s32.totalorder %v5665, 0
      %v5667 = vsel %vm5666, %v5665, 0
      %v5668 = vshrl.u32 %v5667, 5
      %v5669 = vand.u32 %v5667, 31
      %v5670 = vsub.s32 32, %v5669
      %v5671 = vshrl.u32 683565275, %v5670
      %v5672 = vshll.u32 683565275, %v5669
      %v5673 = vshrl.u32 2475754826, %v5670
      %v5674 = vor.u32 %v5672, %v5673
      %v5675 = vshll.u32 2475754826, %v5669
      %v5676 = vshrl.u32 2131351028, %v5670
      %v5677 = vor.u32 %v5675, %v5676
      %v5678 = vshll.u32 2131351028, %v5669
      %v5679 = vshrl.u32 2102212464, %v5670
      %v5680 = vor.u32 %v5678, %v5679
      %v5681 = vshll.u32 2102212464, %v5669
      %v5682 = vshrl.u32 920167782, %v5670
      %v5683 = vor.u32 %v5681, %v5682
      %v5684 = vshll.u32 920167782, %v5669
      %v5685 = vshrl.u32 1326507024, %v5670
      %v5686 = vor.u32 %v5684, %v5685
      %vm5687 = vcmp.lt.s32.totalorder %v5668, 1
      %vm5688 = vcmp.lt.s32.totalorder %v5668, 2
      %vm5689 = vcmp.lt.s32.totalorder %v5668, 3
      %vm5690 = vcmp.lt.s32.totalorder %v5668, 4
      %v5691 = vsel %vm5687, %v5671, %v5674
      %v5692 = vsel %vm5690, %v5680, 2102212464
      %v5693 = vsel %vm5689, %v5677, %v5692
      %v5694 = vsel %vm5688, %v5691, %v5693
      %v5695 = vsel %vm5687, %v5674, %v5677
      %v5696 = vsel %vm5690, %v5683, 920167782
      %v5697 = vsel %vm5689, %v5680, %v5696
      %v5698 = vsel %vm5688, %v5695, %v5697
      %v5699 = vsel %vm5687, %v5677, %v5680
      %v5700 = vsel %vm5690, %v5686, 1326507024
      %v5701 = vsel %vm5689, %v5683, %v5700
      %v5702 = vsel %vm5688, %v5699, %v5701
      %v5703 = vshll.u32 %v5663, 8
      %v5704 = vmul.u32.u64.compose %v5703, %v5702
      %v5705 = vextract.low.u32 %v5704
      %v5706 = vextract.high.u32 %v5704
      %v5707 = vmul.u32.u64.compose %v5703, %v5698
      %v5708 = vextract.low.u32 %v5707
      %v5709 = vextract.high.u32 %v5707
      %v5710 = vmul.u32 %v5703, %v5694
      %v5711 = vadd.s32 %v5706, %v5708
      %vm5712 = vc.u32 %v5706, %v5708
      %v5713 = vadd.s32 %v5709, 1
      %v5714 = vsel %vm5712, %v5713, %v5709
      %v5715 = vadd.s32 %v5710, %v5714
      %v5716 = vadd.s32 %v5715, 536870912
      %v5717 = vshrl.u32 %v5716, 30
      %v5718 = vshll.u32 %v5717, 30
      %v5719 = vsub.s32 %v5715, %v5718
      %vm5720 = vcmp.lt.s32.totalorder %v5719, 0
      %v5721 = vsub.s32 0, %v5719
      %v5722 = vsel %vm5720, %v5721, %v5719
      %v5723 = vclz %v5722
      %v5724 = vsub.s32 %v5723, 2
      %vm5725 = vcmp.gt.s32.totalorder 0, %v5724
      %v5726 = vsel %vm5725, 0, %v5724
      %v5727 = vsub.s32 32, %v5726
      %v5728 = vshll.u32 %v5719, %v5726
      %v5729 = vshrl.u32 %v5711, %v5727
      %v5730 = vor.u32 %v5728, %v5729
      %v5731 = vsub.s32 4294967266, %v5726
      %v5732 = vadd.s32 %v5731, 127
      %v5733 = vshll.u32 %v5732, 23
      %v5734 = vor.u32 4788187, %v5733
      %v5735 = vand.u32 2147483647, %v5734
      %v5737 = vcvt.s32.f32 %v5730
      %v5738 = vmul.f32 %v5737, %v5735
      %v5739 = vxor.u32 %v5738, 2147483648
      %v5740 = vsel %vm5657, %v5739, %v5738
      %v5741 = vsub.s32 4, %v5717
      %v5742 = vsel %vm5657, %v5741, %v5717
      %v5743 = vsel %vm5656, %v4389, %v5740
      %v5744 = vsel %vm5656, 0, %v5742
      %v5745 = vcosq.f32.pop %v5743
      %v5746 = vsinq.f32.pop %v5743
      %vm5747 = vweird.f32 %v4389
      %v5748 = vadd.s32 %v5744, 3
      %v5749 = vand.u32 %v5748, 3
      %vm5750 = vcmp.lt.s32.totalorder %v5749, 2
      %vm5751 = vcmp.eq.s32.totalorder %v5749, 0
      %v5752 = vxor.u32 %v5746, 2147483648
      %v5753 = vsel %vm5751, %v5745, %v5752
      %vm5754 = vcmp.eq.s32.totalorder %v5749, 2
      %v5755 = vxor.u32 %v5745, 2147483648
      %v5756 = vsel %vm5754, %v5755, %v5746
      %v5757 = vsel %vm5750, %v5753, %v5756
      %v5758 = vsel %vm5747, nan, %v5757
      %v5759 = vand.u32 2147483647, %v4394
      %vm5760 = vcmp.le.f32.partialorder %v5759, 0.7853982
      %vm5761 = vcmp.lt.s32.totalorder %v4394, 0
      %v5762 = vand.u32 %v4394, 2139095040
      %v5763 = vshrl.u32 %v5762, 23
      %v5764 = vsub.s32 %v5763, 127
      %v5765 = vand.u32 2147483647, %v4394
      %v5766 = vand.u32 %v5765, 8388607
      %v5767 = vor.u32 %v5766, 8388608
      %v5768 = vsub.s32 0, %v5767
      %v5769 = vadd.s32 %v5764, 1
      %vm5770 = vcmp.gt.s32.totalorder %v5769, 0
      %v5771 = vsel %vm5770, %v5769, 0
      %v5772 = vshrl.u32 %v5771, 5
      %v5773 = vand.u32 %v5771, 31
      %v5774 = vsub.s32 32, %v5773
      %v5775 = vshrl.u32 683565275, %v5774
      %v5776 = vshll.u32 683565275, %v5773
      %v5777 = vshrl.u32 2475754826, %v5774
      %v5778 = vor.u32 %v5776, %v5777
      %v5779 = vshll.u32 2475754826, %v5773
      %v5780 = vshrl.u32 2131351028, %v5774
      %v5781 = vor.u32 %v5779, %v5780
      %v5782 = vshll.u32 2131351028, %v5773
      %v5783 = vshrl.u32 2102212464, %v5774
      %v5784 = vor.u32 %v5782, %v5783
      %v5785 = vshll.u32 2102212464, %v5773
      %v5786 = vshrl.u32 920167782, %v5774
      %v5787 = vor.u32 %v5785, %v5786
      %v5788 = vshll.u32 920167782, %v5773
      %v5789 = vshrl.u32 1326507024, %v5774
      %v5790 = vor.u32 %v5788, %v5789
      %vm5791 = vcmp.lt.s32.totalorder %v5772, 1
      %vm5792 = vcmp.lt.s32.totalorder %v5772, 2
      %vm5793 = vcmp.lt.s32.totalorder %v5772, 3
      %vm5794 = vcmp.lt.s32.totalorder %v5772, 4
      %v5795 = vsel %vm5791, %v5775, %v5778
      %v5796 = vsel %vm5794, %v5784, 2102212464
      %v5797 = vsel %vm5793, %v5781, %v5796
      %v5798 = vsel %vm5792, %v5795, %v5797
      %v5799 = vsel %vm5791, %v5778, %v5781
      %v5800 = vsel %vm5794, %v5787, 920167782
      %v5801 = vsel %vm5793, %v5784, %v5800
      %v5802 = vsel %vm5792, %v5799, %v5801
      %v5803 = vsel %vm5791, %v5781, %v5784
      %v5804 = vsel %vm5794, %v5790, 1326507024
      %v5805 = vsel %vm5793, %v5787, %v5804
      %v5806 = vsel %vm5792, %v5803, %v5805
      %v5807 = vshll.u32 %v5767, 8
      %v5808 = vmul.u32.u64.compose %v5807, %v5806
      %v5809 = vextract.low.u32 %v5808
      %v5810 = vextract.high.u32 %v5808
      %v5811 = vmul.u32.u64.compose %v5807, %v5802
      %v5812 = vextract.low.u32 %v5811
      %v5813 = vextract.high.u32 %v5811
      %v5814 = vmul.u32 %v5807, %v5798
      %v5815 = vadd.s32 %v5810, %v5812
      %vm5816 = vc.u32 %v5810, %v5812
      %v5817 = vadd.s32 %v5813, 1
      %v5818 = vsel %vm5816, %v5817, %v5813
      %v5819 = vadd.s32 %v5814, %v5818
      %v5820 = vadd.s32 %v5819, 536870912
      %v5821 = vshrl.u32 %v5820, 30
      %v5822 = vshll.u32 %v5821, 30
      %v5823 = vsub.s32 %v5819, %v5822
      %vm5824 = vcmp.lt.s32.totalorder %v5823, 0
      %v5825 = vsub.s32 0, %v5823
      %v5826 = vsel %vm5824, %v5825, %v5823
      %v5827 = vclz %v5826
      %v5828 = vsub.s32 %v5827, 2
      %vm5829 = vcmp.gt.s32.totalorder 0, %v5828
      %v5830 = vsel %vm5829, 0, %v5828
      %v5831 = vsub.s32 32, %v5830
      %v5832 = vshll.u32 %v5823, %v5830
      %v5833 = vshrl.u32 %v5815, %v5831
      %v5834 = vor.u32 %v5832, %v5833
      %v5835 = vsub.s32 4294967266, %v5830
      %v5836 = vadd.s32 %v5835, 127
      %v5837 = vshll.u32 %v5836, 23
      %v5838 = vor.u32 4788187, %v5837
      %v5839 = vand.u32 2147483647, %v5838
      %v5841 = vcvt.s32.f32 %v5834
      %v5842 = vmul.f32 %v5841, %v5839
      %v5843 = vxor.u32 %v5842, 2147483648
      %v5844 = vsel %vm5761, %v5843, %v5842
      %v5845 = vsub.s32 4, %v5821
      %v5846 = vsel %vm5761, %v5845, %v5821
      %v5847 = vsel %vm5760, %v4394, %v5844
      %v5848 = vsel %vm5760, 0, %v5846
      %v5849 = vcosq.f32.pop %v5847
      %v5850 = vsinq.f32.pop %v5847
      %vm5851 = vweird.f32 %v4394
      %v5852 = vadd.s32 %v5848, 3
      %v5853 = vand.u32 %v5852, 3
      %vm5854 = vcmp.lt.s32.totalorder %v5853, 2
      %vm5855 = vcmp.eq.s32.totalorder %v5853, 0
      %v5856 = vxor.u32 %v5850, 2147483648
      %v5857 = vsel %vm5855, %v5849, %v5856
      %vm5858 = vcmp.eq.s32.totalorder %v5853, 2
      %v5859 = vxor.u32 %v5849, 2147483648
      %v5860 = vsel %vm5858, %v5859, %v5850
      %v5861 = vsel %vm5854, %v5857, %v5860
      %v5862 = vsel %vm5851, nan, %v5861
      %v5863 = vand.u32 2147483647, %v4399
      %vm5864 = vcmp.le.f32.partialorder %v5863, 0.7853982
      %vm5865 = vcmp.lt.s32.totalorder %v4399, 0
      %v5866 = vand.u32 %v4399, 2139095040
      %v5867 = vshrl.u32 %v5866, 23
      %v5868 = vsub.s32 %v5867, 127
      %v5869 = vand.u32 2147483647, %v4399
      %v5870 = vand.u32 %v5869, 8388607
      %v5871 = vor.u32 %v5870, 8388608
      %v5872 = vsub.s32 0, %v5871
      %v5873 = vadd.s32 %v5868, 1
      %vm5874 = vcmp.gt.s32.totalorder %v5873, 0
      %v5875 = vsel %vm5874, %v5873, 0
      %v5876 = vshrl.u32 %v5875, 5
      %v5877 = vand.u32 %v5875, 31
      %v5878 = vsub.s32 32, %v5877
      %v5879 = vshrl.u32 683565275, %v5878
      %v5880 = vshll.u32 683565275, %v5877
      %v5881 = vshrl.u32 2475754826, %v5878
      %v5882 = vor.u32 %v5880, %v5881
      %v5883 = vshll.u32 2475754826, %v5877
      %v5884 = vshrl.u32 2131351028, %v5878
      %v5885 = vor.u32 %v5883, %v5884
      %v5886 = vshll.u32 2131351028, %v5877
      %v5887 = vshrl.u32 2102212464, %v5878
      %v5888 = vor.u32 %v5886, %v5887
      %v5889 = vshll.u32 2102212464, %v5877
      %v5890 = vshrl.u32 920167782, %v5878
      %v5891 = vor.u32 %v5889, %v5890
      %v5892 = vshll.u32 920167782, %v5877
      %v5893 = vshrl.u32 1326507024, %v5878
      %v5894 = vor.u32 %v5892, %v5893
      %vm5895 = vcmp.lt.s32.totalorder %v5876, 1
      %vm5896 = vcmp.lt.s32.totalorder %v5876, 2
      %vm5897 = vcmp.lt.s32.totalorder %v5876, 3
      %vm5898 = vcmp.lt.s32.totalorder %v5876, 4
      %v5899 = vsel %vm5895, %v5879, %v5882
      %v5900 = vsel %vm5898, %v5888, 2102212464
      %v5901 = vsel %vm5897, %v5885, %v5900
      %v5902 = vsel %vm5896, %v5899, %v5901
      %v5903 = vsel %vm5895, %v5882, %v5885
      %v5904 = vsel %vm5898, %v5891, 920167782
      %v5905 = vsel %vm5897, %v5888, %v5904
      %v5906 = vsel %vm5896, %v5903, %v5905
      %v5907 = vsel %vm5895, %v5885, %v5888
      %v5908 = vsel %vm5898, %v5894, 1326507024
      %v5909 = vsel %vm5897, %v5891, %v5908
      %v5910 = vsel %vm5896, %v5907, %v5909
      %v5911 = vshll.u32 %v5871, 8
      %v5912 = vmul.u32.u64.compose %v5911, %v5910
      %v5913 = vextract.low.u32 %v5912
      %v5914 = vextract.high.u32 %v5912
      %v5915 = vmul.u32.u64.compose %v5911, %v5906
      %v5916 = vextract.low.u32 %v5915
      %v5917 = vextract.high.u32 %v5915
      %v5918 = vmul.u32 %v5911, %v5902
      %v5919 = vadd.s32 %v5914, %v5916
      %vm5920 = vc.u32 %v5914, %v5916
      %v5921 = vadd.s32 %v5917, 1
      %v5922 = vsel %vm5920, %v5921, %v5917
      %v5923 = vadd.s32 %v5918, %v5922
      %v5924 = vadd.s32 %v5923, 536870912
      %v5925 = vshrl.u32 %v5924, 30
      %v5926 = vshll.u32 %v5925, 30
      %v5927 = vsub.s32 %v5923, %v5926
      %vm5928 = vcmp.lt.s32.totalorder %v5927, 0
      %v5929 = vsub.s32 0, %v5927
      %v5930 = vsel %vm5928, %v5929, %v5927
      %v5931 = vclz %v5930
      %v5932 = vsub.s32 %v5931, 2
      %vm5933 = vcmp.gt.s32.totalorder 0, %v5932
      %v5934 = vsel %vm5933, 0, %v5932
      %v5935 = vsub.s32 32, %v5934
      %v5936 = vshll.u32 %v5927, %v5934
      %v5937 = vshrl.u32 %v5919, %v5935
      %v5938 = vor.u32 %v5936, %v5937
      %v5939 = vsub.s32 4294967266, %v5934
      %v5940 = vadd.s32 %v5939, 127
      %v5941 = vshll.u32 %v5940, 23
      %v5942 = vor.u32 4788187, %v5941
      %v5943 = vand.u32 2147483647, %v5942
      %v5945 = vcvt.s32.f32 %v5938
      %v5946 = vmul.f32 %v5945, %v5943
      %v5947 = vxor.u32 %v5946, 2147483648
      %v5948 = vsel %vm5865, %v5947, %v5946
      %v5949 = vsub.s32 4, %v5925
      %v5950 = vsel %vm5865, %v5949, %v5925
      %v5951 = vsel %vm5864, %v4399, %v5948
      %v5952 = vsel %vm5864, 0, %v5950
      %v5953 = vcosq.f32.pop %v5951
      %v5954 = vsinq.f32.pop %v5951
      %vm5955 = vweird.f32 %v4399
      %v5956 = vadd.s32 %v5952, 3
      %v5957 = vand.u32 %v5956, 3
      %vm5958 = vcmp.lt.s32.totalorder %v5957, 2
      %vm5959 = vcmp.eq.s32.totalorder %v5957, 0
      %v5960 = vxor.u32 %v5954, 2147483648
      %v5961 = vsel %vm5959, %v5953, %v5960
      %vm5962 = vcmp.eq.s32.totalorder %v5957, 2
      %v5963 = vxor.u32 %v5953, 2147483648
      %v5964 = vsel %vm5962, %v5963, %v5954
      %v5965 = vsel %vm5958, %v5961, %v5964
      %v5966 = vsel %vm5955, nan, %v5965
      %v5967 = vand.u32 2147483647, %v4404
      %vm5968 = vcmp.le.f32.partialorder %v5967, 0.7853982
      %vm5969 = vcmp.lt.s32.totalorder %v4404, 0
      %v5970 = vand.u32 %v4404, 2139095040
      %v5971 = vshrl.u32 %v5970, 23
      %v5972 = vsub.s32 %v5971, 127
      %v5973 = vand.u32 2147483647, %v4404
      %v5974 = vand.u32 %v5973, 8388607
      %v5975 = vor.u32 %v5974, 8388608
      %v5976 = vsub.s32 0, %v5975
      %v5977 = vadd.s32 %v5972, 1
      %vm5978 = vcmp.gt.s32.totalorder %v5977, 0
      %v5979 = vsel %vm5978, %v5977, 0
      %v5980 = vshrl.u32 %v5979, 5
      %v5981 = vand.u32 %v5979, 31
      %v5982 = vsub.s32 32, %v5981
      %v5983 = vshrl.u32 683565275, %v5982
      %v5984 = vshll.u32 683565275, %v5981
      %v5985 = vshrl.u32 2475754826, %v5982
      %v5986 = vor.u32 %v5984, %v5985
      %v5987 = vshll.u32 2475754826, %v5981
      %v5988 = vshrl.u32 2131351028, %v5982
      %v5989 = vor.u32 %v5987, %v5988
      %v5990 = vshll.u32 2131351028, %v5981
      %v5991 = vshrl.u32 2102212464, %v5982
      %v5992 = vor.u32 %v5990, %v5991
      %v5993 = vshll.u32 2102212464, %v5981
      %v5994 = vshrl.u32 920167782, %v5982
      %v5995 = vor.u32 %v5993, %v5994
      %v5996 = vshll.u32 920167782, %v5981
      %v5997 = vshrl.u32 1326507024, %v5982
      %v5998 = vor.u32 %v5996, %v5997
      %vm5999 = vcmp.lt.s32.totalorder %v5980, 1
      %vm6000 = vcmp.lt.s32.totalorder %v5980, 2
      %vm6001 = vcmp.lt.s32.totalorder %v5980, 3
      %vm6002 = vcmp.lt.s32.totalorder %v5980, 4
      %v6003 = vsel %vm5999, %v5983, %v5986
      %v6004 = vsel %vm6002, %v5992, 2102212464
      %v6005 = vsel %vm6001, %v5989, %v6004
      %v6006 = vsel %vm6000, %v6003, %v6005
      %v6007 = vsel %vm5999, %v5986, %v5989
      %v6008 = vsel %vm6002, %v5995, 920167782
      %v6009 = vsel %vm6001, %v5992, %v6008
      %v6010 = vsel %vm6000, %v6007, %v6009
      %v6011 = vsel %vm5999, %v5989, %v5992
      %v6012 = vsel %vm6002, %v5998, 1326507024
      %v6013 = vsel %vm6001, %v5995, %v6012
      %v6014 = vsel %vm6000, %v6011, %v6013
      %v6015 = vshll.u32 %v5975, 8
      %v6016 = vmul.u32.u64.compose %v6015, %v6014
      %v6017 = vextract.low.u32 %v6016
      %v6018 = vextract.high.u32 %v6016
      %v6019 = vmul.u32.u64.compose %v6015, %v6010
      %v6020 = vextract.low.u32 %v6019
      %v6021 = vextract.high.u32 %v6019
      %v6022 = vmul.u32 %v6015, %v6006
      %v6023 = vadd.s32 %v6018, %v6020
      %vm6024 = vc.u32 %v6018, %v6020
      %v6025 = vadd.s32 %v6021, 1
      %v6026 = vsel %vm6024, %v6025, %v6021
      %v6027 = vadd.s32 %v6022, %v6026
      %v6028 = vadd.s32 %v6027, 536870912
      %v6029 = vshrl.u32 %v6028, 30
      %v6030 = vshll.u32 %v6029, 30
      %v6031 = vsub.s32 %v6027, %v6030
      %vm6032 = vcmp.lt.s32.totalorder %v6031, 0
      %v6033 = vsub.s32 0, %v6031
      %v6034 = vsel %vm6032, %v6033, %v6031
      %v6035 = vclz %v6034
      %v6036 = vsub.s32 %v6035, 2
      %vm6037 = vcmp.gt.s32.totalorder 0, %v6036
      %v6038 = vsel %vm6037, 0, %v6036
      %v6039 = vsub.s32 32, %v6038
      %v6040 = vshll.u32 %v6031, %v6038
      %v6041 = vshrl.u32 %v6023, %v6039
      %v6042 = vor.u32 %v6040, %v6041
      %v6043 = vsub.s32 4294967266, %v6038
      %v6044 = vadd.s32 %v6043, 127
      %v6045 = vshll.u32 %v6044, 23
      %v6046 = vor.u32 4788187, %v6045
      %v6047 = vand.u32 2147483647, %v6046
      %v6049 = vcvt.s32.f32 %v6042
      %v6050 = vmul.f32 %v6049, %v6047
      %v6051 = vxor.u32 %v6050, 2147483648
      %v6052 = vsel %vm5969, %v6051, %v6050
      %v6053 = vsub.s32 4, %v6029
      %v6054 = vsel %vm5969, %v6053, %v6029
      %v6055 = vsel %vm5968, %v4404, %v6052
      %v6056 = vsel %vm5968, 0, %v6054
      %v6057 = vcosq.f32.pop %v6055
      %v6058 = vsinq.f32.pop %v6055
      %vm6059 = vweird.f32 %v4404
      %v6060 = vadd.s32 %v6056, 3
      %v6061 = vand.u32 %v6060, 3
      %vm6062 = vcmp.lt.s32.totalorder %v6061, 2
      %vm6063 = vcmp.eq.s32.totalorder %v6061, 0
      %v6064 = vxor.u32 %v6058, 2147483648
      %v6065 = vsel %vm6063, %v6057, %v6064
      %vm6066 = vcmp.eq.s32.totalorder %v6061, 2
      %v6067 = vxor.u32 %v6057, 2147483648
      %v6068 = vsel %vm6066, %v6067, %v6058
      %v6069 = vsel %vm6062, %v6065, %v6068
      %v6070 = vsel %vm6059, nan, %v6069
      %v6071 = vmul.f32 %v317, %v4510
      %v6072 = vmul.f32 %v317, %v4614
      %v6073 = vmul.f32 %v317, %v4718
      %v6074 = vmul.f32 %v317, %v4822
      %v6075 = vmul.f32 %v317, %v4926
      %v6076 = vmul.f32 %v317, %v5030
      %v6077 = vmul.f32 %v317, %v5134
      %v6078 = vmul.f32 %v317, %v5238
      %v6079 = vmul.f32 %v317, %v5342
      %v6080 = vmul.f32 %v317, %v5446
      %v6081 = vmul.f32 %v317, %v5550
      %v6082 = vmul.f32 %v317, %v5654
      %v6083 = vmul.f32 %v317, %v5758
      %v6084 = vmul.f32 %v317, %v5862
      %v6085 = vmul.f32 %v317, %v5966
      %v6086 = vmul.f32 %v317, %v6070
      %v6087 = vadd.f32 %v6071, %v321
      %v6088 = vadd.f32 %v6072, %v321
      %v6089 = vadd.f32 %v6073, %v321
      %v6090 = vadd.f32 %v6074, %v321
      %v6091 = vadd.f32 %v6075, %v321
      %v6092 = vadd.f32 %v6076, %v321
      %v6093 = vadd.f32 %v6077, %v321
      %v6094 = vadd.f32 %v6078, %v321
      %v6095 = vadd.f32 %v6079, %v321
      %v6096 = vadd.f32 %v6080, %v321
      %v6097 = vadd.f32 %v6081, %v321
      %v6098 = vadd.f32 %v6082, %v321
      %v6099 = vadd.f32 %v6083, %v321
      %v6100 = vadd.f32 %v6084, %v321
      %v6101 = vadd.f32 %v6085, %v321
      %v6102 = vadd.f32 %v6086, %v321
      %v6103 = vld [vmem:[%s6] sm:$0xff]
      %v6104 = vld [vmem:[%s6 + $0x8] sm:$0xff]
      %v6105 = vld [vmem:[%s6 + $0x10] sm:$0xff]
      %v6106 = vld [vmem:[%s6 + $0x18] sm:$0xff]
      %v6107 = vld [vmem:[%s7] sm:$0x1]
      %v6109 = vlaneseq
      %v6110 = vshrl.u32 %v6109, 7
      %v6111 = vsub.s32 0, %v6110
      %v6112 = vrot.slane %v6107, %v6111
      %v6115 = vsel %vm2305, %v6087, 0
      %v6118 = vsel %vm2305, %v6088, 0
      %v6121 = vsel %vm2305, %v6089, 0
      %v6124 = vsel %vm2305, %v6090, 0
      %v6127 = vsel %vm2305, %v6091, 0
      %v6130 = vsel %vm2305, %v6092, 0
      %v6133 = vsel %vm2305, %v6093, 0
      %v6136 = vsel %vm2305, %v6094, 0
      %v6139 = vsel %vm2305, %v6095, 0
      %v6142 = vsel %vm2305, %v6096, 0
      %v6145 = vsel %vm2305, %v6097, 0
      %v6148 = vsel %vm2305, %v6098, 0
      %v6151 = vsel %vm2305, %v6099, 0
      %v6154 = vsel %vm2305, %v6100, 0
      %v6157 = vsel %vm2305, %v6101, 0
      %v6160 = vsel %vm2305, %v6102, 0
      %6162 = vmatprep.subr.mxu0 0.0
      %6163 = vmatpush1.msra.mxu0 %v6103
      %6164 = vmatprep.subr.mxu0 0.0
      %6165 = vmatpush1.msra.mxu0 %v6104
      %6166 = vmatprep.subr.mxu0 0.0
      %6167 = vmatpush1.msra.mxu0 %v6105
      %6168 = vmatprep.subr.mxu0 0.0
      %6169 = vmatpush1.msra.mxu0 %v6106
      %6170 = vmatprep.subr.mxu0 0.0
      %6171 = vmatpush1.msra.mxu0 0.0
      %6172 = vmatprep.subr.mxu0 0.0
      %6173 = vmatpush1.msra.mxu0 0.0
      %6174 = vmatprep.subr.mxu0 0.0
      %6175 = vmatpush1.msra.mxu0 0.0
      %6176 = vmatprep.subr.mxu0 0.0
      %6177 = vmatpush1.msra.mxu0 0.0
      %6178 = vmatprep.subr.mxu0 0.0
      %6179 = vmatpush1.msra.mxu0 0.0
      %6180 = vmatprep.subr.mxu0 0.0
      %6181 = vmatpush1.msra.mxu0 0.0
      %6182 = vmatprep.subr.mxu0 0.0
      %6183 = vmatpush1.msra.mxu0 0.0
      %6184 = vmatprep.subr.mxu0 0.0
      %6185 = vmatpush1.msra.mxu0 0.0
      %6186 = vmatprep.subr.mxu0 0.0
      %6187 = vmatpush1.msra.mxu0 0.0
      %6188 = vmatprep.subr.mxu0 0.0
      %6189 = vmatpush1.msra.mxu0 0.0
      %6190 = vmatprep.subr.mxu0 0.0
      %6191 = vmatpush1.msra.mxu0 0.0
      %6192 = vmatprep.subr.mxu0 0.0
      %6193 = vmatpush1.msra.mxu0 0.0
      %6194 = vmatprep.subr.mxu0 0.0
      %6195 = vmatpush1.msra.mxu0 0.0
      %6196 = vmatprep.subr.mxu0 0.0
      %6197 = vmatpush1.msra.mxu0 0.0
      %6198 = vmatprep.subr.mxu0 0.0
      %6199 = vmatpush1.msra.mxu0 0.0
      %6200 = vmatprep.subr.mxu0 0.0
      %6201 = vmatpush1.msra.mxu0 0.0
      %6202 = vmatprep.subr.mxu0 0.0
      %6203 = vmatpush1.msra.mxu0 0.0
      %6204 = vmatprep.subr.mxu0 0.0
      %6205 = vmatpush1.msra.mxu0 0.0
      %6206 = vmatprep.subr.mxu0 0.0
      %6207 = vmatpush1.msra.mxu0 0.0
      %6208 = vmatprep.subr.mxu0 0.0
      %6209 = vmatpush1.msra.mxu0 0.0
      %6210 = vmatprep.subr.mxu0 0.0
      %6211 = vmatpush1.msra.mxu0 0.0
      %6212 = vmatprep.subr.mxu0 0.0
      %6213 = vmatpush1.msra.mxu0 0.0
      %6214 = vmatprep.subr.mxu0 0.0
      %6215 = vmatpush1.msra.mxu0 0.0
      %6216 = vmatprep.subr.mxu0 0.0
      %6217 = vmatpush1.msra.mxu0 0.0
      %6218 = vmatprep.subr.mxu0 0.0
      %6219 = vmatpush1.msra.mxu0 0.0
      %6220 = vmatprep.subr.mxu0 0.0
      %6221 = vmatpush1.msra.mxu0 0.0
      %6222 = vmatprep.subr.mxu0 0.0
      %6223 = vmatpush1.msra.mxu0 0.0
      %6224 = vmatprep.subr.mxu0 0.0
      %6225 = vmatpush1.msra.mxu0 0.0
      %6226 = vmatprep.mubr.f32.mxu0 0.0
      %6227 = vmatmul.mubr.f32.gmra.mrb[0].mxu0 %v6115
      %v6228 = vpop.f32.mrb[0].mxu0
      %v6229 = vadd.f32 %v6112, %v6228
      %v6230 = vpop.f32.mrb[0].mxu0
      %6231 = vmatprep.mubr.f32.mxu0 0.0
      %6232 = vmatmul.mubr.f32.gmra.mrb[0].mxu0 %v6118
      %v6233 = vpop.f32.mrb[0].mxu0
      %v6234 = vadd.f32 %v6112, %v6233
      %v6235 = vpop.f32.mrb[0].mxu0
      %6236 = vmatprep.mubr.f32.mxu0 0.0
      %6237 = vmatmul.mubr.f32.gmra.mrb[0].mxu0 %v6121
      %v6238 = vpop.f32.mrb[0].mxu0
      %v6239 = vadd.f32 %v6112, %v6238
      %v6240 = vpop.f32.mrb[0].mxu0
      %6241 = vmatprep.mubr.f32.mxu0 0.0
      %6242 = vmatmul.mubr.f32.gmra.mrb[0].mxu0 %v6124
      %v6243 = vpop.f32.mrb[0].mxu0
      %v6244 = vadd.f32 %v6112, %v6243
      %v6245 = vpop.f32.mrb[0].mxu0
      %6246 = vmatprep.mubr.f32.mxu0 0.0
      %6247 = vmatmul.mubr.f32.gmra.mrb[0].mxu0 %v6127
      %v6248 = vpop.f32.mrb[0].mxu0
      %v6249 = vadd.f32 %v6112, %v6248
      %v6250 = vpop.f32.mrb[0].mxu0
      %6251 = vmatprep.mubr.f32.mxu0 0.0
      %6252 = vmatmul.mubr.f32.gmra.mrb[0].mxu0 %v6130
      %v6253 = vpop.f32.mrb[0].mxu0
      %v6254 = vadd.f32 %v6112, %v6253
      %v6255 = vpop.f32.mrb[0].mxu0
      %6256 = vmatprep.mubr.f32.mxu0 0.0
      %6257 = vmatmul.mubr.f32.gmra.mrb[0].mxu0 %v6133
      %v6258 = vpop.f32.mrb[0].mxu0
      %v6259 = vadd.f32 %v6112, %v6258
      %v6260 = vpop.f32.mrb[0].mxu0
      %6261 = vmatprep.mubr.f32.mxu0 0.0
      %6262 = vmatmul.mubr.f32.gmra.mrb[0].mxu0 %v6136
      %v6263 = vpop.f32.mrb[0].mxu0
      %v6264 = vadd.f32 %v6112, %v6263
      %v6265 = vpop.f32.mrb[0].mxu0
      %6266 = vmatprep.mubr.f32.mxu0 0.0
      %6267 = vmatmul.mubr.f32.gmra.mrb[0].mxu0 %v6139
      %v6268 = vpop.f32.mrb[0].mxu0
      %v6269 = vadd.f32 %v6112, %v6268
      %v6270 = vpop.f32.mrb[0].mxu0
      %6271 = vmatprep.mubr.f32.mxu0 0.0
      %6272 = vmatmul.mubr.f32.gmra.mrb[0].mxu0 %v6142
      %v6273 = vpop.f32.mrb[0].mxu0
      %v6274 = vadd.f32 %v6112, %v6273
      %v6275 = vpop.f32.mrb[0].mxu0
      %6276 = vmatprep.mubr.f32.mxu0 0.0
      %6277 = vmatmul.mubr.f32.gmra.mrb[0].mxu0 %v6145
      %v6278 = vpop.f32.mrb[0].mxu0
      %v6279 = vadd.f32 %v6112, %v6278
      %v6280 = vpop.f32.mrb[0].mxu0
      %6281 = vmatprep.mubr.f32.mxu0 0.0
      %6282 = vmatmul.mubr.f32.gmra.mrb[0].mxu0 %v6148
      %v6283 = vpop.f32.mrb[0].mxu0
      %v6284 = vadd.f32 %v6112, %v6283
      %v6285 = vpop.f32.mrb[0].mxu0
      %6286 = vmatprep.mubr.f32.mxu0 0.0
      %6287 = vmatmul.mubr.f32.gmra.mrb[0].mxu0 %v6151
      %v6288 = vpop.f32.mrb[0].mxu0
      %v6289 = vadd.f32 %v6112, %v6288
      %v6290 = vpop.f32.mrb[0].mxu0
      %6291 = vmatprep.mubr.f32.mxu0 0.0
      %6292 = vmatmul.mubr.f32.gmra.mrb[0].mxu0 %v6154
      %v6293 = vpop.f32.mrb[0].mxu0
      %v6294 = vadd.f32 %v6112, %v6293
      %v6295 = vpop.f32.mrb[0].mxu0
      %6296 = vmatprep.mubr.f32.mxu0 0.0
      %6297 = vmatmul.mubr.f32.gmra.mrb[0].mxu0 %v6157
      %v6298 = vpop.f32.mrb[0].mxu0
      %v6299 = vadd.f32 %v6112, %v6298
      %v6300 = vpop.f32.mrb[0].mxu0
      %6301 = vmatprep.mubr.f32.mxu0 0.0
      %6302 = vmatmul.mubr.f32.gmra.mrb[0].mxu0 %v6160
      %v6303 = vpop.f32.mrb[0].mxu0
      %v6304 = vadd.f32 %v6112, %v6303
      %v6305 = vpop.f32.mrb[0].mxu0
      %6306 = vdwg.mxu0
      %6307 = vst [vmem:[%s307] sm:$0xff] %v6229
      %6308 = vst [vmem:[%s307 + $0x8] sm:$0xff] %v6234
      %6309 = vst [vmem:[%s307 + $0x10] sm:$0xff] %v6239
      %6310 = vst [vmem:[%s307 + $0x18] sm:$0xff] %v6244
      %6311 = vst [vmem:[%s307 + $0x20] sm:$0xff] %v6249
      %6312 = vst [vmem:[%s307 + $0x28] sm:$0xff] %v6254
      %6313 = vst [vmem:[%s307 + $0x30] sm:$0xff] %v6259
      %6314 = vst [vmem:[%s307 + $0x38] sm:$0xff] %v6264
      %6315 = vst [vmem:[%s307 + $0x40] sm:$0xff] %v6269
      %6316 = vst [vmem:[%s307 + $0x48] sm:$0xff] %v6274
      %6317 = vst [vmem:[%s307 + $0x50] sm:$0xff] %v6279
      %6318 = vst [vmem:[%s307 + $0x58] sm:$0xff] %v6284
      %6319 = vst [vmem:[%s307 + $0x60] sm:$0xff] %v6289
      %6320 = vst [vmem:[%s307 + $0x68] sm:$0xff] %v6294
      %6321 = vst [vmem:[%s307 + $0x70] sm:$0xff] %v6299
      %6322 = vst [vmem:[%s307 + $0x78] sm:$0xff] %v6304
      %s6323 = smul.u32 16, %s19
      %p6324 = scmp.lt.s32.totalorder %s6323, 31
      %s6325 = scalar_select %p6324, %s6323, 31
      %s6326 = smul.addr %s6325, 8
      %s6327 = scalar_lea.vmem %s8, %s6326
      // Predicated region
      $region53: #{inr_forward.3} parent=51 // pred_check
        %p6328 = pneg %p210
      $region54: #{inr_forward.3} parent=51 // pred_check_branch
        %6330 = sbr.rel (%p6328) target = $region56
      $region55: #{inr_forward.3} parent=51 // pred_region
        %s6331 = smul.u32 16, %s19
      $region56: #{inr_forward.3} parent=51 // pred_fallthru
        _
    $region52: #{inr_forward.3} parent=5 // pred_fallthru
      _
    %p6332 = scmp.le.s32.totalorder 2, %s14
    // Predicated region
    $region57: #{inr_forward.3} parent=5 // pred_check
      %p6333 = pneg %p6332
    $region58: #{inr_forward.3} parent=5 // pred_check_branch
      %6335 = sbr.rel (%p6333) target = $region60
    $region59: #{inr_forward.3} parent=5 // pred_region
      %s6336 = ssub.s32 %s14, 2
      // Predicated region
      $region61: #{inr_forward.3} parent=59 // pred_check
        %p6337 = pneg %p216
      $region62: #{inr_forward.3} parent=59 // pred_check_branch
        %6339 = sbr.rel (%p6337) target = $region64
      $region63: #{inr_forward.3} parent=59 // pred_region
        %s6340 = smul.u32 16, %s20
        %p6341 = scmp.lt.s32.totalorder %s6340, 31
        %s6342 = scalar_select %p6341, %s6340, 31
        %s6343 = smul.addr %s6342, 8
        %s6344 = scalar_lea.vmem %s8, %s6343
      $region64: #{inr_forward.3} parent=59 // pred_fallthru
        _
    $region60: #{inr_forward.3} parent=5 // pred_fallthru
      _
  $region6: #{inr_forward.3} parent=0 // loop_footer
    %s18 = sadd.s32 1, %s14
  $region7: #{inr_forward.3} parent=0 // loop_footer_branch
    %13 = sbr.rel target = $region3
  $region8: #{inr_forward.3} parent=0 // loop_exit
    _

// kernel: inr_forward.2
$region0: #{inr_forward.2}
  #allocation0 [shape = 'u32[]', space=smem, size = 0x4, offset = 0x4, fixed_abs, tag = 'smem constant byte address 0x4 - core index']
  #allocation1 [shape = 'u32[144,128]{1,0:T(1,128)}', space=vmem, size = 0x12000, scoped, tag = 'internal scratch']
  %s0 = inlined_call_operand.vmem [shape: f32[3,66], index: 0, kind: input, shape index: {}]
  %s1 = inlined_call_operand.vmem [shape: f32[3,32,3], index: 1, kind: input, shape index: {}]
  %s2 = inlined_call_operand.vmem [shape: f32[32,1], index: 2, kind: input, shape index: {}]
  %s3 = inlined_call_operand.vmem [shape: f32[64,32], index: 3, kind: input, shape index: {}]
  %s4 = inlined_call_operand.vmem [shape: f32[64,32], index: 4, kind: input, shape index: {}]
  %s5 = inlined_call_operand.vmem [shape: f32[32,34], index: 5, kind: input, shape index: {}]
  %s6 = inlined_call_operand.vmem [shape: f32[5,64,32], index: 6, kind: input, shape index: {}]
  %s7 = inlined_call_operand.vmem [shape: f32[64,1], index: 7, kind: input, shape index: {}]
  %s8 = inlined_call_operand.vmem [shape: f32[30,15], index: 8, kind: input, shape index: {}]
  %s9 = inlined_call_operand.vmem [shape: f32[30,15], index: 9, kind: input, shape index: {}]
  %s10 = inlined_call_operand.vmem [shape: f32[15,17], index: 10, kind: input, shape index: {}]
  %s11 = inlined_call_operand.vmem [shape: f32[7,64,64], index: 11, kind: input, shape index: {}]
  %s12 = inlined_call_operand.vmem [shape: f32[64,1], index: 12, kind: input, shape index: {}]
  %s13 = inlined_call_operand.vmem [shape: f32[64,64], index: 13, kind: input, shape index: {}]
  %s14 = inlined_call_operand.vmem [shape: f32[64,1], index: 14, kind: input, shape index: {}]
  %s15 = inlined_call_operand.vmem [shape: f32[32,64], index: 15, kind: input, shape index: {}]
  %s16 = inlined_call_operand.vmem [shape: f32[32,1], index: 16, kind: input, shape index: {}]
  %s17 = inlined_call_operand.vmem [shape: f32[4,32], index: 17, kind: input, shape index: {}]
  %s18 = inlined_call_operand.vmem [shape: f32[4,1], index: 18, kind: input, shape index: {}]
  %s19 = inlined_call_operand.vmem [shape: f32[4,1], index: 19, kind: output, shape index: {0}]
  %s20 = inlined_call_operand.vmem [shape: f32[4,1], index: 20, kind: output, shape index: {1}]
  %21 = xla_tuple %s19, %s20
  %s22 = sld [smem:[#allocation0]]
  $region94: #{inr_forward.2} parent=0
    _
  %s24 = ssub.s32 1, %s22
  %s25 = scalar_select 0, %s24, %s22
  // Predicated region
  $region2: #{inr_forward.2} parent=0 // pred_check
    _
  $region3: #{inr_forward.2} parent=0 // pred_check_branch
    %27 = sbr.rel (0) target = $region5
  $region4: #{inr_forward.2} parent=0 // pred_region
    _
  $region5: #{inr_forward.2} parent=0 // pred_fallthru
    _
  // Predicated region
  $region6: #{inr_forward.2} parent=0 // pred_check
    _
  $region7: #{inr_forward.2} parent=0 // pred_check_branch
    %29 = sbr.rel (0) target = $region9
  $region8: #{inr_forward.2} parent=0 // pred_region
    _
  $region9: #{inr_forward.2} parent=0 // pred_fallthru
    _
  // Predicated region
  $region10: #{inr_forward.2} parent=0 // pred_check
    _
  $region11: #{inr_forward.2} parent=0 // pred_check_branch
    %31 = sbr.rel (0) target = $region13
  $region12: #{inr_forward.2} parent=0 // pred_region
    _
  $region13: #{inr_forward.2} parent=0 // pred_fallthru
    _
  // Predicated region
  $region14: #{inr_forward.2} parent=0 // pred_check
    _
  $region15: #{inr_forward.2} parent=0 // pred_check_branch
    %33 = sbr.rel (0) target = $region17
  $region16: #{inr_forward.2} parent=0 // pred_region
    _
  $region17: #{inr_forward.2} parent=0 // pred_fallthru
    _
  // Predicated region
  $region18: #{inr_forward.2} parent=0 // pred_check
    _
  $region19: #{inr_forward.2} parent=0 // pred_check_branch
    %35 = sbr.rel (0) target = $region21
  $region20: #{inr_forward.2} parent=0 // pred_region
    _
  $region21: #{inr_forward.2} parent=0 // pred_fallthru
    _
  // Predicated region
  $region22: #{inr_forward.2} parent=0 // pred_check
    _
  $region23: #{inr_forward.2} parent=0 // pred_check_branch
    %37 = sbr.rel (0) target = $region25
  $region24: #{inr_forward.2} parent=0 // pred_region
    _
  $region25: #{inr_forward.2} parent=0 // pred_fallthru
    _
  // Predicated region
  $region26: #{inr_forward.2} parent=0 // pred_check
    _
  $region27: #{inr_forward.2} parent=0 // pred_check_branch
    %39 = sbr.rel (0) target = $region29
  $region28: #{inr_forward.2} parent=0 // pred_region
    _
  $region29: #{inr_forward.2} parent=0 // pred_fallthru
    _
  // Predicated region
  $region30: #{inr_forward.2} parent=0 // pred_check
    _
  $region31: #{inr_forward.2} parent=0 // pred_check_branch
    %41 = sbr.rel (0) target = $region33
  $region32: #{inr_forward.2} parent=0 // pred_region
    _
  $region33: #{inr_forward.2} parent=0 // pred_fallthru
    _
  // Predicated region
  $region34: #{inr_forward.2} parent=0 // pred_check
    _
  $region35: #{inr_forward.2} parent=0 // pred_check_branch
    %43 = sbr.rel (0) target = $region37
  $region36: #{inr_forward.2} parent=0 // pred_region
    _
  $region37: #{inr_forward.2} parent=0 // pred_fallthru
    _
  // Predicated region
  $region38: #{inr_forward.2} parent=0 // pred_check
    _
  $region39: #{inr_forward.2} parent=0 // pred_check_branch
    %45 = sbr.rel (0) target = $region41
  $region40: #{inr_forward.2} parent=0 // pred_region
    _
  $region41: #{inr_forward.2} parent=0 // pred_fallthru
    _
  // Predicated region
  $region42: #{inr_forward.2} parent=0 // pred_check
    _
  $region43: #{inr_forward.2} parent=0 // pred_check_branch
    %47 = sbr.rel (0) target = $region45
  $region44: #{inr_forward.2} parent=0 // pred_region
    _
  $region45: #{inr_forward.2} parent=0 // pred_fallthru
    _
  // Predicated region
  $region46: #{inr_forward.2} parent=0 // pred_check
    _
  $region47: #{inr_forward.2} parent=0 // pred_check_branch
    %49 = sbr.rel (0) target = $region49
  $region48: #{inr_forward.2} parent=0 // pred_region
    _
  $region49: #{inr_forward.2} parent=0 // pred_fallthru
    _
  // Predicated region
  $region50: #{inr_forward.2} parent=0 // pred_check
    _
  $region51: #{inr_forward.2} parent=0 // pred_check_branch
    %51 = sbr.rel (0) target = $region53
  $region52: #{inr_forward.2} parent=0 // pred_region
    _
  $region53: #{inr_forward.2} parent=0 // pred_fallthru
    _
  // Predicated region
  $region54: #{inr_forward.2} parent=0 // pred_check
    _
  $region55: #{inr_forward.2} parent=0 // pred_check_branch
    %53 = sbr.rel (0) target = $region57
  $region56: #{inr_forward.2} parent=0 // pred_region
    _
  $region57: #{inr_forward.2} parent=0 // pred_fallthru
    _
  // Predicated region
  $region58: #{inr_forward.2} parent=0 // pred_check
    _
  $region59: #{inr_forward.2} parent=0 // pred_check_branch
    %55 = sbr.rel (0) target = $region61
  $region60: #{inr_forward.2} parent=0 // pred_region
    _
  $region61: #{inr_forward.2} parent=0 // pred_fallthru
    _
  // Predicated region
  $region62: #{inr_forward.2} parent=0 // pred_check
    _
  $region63: #{inr_forward.2} parent=0 // pred_check_branch
    %57 = sbr.rel (0) target = $region65
  $region64: #{inr_forward.2} parent=0 // pred_region
    _
  $region65: #{inr_forward.2} parent=0 // pred_fallthru
    _
  // Predicated region
  $region66: #{inr_forward.2} parent=0 // pred_check
    _
  $region67: #{inr_forward.2} parent=0 // pred_check_branch
    %59 = sbr.rel (0) target = $region69
  $region68: #{inr_forward.2} parent=0 // pred_region
    _
  $region69: #{inr_forward.2} parent=0 // pred_fallthru
    _
  // Predicated region
  $region70: #{inr_forward.2} parent=0 // pred_check
    _
  $region71: #{inr_forward.2} parent=0 // pred_check_branch
    %61 = sbr.rel (0) target = $region73
  $region72: #{inr_forward.2} parent=0 // pred_region
    _
  $region73: #{inr_forward.2} parent=0 // pred_fallthru
    _
  // Predicated region
  $region74: #{inr_forward.2} parent=0 // pred_check
    _
  $region75: #{inr_forward.2} parent=0 // pred_check_branch
    %63 = sbr.rel (0) target = $region77
  $region76: #{inr_forward.2} parent=0 // pred_region
    _
  $region77: #{inr_forward.2} parent=0 // pred_fallthru
    _
  %v64 = vld [vmem:[%s0] sm:$0x7]
  %v65 = vld [vmem:[%s1] sm:$0xff]
  %v66 = vld [vmem:[%s1 + $0x8] sm:$0xff]
  %v67 = vld [vmem:[%s1 + $0x10] sm:$0xff]
  %v68 = vld [vmem:[%s1 + $0x18] sm:$0xff]
  %s69 = scalar_lea.vmem %s1, 32
  %v70 = vld [vmem:[%s69] sm:$0xff]
  %v71 = vld [vmem:[%s69 + $0x8] sm:$0xff]
  %v72 = vld [vmem:[%s69 + $0x10] sm:$0xff]
  %v73 = vld [vmem:[%s69 + $0x18] sm:$0xff]
  %75 = vrot.lane.b32.xlu0 %v64, 127
  %v76 = vpop.permute.xlu0 %75
  %vm77 = vcmask 23552
  %v79 = vsel %vm77, %v70, 0
  %v82 = vsel %vm77, %v71, 0
  %v85 = vsel %vm77, %v72, 0
  %v88 = vsel %vm77, %v73, 0
  %vm90 = vcmask 1042432
  %v91 = vsel %vm90, %v76, 0
  %93 = vmatprep.subr.mxu0 0.0
  %94 = vmatpush1.msra.mxu0 %v91
  %95 = vmatprep.subr.mxu0 0.0
  %96 = vmatpush1.msra.mxu0 0.0
  %97 = vmatprep.subr.mxu0 0.0
  %98 = vmatpush1.msra.mxu0 0.0
  %99 = vmatprep.subr.mxu0 0.0
  %100 = vmatpush1.msra.mxu0 0.0
  %101 = vmatprep.subr.mxu0 0.0
  %102 = vmatpush1.msra.mxu0 0.0
  %103 = vmatprep.subr.mxu0 0.0
  %104 = vmatpush1.msra.mxu0 0.0
  %105 = vmatprep.subr.mxu0 0.0
  %106 = vmatpush1.msra.mxu0 0.0
  %107 = vmatprep.subr.mxu0 0.0
  %108 = vmatpush1.msra.mxu0 0.0
  %109 = vmatprep.subr.mxu0 0.0
  %110 = vmatpush1.msra.mxu0 0.0
  %111 = vmatprep.subr.mxu0 0.0
  %112 = vmatpush1.msra.mxu0 0.0
  %113 = vmatprep.subr.mxu0 0.0
  %114 = vmatpush1.msra.mxu0 0.0
  %115 = vmatprep.subr.mxu0 0.0
  %116 = vmatpush1.msra.mxu0 0.0
  %117 = vmatprep.subr.mxu0 0.0
  %118 = vmatpush1.msra.mxu0 0.0
  %119 = vmatprep.subr.mxu0 0.0
  %120 = vmatpush1.msra.mxu0 0.0
  %121 = vmatprep.subr.mxu0 0.0
  %122 = vmatpush1.msra.mxu0 0.0
  %123 = vmatprep.subr.mxu0 0.0
  %124 = vmatpush1.msra.mxu0 0.0
  %125 = vmatprep.subr.mxu0 0.0
  %126 = vmatpush1.msra.mxu0 0.0
  %127 = vmatprep.subr.mxu0 0.0
  %128 = vmatpush1.msra.mxu0 0.0
  %129 = vmatprep.subr.mxu0 0.0
  %130 = vmatpush1.msra.mxu0 0.0
  %131 = vmatprep.subr.mxu0 0.0
  %132 = vmatpush1.msra.mxu0 0.0
  %133 = vmatprep.subr.mxu0 0.0
  %134 = vmatpush1.msra.mxu0 0.0
  %135 = vmatprep.subr.mxu0 0.0
  %136 = vmatpush1.msra.mxu0 0.0
  %137 = vmatprep.subr.mxu0 0.0
  %138 = vmatpush1.msra.mxu0 0.0
  %139 = vmatprep.subr.mxu0 0.0
  %140 = vmatpush1.msra.mxu0 0.0
  %141 = vmatprep.subr.mxu0 0.0
  %142 = vmatpush1.msra.mxu0 0.0
  %143 = vmatprep.subr.mxu0 0.0
  %144 = vmatpush1.msra.mxu0 0.0
  %145 = vmatprep.subr.mxu0 0.0
  %146 = vmatpush1.msra.mxu0 0.0
  %147 = vmatprep.subr.mxu0 0.0
  %148 = vmatpush1.msra.mxu0 0.0
  %149 = vmatprep.subr.mxu0 0.0
  %150 = vmatpush1.msra.mxu0 0.0
  %151 = vmatprep.subr.mxu0 0.0
  %152 = vmatpush1.msra.mxu0 0.0
  %153 = vmatprep.subr.mxu0 0.0
  %154 = vmatpush1.msra.mxu0 0.0
  %155 = vmatprep.subr.mxu0 0.0
  %156 = vmatpush1.msra.mxu0 0.0
  %157 = vmatprep.mubr.f32.mxu0 0.0
  %158 = vmatmul.mubr.f32.gmra.mrb[0].mxu0 %v79
  %v159 = vpop.f32.mrb[0].mxu0
  %v160 = vadd.f32 0.0, %v159
  %v161 = vpop.f32.mrb[0].mxu0
  %162 = vmatprep.mubr.f32.mxu0 0.0
  %163 = vmatmul.mubr.f32.gmra.mrb[0].mxu0 %v82
  %v164 = vpop.f32.mrb[0].mxu0
  %v165 = vadd.f32 0.0, %v164
  %v166 = vpop.f32.mrb[0].mxu0
  %167 = vmatprep.mubr.f32.mxu0 0.0
  %168 = vmatmul.mubr.f32.gmra.mrb[0].mxu0 %v85
  %v169 = vpop.f32.mrb[0].mxu0
  %v170 = vadd.f32 0.0, %v169
  %v171 = vpop.f32.mrb[0].mxu0
  %172 = vmatprep.mubr.f32.mxu0 0.0
  %173 = vmatmul.mubr.f32.gmra.mrb[0].mxu0 %v88
  %v174 = vpop.f32.mrb[0].mxu0
  %v175 = vadd.f32 0.0, %v174
  %v176 = vpop.f32.mrb[0].mxu0
  %177 = vdwg.mxu0
  %v179 = vsel %vm77, %v65, 0
  %v182 = vsel %vm77, %v66, 0
  %v185 = vsel %vm77, %v67, 0
  %v188 = vsel %vm77, %v68, 0
  %v190 = vsel %vm90, %v64, 0
  %192 = vmatprep.subr.mxu0 0.0
  %193 = vmatpush1.msra.mxu0 %v190
  %194 = vmatprep.subr.mxu0 0.0
  %195 = vmatpush1.msra.mxu0 0.0
  %196 = vmatprep.subr.mxu0 0.0
  %197 = vmatpush1.msra.mxu0 0.0
  %198 = vmatprep.subr.mxu0 0.0
  %199 = vmatpush1.msra.mxu0 0.0
  %200 = vmatprep.subr.mxu0 0.0
  %201 = vmatpush1.msra.mxu0 0.0
  %202 = vmatprep.subr.mxu0 0.0
  %203 = vmatpush1.msra.mxu0 0.0
  %204 = vmatprep.subr.mxu0 0.0
  %205 = vmatpush1.msra.mxu0 0.0
  %206 = vmatprep.subr.mxu0 0.0
  %207 = vmatpush1.msra.mxu0 0.0
  %208 = vmatprep.subr.mxu0 0.0
  %209 = vmatpush1.msra.mxu0 0.0
  %210 = vmatprep.subr.mxu0 0.0
  %211 = vmatpush1.msra.mxu0 0.0
  %212 = vmatprep.subr.mxu0 0.0
  %213 = vmatpush1.msra.mxu0 0.0
  %214 = vmatprep.subr.mxu0 0.0
  %215 = vmatpush1.msra.mxu0 0.0
  %216 = vmatprep.subr.mxu0 0.0
  %217 = vmatpush1.msra.mxu0 0.0
  %218 = vmatprep.subr.mxu0 0.0
  %219 = vmatpush1.msra.mxu0 0.0
  %220 = vmatprep.subr.mxu0 0.0
  %221 = vmatpush1.msra.mxu0 0.0
  %222 = vmatprep.subr.mxu0 0.0
  %223 = vmatpush1.msra.mxu0 0.0
  %224 = vmatprep.subr.mxu0 0.0
  %225 = vmatpush1.msra.mxu0 0.0
  %226 = vmatprep.subr.mxu0 0.0
  %227 = vmatpush1.msra.mxu0 0.0
  %228 = vmatprep.subr.mxu0 0.0
  %229 = vmatpush1.msra.mxu0 0.0
  %230 = vmatprep.subr.mxu0 0.0
  %231 = vmatpush1.msra.mxu0 0.0
  %232 = vmatprep.subr.mxu0 0.0
  %233 = vmatpush1.msra.mxu0 0.0
  %234 = vmatprep.subr.mxu0 0.0
  %235 = vmatpush1.msra.mxu0 0.0
  %236 = vmatprep.subr.mxu0 0.0
  %237 = vmatpush1.msra.mxu0 0.0
  %238 = vmatprep.subr.mxu0 0.0
  %239 = vmatpush1.msra.mxu0 0.0
  %240 = vmatprep.subr.mxu0 0.0
  %241 = vmatpush1.msra.mxu0 0.0
  %242 = vmatprep.subr.mxu0 0.0
  %243 = vmatpush1.msra.mxu0 0.0
  %244 = vmatprep.subr.mxu0 0.0
  %245 = vmatpush1.msra.mxu0 0.0
  %246 = vmatprep.subr.mxu0 0.0
  %247 = vmatpush1.msra.mxu0 0.0
  %248 = vmatprep.subr.mxu0 0.0
  %249 = vmatpush1.msra.mxu0 0.0
  %250 = vmatprep.subr.mxu0 0.0
  %251 = vmatpush1.msra.mxu0 0.0
  %252 = vmatprep.subr.mxu0 0.0
  %253 = vmatpush1.msra.mxu0 0.0
  %254 = vmatprep.subr.mxu0 0.0
  %255 = vmatpush1.msra.mxu0 0.0
  %256 = vmatprep.mubr.f32.mxu0 0.0
  %257 = vmatmul.mubr.f32.gmra.mrb[0].mxu0 %v179
  %v258 = vpop.f32.mrb[0].mxu0
  %v259 = vadd.f32 %v160, %v258
  %v260 = vpop.f32.mrb[0].mxu0
  %261 = vmatprep.mubr.f32.mxu0 0.0
  %262 = vmatmul.mubr.f32.gmra.mrb[0].mxu0 %v182
  %v263 = vpop.f32.mrb[0].mxu0
  %v264 = vadd.f32 %v165, %v263
  %v265 = vpop.f32.mrb[0].mxu0
  %266 = vmatprep.mubr.f32.mxu0 0.0
  %267 = vmatmul.mubr.f32.gmra.mrb[0].mxu0 %v185
  %v268 = vpop.f32.mrb[0].mxu0
  %v269 = vadd.f32 %v170, %v268
  %v270 = vpop.f32.mrb[0].mxu0
  %271 = vmatprep.mubr.f32.mxu0 0.0
  %272 = vmatmul.mubr.f32.gmra.mrb[0].mxu0 %v188
  %v273 = vpop.f32.mrb[0].mxu0
  %v274 = vadd.f32 %v175, %v273
  %v275 = vpop.f32.mrb[0].mxu0
  %276 = vdwg.mxu0
  %s277 = scalar_lea.vmem %s1, 64
  %v278 = vld [vmem:[%s277] sm:$0xff]
  %v279 = vld [vmem:[%s277 + $0x8] sm:$0xff]
  %v280 = vld [vmem:[%s277 + $0x10] sm:$0xff]
  %v281 = vld [vmem:[%s277 + $0x18] sm:$0xff]
  %282 = vrot.lane.b32.xlu0 %v64, 126
  %v283 = vpop.permute.xlu0 %282
  %v285 = vsel %vm77, %v278, 0
  %v288 = vsel %vm77, %v279, 0
  %v291 = vsel %vm77, %v280, 0
  %v294 = vsel %vm77, %v281, 0
  %v296 = vsel %vm90, %v283, 0
  %298 = vmatprep.subr.mxu0 0.0
  %299 = vmatpush1.msra.mxu0 %v296
  %300 = vmatprep.subr.mxu0 0.0
  %301 = vmatpush1.msra.mxu0 0.0
  %302 = vmatprep.subr.mxu0 0.0
  %303 = vmatpush1.msra.mxu0 0.0
  %304 = vmatprep.subr.mxu0 0.0
  %305 = vmatpush1.msra.mxu0 0.0
  %306 = vmatprep.subr.mxu0 0.0
  %307 = vmatpush1.msra.mxu0 0.0
  %308 = vmatprep.subr.mxu0 0.0
  %309 = vmatpush1.msra.mxu0 0.0
  %310 = vmatprep.subr.mxu0 0.0
  %311 = vmatpush1.msra.mxu0 0.0
  %312 = vmatprep.subr.mxu0 0.0
  %313 = vmatpush1.msra.mxu0 0.0
  %314 = vmatprep.subr.mxu0 0.0
  %315 = vmatpush1.msra.mxu0 0.0
  %316 = vmatprep.subr.mxu0 0.0
  %317 = vmatpush1.msra.mxu0 0.0
  %318 = vmatprep.subr.mxu0 0.0
  %319 = vmatpush1.msra.mxu0 0.0
  %320 = vmatprep.subr.mxu0 0.0
  %321 = vmatpush1.msra.mxu0 0.0
  %322 = vmatprep.subr.mxu0 0.0
  %323 = vmatpush1.msra.mxu0 0.0
  %324 = vmatprep.subr.mxu0 0.0
  %325 = vmatpush1.msra.mxu0 0.0
  %326 = vmatprep.subr.mxu0 0.0
  %327 = vmatpush1.msra.mxu0 0.0
  %328 = vmatprep.subr.mxu0 0.0
  %329 = vmatpush1.msra.mxu0 0.0
  %330 = vmatprep.subr.mxu0 0.0
  %331 = vmatpush1.msra.mxu0 0.0
  %332 = vmatprep.subr.mxu0 0.0
  %333 = vmatpush1.msra.mxu0 0.0
  %334 = vmatprep.subr.mxu0 0.0
  %335 = vmatpush1.msra.mxu0 0.0
  %336 = vmatprep.subr.mxu0 0.0
  %337 = vmatpush1.msra.mxu0 0.0
  %338 = vmatprep.subr.mxu0 0.0
  %339 = vmatpush1.msra.mxu0 0.0
  %340 = vmatprep.subr.mxu0 0.0
  %341 = vmatpush1.msra.mxu0 0.0
  %342 = vmatprep.subr.mxu0 0.0
  %343 = vmatpush1.msra.mxu0 0.0
  %344 = vmatprep.subr.mxu0 0.0
  %345 = vmatpush1.msra.mxu0 0.0
  %346 = vmatprep.subr.mxu0 0.0
  %347 = vmatpush1.msra.mxu0 0.0
  %348 = vmatprep.subr.mxu0 0.0
  %349 = vmatpush1.msra.mxu0 0.0
  %350 = vmatprep.subr.mxu0 0.0
  %351 = vmatpush1.msra.mxu0 0.0
  %352 = vmatprep.subr.mxu0 0.0
  %353 = vmatpush1.msra.mxu0 0.0
  %354 = vmatprep.subr.mxu0 0.0
  %355 = vmatpush1.msra.mxu0 0.0
  %356 = vmatprep.subr.mxu0 0.0
  %357 = vmatpush1.msra.mxu0 0.0
  %358 = vmatprep.subr.mxu0 0.0
  %359 = vmatpush1.msra.mxu0 0.0
  %360 = vmatprep.subr.mxu0 0.0
  %361 = vmatpush1.msra.mxu0 0.0
  %362 = vmatprep.mubr.f32.mxu0 0.0
  %363 = vmatmul.mubr.f32.gmra.mrb[0].mxu0 %v285
  %v364 = vpop.f32.mrb[0].mxu0
  %v365 = vadd.f32 0.0, %v364
  %v366 = vpop.f32.mrb[0].mxu0
  %367 = vmatprep.mubr.f32.mxu0 0.0
  %368 = vmatmul.mubr.f32.gmra.mrb[0].mxu0 %v288
  %v369 = vpop.f32.mrb[0].mxu0
  %v370 = vadd.f32 0.0, %v369
  %v371 = vpop.f32.mrb[0].mxu0
  %372 = vmatprep.mubr.f32.mxu0 0.0
  %373 = vmatmul.mubr.f32.gmra.mrb[0].mxu0 %v291
  %v374 = vpop.f32.mrb[0].mxu0
  %v375 = vadd.f32 0.0, %v374
  %v376 = vpop.f32.mrb[0].mxu0
  %377 = vmatprep.mubr.f32.mxu0 0.0
  %378 = vmatmul.mubr.f32.gmra.mrb[0].mxu0 %v294
  %v379 = vpop.f32.mrb[0].mxu0
  %v380 = vadd.f32 0.0, %v379
  %v381 = vpop.f32.mrb[0].mxu0
  %382 = vdwg.mxu0
  %v383 = vadd.f32 %v259, %v365
  %v384 = vadd.f32 %v264, %v370
  %v385 = vadd.f32 %v269, %v375
  %v386 = vadd.f32 %v274, %v380
  %v387 = vld [vmem:[%s2] sm:$0xff]
  %v388 = vld [vmem:[%s2 + $0x8] sm:$0xff]
  %v389 = vld [vmem:[%s2 + $0x10] sm:$0xff]
  %v390 = vld [vmem:[%s2 + $0x18] sm:$0xff]
  %392 = vset.pattern.permute.xlu0 0
  %393 = vperm.xlu0 %392, %v387
  %v394 = vpop.permute.xlu0 %393
  %397 = vset.pattern.permute.xlu0 0
  %398 = vperm.xlu0 %397, %v388
  %v399 = vpop.permute.xlu0 %398
  %402 = vset.pattern.permute.xlu0 0
  %403 = vperm.xlu0 %402, %v389
  %v404 = vpop.permute.xlu0 %403
  %407 = vset.pattern.permute.xlu0 0
  %408 = vperm.xlu0 %407, %v390
  %v409 = vpop.permute.xlu0 %408
  %v411 = vadd.f32 %v383, %v394
  %v412 = vadd.f32 %v384, %v399
  %v413 = vadd.f32 %v385, %v404
  %v414 = vadd.f32 %v386, %v409
  %v415 = vmax.f32 %v411, 0.0
  %v416 = vmax.f32 %v412, 0.0
  %v417 = vmax.f32 %v413, 0.0
  %v418 = vmax.f32 %v414, 0.0
  %v419 = vld [vmem:[%s3] sm:$0xff]
  %v420 = vld [vmem:[%s3 + $0x8] sm:$0xff]
  %v421 = vld [vmem:[%s3 + $0x10] sm:$0xff]
  %v422 = vld [vmem:[%s3 + $0x18] sm:$0xff]
  %v423 = vld [vmem:[%s3 + $0x20] sm:$0xff]
  %v424 = vld [vmem:[%s3 + $0x28] sm:$0xff]
  %v425 = vld [vmem:[%s3 + $0x30] sm:$0xff]
  %v426 = vld [vmem:[%s3 + $0x38] sm:$0xff]
  %vm427 = vcmask 523264
  %v429 = vsel %vm427, %v415, 0
  %v432 = vsel %vm427, %v416, 0
  %v435 = vsel %vm427, %v417, 0
  %v438 = vsel %vm427, %v418, 0
  %440 = vmatprep.subr.mxu0 0.0
  %441 = vmatpush1.msra.mxu0 %v419
  %442 = vmatprep.subr.mxu0 0.0
  %443 = vmatpush1.msra.mxu0 %v420
  %444 = vmatprep.subr.mxu0 0.0
  %445 = vmatpush1.msra.mxu0 %v421
  %446 = vmatprep.subr.mxu0 0.0
  %447 = vmatpush1.msra.mxu0 %v422
  %448 = vmatprep.subr.mxu0 0.0
  %449 = vmatpush1.msra.mxu0 %v423
  %450 = vmatprep.subr.mxu0 0.0
  %451 = vmatpush1.msra.mxu0 %v424
  %452 = vmatprep.subr.mxu0 0.0
  %453 = vmatpush1.msra.mxu0 %v425
  %454 = vmatprep.subr.mxu0 0.0
  %455 = vmatpush1.msra.mxu0 %v426
  %456 = vmatprep.subr.mxu0 0.0
  %457 = vmatpush1.msra.mxu0 0.0
  %458 = vmatprep.subr.mxu0 0.0
  %459 = vmatpush1.msra.mxu0 0.0
  %460 = vmatprep.subr.mxu0 0.0
  %461 = vmatpush1.msra.mxu0 0.0
  %462 = vmatprep.subr.mxu0 0.0
  %463 = vmatpush1.msra.mxu0 0.0
  %464 = vmatprep.subr.mxu0 0.0
  %465 = vmatpush1.msra.mxu0 0.0
  %466 = vmatprep.subr.mxu0 0.0
  %467 = vmatpush1.msra.mxu0 0.0
  %468 = vmatprep.subr.mxu0 0.0
  %469 = vmatpush1.msra.mxu0 0.0
  %470 = vmatprep.subr.mxu0 0.0
  %471 = vmatpush1.msra.mxu0 0.0
  %472 = vmatprep.subr.mxu0 0.0
  %473 = vmatpush1.msra.mxu0 0.0
  %474 = vmatprep.subr.mxu0 0.0
  %475 = vmatpush1.msra.mxu0 0.0
  %476 = vmatprep.subr.mxu0 0.0
  %477 = vmatpush1.msra.mxu0 0.0
  %478 = vmatprep.subr.mxu0 0.0
  %479 = vmatpush1.msra.mxu0 0.0
  %480 = vmatprep.subr.mxu0 0.0
  %481 = vmatpush1.msra.mxu0 0.0
  %482 = vmatprep.subr.mxu0 0.0
  %483 = vmatpush1.msra.mxu0 0.0
  %484 = vmatprep.subr.mxu0 0.0
  %485 = vmatpush1.msra.mxu0 0.0
  %486 = vmatprep.subr.mxu0 0.0
  %487 = vmatpush1.msra.mxu0 0.0
  %488 = vmatprep.subr.mxu0 0.0
  %489 = vmatpush1.msra.mxu0 0.0
  %490 = vmatprep.subr.mxu0 0.0
  %491 = vmatpush1.msra.mxu0 0.0
  %492 = vmatprep.subr.mxu0 0.0
  %493 = vmatpush1.msra.mxu0 0.0
  %494 = vmatprep.subr.mxu0 0.0
  %495 = vmatpush1.msra.mxu0 0.0
  %496 = vmatprep.subr.mxu0 0.0
  %497 = vmatpush1.msra.mxu0 0.0
  %498 = vmatprep.subr.mxu0 0.0
  %499 = vmatpush1.msra.mxu0 0.0
  %500 = vmatprep.subr.mxu0 0.0
  %501 = vmatpush1.msra.mxu0 0.0
  %502 = vmatprep.subr.mxu0 0.0
  %503 = vmatpush1.msra.mxu0 0.0
  %504 = vmatprep.mubr.f32.mxu0 0.0
  %505 = vmatmul.mubr.f32.gmra.mrb[0].mxu0 %v429
  %v506 = vpop.f32.mrb[0].mxu0
  %v507 = vadd.f32 0.0, %v506
  %v508 = vpop.f32.mrb[0].mxu0
  %509 = vmatprep.mubr.f32.mxu0 0.0
  %510 = vmatmul.mubr.f32.gmra.mrb[0].mxu0 %v432
  %v511 = vpop.f32.mrb[0].mxu0
  %v512 = vadd.f32 0.0, %v511
  %v513 = vpop.f32.mrb[0].mxu0
  %514 = vmatprep.mubr.f32.mxu0 0.0
  %515 = vmatmul.mubr.f32.gmra.mrb[0].mxu0 %v435
  %v516 = vpop.f32.mrb[0].mxu0
  %v517 = vadd.f32 0.0, %v516
  %v518 = vpop.f32.mrb[0].mxu0
  %519 = vmatprep.mubr.f32.mxu0 0.0
  %520 = vmatmul.mubr.f32.gmra.mrb[0].mxu0 %v438
  %v521 = vpop.f32.mrb[0].mxu0
  %v522 = vadd.f32 0.0, %v521
  %v523 = vpop.f32.mrb[0].mxu0
  %524 = vdwg.mxu0
  %v525 = vld [vmem:[%s4] sm:$0xff]
  %v526 = vld [vmem:[%s4 + $0x8] sm:$0xff]
  %v527 = vld [vmem:[%s4 + $0x10] sm:$0xff]
  %v528 = vld [vmem:[%s4 + $0x18] sm:$0xff]
  %v529 = vld [vmem:[%s4 + $0x20] sm:$0xff]
  %v530 = vld [vmem:[%s4 + $0x28] sm:$0xff]
  %v531 = vld [vmem:[%s4 + $0x30] sm:$0xff]
  %v532 = vld [vmem:[%s4 + $0x38] sm:$0xff]
  %533 = vmatprep.subr.mxu0 0.0
  %534 = vmatpush1.msra.mxu0 %v525
  %535 = vmatprep.subr.mxu0 0.0
  %536 = vmatpush1.msra.mxu0 %v526
  %537 = vmatprep.subr.mxu0 0.0
  %538 = vmatpush1.msra.mxu0 %v527
  %539 = vmatprep.subr.mxu0 0.0
  %540 = vmatpush1.msra.mxu0 %v528
  %541 = vmatprep.subr.mxu0 0.0
  %542 = vmatpush1.msra.mxu0 %v529
  %543 = vmatprep.subr.mxu0 0.0
  %544 = vmatpush1.msra.mxu0 %v530
  %545 = vmatprep.subr.mxu0 0.0
  %546 = vmatpush1.msra.mxu0 %v531
  %547 = vmatprep.subr.mxu0 0.0
  %548 = vmatpush1.msra.mxu0 %v532
  %549 = vmatprep.subr.mxu0 0.0
  %550 = vmatpush1.msra.mxu0 0.0
  %551 = vmatprep.subr.mxu0 0.0
  %552 = vmatpush1.msra.mxu0 0.0
  %553 = vmatprep.subr.mxu0 0.0
  %554 = vmatpush1.msra.mxu0 0.0
  %555 = vmatprep.subr.mxu0 0.0
  %556 = vmatpush1.msra.mxu0 0.0
  %557 = vmatprep.subr.mxu0 0.0
  %558 = vmatpush1.msra.mxu0 0.0
  %559 = vmatprep.subr.mxu0 0.0
  %560 = vmatpush1.msra.mxu0 0.0
  %561 = vmatprep.subr.mxu0 0.0
  %562 = vmatpush1.msra.mxu0 0.0
  %563 = vmatprep.subr.mxu0 0.0
  %564 = vmatpush1.msra.mxu0 0.0
  %565 = vmatprep.subr.mxu0 0.0
  %566 = vmatpush1.msra.mxu0 0.0
  %567 = vmatprep.subr.mxu0 0.0
  %568 = vmatpush1.msra.mxu0 0.0
  %569 = vmatprep.subr.mxu0 0.0
  %570 = vmatpush1.msra.mxu0 0.0
  %571 = vmatprep.subr.mxu0 0.0
  %572 = vmatpush1.msra.mxu0 0.0
  %573 = vmatprep.subr.mxu0 0.0
  %574 = vmatpush1.msra.mxu0 0.0
  %575 = vmatprep.subr.mxu0 0.0
  %576 = vmatpush1.msra.mxu0 0.0
  %577 = vmatprep.subr.mxu0 0.0
  %578 = vmatpush1.msra.mxu0 0.0
  %579 = vmatprep.subr.mxu0 0.0
  %580 = vmatpush1.msra.mxu0 0.0
  %581 = vmatprep.subr.mxu0 0.0
  %582 = vmatpush1.msra.mxu0 0.0
  %583 = vmatprep.subr.mxu0 0.0
  %584 = vmatpush1.msra.mxu0 0.0
  %585 = vmatprep.subr.mxu0 0.0
  %586 = vmatpush1.msra.mxu0 0.0
  %587 = vmatprep.subr.mxu0 0.0
  %588 = vmatpush1.msra.mxu0 0.0
  %589 = vmatprep.subr.mxu0 0.0
  %590 = vmatpush1.msra.mxu0 0.0
  %591 = vmatprep.subr.mxu0 0.0
  %592 = vmatpush1.msra.mxu0 0.0
  %593 = vmatprep.subr.mxu0 0.0
  %594 = vmatpush1.msra.mxu0 0.0
  %595 = vmatprep.subr.mxu0 0.0
  %596 = vmatpush1.msra.mxu0 0.0
  %597 = vmatprep.mubr.f32.mxu0 0.0
  %598 = vmatmul.mubr.f32.gmra.mrb[0].mxu0 %v429
  %v599 = vpop.f32.mrb[0].mxu0
  %v600 = vadd.f32 0.0, %v599
  %v601 = vpop.f32.mrb[0].mxu0
  %602 = vmatprep.mubr.f32.mxu0 0.0
  %603 = vmatmul.mubr.f32.gmra.mrb[0].mxu0 %v432
  %v604 = vpop.f32.mrb[0].mxu0
  %v605 = vadd.f32 0.0, %v604
  %v606 = vpop.f32.mrb[0].mxu0
  %607 = vmatprep.mubr.f32.mxu0 0.0
  %608 = vmatmul.mubr.f32.gmra.mrb[0].mxu0 %v435
  %v609 = vpop.f32.mrb[0].mxu0
  %v610 = vadd.f32 0.0, %v609
  %v611 = vpop.f32.mrb[0].mxu0
  %612 = vmatprep.mubr.f32.mxu0 0.0
  %613 = vmatmul.mubr.f32.gmra.mrb[0].mxu0 %v438
  %v614 = vpop.f32.mrb[0].mxu0
  %v615 = vadd.f32 0.0, %v614
  %v616 = vpop.f32.mrb[0].mxu0
  %617 = vdwg.mxu0
  %v618 = vmax.f32 %v507, %v600
  %v619 = vmax.f32 %v512, %v605
  %v620 = vmax.f32 %v517, %v610
  %v621 = vmax.f32 %v522, %v615
  %v622 = vld [vmem:[%s5] sm:$0xff]
  %v623 = vld [vmem:[%s5 + $0x8] sm:$0xff]
  %v624 = vld [vmem:[%s5 + $0x10] sm:$0xff]
  %v625 = vld [vmem:[%s5 + $0x18] sm:$0xff]
  %vm626 = vcmask 261120
  %v628 = vsel %vm626, %v618, 0
  %v631 = vsel %vm626, %v619, 0
  %v634 = vsel %vm626, %v620, 0
  %v637 = vsel %vm626, %v621, 0
  %639 = vmatprep.subr.mxu0 0.0
  %640 = vmatpush1.msra.mxu0 %v622
  %641 = vmatprep.subr.mxu0 0.0
  %642 = vmatpush1.msra.mxu0 %v623
  %643 = vmatprep.subr.mxu0 0.0
  %644 = vmatpush1.msra.mxu0 %v624
  %645 = vmatprep.subr.mxu0 0.0
  %646 = vmatpush1.msra.mxu0 %v625
  %647 = vmatprep.subr.mxu0 0.0
  %648 = vmatpush1.msra.mxu0 0.0
  %649 = vmatprep.subr.mxu0 0.0
  %650 = vmatpush1.msra.mxu0 0.0
  %651 = vmatprep.subr.mxu0 0.0
  %652 = vmatpush1.msra.mxu0 0.0
  %653 = vmatprep.subr.mxu0 0.0
  %654 = vmatpush1.msra.mxu0 0.0
  %655 = vmatprep.subr.mxu0 0.0
  %656 = vmatpush1.msra.mxu0 0.0
  %657 = vmatprep.subr.mxu0 0.0
  %658 = vmatpush1.msra.mxu0 0.0
  %659 = vmatprep.subr.mxu0 0.0
  %660 = vmatpush1.msra.mxu0 0.0
  %661 = vmatprep.subr.mxu0 0.0
  %662 = vmatpush1.msra.mxu0 0.0
  %663 = vmatprep.subr.mxu0 0.0
  %664 = vmatpush1.msra.mxu0 0.0
  %665 = vmatprep.subr.mxu0 0.0
  %666 = vmatpush1.msra.mxu0 0.0
  %667 = vmatprep.subr.mxu0 0.0
  %668 = vmatpush1.msra.mxu0 0.0
  %669 = vmatprep.subr.mxu0 0.0
  %670 = vmatpush1.msra.mxu0 0.0
  %671 = vmatprep.subr.mxu0 0.0
  %672 = vmatpush1.msra.mxu0 0.0
  %673 = vmatprep.subr.mxu0 0.0
  %674 = vmatpush1.msra.mxu0 0.0
  %675 = vmatprep.subr.mxu0 0.0
  %676 = vmatpush1.msra.mxu0 0.0
  %677 = vmatprep.subr.mxu0 0.0
  %678 = vmatpush1.msra.mxu0 0.0
  %679 = vmatprep.subr.mxu0 0.0
  %680 = vmatpush1.msra.mxu0 0.0
  %681 = vmatprep.subr.mxu0 0.0
  %682 = vmatpush1.msra.mxu0 0.0
  %683 = vmatprep.subr.mxu0 0.0
  %684 = vmatpush1.msra.mxu0 0.0
  %685 = vmatprep.subr.mxu0 0.0
  %686 = vmatpush1.msra.mxu0 0.0
  %687 = vmatprep.subr.mxu0 0.0
  %688 = vmatpush1.msra.mxu0 0.0
  %689 = vmatprep.subr.mxu0 0.0
  %690 = vmatpush1.msra.mxu0 0.0
  %691 = vmatprep.subr.mxu0 0.0
  %692 = vmatpush1.msra.mxu0 0.0
  %693 = vmatprep.subr.mxu0 0.0
  %694 = vmatpush1.msra.mxu0 0.0
  %695 = vmatprep.subr.mxu0 0.0
  %696 = vmatpush1.msra.mxu0 0.0
  %697 = vmatprep.subr.mxu0 0.0
  %698 = vmatpush1.msra.mxu0 0.0
  %699 = vmatprep.subr.mxu0 0.0
  %700 = vmatpush1.msra.mxu0 0.0
  %701 = vmatprep.subr.mxu0 0.0
  %702 = vmatpush1.msra.mxu0 0.0
  %703 = vmatprep.mubr.f32.mxu0 0.0
  %704 = vmatmul.mubr.f32.gmra.mrb[0].mxu0 %v628
  %v705 = vpop.f32.mrb[0].mxu0
  %v706 = vadd.f32 0.0, %v705
  %v707 = vpop.f32.mrb[0].mxu0
  %708 = vmatprep.mubr.f32.mxu0 0.0
  %709 = vmatmul.mubr.f32.gmra.mrb[0].mxu0 %v631
  %v710 = vpop.f32.mrb[0].mxu0
  %v711 = vadd.f32 0.0, %v710
  %v712 = vpop.f32.mrb[0].mxu0
  %713 = vmatprep.mubr.f32.mxu0 0.0
  %714 = vmatmul.mubr.f32.gmra.mrb[0].mxu0 %v634
  %v715 = vpop.f32.mrb[0].mxu0
  %v716 = vadd.f32 0.0, %v715
  %v717 = vpop.f32.mrb[0].mxu0
  %718 = vmatprep.mubr.f32.mxu0 0.0
  %719 = vmatmul.mubr.f32.gmra.mrb[0].mxu0 %v637
  %v720 = vpop.f32.mrb[0].mxu0
  %v721 = vadd.f32 0.0, %v720
  %v722 = vpop.f32.mrb[0].mxu0
  %723 = vdwg.mxu0
  %v724 = vld [vmem:[%s6] sm:$0xff]
  %v725 = vld [vmem:[%s6 + $0x8] sm:$0xff]
  %v726 = vld [vmem:[%s6 + $0x10] sm:$0xff]
  %v727 = vld [vmem:[%s6 + $0x18] sm:$0xff]
  %v728 = vld [vmem:[%s6 + $0x20] sm:$0xff]
  %v729 = vld [vmem:[%s6 + $0x28] sm:$0xff]
  %v730 = vld [vmem:[%s6 + $0x30] sm:$0xff]
  %v731 = vld [vmem:[%s6 + $0x38] sm:$0xff]
  %s732 = scalar_lea.vmem %s6, 64
  %v733 = vld [vmem:[%s732] sm:$0xff]
  %v734 = vld [vmem:[%s732 + $0x8] sm:$0xff]
  %v735 = vld [vmem:[%s732 + $0x10] sm:$0xff]
  %v736 = vld [vmem:[%s732 + $0x18] sm:$0xff]
  %v737 = vld [vmem:[%s732 + $0x20] sm:$0xff]
  %v738 = vld [vmem:[%s732 + $0x28] sm:$0xff]
  %v739 = vld [vmem:[%s732 + $0x30] sm:$0xff]
  %v740 = vld [vmem:[%s732 + $0x38] sm:$0xff]
  %745 = vrot.lane.b32.xlu0 %v706, 127
  %v746 = vpop.permute.xlu0 %745
  %747 = vrot.lane.b32.xlu0 %v711, 127
  %v748 = vpop.permute.xlu0 %747
  %749 = vrot.lane.b32.xlu0 %v716, 127
  %v750 = vpop.permute.xlu0 %749
  %751 = vrot.lane.b32.xlu0 %v721, 127
  %v752 = vpop.permute.xlu0 %751
  %v758 = vsel %vm626, %v733, 0
  %v761 = vsel %vm626, %v734, 0
  %v764 = vsel %vm626, %v735, 0
  %v767 = vsel %vm626, %v736, 0
  %v770 = vsel %vm626, %v737, 0
  %v773 = vsel %vm626, %v738, 0
  %v776 = vsel %vm626, %v739, 0
  %v779 = vsel %vm626, %v740, 0
  %781 = vmatprep.subr.mxu0 0.0
  %782 = vmatpush1.msra.mxu0 %v746
  %783 = vmatprep.subr.mxu0 0.0
  %784 = vmatpush1.msra.mxu0 %v748
  %785 = vmatprep.subr.mxu0 0.0
  %786 = vmatpush1.msra.mxu0 %v750
  %787 = vmatprep.subr.mxu0 0.0
  %788 = vmatpush1.msra.mxu0 %v752
  %789 = vmatprep.subr.mxu0 0.0
  %790 = vmatpush1.msra.mxu0 0.0
  %791 = vmatprep.subr.mxu0 0.0
  %792 = vmatpush1.msra.mxu0 0.0
  %793 = vmatprep.subr.mxu0 0.0
  %794 = vmatpush1.msra.mxu0 0.0
  %795 = vmatprep.subr.mxu0 0.0
  %796 = vmatpush1.msra.mxu0 0.0
  %797 = vmatprep.subr.mxu0 0.0
  %798 = vmatpush1.msra.mxu0 0.0
  %799 = vmatprep.subr.mxu0 0.0
  %800 = vmatpush1.msra.mxu0 0.0
  %801 = vmatprep.subr.mxu0 0.0
  %802 = vmatpush1.msra.mxu0 0.0
  %803 = vmatprep.subr.mxu0 0.0
  %804 = vmatpush1.msra.mxu0 0.0
  %805 = vmatprep.subr.mxu0 0.0
  %806 = vmatpush1.msra.mxu0 0.0
  %807 = vmatprep.subr.mxu0 0.0
  %808 = vmatpush1.msra.mxu0 0.0
  %809 = vmatprep.subr.mxu0 0.0
  %810 = vmatpush1.msra.mxu0 0.0
  %811 = vmatprep.subr.mxu0 0.0
  %812 = vmatpush1.msra.mxu0 0.0
  %813 = vmatprep.subr.mxu0 0.0
  %814 = vmatpush1.msra.mxu0 0.0
  %815 = vmatprep.subr.mxu0 0.0
  %816 = vmatpush1.msra.mxu0 0.0
  %817 = vmatprep.subr.mxu0 0.0
  %818 = vmatpush1.msra.mxu0 0.0
  %819 = vmatprep.subr.mxu0 0.0
  %820 = vmatpush1.msra.mxu0 0.0
  %821 = vmatprep.subr.mxu0 0.0
  %822 = vmatpush1.msra.mxu0 0.0
  %823 = vmatprep.subr.mxu0 0.0
  %824 = vmatpush1.msra.mxu0 0.0
  %825 = vmatprep.subr.mxu0 0.0
  %826 = vmatpush1.msra.mxu0 0.0
  %827 = vmatprep.subr.mxu0 0.0
  %828 = vmatpush1.msra.mxu0 0.0
  %829 = vmatprep.subr.mxu0 0.0
  %830 = vmatpush1.msra.mxu0 0.0
  %831 = vmatprep.subr.mxu0 0.0
  %832 = vmatpush1.msra.mxu0 0.0
  %833 = vmatprep.subr.mxu0 0.0
  %834 = vmatpush1.msra.mxu0 0.0
  %835 = vmatprep.subr.mxu0 0.0
  %836 = vmatpush1.msra.mxu0 0.0
  %837 = vmatprep.subr.mxu0 0.0
  %838 = vmatpush1.msra.mxu0 0.0
  %839 = vmatprep.subr.mxu0 0.0
  %840 = vmatpush1.msra.mxu0 0.0
  %841 = vmatprep.subr.mxu0 0.0
  %842 = vmatpush1.msra.mxu0 0.0
  %843 = vmatprep.subr.mxu0 0.0
  %844 = vmatpush1.msra.mxu0 0.0
  %845 = vmatprep.mubr.f32.mxu0 0.0
  %846 = vmatmul.mubr.f32.gmra.mrb[0].mxu0 %v758
  %v847 = vpop.f32.mrb[0].mxu0
  %v848 = vadd.f32 0.0, %v847
  %v849 = vpop.f32.mrb[0].mxu0
  %850 = vmatprep.mubr.f32.mxu0 0.0
  %851 = vmatmul.mubr.f32.gmra.mrb[0].mxu0 %v761
  %v852 = vpop.f32.mrb[0].mxu0
  %v853 = vadd.f32 0.0, %v852
  %v854 = vpop.f32.mrb[0].mxu0
  %855 = vmatprep.mubr.f32.mxu0 0.0
  %856 = vmatmul.mubr.f32.gmra.mrb[0].mxu0 %v764
  %v857 = vpop.f32.mrb[0].mxu0
  %v858 = vadd.f32 0.0, %v857
  %v859 = vpop.f32.mrb[0].mxu0
  %860 = vmatprep.mubr.f32.mxu0 0.0
  %861 = vmatmul.mubr.f32.gmra.mrb[0].mxu0 %v767
  %v862 = vpop.f32.mrb[0].mxu0
  %v863 = vadd.f32 0.0, %v862
  %v864 = vpop.f32.mrb[0].mxu0
  %865 = vmatprep.mubr.f32.mxu0 0.0
  %866 = vmatmul.mubr.f32.gmra.mrb[0].mxu0 %v770
  %v867 = vpop.f32.mrb[0].mxu0
  %v868 = vadd.f32 0.0, %v867
  %v869 = vpop.f32.mrb[0].mxu0
  %870 = vmatprep.mubr.f32.mxu0 0.0
  %871 = vmatmul.mubr.f32.gmra.mrb[0].mxu0 %v773
  %v872 = vpop.f32.mrb[0].mxu0
  %v873 = vadd.f32 0.0, %v872
  %v874 = vpop.f32.mrb[0].mxu0
  %875 = vmatprep.mubr.f32.mxu0 0.0
  %876 = vmatmul.mubr.f32.gmra.mrb[0].mxu0 %v776
  %v877 = vpop.f32.mrb[0].mxu0
  %v878 = vadd.f32 0.0, %v877
  %v879 = vpop.f32.mrb[0].mxu0
  %880 = vmatprep.mubr.f32.mxu0 0.0
  %881 = vmatmul.mubr.f32.gmra.mrb[0].mxu0 %v779
  %v882 = vpop.f32.mrb[0].mxu0
  %v883 = vadd.f32 0.0, %v882
  %v884 = vpop.f32.mrb[0].mxu0
  %885 = vdwg.mxu0
  %v887 = vsel %vm626, %v724, 0
  %v890 = vsel %vm626, %v725, 0
  %v893 = vsel %vm626, %v726, 0
  %v896 = vsel %vm626, %v727, 0
  %v899 = vsel %vm626, %v728, 0
  %v902 = vsel %vm626, %v729, 0
  %v905 = vsel %vm626, %v730, 0
  %v908 = vsel %vm626, %v731, 0
  %910 = vmatprep.subr.mxu0 0.0
  %911 = vmatpush1.msra.mxu0 %v706
  %912 = vmatprep.subr.mxu0 0.0
  %913 = vmatpush1.msra.mxu0 %v711
  %914 = vmatprep.subr.mxu0 0.0
  %915 = vmatpush1.msra.mxu0 %v716
  %916 = vmatprep.subr.mxu0 0.0
  %917 = vmatpush1.msra.mxu0 %v721
  %918 = vmatprep.subr.mxu0 0.0
  %919 = vmatpush1.msra.mxu0 0.0
  %920 = vmatprep.subr.mxu0 0.0
  %921 = vmatpush1.msra.mxu0 0.0
  %922 = vmatprep.subr.mxu0 0.0
  %923 = vmatpush1.msra.mxu0 0.0
  %924 = vmatprep.subr.mxu0 0.0
  %925 = vmatpush1.msra.mxu0 0.0
  %926 = vmatprep.subr.mxu0 0.0
  %927 = vmatpush1.msra.mxu0 0.0
  %928 = vmatprep.subr.mxu0 0.0
  %929 = vmatpush1.msra.mxu0 0.0
  %930 = vmatprep.subr.mxu0 0.0
  %931 = vmatpush1.msra.mxu0 0.0
  %932 = vmatprep.subr.mxu0 0.0
  %933 = vmatpush1.msra.mxu0 0.0
  %934 = vmatprep.subr.mxu0 0.0
  %935 = vmatpush1.msra.mxu0 0.0
  %936 = vmatprep.subr.mxu0 0.0
  %937 = vmatpush1.msra.mxu0 0.0
  %938 = vmatprep.subr.mxu0 0.0
  %939 = vmatpush1.msra.mxu0 0.0
  %940 = vmatprep.subr.mxu0 0.0
  %941 = vmatpush1.msra.mxu0 0.0
  %942 = vmatprep.subr.mxu0 0.0
  %943 = vmatpush1.msra.mxu0 0.0
  %944 = vmatprep.subr.mxu0 0.0
  %945 = vmatpush1.msra.mxu0 0.0
  %946 = vmatprep.subr.mxu0 0.0
  %947 = vmatpush1.msra.mxu0 0.0
  %948 = vmatprep.subr.mxu0 0.0
  %949 = vmatpush1.msra.mxu0 0.0
  %950 = vmatprep.subr.mxu0 0.0
  %951 = vmatpush1.msra.mxu0 0.0
  %952 = vmatprep.subr.mxu0 0.0
  %953 = vmatpush1.msra.mxu0 0.0
  %954 = vmatprep.subr.mxu0 0.0
  %955 = vmatpush1.msra.mxu0 0.0
  %956 = vmatprep.subr.mxu0 0.0
  %957 = vmatpush1.msra.mxu0 0.0
  %958 = vmatprep.subr.mxu0 0.0
  %959 = vmatpush1.msra.mxu0 0.0
  %960 = vmatprep.subr.mxu0 0.0
  %961 = vmatpush1.msra.mxu0 0.0
  %962 = vmatprep.subr.mxu0 0.0
  %963 = vmatpush1.msra.mxu0 0.0
  %964 = vmatprep.subr.mxu0 0.0
  %965 = vmatpush1.msra.mxu0 0.0
  %966 = vmatprep.subr.mxu0 0.0
  %967 = vmatpush1.msra.mxu0 0.0
  %968 = vmatprep.subr.mxu0 0.0
  %969 = vmatpush1.msra.mxu0 0.0
  %970 = vmatprep.subr.mxu0 0.0
  %971 = vmatpush1.msra.mxu0 0.0
  %972 = vmatprep.subr.mxu0 0.0
  %973 = vmatpush1.msra.mxu0 0.0
  %974 = vmatprep.mubr.f32.mxu0 0.0
  %975 = vmatmul.mubr.f32.gmra.mrb[0].mxu0 %v887
  %v976 = vpop.f32.mrb[0].mxu0
  %v977 = vadd.f32 %v848, %v976
  %v978 = vpop.f32.mrb[0].mxu0
  %979 = vmatprep.mubr.f32.mxu0 0.0
  %980 = vmatmul.mubr.f32.gmra.mrb[0].mxu0 %v890
  %v981 = vpop.f32.mrb[0].mxu0
  %v982 = vadd.f32 %v853, %v981
  %v983 = vpop.f32.mrb[0].mxu0
  %984 = vmatprep.mubr.f32.mxu0 0.0
  %985 = vmatmul.mubr.f32.gmra.mrb[0].mxu0 %v893
  %v986 = vpop.f32.mrb[0].mxu0
  %v987 = vadd.f32 %v858, %v986
  %v988 = vpop.f32.mrb[0].mxu0
  %989 = vmatprep.mubr.f32.mxu0 0.0
  %990 = vmatmul.mubr.f32.gmra.mrb[0].mxu0 %v896
  %v991 = vpop.f32.mrb[0].mxu0
  %v992 = vadd.f32 %v863, %v991
  %v993 = vpop.f32.mrb[0].mxu0
  %994 = vmatprep.mubr.f32.mxu0 0.0
  %995 = vmatmul.mubr.f32.gmra.mrb[0].mxu0 %v899
  %v996 = vpop.f32.mrb[0].mxu0
  %v997 = vadd.f32 %v868, %v996
  %v998 = vpop.f32.mrb[0].mxu0
  %999 = vmatprep.mubr.f32.mxu0 0.0
  %1000 = vmatmul.mubr.f32.gmra.mrb[0].mxu0 %v902
  %v1001 = vpop.f32.mrb[0].mxu0
  %v1002 = vadd.f32 %v873, %v1001
  %v1003 = vpop.f32.mrb[0].mxu0
  %1004 = vmatprep.mubr.f32.mxu0 0.0
  %1005 = vmatmul.mubr.f32.gmra.mrb[0].mxu0 %v905
  %v1006 = vpop.f32.mrb[0].mxu0
  %v1007 = vadd.f32 %v878, %v1006
  %v1008 = vpop.f32.mrb[0].mxu0
  %1009 = vmatprep.mubr.f32.mxu0 0.0
  %1010 = vmatmul.mubr.f32.gmra.mrb[0].mxu0 %v908
  %v1011 = vpop.f32.mrb[0].mxu0
  %v1012 = vadd.f32 %v883, %v1011
  %v1013 = vpop.f32.mrb[0].mxu0
  %1014 = vdwg.mxu0
  %s1015 = scalar_lea.vmem %s6, 128
  %v1016 = vld [vmem:[%s1015] sm:$0xff]
  %v1017 = vld [vmem:[%s1015 + $0x8] sm:$0xff]
  %v1018 = vld [vmem:[%s1015 + $0x10] sm:$0xff]
  %v1019 = vld [vmem:[%s1015 + $0x18] sm:$0xff]
  %v1020 = vld [vmem:[%s1015 + $0x20] sm:$0xff]
  %v1021 = vld [vmem:[%s1015 + $0x28] sm:$0xff]
  %v1022 = vld [vmem:[%s1015 + $0x30] sm:$0xff]
  %v1023 = vld [vmem:[%s1015 + $0x38] sm:$0xff]
  %1024 = vrot.lane.b32.xlu0 %v706, 126
  %v1025 = vpop.permute.xlu0 %1024
  %1026 = vrot.lane.b32.xlu0 %v711, 126
  %v1027 = vpop.permute.xlu0 %1026
  %1028 = vrot.lane.b32.xlu0 %v716, 126
  %v1029 = vpop.permute.xlu0 %1028
  %1030 = vrot.lane.b32.xlu0 %v721, 126
  %v1031 = vpop.permute.xlu0 %1030
  %v1037 = vsel %vm626, %v1016, 0
  %v1040 = vsel %vm626, %v1017, 0
  %v1043 = vsel %vm626, %v1018, 0
  %v1046 = vsel %vm626, %v1019, 0
  %v1049 = vsel %vm626, %v1020, 0
  %v1052 = vsel %vm626, %v1021, 0
  %v1055 = vsel %vm626, %v1022, 0
  %v1058 = vsel %vm626, %v1023, 0
  %1060 = vmatprep.subr.mxu0 0.0
  %1061 = vmatpush1.msra.mxu0 %v1025
  %1062 = vmatprep.subr.mxu0 0.0
  %1063 = vmatpush1.msra.mxu0 %v1027
  %1064 = vmatprep.subr.mxu0 0.0
  %1065 = vmatpush1.msra.mxu0 %v1029
  %1066 = vmatprep.subr.mxu0 0.0
  %1067 = vmatpush1.msra.mxu0 %v1031
  %1068 = vmatprep.subr.mxu0 0.0
  %1069 = vmatpush1.msra.mxu0 0.0
  %1070 = vmatprep.subr.mxu0 0.0
  %1071 = vmatpush1.msra.mxu0 0.0
  %1072 = vmatprep.subr.mxu0 0.0
  %1073 = vmatpush1.msra.mxu0 0.0
  %1074 = vmatprep.subr.mxu0 0.0
  %1075 = vmatpush1.msra.mxu0 0.0
  %1076 = vmatprep.subr.mxu0 0.0
  %1077 = vmatpush1.msra.mxu0 0.0
  %1078 = vmatprep.subr.mxu0 0.0
  %1079 = vmatpush1.msra.mxu0 0.0
  %1080 = vmatprep.subr.mxu0 0.0
  %1081 = vmatpush1.msra.mxu0 0.0
  %1082 = vmatprep.subr.mxu0 0.0
  %1083 = vmatpush1.msra.mxu0 0.0
  %1084 = vmatprep.subr.mxu0 0.0
  %1085 = vmatpush1.msra.mxu0 0.0
  %1086 = vmatprep.subr.mxu0 0.0
  %1087 = vmatpush1.msra.mxu0 0.0
  %1088 = vmatprep.subr.mxu0 0.0
  %1089 = vmatpush1.msra.mxu0 0.0
  %1090 = vmatprep.subr.mxu0 0.0
  %1091 = vmatpush1.msra.mxu0 0.0
  %1092 = vmatprep.subr.mxu0 0.0
  %1093 = vmatpush1.msra.mxu0 0.0
  %1094 = vmatprep.subr.mxu0 0.0
  %1095 = vmatpush1.msra.mxu0 0.0
  %1096 = vmatprep.subr.mxu0 0.0
  %1097 = vmatpush1.msra.mxu0 0.0
  %1098 = vmatprep.subr.mxu0 0.0
  %1099 = vmatpush1.msra.mxu0 0.0
  %1100 = vmatprep.subr.mxu0 0.0
  %1101 = vmatpush1.msra.mxu0 0.0
  %1102 = vmatprep.subr.mxu0 0.0
  %1103 = vmatpush1.msra.mxu0 0.0
  %1104 = vmatprep.subr.mxu0 0.0
  %1105 = vmatpush1.msra.mxu0 0.0
  %1106 = vmatprep.subr.mxu0 0.0
  %1107 = vmatpush1.msra.mxu0 0.0
  %1108 = vmatprep.subr.mxu0 0.0
  %1109 = vmatpush1.msra.mxu0 0.0
  %1110 = vmatprep.subr.mxu0 0.0
  %1111 = vmatpush1.msra.mxu0 0.0
  %1112 = vmatprep.subr.mxu0 0.0
  %1113 = vmatpush1.msra.mxu0 0.0
  %1114 = vmatprep.subr.mxu0 0.0
  %1115 = vmatpush1.msra.mxu0 0.0
  %1116 = vmatprep.subr.mxu0 0.0
  %1117 = vmatpush1.msra.mxu0 0.0
  %1118 = vmatprep.subr.mxu0 0.0
  %1119 = vmatpush1.msra.mxu0 0.0
  %1120 = vmatprep.subr.mxu0 0.0
  %1121 = vmatpush1.msra.mxu0 0.0
  %1122 = vmatprep.subr.mxu0 0.0
  %1123 = vmatpush1.msra.mxu0 0.0
  %1124 = vmatprep.mubr.f32.mxu0 0.0
  %1125 = vmatmul.mubr.f32.gmra.mrb[0].mxu0 %v1037
  %v1126 = vpop.f32.mrb[0].mxu0
  %v1127 = vadd.f32 0.0, %v1126
  %v1128 = vpop.f32.mrb[0].mxu0
  %1129 = vmatprep.mubr.f32.mxu0 0.0
  %1130 = vmatmul.mubr.f32.gmra.mrb[0].mxu0 %v1040
  %v1131 = vpop.f32.mrb[0].mxu0
  %v1132 = vadd.f32 0.0, %v1131
  %v1133 = vpop.f32.mrb[0].mxu0
  %1134 = vmatprep.mubr.f32.mxu0 0.0
  %1135 = vmatmul.mubr.f32.gmra.mrb[0].mxu0 %v1043
  %v1136 = vpop.f32.mrb[0].mxu0
  %v1137 = vadd.f32 0.0, %v1136
  %v1138 = vpop.f32.mrb[0].mxu0
  %1139 = vmatprep.mubr.f32.mxu0 0.0
  %1140 = vmatmul.mubr.f32.gmra.mrb[0].mxu0 %v1046
  %v1141 = vpop.f32.mrb[0].mxu0
  %v1142 = vadd.f32 0.0, %v1141
  %v1143 = vpop.f32.mrb[0].mxu0
  %1144 = vmatprep.mubr.f32.mxu0 0.0
  %1145 = vmatmul.mubr.f32.gmra.mrb[0].mxu0 %v1049
  %v1146 = vpop.f32.mrb[0].mxu0
  %v1147 = vadd.f32 0.0, %v1146
  %v1148 = vpop.f32.mrb[0].mxu0
  %1149 = vmatprep.mubr.f32.mxu0 0.0
  %1150 = vmatmul.mubr.f32.gmra.mrb[0].mxu0 %v1052
  %v1151 = vpop.f32.mrb[0].mxu0
  %v1152 = vadd.f32 0.0, %v1151
  %v1153 = vpop.f32.mrb[0].mxu0
  %1154 = vmatprep.mubr.f32.mxu0 0.0
  %1155 = vmatmul.mubr.f32.gmra.mrb[0].mxu0 %v1055
  %v1156 = vpop.f32.mrb[0].mxu0
  %v1157 = vadd.f32 0.0, %v1156
  %v1158 = vpop.f32.mrb[0].mxu0
  %1159 = vmatprep.mubr.f32.mxu0 0.0
  %1160 = vmatmul.mubr.f32.gmra.mrb[0].mxu0 %v1058
  %v1161 = vpop.f32.mrb[0].mxu0
  %v1162 = vadd.f32 0.0, %v1161
  %v1163 = vpop.f32.mrb[0].mxu0
  %1164 = vdwg.mxu0
  %v1165 = vadd.f32 %v977, %v1127
  %v1166 = vadd.f32 %v982, %v1132
  %v1167 = vadd.f32 %v987, %v1137
  %v1168 = vadd.f32 %v992, %v1142
  %v1169 = vadd.f32 %v997, %v1147
  %v1170 = vadd.f32 %v1002, %v1152
  %v1171 = vadd.f32 %v1007, %v1157
  %v1172 = vadd.f32 %v1012, %v1162
  %s1173 = scalar_lea.vmem %s6, 192
  %v1174 = vld [vmem:[%s1173] sm:$0xff]
  %v1175 = vld [vmem:[%s1173 + $0x8] sm:$0xff]
  %v1176 = vld [vmem:[%s1173 + $0x10] sm:$0xff]
  %v1177 = vld [vmem:[%s1173 + $0x18] sm:$0xff]
  %v1178 = vld [vmem:[%s1173 + $0x20] sm:$0xff]
  %v1179 = vld [vmem:[%s1173 + $0x28] sm:$0xff]
  %v1180 = vld [vmem:[%s1173 + $0x30] sm:$0xff]
  %v1181 = vld [vmem:[%s1173 + $0x38] sm:$0xff]
  %1182 = vrot.lane.b32.xlu0 %v706, 125
  %v1183 = vpop.permute.xlu0 %1182
  %1184 = vrot.lane.b32.xlu0 %v711, 125
  %v1185 = vpop.permute.xlu0 %1184
  %1186 = vrot.lane.b32.xlu0 %v716, 125
  %v1187 = vpop.permute.xlu0 %1186
  %1188 = vrot.lane.b32.xlu0 %v721, 125
  %v1189 = vpop.permute.xlu0 %1188
  %v1195 = vsel %vm626, %v1174, 0
  %v1198 = vsel %vm626, %v1175, 0
  %v1201 = vsel %vm626, %v1176, 0
  %v1204 = vsel %vm626, %v1177, 0
  %v1207 = vsel %vm626, %v1178, 0
  %v1210 = vsel %vm626, %v1179, 0
  %v1213 = vsel %vm626, %v1180, 0
  %v1216 = vsel %vm626, %v1181, 0
  %1218 = vmatprep.subr.mxu0 0.0
  %1219 = vmatpush1.msra.mxu0 %v1183
  %1220 = vmatprep.subr.mxu0 0.0
  %1221 = vmatpush1.msra.mxu0 %v1185
  %1222 = vmatprep.subr.mxu0 0.0
  %1223 = vmatpush1.msra.mxu0 %v1187
  %1224 = vmatprep.subr.mxu0 0.0
  %1225 = vmatpush1.msra.mxu0 %v1189
  %1226 = vmatprep.subr.mxu0 0.0
  %1227 = vmatpush1.msra.mxu0 0.0
  %1228 = vmatprep.subr.mxu0 0.0
  %1229 = vmatpush1.msra.mxu0 0.0
  %1230 = vmatprep.subr.mxu0 0.0
  %1231 = vmatpush1.msra.mxu0 0.0
  %1232 = vmatprep.subr.mxu0 0.0
  %1233 = vmatpush1.msra.mxu0 0.0
  %1234 = vmatprep.subr.mxu0 0.0
  %1235 = vmatpush1.msra.mxu0 0.0
  %1236 = vmatprep.subr.mxu0 0.0
  %1237 = vmatpush1.msra.mxu0 0.0
  %1238 = vmatprep.subr.mxu0 0.0
  %1239 = vmatpush1.msra.mxu0 0.0
  %1240 = vmatprep.subr.mxu0 0.0
  %1241 = vmatpush1.msra.mxu0 0.0
  %1242 = vmatprep.subr.mxu0 0.0
  %1243 = vmatpush1.msra.mxu0 0.0
  %1244 = vmatprep.subr.mxu0 0.0
  %1245 = vmatpush1.msra.mxu0 0.0
  %1246 = vmatprep.subr.mxu0 0.0
  %1247 = vmatpush1.msra.mxu0 0.0
  %1248 = vmatprep.subr.mxu0 0.0
  %1249 = vmatpush1.msra.mxu0 0.0
  %1250 = vmatprep.subr.mxu0 0.0
  %1251 = vmatpush1.msra.mxu0 0.0
  %1252 = vmatprep.subr.mxu0 0.0
  %1253 = vmatpush1.msra.mxu0 0.0
  %1254 = vmatprep.subr.mxu0 0.0
  %1255 = vmatpush1.msra.mxu0 0.0
  %1256 = vmatprep.subr.mxu0 0.0
  %1257 = vmatpush1.msra.mxu0 0.0
  %1258 = vmatprep.subr.mxu0 0.0
  %1259 = vmatpush1.msra.mxu0 0.0
  %1260 = vmatprep.subr.mxu0 0.0
  %1261 = vmatpush1.msra.mxu0 0.0
  %1262 = vmatprep.subr.mxu0 0.0
  %1263 = vmatpush1.msra.mxu0 0.0
  %1264 = vmatprep.subr.mxu0 0.0
  %1265 = vmatpush1.msra.mxu0 0.0
  %1266 = vmatprep.subr.mxu0 0.0
  %1267 = vmatpush1.msra.mxu0 0.0
  %1268 = vmatprep.subr.mxu0 0.0
  %1269 = vmatpush1.msra.mxu0 0.0
  %1270 = vmatprep.subr.mxu0 0.0
  %1271 = vmatpush1.msra.mxu0 0.0
  %1272 = vmatprep.subr.mxu0 0.0
  %1273 = vmatpush1.msra.mxu0 0.0
  %1274 = vmatprep.subr.mxu0 0.0
  %1275 = vmatpush1.msra.mxu0 0.0
  %1276 = vmatprep.subr.mxu0 0.0
  %1277 = vmatpush1.msra.mxu0 0.0
  %1278 = vmatprep.subr.mxu0 0.0
  %1279 = vmatpush1.msra.mxu0 0.0
  %1280 = vmatprep.subr.mxu0 0.0
  %1281 = vmatpush1.msra.mxu0 0.0
  %1282 = vmatprep.mubr.f32.mxu0 0.0
  %1283 = vmatmul.mubr.f32.gmra.mrb[0].mxu0 %v1195
  %v1284 = vpop.f32.mrb[0].mxu0
  %v1285 = vadd.f32 0.0, %v1284
  %v1286 = vpop.f32.mrb[0].mxu0
  %1287 = vmatprep.mubr.f32.mxu0 0.0
  %1288 = vmatmul.mubr.f32.gmra.mrb[0].mxu0 %v1198
  %v1289 = vpop.f32.mrb[0].mxu0
  %v1290 = vadd.f32 0.0, %v1289
  %v1291 = vpop.f32.mrb[0].mxu0
  %1292 = vmatprep.mubr.f32.mxu0 0.0
  %1293 = vmatmul.mubr.f32.gmra.mrb[0].mxu0 %v1201
  %v1294 = vpop.f32.mrb[0].mxu0
  %v1295 = vadd.f32 0.0, %v1294
  %v1296 = vpop.f32.mrb[0].mxu0
  %1297 = vmatprep.mubr.f32.mxu0 0.0
  %1298 = vmatmul.mubr.f32.gmra.mrb[0].mxu0 %v1204
  %v1299 = vpop.f32.mrb[0].mxu0
  %v1300 = vadd.f32 0.0, %v1299
  %v1301 = vpop.f32.mrb[0].mxu0
  %1302 = vmatprep.mubr.f32.mxu0 0.0
  %1303 = vmatmul.mubr.f32.gmra.mrb[0].mxu0 %v1207
  %v1304 = vpop.f32.mrb[0].mxu0
  %v1305 = vadd.f32 0.0, %v1304
  %v1306 = vpop.f32.mrb[0].mxu0
  %1307 = vmatprep.mubr.f32.mxu0 0.0
  %1308 = vmatmul.mubr.f32.gmra.mrb[0].mxu0 %v1210
  %v1309 = vpop.f32.mrb[0].mxu0
  %v1310 = vadd.f32 0.0, %v1309
  %v1311 = vpop.f32.mrb[0].mxu0
  %1312 = vmatprep.mubr.f32.mxu0 0.0
  %1313 = vmatmul.mubr.f32.gmra.mrb[0].mxu0 %v1213
  %v1314 = vpop.f32.mrb[0].mxu0
  %v1315 = vadd.f32 0.0, %v1314
  %v1316 = vpop.f32.mrb[0].mxu0
  %1317 = vmatprep.mubr.f32.mxu0 0.0
  %1318 = vmatmul.mubr.f32.gmra.mrb[0].mxu0 %v1216
  %v1319 = vpop.f32.mrb[0].mxu0
  %v1320 = vadd.f32 0.0, %v1319
  %v1321 = vpop.f32.mrb[0].mxu0
  %1322 = vdwg.mxu0
  %v1323 = vadd.f32 %v1165, %v1285
  %v1324 = vadd.f32 %v1166, %v1290
  %v1325 = vadd.f32 %v1167, %v1295
  %v1326 = vadd.f32 %v1168, %v1300
  %v1327 = vadd.f32 %v1169, %v1305
  %v1328 = vadd.f32 %v1170, %v1310
  %v1329 = vadd.f32 %v1171, %v1315
  %v1330 = vadd.f32 %v1172, %v1320
  %s1331 = scalar_lea.vmem %s6, 256
  %v1332 = vld [vmem:[%s1331] sm:$0xff]
  %v1333 = vld [vmem:[%s1331 + $0x8] sm:$0xff]
  %v1334 = vld [vmem:[%s1331 + $0x10] sm:$0xff]
  %v1335 = vld [vmem:[%s1331 + $0x18] sm:$0xff]
  %v1336 = vld [vmem:[%s1331 + $0x20] sm:$0xff]
  %v1337 = vld [vmem:[%s1331 + $0x28] sm:$0xff]
  %v1338 = vld [vmem:[%s1331 + $0x30] sm:$0xff]
  %v1339 = vld [vmem:[%s1331 + $0x38] sm:$0xff]
  %1340 = vrot.lane.b32.xlu0 %v706, 124
  %v1341 = vpop.permute.xlu0 %1340
  %1342 = vrot.lane.b32.xlu0 %v711, 124
  %v1343 = vpop.permute.xlu0 %1342
  %1344 = vrot.lane.b32.xlu0 %v716, 124
  %v1345 = vpop.permute.xlu0 %1344
  %1346 = vrot.lane.b32.xlu0 %v721, 124
  %v1347 = vpop.permute.xlu0 %1346
  %v1353 = vsel %vm626, %v1332, 0
  %v1356 = vsel %vm626, %v1333, 0
  %v1359 = vsel %vm626, %v1334, 0
  %v1362 = vsel %vm626, %v1335, 0
  %v1365 = vsel %vm626, %v1336, 0
  %v1368 = vsel %vm626, %v1337, 0
  %v1371 = vsel %vm626, %v1338, 0
  %v1374 = vsel %vm626, %v1339, 0
  %1376 = vmatprep.subr.mxu0 0.0
  %1377 = vmatpush1.msra.mxu0 %v1341
  %1378 = vmatprep.subr.mxu0 0.0
  %1379 = vmatpush1.msra.mxu0 %v1343
  %1380 = vmatprep.subr.mxu0 0.0
  %1381 = vmatpush1.msra.mxu0 %v1345
  %1382 = vmatprep.subr.mxu0 0.0
  %1383 = vmatpush1.msra.mxu0 %v1347
  %1384 = vmatprep.subr.mxu0 0.0
  %1385 = vmatpush1.msra.mxu0 0.0
  %1386 = vmatprep.subr.mxu0 0.0
  %1387 = vmatpush1.msra.mxu0 0.0
  %1388 = vmatprep.subr.mxu0 0.0
  %1389 = vmatpush1.msra.mxu0 0.0
  %1390 = vmatprep.subr.mxu0 0.0
  %1391 = vmatpush1.msra.mxu0 0.0
  %1392 = vmatprep.subr.mxu0 0.0
  %1393 = vmatpush1.msra.mxu0 0.0
  %1394 = vmatprep.subr.mxu0 0.0
  %1395 = vmatpush1.msra.mxu0 0.0
  %1396 = vmatprep.subr.mxu0 0.0
  %1397 = vmatpush1.msra.mxu0 0.0
  %1398 = vmatprep.subr.mxu0 0.0
  %1399 = vmatpush1.msra.mxu0 0.0
  %1400 = vmatprep.subr.mxu0 0.0
  %1401 = vmatpush1.msra.mxu0 0.0
  %1402 = vmatprep.subr.mxu0 0.0
  %1403 = vmatpush1.msra.mxu0 0.0
  %1404 = vmatprep.subr.mxu0 0.0
  %1405 = vmatpush1.msra.mxu0 0.0
  %1406 = vmatprep.subr.mxu0 0.0
  %1407 = vmatpush1.msra.mxu0 0.0
  %1408 = vmatprep.subr.mxu0 0.0
  %1409 = vmatpush1.msra.mxu0 0.0
  %1410 = vmatprep.subr.mxu0 0.0
  %1411 = vmatpush1.msra.mxu0 0.0
  %1412 = vmatprep.subr.mxu0 0.0
  %1413 = vmatpush1.msra.mxu0 0.0
  %1414 = vmatprep.subr.mxu0 0.0
  %1415 = vmatpush1.msra.mxu0 0.0
  %1416 = vmatprep.subr.mxu0 0.0
  %1417 = vmatpush1.msra.mxu0 0.0
  %1418 = vmatprep.subr.mxu0 0.0
  %1419 = vmatpush1.msra.mxu0 0.0
  %1420 = vmatprep.subr.mxu0 0.0
  %1421 = vmatpush1.msra.mxu0 0.0
  %1422 = vmatprep.subr.mxu0 0.0
  %1423 = vmatpush1.msra.mxu0 0.0
  %1424 = vmatprep.subr.mxu0 0.0
  %1425 = vmatpush1.msra.mxu0 0.0
  %1426 = vmatprep.subr.mxu0 0.0
  %1427 = vmatpush1.msra.mxu0 0.0
  %1428 = vmatprep.subr.mxu0 0.0
  %1429 = vmatpush1.msra.mxu0 0.0
  %1430 = vmatprep.subr.mxu0 0.0
  %1431 = vmatpush1.msra.mxu0 0.0
  %1432 = vmatprep.subr.mxu0 0.0
  %1433 = vmatpush1.msra.mxu0 0.0
  %1434 = vmatprep.subr.mxu0 0.0
  %1435 = vmatpush1.msra.mxu0 0.0
  %1436 = vmatprep.subr.mxu0 0.0
  %1437 = vmatpush1.msra.mxu0 0.0
  %1438 = vmatprep.subr.mxu0 0.0
  %1439 = vmatpush1.msra.mxu0 0.0
  %1440 = vmatprep.mubr.f32.mxu0 0.0
  %1441 = vmatmul.mubr.f32.gmra.mrb[0].mxu0 %v1353
  %v1442 = vpop.f32.mrb[0].mxu0
  %v1443 = vadd.f32 0.0, %v1442
  %v1444 = vpop.f32.mrb[0].mxu0
  %1445 = vmatprep.mubr.f32.mxu0 0.0
  %1446 = vmatmul.mubr.f32.gmra.mrb[0].mxu0 %v1356
  %v1447 = vpop.f32.mrb[0].mxu0
  %v1448 = vadd.f32 0.0, %v1447
  %v1449 = vpop.f32.mrb[0].mxu0
  %1450 = vmatprep.mubr.f32.mxu0 0.0
  %1451 = vmatmul.mubr.f32.gmra.mrb[0].mxu0 %v1359
  %v1452 = vpop.f32.mrb[0].mxu0
  %v1453 = vadd.f32 0.0, %v1452
  %v1454 = vpop.f32.mrb[0].mxu0
  %1455 = vmatprep.mubr.f32.mxu0 0.0
  %1456 = vmatmul.mubr.f32.gmra.mrb[0].mxu0 %v1362
  %v1457 = vpop.f32.mrb[0].mxu0
  %v1458 = vadd.f32 0.0, %v1457
  %v1459 = vpop.f32.mrb[0].mxu0
  %1460 = vmatprep.mubr.f32.mxu0 0.0
  %1461 = vmatmul.mubr.f32.gmra.mrb[0].mxu0 %v1365
  %v1462 = vpop.f32.mrb[0].mxu0
  %v1463 = vadd.f32 0.0, %v1462
  %v1464 = vpop.f32.mrb[0].mxu0
  %1465 = vmatprep.mubr.f32.mxu0 0.0
  %1466 = vmatmul.mubr.f32.gmra.mrb[0].mxu0 %v1368
  %v1467 = vpop.f32.mrb[0].mxu0
  %v1468 = vadd.f32 0.0, %v1467
  %v1469 = vpop.f32.mrb[0].mxu0
  %1470 = vmatprep.mubr.f32.mxu0 0.0
  %1471 = vmatmul.mubr.f32.gmra.mrb[0].mxu0 %v1371
  %v1472 = vpop.f32.mrb[0].mxu0
  %v1473 = vadd.f32 0.0, %v1472
  %v1474 = vpop.f32.mrb[0].mxu0
  %1475 = vmatprep.mubr.f32.mxu0 0.0
  %1476 = vmatmul.mubr.f32.gmra.mrb[0].mxu0 %v1374
  %v1477 = vpop.f32.mrb[0].mxu0
  %v1478 = vadd.f32 0.0, %v1477
  %v1479 = vpop.f32.mrb[0].mxu0
  %1480 = vdwg.mxu0
  %v1481 = vadd.f32 %v1323, %v1443
  %v1482 = vadd.f32 %v1324, %v1448
  %v1483 = vadd.f32 %v1325, %v1453
  %v1484 = vadd.f32 %v1326, %v1458
  %v1485 = vadd.f32 %v1327, %v1463
  %v1486 = vadd.f32 %v1328, %v1468
  %v1487 = vadd.f32 %v1329, %v1473
  %v1488 = vadd.f32 %v1330, %v1478
  %v1489 = vld [vmem:[%s7] sm:$0xff]
  %v1490 = vld [vmem:[%s7 + $0x8] sm:$0xff]
  %v1491 = vld [vmem:[%s7 + $0x10] sm:$0xff]
  %v1492 = vld [vmem:[%s7 + $0x18] sm:$0xff]
  %v1493 = vld [vmem:[%s7 + $0x20] sm:$0xff]
  %v1494 = vld [vmem:[%s7 + $0x28] sm:$0xff]
  %v1495 = vld [vmem:[%s7 + $0x30] sm:$0xff]
  %v1496 = vld [vmem:[%s7 + $0x38] sm:$0xff]
  %1498 = vset.pattern.permute.xlu0 0
  %1499 = vperm.xlu0 %1498, %v1489
  %v1500 = vpop.permute.xlu0 %1499
  %1503 = vset.pattern.permute.xlu0 0
  %1504 = vperm.xlu0 %1503, %v1490
  %v1505 = vpop.permute.xlu0 %1504
  %1508 = vset.pattern.permute.xlu0 0
  %1509 = vperm.xlu0 %1508, %v1491
  %v1510 = vpop.permute.xlu0 %1509
  %1513 = vset.pattern.permute.xlu0 0
  %1514 = vperm.xlu0 %1513, %v1492
  %v1515 = vpop.permute.xlu0 %1514
  %1518 = vset.pattern.permute.xlu0 0
  %1519 = vperm.xlu0 %1518, %v1493
  %v1520 = vpop.permute.xlu0 %1519
  %1523 = vset.pattern.permute.xlu0 0
  %1524 = vperm.xlu0 %1523, %v1494
  %v1525 = vpop.permute.xlu0 %1524
  %1528 = vset.pattern.permute.xlu0 0
  %1529 = vperm.xlu0 %1528, %v1495
  %v1530 = vpop.permute.xlu0 %1529
  %1533 = vset.pattern.permute.xlu0 0
  %1534 = vperm.xlu0 %1533, %v1496
  %v1535 = vpop.permute.xlu0 %1534
  %v1537 = vadd.f32 %v1481, %v1500
  %v1538 = vadd.f32 %v1482, %v1505
  %v1539 = vadd.f32 %v1483, %v1510
  %v1540 = vadd.f32 %v1484, %v1515
  %v1541 = vadd.f32 %v1485, %v1520
  %v1542 = vadd.f32 %v1486, %v1525
  %v1543 = vadd.f32 %v1487, %v1530
  %v1544 = vadd.f32 %v1488, %v1535
  %v1545 = vmax.f32 %v1537, 0.0
  %v1546 = vmax.f32 %v1538, 0.0
  %v1547 = vmax.f32 %v1539, 0.0
  %v1548 = vmax.f32 %v1540, 0.0
  %v1549 = vmax.f32 %v1541, 0.0
  %v1550 = vmax.f32 %v1542, 0.0
  %v1551 = vmax.f32 %v1543, 0.0
  %v1552 = vmax.f32 %v1544, 0.0
  %v1553 = vld [vmem:[%s8] sm:$0xff]
  %v1554 = vld [vmem:[%s8 + $0x8] sm:$0xff]
  %v1555 = vld [vmem:[%s8 + $0x10] sm:$0xff]
  %v1556 = vld [vmem:[%s8 + $0x18] sm:$0x3f]
  %vm1557 = vcmask 244736
  %v1559 = vsel %vm1557, %v1545, 0
  %v1562 = vsel %vm1557, %v1546, 0
  %v1565 = vsel %vm1557, %v1547, 0
  %v1568 = vsel %vm1557, %v1548, 0
  %v1571 = vsel %vm1557, %v1549, 0
  %v1574 = vsel %vm1557, %v1550, 0
  %v1577 = vsel %vm1557, %v1551, 0
  %v1580 = vsel %vm1557, %v1552, 0
  %vm1582 = vcmask 1045504
  %v1584 = vsel %vm1582, %v1556, 0
  %1586 = vmatprep.subr.mxu0 0.0
  %1587 = vmatpush1.msra.mxu0 %v1553
  %1588 = vmatprep.subr.mxu0 0.0
  %1589 = vmatpush1.msra.mxu0 %v1554
  %1590 = vmatprep.subr.mxu0 0.0
  %1591 = vmatpush1.msra.mxu0 %v1555
  %1592 = vmatprep.subr.mxu0 0.0
  %1593 = vmatpush1.msra.mxu0 %v1584
  %1594 = vmatprep.subr.mxu0 0.0
  %1595 = vmatpush1.msra.mxu0 0.0
  %1596 = vmatprep.subr.mxu0 0.0
  %1597 = vmatpush1.msra.mxu0 0.0
  %1598 = vmatprep.subr.mxu0 0.0
  %1599 = vmatpush1.msra.mxu0 0.0
  %1600 = vmatprep.subr.mxu0 0.0
  %1601 = vmatpush1.msra.mxu0 0.0
  %1602 = vmatprep.subr.mxu0 0.0
  %1603 = vmatpush1.msra.mxu0 0.0
  %1604 = vmatprep.subr.mxu0 0.0
  %1605 = vmatpush1.msra.mxu0 0.0
  %1606 = vmatprep.subr.mxu0 0.0
  %1607 = vmatpush1.msra.mxu0 0.0
  %1608 = vmatprep.subr.mxu0 0.0
  %1609 = vmatpush1.msra.mxu0 0.0
  %1610 = vmatprep.subr.mxu0 0.0
  %1611 = vmatpush1.msra.mxu0 0.0
  %1612 = vmatprep.subr.mxu0 0.0
  %1613 = vmatpush1.msra.mxu0 0.0
  %1614 = vmatprep.subr.mxu0 0.0
  %1615 = vmatpush1.msra.mxu0 0.0
  %1616 = vmatprep.subr.mxu0 0.0
  %1617 = vmatpush1.msra.mxu0 0.0
  %1618 = vmatprep.subr.mxu0 0.0
  %1619 = vmatpush1.msra.mxu0 0.0
  %1620 = vmatprep.subr.mxu0 0.0
  %1621 = vmatpush1.msra.mxu0 0.0
  %1622 = vmatprep.subr.mxu0 0.0
  %1623 = vmatpush1.msra.mxu0 0.0
  %1624 = vmatprep.subr.mxu0 0.0
  %1625 = vmatpush1.msra.mxu0 0.0
  %1626 = vmatprep.subr.mxu0 0.0
  %1627 = vmatpush1.msra.mxu0 0.0
  %1628 = vmatprep.subr.mxu0 0.0
  %1629 = vmatpush1.msra.mxu0 0.0
  %1630 = vmatprep.subr.mxu0 0.0
  %1631 = vmatpush1.msra.mxu0 0.0
  %1632 = vmatprep.subr.mxu0 0.0
  %1633 = vmatpush1.msra.mxu0 0.0
  %1634 = vmatprep.subr.mxu0 0.0
  %1635 = vmatpush1.msra.mxu0 0.0
  %1636 = vmatprep.subr.mxu0 0.0
  %1637 = vmatpush1.msra.mxu0 0.0
  %1638 = vmatprep.subr.mxu0 0.0
  %1639 = vmatpush1.msra.mxu0 0.0
  %1640 = vmatprep.subr.mxu0 0.0
  %1641 = vmatpush1.msra.mxu0 0.0
  %1642 = vmatprep.subr.mxu0 0.0
  %1643 = vmatpush1.msra.mxu0 0.0
  %1644 = vmatprep.subr.mxu0 0.0
  %1645 = vmatpush1.msra.mxu0 0.0
  %1646 = vmatprep.subr.mxu0 0.0
  %1647 = vmatpush1.msra.mxu0 0.0
  %1648 = vmatprep.subr.mxu0 0.0
  %1649 = vmatpush1.msra.mxu0 0.0
  %1650 = vmatprep.mubr.f32.mxu0 0.0
  %1651 = vmatmul.mubr.f32.gmra.mrb[0].mxu0 %v1559
  %v1652 = vpop.f32.mrb[0].mxu0
  %v1653 = vadd.f32 0.0, %v1652
  %v1654 = vpop.f32.mrb[0].mxu0
  %1655 = vmatprep.mubr.f32.mxu0 0.0
  %1656 = vmatmul.mubr.f32.gmra.mrb[0].mxu0 %v1562
  %v1657 = vpop.f32.mrb[0].mxu0
  %v1658 = vadd.f32 0.0, %v1657
  %v1659 = vpop.f32.mrb[0].mxu0
  %1660 = vmatprep.mubr.f32.mxu0 0.0
  %1661 = vmatmul.mubr.f32.gmra.mrb[0].mxu0 %v1565
  %v1662 = vpop.f32.mrb[0].mxu0
  %v1663 = vadd.f32 0.0, %v1662
  %v1664 = vpop.f32.mrb[0].mxu0
  %1665 = vmatprep.mubr.f32.mxu0 0.0
  %1666 = vmatmul.mubr.f32.gmra.mrb[0].mxu0 %v1568
  %v1667 = vpop.f32.mrb[0].mxu0
  %v1668 = vadd.f32 0.0, %v1667
  %v1669 = vpop.f32.mrb[0].mxu0
  %1670 = vmatprep.mubr.f32.mxu0 0.0
  %1671 = vmatmul.mubr.f32.gmra.mrb[0].mxu0 %v1571
  %v1672 = vpop.f32.mrb[0].mxu0
  %v1673 = vadd.f32 0.0, %v1672
  %v1674 = vpop.f32.mrb[0].mxu0
  %1675 = vmatprep.mubr.f32.mxu0 0.0
  %1676 = vmatmul.mubr.f32.gmra.mrb[0].mxu0 %v1574
  %v1677 = vpop.f32.mrb[0].mxu0
  %v1678 = vadd.f32 0.0, %v1677
  %v1679 = vpop.f32.mrb[0].mxu0
  %1680 = vmatprep.mubr.f32.mxu0 0.0
  %1681 = vmatmul.mubr.f32.gmra.mrb[0].mxu0 %v1577
  %v1682 = vpop.f32.mrb[0].mxu0
  %v1683 = vadd.f32 0.0, %v1682
  %v1684 = vpop.f32.mrb[0].mxu0
  %1685 = vmatprep.mubr.f32.mxu0 0.0
  %1686 = vmatmul.mubr.f32.gmra.mrb[0].mxu0 %v1580
  %v1687 = vpop.f32.mrb[0].mxu0
  %v1688 = vadd.f32 0.0, %v1687
  %v1689 = vpop.f32.mrb[0].mxu0
  %1690 = vdwg.mxu0
  %v1691 = vld [vmem:[%s9] sm:$0xff]
  %v1692 = vld [vmem:[%s9 + $0x8] sm:$0xff]
  %v1693 = vld [vmem:[%s9 + $0x10] sm:$0xff]
  %v1694 = vld [vmem:[%s9 + $0x18] sm:$0x3f]
  %v1696 = vsel %vm1582, %v1694, 0
  %1698 = vmatprep.subr.mxu0 0.0
  %1699 = vmatpush1.msra.mxu0 %v1691
  %1700 = vmatprep.subr.mxu0 0.0
  %1701 = vmatpush1.msra.mxu0 %v1692
  %1702 = vmatprep.subr.mxu0 0.0
  %1703 = vmatpush1.msra.mxu0 %v1693
  %1704 = vmatprep.subr.mxu0 0.0
  %1705 = vmatpush1.msra.mxu0 %v1696
  %1706 = vmatprep.subr.mxu0 0.0
  %1707 = vmatpush1.msra.mxu0 0.0
  %1708 = vmatprep.subr.mxu0 0.0
  %1709 = vmatpush1.msra.mxu0 0.0
  %1710 = vmatprep.subr.mxu0 0.0
  %1711 = vmatpush1.msra.mxu0 0.0
  %1712 = vmatprep.subr.mxu0 0.0
  %1713 = vmatpush1.msra.mxu0 0.0
  %1714 = vmatprep.subr.mxu0 0.0
  %1715 = vmatpush1.msra.mxu0 0.0
  %1716 = vmatprep.subr.mxu0 0.0
  %1717 = vmatpush1.msra.mxu0 0.0
  %1718 = vmatprep.subr.mxu0 0.0
  %1719 = vmatpush1.msra.mxu0 0.0
  %1720 = vmatprep.subr.mxu0 0.0
  %1721 = vmatpush1.msra.mxu0 0.0
  %1722 = vmatprep.subr.mxu0 0.0
  %1723 = vmatpush1.msra.mxu0 0.0
  %1724 = vmatprep.subr.mxu0 0.0
  %1725 = vmatpush1.msra.mxu0 0.0
  %1726 = vmatprep.subr.mxu0 0.0
  %1727 = vmatpush1.msra.mxu0 0.0
  %1728 = vmatprep.subr.mxu0 0.0
  %1729 = vmatpush1.msra.mxu0 0.0
  %1730 = vmatprep.subr.mxu0 0.0
  %1731 = vmatpush1.msra.mxu0 0.0
  %1732 = vmatprep.subr.mxu0 0.0
  %1733 = vmatpush1.msra.mxu0 0.0
  %1734 = vmatprep.subr.mxu0 0.0
  %1735 = vmatpush1.msra.mxu0 0.0
  %1736 = vmatprep.subr.mxu0 0.0
  %1737 = vmatpush1.msra.mxu0 0.0
  %1738 = vmatprep.subr.mxu0 0.0
  %1739 = vmatpush1.msra.mxu0 0.0
  %1740 = vmatprep.subr.mxu0 0.0
  %1741 = vmatpush1.msra.mxu0 0.0
  %1742 = vmatprep.subr.mxu0 0.0
  %1743 = vmatpush1.msra.mxu0 0.0
  %1744 = vmatprep.subr.mxu0 0.0
  %1745 = vmatpush1.msra.mxu0 0.0
  %1746 = vmatprep.subr.mxu0 0.0
  %1747 = vmatpush1.msra.mxu0 0.0
  %1748 = vmatprep.subr.mxu0 0.0
  %1749 = vmatpush1.msra.mxu0 0.0
  %1750 = vmatprep.subr.mxu0 0.0
  %1751 = vmatpush1.msra.mxu0 0.0
  %1752 = vmatprep.subr.mxu0 0.0
  %1753 = vmatpush1.msra.mxu0 0.0
  %1754 = vmatprep.subr.mxu0 0.0
  %1755 = vmatpush1.msra.mxu0 0.0
  %1756 = vmatprep.subr.mxu0 0.0
  %1757 = vmatpush1.msra.mxu0 0.0
  %1758 = vmatprep.subr.mxu0 0.0
  %1759 = vmatpush1.msra.mxu0 0.0
  %1760 = vmatprep.subr.mxu0 0.0
  %1761 = vmatpush1.msra.mxu0 0.0
  %1762 = vmatprep.mubr.f32.mxu0 0.0
  %1763 = vmatmul.mubr.f32.gmra.mrb[0].mxu0 %v1559
  %v1764 = vpop.f32.mrb[0].mxu0
  %v1765 = vadd.f32 0.0, %v1764
  %v1766 = vpop.f32.mrb[0].mxu0
  %1767 = vmatprep.mubr.f32.mxu0 0.0
  %1768 = vmatmul.mubr.f32.gmra.mrb[0].mxu0 %v1562
  %v1769 = vpop.f32.mrb[0].mxu0
  %v1770 = vadd.f32 0.0, %v1769
  %v1771 = vpop.f32.mrb[0].mxu0
  %1772 = vmatprep.mubr.f32.mxu0 0.0
  %1773 = vmatmul.mubr.f32.gmra.mrb[0].mxu0 %v1565
  %v1774 = vpop.f32.mrb[0].mxu0
  %v1775 = vadd.f32 0.0, %v1774
  %v1776 = vpop.f32.mrb[0].mxu0
  %1777 = vmatprep.mubr.f32.mxu0 0.0
  %1778 = vmatmul.mubr.f32.gmra.mrb[0].mxu0 %v1568
  %v1779 = vpop.f32.mrb[0].mxu0
  %v1780 = vadd.f32 0.0, %v1779
  %v1781 = vpop.f32.mrb[0].mxu0
  %1782 = vmatprep.mubr.f32.mxu0 0.0
  %1783 = vmatmul.mubr.f32.gmra.mrb[0].mxu0 %v1571
  %v1784 = vpop.f32.mrb[0].mxu0
  %v1785 = vadd.f32 0.0, %v1784
  %v1786 = vpop.f32.mrb[0].mxu0
  %1787 = vmatprep.mubr.f32.mxu0 0.0
  %1788 = vmatmul.mubr.f32.gmra.mrb[0].mxu0 %v1574
  %v1789 = vpop.f32.mrb[0].mxu0
  %v1790 = vadd.f32 0.0, %v1789
  %v1791 = vpop.f32.mrb[0].mxu0
  %1792 = vmatprep.mubr.f32.mxu0 0.0
  %1793 = vmatmul.mubr.f32.gmra.mrb[0].mxu0 %v1577
  %v1794 = vpop.f32.mrb[0].mxu0
  %v1795 = vadd.f32 0.0, %v1794
  %v1796 = vpop.f32.mrb[0].mxu0
  %1797 = vmatprep.mubr.f32.mxu0 0.0
  %1798 = vmatmul.mubr.f32.gmra.mrb[0].mxu0 %v1580
  %v1799 = vpop.f32.mrb[0].mxu0
  %v1800 = vadd.f32 0.0, %v1799
  %v1801 = vpop.f32.mrb[0].mxu0
  %1802 = vdwg.mxu0
  %v1803 = vmax.f32 %v1653, %v1765
  %v1804 = vmax.f32 %v1658, %v1770
  %v1805 = vmax.f32 %v1663, %v1775
  %v1806 = vmax.f32 %v1668, %v1780
  %v1807 = vmax.f32 %v1673, %v1785
  %v1808 = vmax.f32 %v1678, %v1790
  %v1809 = vmax.f32 %v1683, %v1795
  %v1810 = vmax.f32 %v1688, %v1800
  %v1811 = vld [vmem:[%s10] sm:$0xff]
  %v1812 = vld [vmem:[%s10 + $0x8] sm:$0x7f]
  %vm1813 = vcmask 121856
  %v1815 = vsel %vm1813, %v1803, 0
  %v1818 = vsel %vm1813, %v1804, 0
  %v1821 = vsel %vm1813, %v1805, 0
  %v1824 = vsel %vm1813, %v1806, 0
  %v1827 = vsel %vm1813, %v1807, 0
  %v1830 = vsel %vm1813, %v1808, 0
  %v1833 = vsel %vm1813, %v1809, 0
  %v1836 = vsel %vm1813, %v1810, 0
  %vm1838 = vcmask 1046528
  %v1840 = vsel %vm1838, %v1812, 0
  %1842 = vmatprep.subr.mxu0 0.0
  %1843 = vmatpush1.msra.mxu0 %v1811
  %1844 = vmatprep.subr.mxu0 0.0
  %1845 = vmatpush1.msra.mxu0 %v1840
  %1846 = vmatprep.subr.mxu0 0.0
  %1847 = vmatpush1.msra.mxu0 0.0
  %1848 = vmatprep.subr.mxu0 0.0
  %1849 = vmatpush1.msra.mxu0 0.0
  %1850 = vmatprep.subr.mxu0 0.0
  %1851 = vmatpush1.msra.mxu0 0.0
  %1852 = vmatprep.subr.mxu0 0.0
  %1853 = vmatpush1.msra.mxu0 0.0
  %1854 = vmatprep.subr.mxu0 0.0
  %1855 = vmatpush1.msra.mxu0 0.0
  %1856 = vmatprep.subr.mxu0 0.0
  %1857 = vmatpush1.msra.mxu0 0.0
  %1858 = vmatprep.subr.mxu0 0.0
  %1859 = vmatpush1.msra.mxu0 0.0
  %1860 = vmatprep.subr.mxu0 0.0
  %1861 = vmatpush1.msra.mxu0 0.0
  %1862 = vmatprep.subr.mxu0 0.0
  %1863 = vmatpush1.msra.mxu0 0.0
  %1864 = vmatprep.subr.mxu0 0.0
  %1865 = vmatpush1.msra.mxu0 0.0
  %1866 = vmatprep.subr.mxu0 0.0
  %1867 = vmatpush1.msra.mxu0 0.0
  %1868 = vmatprep.subr.mxu0 0.0
  %1869 = vmatpush1.msra.mxu0 0.0
  %1870 = vmatprep.subr.mxu0 0.0
  %1871 = vmatpush1.msra.mxu0 0.0
  %1872 = vmatprep.subr.mxu0 0.0
  %1873 = vmatpush1.msra.mxu0 0.0
  %1874 = vmatprep.subr.mxu0 0.0
  %1875 = vmatpush1.msra.mxu0 0.0
  %1876 = vmatprep.subr.mxu0 0.0
  %1877 = vmatpush1.msra.mxu0 0.0
  %1878 = vmatprep.subr.mxu0 0.0
  %1879 = vmatpush1.msra.mxu0 0.0
  %1880 = vmatprep.subr.mxu0 0.0
  %1881 = vmatpush1.msra.mxu0 0.0
  %1882 = vmatprep.subr.mxu0 0.0
  %1883 = vmatpush1.msra.mxu0 0.0
  %1884 = vmatprep.subr.mxu0 0.0
  %1885 = vmatpush1.msra.mxu0 0.0
  %1886 = vmatprep.subr.mxu0 0.0
  %1887 = vmatpush1.msra.mxu0 0.0
  %1888 = vmatprep.subr.mxu0 0.0
  %1889 = vmatpush1.msra.mxu0 0.0
  %1890 = vmatprep.subr.mxu0 0.0
  %1891 = vmatpush1.msra.mxu0 0.0
  %1892 = vmatprep.subr.mxu0 0.0
  %1893 = vmatpush1.msra.mxu0 0.0
  %1894 = vmatprep.subr.mxu0 0.0
  %1895 = vmatpush1.msra.mxu0 0.0
  %1896 = vmatprep.subr.mxu0 0.0
  %1897 = vmatpush1.msra.mxu0 0.0
  %1898 = vmatprep.subr.mxu0 0.0
  %1899 = vmatpush1.msra.mxu0 0.0
  %1900 = vmatprep.subr.mxu0 0.0
  %1901 = vmatpush1.msra.mxu0 0.0
  %1902 = vmatprep.subr.mxu0 0.0
  %1903 = vmatpush1.msra.mxu0 0.0
  %1904 = vmatprep.subr.mxu0 0.0
  %1905 = vmatpush1.msra.mxu0 0.0
  %1906 = vmatprep.mubr.f32.mxu0 0.0
  %1907 = vmatmul.mubr.f32.gmra.mrb[0].mxu0 %v1815
  %v1908 = vpop.f32.mrb[0].mxu0
  %v1909 = vadd.f32 0.0, %v1908
  %v1910 = vpop.f32.mrb[0].mxu0
  %1911 = vmatprep.mubr.f32.mxu0 0.0
  %1912 = vmatmul.mubr.f32.gmra.mrb[0].mxu0 %v1818
  %v1913 = vpop.f32.mrb[0].mxu0
  %v1914 = vadd.f32 0.0, %v1913
  %v1915 = vpop.f32.mrb[0].mxu0
  %1916 = vmatprep.mubr.f32.mxu0 0.0
  %1917 = vmatmul.mubr.f32.gmra.mrb[0].mxu0 %v1821
  %v1918 = vpop.f32.mrb[0].mxu0
  %v1919 = vadd.f32 0.0, %v1918
  %v1920 = vpop.f32.mrb[0].mxu0
  %1921 = vmatprep.mubr.f32.mxu0 0.0
  %1922 = vmatmul.mubr.f32.gmra.mrb[0].mxu0 %v1824
  %v1923 = vpop.f32.mrb[0].mxu0
  %v1924 = vadd.f32 0.0, %v1923
  %v1925 = vpop.f32.mrb[0].mxu0
  %1926 = vmatprep.mubr.f32.mxu0 0.0
  %1927 = vmatmul.mubr.f32.gmra.mrb[0].mxu0 %v1827
  %v1928 = vpop.f32.mrb[0].mxu0
  %v1929 = vadd.f32 0.0, %v1928
  %v1930 = vpop.f32.mrb[0].mxu0
  %1931 = vmatprep.mubr.f32.mxu0 0.0
  %1932 = vmatmul.mubr.f32.gmra.mrb[0].mxu0 %v1830
  %v1933 = vpop.f32.mrb[0].mxu0
  %v1934 = vadd.f32 0.0, %v1933
  %v1935 = vpop.f32.mrb[0].mxu0
  %1936 = vmatprep.mubr.f32.mxu0 0.0
  %1937 = vmatmul.mubr.f32.gmra.mrb[0].mxu0 %v1833
  %v1938 = vpop.f32.mrb[0].mxu0
  %v1939 = vadd.f32 0.0, %v1938
  %v1940 = vpop.f32.mrb[0].mxu0
  %1941 = vmatprep.mubr.f32.mxu0 0.0
  %1942 = vmatmul.mubr.f32.gmra.mrb[0].mxu0 %v1836
  %v1943 = vpop.f32.mrb[0].mxu0
  %v1944 = vadd.f32 0.0, %v1943
  %v1945 = vpop.f32.mrb[0].mxu0
  %1946 = vdwg.mxu0
  %v1947 = vld [vmem:[%s11] sm:$0xff]
  %v1948 = vld [vmem:[%s11 + $0x8] sm:$0xff]
  %v1949 = vld [vmem:[%s11 + $0x10] sm:$0xff]
  %v1950 = vld [vmem:[%s11 + $0x18] sm:$0xff]
  %v1951 = vld [vmem:[%s11 + $0x20] sm:$0xff]
  %v1952 = vld [vmem:[%s11 + $0x28] sm:$0xff]
  %v1953 = vld [vmem:[%s11 + $0x30] sm:$0xff]
  %v1954 = vld [vmem:[%s11 + $0x38] sm:$0xff]
  %s1955 = scalar_lea.vmem %s11, 64
  %v1956 = vld [vmem:[%s1955] sm:$0xff]
  %v1957 = vld [vmem:[%s1955 + $0x8] sm:$0xff]
  %v1958 = vld [vmem:[%s1955 + $0x10] sm:$0xff]
  %v1959 = vld [vmem:[%s1955 + $0x18] sm:$0xff]
  %v1960 = vld [vmem:[%s1955 + $0x20] sm:$0xff]
  %v1961 = vld [vmem:[%s1955 + $0x28] sm:$0xff]
  %v1962 = vld [vmem:[%s1955 + $0x30] sm:$0xff]
  %v1963 = vld [vmem:[%s1955 + $0x38] sm:$0xff]
  %1972 = vrot.lane.b32.xlu0 %v1909, 127
  %v1973 = vpop.permute.xlu0 %1972
  %1974 = vrot.lane.b32.xlu0 %v1914, 127
  %v1975 = vpop.permute.xlu0 %1974
  %1976 = vrot.lane.b32.xlu0 %v1919, 127
  %v1977 = vpop.permute.xlu0 %1976
  %1978 = vrot.lane.b32.xlu0 %v1924, 127
  %v1979 = vpop.permute.xlu0 %1978
  %1980 = vrot.lane.b32.xlu0 %v1929, 127
  %v1981 = vpop.permute.xlu0 %1980
  %1982 = vrot.lane.b32.xlu0 %v1934, 127
  %v1983 = vpop.permute.xlu0 %1982
  %1984 = vrot.lane.b32.xlu0 %v1939, 127
  %v1985 = vpop.permute.xlu0 %1984
  %1986 = vrot.lane.b32.xlu0 %v1944, 127
  %v1987 = vpop.permute.xlu0 %1986
  %v1997 = vsel %vm427, %v1956, 0
  %v2000 = vsel %vm427, %v1957, 0
  %v2003 = vsel %vm427, %v1958, 0
  %v2006 = vsel %vm427, %v1959, 0
  %v2009 = vsel %vm427, %v1960, 0
  %v2012 = vsel %vm427, %v1961, 0
  %v2015 = vsel %vm427, %v1962, 0
  %v2018 = vsel %vm427, %v1963, 0
  %2020 = vmatprep.subr.mxu0 0.0
  %2021 = vmatpush1.msra.mxu0 %v1973
  %2022 = vmatprep.subr.mxu0 0.0
  %2023 = vmatpush1.msra.mxu0 %v1975
  %2024 = vmatprep.subr.mxu0 0.0
  %2025 = vmatpush1.msra.mxu0 %v1977
  %2026 = vmatprep.subr.mxu0 0.0
  %2027 = vmatpush1.msra.mxu0 %v1979
  %2028 = vmatprep.subr.mxu0 0.0
  %2029 = vmatpush1.msra.mxu0 %v1981
  %2030 = vmatprep.subr.mxu0 0.0
  %2031 = vmatpush1.msra.mxu0 %v1983
  %2032 = vmatprep.subr.mxu0 0.0
  %2033 = vmatpush1.msra.mxu0 %v1985
  %2034 = vmatprep.subr.mxu0 0.0
  %2035 = vmatpush1.msra.mxu0 %v1987
  %2036 = vmatprep.subr.mxu0 0.0
  %2037 = vmatpush1.msra.mxu0 0.0
  %2038 = vmatprep.subr.mxu0 0.0
  %2039 = vmatpush1.msra.mxu0 0.0
  %2040 = vmatprep.subr.mxu0 0.0
  %2041 = vmatpush1.msra.mxu0 0.0
  %2042 = vmatprep.subr.mxu0 0.0
  %2043 = vmatpush1.msra.mxu0 0.0
  %2044 = vmatprep.subr.mxu0 0.0
  %2045 = vmatpush1.msra.mxu0 0.0
  %2046 = vmatprep.subr.mxu0 0.0
  %2047 = vmatpush1.msra.mxu0 0.0
  %2048 = vmatprep.subr.mxu0 0.0
  %2049 = vmatpush1.msra.mxu0 0.0
  %2050 = vmatprep.subr.mxu0 0.0
  %2051 = vmatpush1.msra.mxu0 0.0
  %2052 = vmatprep.subr.mxu0 0.0
  %2053 = vmatpush1.msra.mxu0 0.0
  %2054 = vmatprep.subr.mxu0 0.0
  %2055 = vmatpush1.msra.mxu0 0.0
  %2056 = vmatprep.subr.mxu0 0.0
  %2057 = vmatpush1.msra.mxu0 0.0
  %2058 = vmatprep.subr.mxu0 0.0
  %2059 = vmatpush1.msra.mxu0 0.0
  %2060 = vmatprep.subr.mxu0 0.0
  %2061 = vmatpush1.msra.mxu0 0.0
  %2062 = vmatprep.subr.mxu0 0.0
  %2063 = vmatpush1.msra.mxu0 0.0
  %2064 = vmatprep.subr.mxu0 0.0
  %2065 = vmatpush1.msra.mxu0 0.0
  %2066 = vmatprep.subr.mxu0 0.0
  %2067 = vmatpush1.msra.mxu0 0.0
  %2068 = vmatprep.subr.mxu0 0.0
  %2069 = vmatpush1.msra.mxu0 0.0
  %2070 = vmatprep.subr.mxu0 0.0
  %2071 = vmatpush1.msra.mxu0 0.0
  %2072 = vmatprep.subr.mxu0 0.0
  %2073 = vmatpush1.msra.mxu0 0.0
  %2074 = vmatprep.subr.mxu0 0.0
  %2075 = vmatpush1.msra.mxu0 0.0
  %2076 = vmatprep.subr.mxu0 0.0
  %2077 = vmatpush1.msra.mxu0 0.0
  %2078 = vmatprep.subr.mxu0 0.0
  %2079 = vmatpush1.msra.mxu0 0.0
  %2080 = vmatprep.subr.mxu0 0.0
  %2081 = vmatpush1.msra.mxu0 0.0
  %2082 = vmatprep.subr.mxu0 0.0
  %2083 = vmatpush1.msra.mxu0 0.0
  %2084 = vmatprep.mubr.f32.mxu0 0.0
  %2085 = vmatmul.mubr.f32.gmra.mrb[0].mxu0 %v1997
  %v2086 = vpop.f32.mrb[0].mxu0
  %v2087 = vadd.f32 0.0, %v2086
  %v2088 = vpop.f32.mrb[0].mxu0
  %2089 = vmatprep.mubr.f32.mxu0 0.0
  %2090 = vmatmul.mubr.f32.gmra.mrb[0].mxu0 %v2000
  %v2091 = vpop.f32.mrb[0].mxu0
  %v2092 = vadd.f32 0.0, %v2091
  %v2093 = vpop.f32.mrb[0].mxu0
  %2094 = vmatprep.mubr.f32.mxu0 0.0
  %2095 = vmatmul.mubr.f32.gmra.mrb[0].mxu0 %v2003
  %v2096 = vpop.f32.mrb[0].mxu0
  %v2097 = vadd.f32 0.0, %v2096
  %v2098 = vpop.f32.mrb[0].mxu0
  %2099 = vmatprep.mubr.f32.mxu0 0.0
  %2100 = vmatmul.mubr.f32.gmra.mrb[0].mxu0 %v2006
  %v2101 = vpop.f32.mrb[0].mxu0
  %v2102 = vadd.f32 0.0, %v2101
  %v2103 = vpop.f32.mrb[0].mxu0
  %2104 = vmatprep.mubr.f32.mxu0 0.0
  %2105 = vmatmul.mubr.f32.gmra.mrb[0].mxu0 %v2009
  %v2106 = vpop.f32.mrb[0].mxu0
  %v2107 = vadd.f32 0.0, %v2106
  %v2108 = vpop.f32.mrb[0].mxu0
  %2109 = vmatprep.mubr.f32.mxu0 0.0
  %2110 = vmatmul.mubr.f32.gmra.mrb[0].mxu0 %v2012
  %v2111 = vpop.f32.mrb[0].mxu0
  %v2112 = vadd.f32 0.0, %v2111
  %v2113 = vpop.f32.mrb[0].mxu0
  %2114 = vmatprep.mubr.f32.mxu0 0.0
  %2115 = vmatmul.mubr.f32.gmra.mrb[0].mxu0 %v2015
  %v2116 = vpop.f32.mrb[0].mxu0
  %v2117 = vadd.f32 0.0, %v2116
  %v2118 = vpop.f32.mrb[0].mxu0
  %2119 = vmatprep.mubr.f32.mxu0 0.0
  %2120 = vmatmul.mubr.f32.gmra.mrb[0].mxu0 %v2018
  %v2121 = vpop.f32.mrb[0].mxu0
  %v2122 = vadd.f32 0.0, %v2121
  %v2123 = vpop.f32.mrb[0].mxu0
  %2124 = vdwg.mxu0
  %v2126 = vsel %vm427, %v1947, 0
  %v2129 = vsel %vm427, %v1948, 0
  %v2132 = vsel %vm427, %v1949, 0
  %v2135 = vsel %vm427, %v1950, 0
  %v2138 = vsel %vm427, %v1951, 0
  %v2141 = vsel %vm427, %v1952, 0
  %v2144 = vsel %vm427, %v1953, 0
  %v2147 = vsel %vm427, %v1954, 0
  %2149 = vmatprep.subr.mxu0 0.0
  %2150 = vmatpush1.msra.mxu0 %v1909
  %2151 = vmatprep.subr.mxu0 0.0
  %2152 = vmatpush1.msra.mxu0 %v1914
  %2153 = vmatprep.subr.mxu0 0.0
  %2154 = vmatpush1.msra.mxu0 %v1919
  %2155 = vmatprep.subr.mxu0 0.0
  %2156 = vmatpush1.msra.mxu0 %v1924
  %2157 = vmatprep.subr.mxu0 0.0
  %2158 = vmatpush1.msra.mxu0 %v1929
  %2159 = vmatprep.subr.mxu0 0.0
  %2160 = vmatpush1.msra.mxu0 %v1934
  %2161 = vmatprep.subr.mxu0 0.0
  %2162 = vmatpush1.msra.mxu0 %v1939
  %2163 = vmatprep.subr.mxu0 0.0
  %2164 = vmatpush1.msra.mxu0 %v1944
  %2165 = vmatprep.subr.mxu0 0.0
  %2166 = vmatpush1.msra.mxu0 0.0
  %2167 = vmatprep.subr.mxu0 0.0
  %2168 = vmatpush1.msra.mxu0 0.0
  %2169 = vmatprep.subr.mxu0 0.0
  %2170 = vmatpush1.msra.mxu0 0.0
  %2171 = vmatprep.subr.mxu0 0.0
  %2172 = vmatpush1.msra.mxu0 0.0
  %2173 = vmatprep.subr.mxu0 0.0
  %2174 = vmatpush1.msra.mxu0 0.0
  %2175 = vmatprep.subr.mxu0 0.0
  %2176 = vmatpush1.msra.mxu0 0.0
  %2177 = vmatprep.subr.mxu0 0.0
  %2178 = vmatpush1.msra.mxu0 0.0
  %2179 = vmatprep.subr.mxu0 0.0
  %2180 = vmatpush1.msra.mxu0 0.0
  %2181 = vmatprep.subr.mxu0 0.0
  %2182 = vmatpush1.msra.mxu0 0.0
  %2183 = vmatprep.subr.mxu0 0.0
  %2184 = vmatpush1.msra.mxu0 0.0
  %2185 = vmatprep.subr.mxu0 0.0
  %2186 = vmatpush1.msra.mxu0 0.0
  %2187 = vmatprep.subr.mxu0 0.0
  %2188 = vmatpush1.msra.mxu0 0.0
  %2189 = vmatprep.subr.mxu0 0.0
  %2190 = vmatpush1.msra.mxu0 0.0
  %2191 = vmatprep.subr.mxu0 0.0
  %2192 = vmatpush1.msra.mxu0 0.0
  %2193 = vmatprep.subr.mxu0 0.0
  %2194 = vmatpush1.msra.mxu0 0.0
  %2195 = vmatprep.subr.mxu0 0.0
  %2196 = vmatpush1.msra.mxu0 0.0
  %2197 = vmatprep.subr.mxu0 0.0
  %2198 = vmatpush1.msra.mxu0 0.0
  %2199 = vmatprep.subr.mxu0 0.0
  %2200 = vmatpush1.msra.mxu0 0.0
  %2201 = vmatprep.subr.mxu0 0.0
  %2202 = vmatpush1.msra.mxu0 0.0
  %2203 = vmatprep.subr.mxu0 0.0
  %2204 = vmatpush1.msra.mxu0 0.0
  %2205 = vmatprep.subr.mxu0 0.0
  %2206 = vmatpush1.msra.mxu0 0.0
  %2207 = vmatprep.subr.mxu0 0.0
  %2208 = vmatpush1.msra.mxu0 0.0
  %2209 = vmatprep.subr.mxu0 0.0
  %2210 = vmatpush1.msra.mxu0 0.0
  %2211 = vmatprep.subr.mxu0 0.0
  %2212 = vmatpush1.msra.mxu0 0.0
  %2213 = vmatprep.mubr.f32.mxu0 0.0
  %2214 = vmatmul.mubr.f32.gmra.mrb[0].mxu0 %v2126
  %v2215 = vpop.f32.mrb[0].mxu0
  %v2216 = vadd.f32 %v2087, %v2215
  %v2217 = vpop.f32.mrb[0].mxu0
  %2218 = vmatprep.mubr.f32.mxu0 0.0
  %2219 = vmatmul.mubr.f32.gmra.mrb[0].mxu0 %v2129
  %v2220 = vpop.f32.mrb[0].mxu0
  %v2221 = vadd.f32 %v2092, %v2220
  %v2222 = vpop.f32.mrb[0].mxu0
  %2223 = vmatprep.mubr.f32.mxu0 0.0
  %2224 = vmatmul.mubr.f32.gmra.mrb[0].mxu0 %v2132
  %v2225 = vpop.f32.mrb[0].mxu0
  %v2226 = vadd.f32 %v2097, %v2225
  %v2227 = vpop.f32.mrb[0].mxu0
  %2228 = vmatprep.mubr.f32.mxu0 0.0
  %2229 = vmatmul.mubr.f32.gmra.mrb[0].mxu0 %v2135
  %v2230 = vpop.f32.mrb[0].mxu0
  %v2231 = vadd.f32 %v2102, %v2230
  %v2232 = vpop.f32.mrb[0].mxu0
  %2233 = vmatprep.mubr.f32.mxu0 0.0
  %2234 = vmatmul.mubr.f32.gmra.mrb[0].mxu0 %v2138
  %v2235 = vpop.f32.mrb[0].mxu0
  %v2236 = vadd.f32 %v2107, %v2235
  %v2237 = vpop.f32.mrb[0].mxu0
  %2238 = vmatprep.mubr.f32.mxu0 0.0
  %2239 = vmatmul.mubr.f32.gmra.mrb[0].mxu0 %v2141
  %v2240 = vpop.f32.mrb[0].mxu0
  %v2241 = vadd.f32 %v2112, %v2240
  %v2242 = vpop.f32.mrb[0].mxu0
  %2243 = vmatprep.mubr.f32.mxu0 0.0
  %2244 = vmatmul.mubr.f32.gmra.mrb[0].mxu0 %v2144
  %v2245 = vpop.f32.mrb[0].mxu0
  %v2246 = vadd.f32 %v2117, %v2245
  %v2247 = vpop.f32.mrb[0].mxu0
  %2248 = vmatprep.mubr.f32.mxu0 0.0
  %2249 = vmatmul.mubr.f32.gmra.mrb[0].mxu0 %v2147
  %v2250 = vpop.f32.mrb[0].mxu0
  %v2251 = vadd.f32 %v2122, %v2250
  %v2252 = vpop.f32.mrb[0].mxu0
  %2253 = vdwg.mxu0
  %s2254 = scalar_lea.vmem %s11, 128
  %v2255 = vld [vmem:[%s2254] sm:$0xff]
  %v2256 = vld [vmem:[%s2254 + $0x8] sm:$0xff]
  %v2257 = vld [vmem:[%s2254 + $0x10] sm:$0xff]
  %v2258 = vld [vmem:[%s2254 + $0x18] sm:$0xff]
  %v2259 = vld [vmem:[%s2254 + $0x20] sm:$0xff]
  %v2260 = vld [vmem:[%s2254 + $0x28] sm:$0xff]
  %v2261 = vld [vmem:[%s2254 + $0x30] sm:$0xff]
  %v2262 = vld [vmem:[%s2254 + $0x38] sm:$0xff]
  %2263 = vrot.lane.b32.xlu0 %v1909, 126
  %v2264 = vpop.permute.xlu0 %2263
  %2265 = vrot.lane.b32.xlu0 %v1914, 126
  %v2266 = vpop.permute.xlu0 %2265
  %2267 = vrot.lane.b32.xlu0 %v1919, 126
  %v2268 = vpop.permute.xlu0 %2267
  %2269 = vrot.lane.b32.xlu0 %v1924, 126
  %v2270 = vpop.permute.xlu0 %2269
  %2271 = vrot.lane.b32.xlu0 %v1929, 126
  %v2272 = vpop.permute.xlu0 %2271
  %2273 = vrot.lane.b32.xlu0 %v1934, 126
  %v2274 = vpop.permute.xlu0 %2273
  %2275 = vrot.lane.b32.xlu0 %v1939, 126
  %v2276 = vpop.permute.xlu0 %2275
  %2277 = vrot.lane.b32.xlu0 %v1944, 126
  %v2278 = vpop.permute.xlu0 %2277
  %v2288 = vsel %vm427, %v2255, 0
  %v2291 = vsel %vm427, %v2256, 0
  %v2294 = vsel %vm427, %v2257, 0
  %v2297 = vsel %vm427, %v2258, 0
  %v2300 = vsel %vm427, %v2259, 0
  %v2303 = vsel %vm427, %v2260, 0
  %v2306 = vsel %vm427, %v2261, 0
  %v2309 = vsel %vm427, %v2262, 0
  %2311 = vmatprep.subr.mxu0 0.0
  %2312 = vmatpush1.msra.mxu0 %v2264
  %2313 = vmatprep.subr.mxu0 0.0
  %2314 = vmatpush1.msra.mxu0 %v2266
  %2315 = vmatprep.subr.mxu0 0.0
  %2316 = vmatpush1.msra.mxu0 %v2268
  %2317 = vmatprep.subr.mxu0 0.0
  %2318 = vmatpush1.msra.mxu0 %v2270
  %2319 = vmatprep.subr.mxu0 0.0
  %2320 = vmatpush1.msra.mxu0 %v2272
  %2321 = vmatprep.subr.mxu0 0.0
  %2322 = vmatpush1.msra.mxu0 %v2274
  %2323 = vmatprep.subr.mxu0 0.0
  %2324 = vmatpush1.msra.mxu0 %v2276
  %2325 = vmatprep.subr.mxu0 0.0
  %2326 = vmatpush1.msra.mxu0 %v2278
  %2327 = vmatprep.subr.mxu0 0.0
  %2328 = vmatpush1.msra.mxu0 0.0
  %2329 = vmatprep.subr.mxu0 0.0
  %2330 = vmatpush1.msra.mxu0 0.0
  %2331 = vmatprep.subr.mxu0 0.0
  %2332 = vmatpush1.msra.mxu0 0.0
  %2333 = vmatprep.subr.mxu0 0.0
  %2334 = vmatpush1.msra.mxu0 0.0
  %2335 = vmatprep.subr.mxu0 0.0
  %2336 = vmatpush1.msra.mxu0 0.0
  %2337 = vmatprep.subr.mxu0 0.0
  %2338 = vmatpush1.msra.mxu0 0.0
  %2339 = vmatprep.subr.mxu0 0.0
  %2340 = vmatpush1.msra.mxu0 0.0
  %2341 = vmatprep.subr.mxu0 0.0
  %2342 = vmatpush1.msra.mxu0 0.0
  %2343 = vmatprep.subr.mxu0 0.0
  %2344 = vmatpush1.msra.mxu0 0.0
  %2345 = vmatprep.subr.mxu0 0.0
  %2346 = vmatpush1.msra.mxu0 0.0
  %2347 = vmatprep.subr.mxu0 0.0
  %2348 = vmatpush1.msra.mxu0 0.0
  %2349 = vmatprep.subr.mxu0 0.0
  %2350 = vmatpush1.msra.mxu0 0.0
  %2351 = vmatprep.subr.mxu0 0.0
  %2352 = vmatpush1.msra.mxu0 0.0
  %2353 = vmatprep.subr.mxu0 0.0
  %2354 = vmatpush1.msra.mxu0 0.0
  %2355 = vmatprep.subr.mxu0 0.0
  %2356 = vmatpush1.msra.mxu0 0.0
  %2357 = vmatprep.subr.mxu0 0.0
  %2358 = vmatpush1.msra.mxu0 0.0
  %2359 = vmatprep.subr.mxu0 0.0
  %2360 = vmatpush1.msra.mxu0 0.0
  %2361 = vmatprep.subr.mxu0 0.0
  %2362 = vmatpush1.msra.mxu0 0.0
  %2363 = vmatprep.subr.mxu0 0.0
  %2364 = vmatpush1.msra.mxu0 0.0
  %2365 = vmatprep.subr.mxu0 0.0
  %2366 = vmatpush1.msra.mxu0 0.0
  %2367 = vmatprep.subr.mxu0 0.0
  %2368 = vmatpush1.msra.mxu0 0.0
  %2369 = vmatprep.subr.mxu0 0.0
  %2370 = vmatpush1.msra.mxu0 0.0
  %2371 = vmatprep.subr.mxu0 0.0
  %2372 = vmatpush1.msra.mxu0 0.0
  %2373 = vmatprep.subr.mxu0 0.0
  %2374 = vmatpush1.msra.mxu0 0.0
  %2375 = vmatprep.mubr.f32.mxu0 0.0
  %2376 = vmatmul.mubr.f32.gmra.mrb[0].mxu0 %v2288
  %v2377 = vpop.f32.mrb[0].mxu0
  %v2378 = vadd.f32 0.0, %v2377
  %v2379 = vpop.f32.mrb[0].mxu0
  %2380 = vmatprep.mubr.f32.mxu0 0.0
  %2381 = vmatmul.mubr.f32.gmra.mrb[0].mxu0 %v2291
  %v2382 = vpop.f32.mrb[0].mxu0
  %v2383 = vadd.f32 0.0, %v2382
  %v2384 = vpop.f32.mrb[0].mxu0
  %2385 = vmatprep.mubr.f32.mxu0 0.0
  %2386 = vmatmul.mubr.f32.gmra.mrb[0].mxu0 %v2294
  %v2387 = vpop.f32.mrb[0].mxu0
  %v2388 = vadd.f32 0.0, %v2387
  %v2389 = vpop.f32.mrb[0].mxu0
  %2390 = vmatprep.mubr.f32.mxu0 0.0
  %2391 = vmatmul.mubr.f32.gmra.mrb[0].mxu0 %v2297
  %v2392 = vpop.f32.mrb[0].mxu0
  %v2393 = vadd.f32 0.0, %v2392
  %v2394 = vpop.f32.mrb[0].mxu0
  %2395 = vmatprep.mubr.f32.mxu0 0.0
  %2396 = vmatmul.mubr.f32.gmra.mrb[0].mxu0 %v2300
  %v2397 = vpop.f32.mrb[0].mxu0
  %v2398 = vadd.f32 0.0, %v2397
  %v2399 = vpop.f32.mrb[0].mxu0
  %2400 = vmatprep.mubr.f32.mxu0 0.0
  %2401 = vmatmul.mubr.f32.gmra.mrb[0].mxu0 %v2303
  %v2402 = vpop.f32.mrb[0].mxu0
  %v2403 = vadd.f32 0.0, %v2402
  %v2404 = vpop.f32.mrb[0].mxu0
  %2405 = vmatprep.mubr.f32.mxu0 0.0
  %2406 = vmatmul.mubr.f32.gmra.mrb[0].mxu0 %v2306
  %v2407 = vpop.f32.mrb[0].mxu0
  %v2408 = vadd.f32 0.0, %v2407
  %v2409 = vpop.f32.mrb[0].mxu0
  %2410 = vmatprep.mubr.f32.mxu0 0.0
  %2411 = vmatmul.mubr.f32.gmra.mrb[0].mxu0 %v2309
  %v2412 = vpop.f32.mrb[0].mxu0
  %v2413 = vadd.f32 0.0, %v2412
  %v2414 = vpop.f32.mrb[0].mxu0
  %2415 = vdwg.mxu0
  %v2416 = vadd.f32 %v2216, %v2378
  %v2417 = vadd.f32 %v2221, %v2383
  %v2418 = vadd.f32 %v2226, %v2388
  %v2419 = vadd.f32 %v2231, %v2393
  %v2420 = vadd.f32 %v2236, %v2398
  %v2421 = vadd.f32 %v2241, %v2403
  %v2422 = vadd.f32 %v2246, %v2408
  %v2423 = vadd.f32 %v2251, %v2413
  %s2424 = scalar_lea.vmem %s11, 192
  %v2425 = vld [vmem:[%s2424] sm:$0xff]
  %v2426 = vld [vmem:[%s2424 + $0x8] sm:$0xff]
  %v2427 = vld [vmem:[%s2424 + $0x10] sm:$0xff]
  %v2428 = vld [vmem:[%s2424 + $0x18] sm:$0xff]
  %v2429 = vld [vmem:[%s2424 + $0x20] sm:$0xff]
  %v2430 = vld [vmem:[%s2424 + $0x28] sm:$0xff]
  %v2431 = vld [vmem:[%s2424 + $0x30] sm:$0xff]
  %v2432 = vld [vmem:[%s2424 + $0x38] sm:$0xff]
  %2433 = vrot.lane.b32.xlu0 %v1909, 125
  %v2434 = vpop.permute.xlu0 %2433
  %2435 = vrot.lane.b32.xlu0 %v1914, 125
  %v2436 = vpop.permute.xlu0 %2435
  %2437 = vrot.lane.b32.xlu0 %v1919, 125
  %v2438 = vpop.permute.xlu0 %2437
  %2439 = vrot.lane.b32.xlu0 %v1924, 125
  %v2440 = vpop.permute.xlu0 %2439
  %2441 = vrot.lane.b32.xlu0 %v1929, 125
  %v2442 = vpop.permute.xlu0 %2441
  %2443 = vrot.lane.b32.xlu0 %v1934, 125
  %v2444 = vpop.permute.xlu0 %2443
  %2445 = vrot.lane.b32.xlu0 %v1939, 125
  %v2446 = vpop.permute.xlu0 %2445
  %2447 = vrot.lane.b32.xlu0 %v1944, 125
  %v2448 = vpop.permute.xlu0 %2447
  %v2458 = vsel %vm427, %v2425, 0
  %v2461 = vsel %vm427, %v2426, 0
  %v2464 = vsel %vm427, %v2427, 0
  %v2467 = vsel %vm427, %v2428, 0
  %v2470 = vsel %vm427, %v2429, 0
  %v2473 = vsel %vm427, %v2430, 0
  %v2476 = vsel %vm427, %v2431, 0
  %v2479 = vsel %vm427, %v2432, 0
  %2481 = vmatprep.subr.mxu0 0.0
  %2482 = vmatpush1.msra.mxu0 %v2434
  %2483 = vmatprep.subr.mxu0 0.0
  %2484 = vmatpush1.msra.mxu0 %v2436
  %2485 = vmatprep.subr.mxu0 0.0
  %2486 = vmatpush1.msra.mxu0 %v2438
  %2487 = vmatprep.subr.mxu0 0.0
  %2488 = vmatpush1.msra.mxu0 %v2440
  %2489 = vmatprep.subr.mxu0 0.0
  %2490 = vmatpush1.msra.mxu0 %v2442
  %2491 = vmatprep.subr.mxu0 0.0
  %2492 = vmatpush1.msra.mxu0 %v2444
  %2493 = vmatprep.subr.mxu0 0.0
  %2494 = vmatpush1.msra.mxu0 %v2446
  %2495 = vmatprep.subr.mxu0 0.0
  %2496 = vmatpush1.msra.mxu0 %v2448
  %2497 = vmatprep.subr.mxu0 0.0
  %2498 = vmatpush1.msra.mxu0 0.0
  %2499 = vmatprep.subr.mxu0 0.0
  %2500 = vmatpush1.msra.mxu0 0.0
  %2501 = vmatprep.subr.mxu0 0.0
  %2502 = vmatpush1.msra.mxu0 0.0
  %2503 = vmatprep.subr.mxu0 0.0
  %2504 = vmatpush1.msra.mxu0 0.0
  %2505 = vmatprep.subr.mxu0 0.0
  %2506 = vmatpush1.msra.mxu0 0.0
  %2507 = vmatprep.subr.mxu0 0.0
  %2508 = vmatpush1.msra.mxu0 0.0
  %2509 = vmatprep.subr.mxu0 0.0
  %2510 = vmatpush1.msra.mxu0 0.0
  %2511 = vmatprep.subr.mxu0 0.0
  %2512 = vmatpush1.msra.mxu0 0.0
  %2513 = vmatprep.subr.mxu0 0.0
  %2514 = vmatpush1.msra.mxu0 0.0
  %2515 = vmatprep.subr.mxu0 0.0
  %2516 = vmatpush1.msra.mxu0 0.0
  %2517 = vmatprep.subr.mxu0 0.0
  %2518 = vmatpush1.msra.mxu0 0.0
  %2519 = vmatprep.subr.mxu0 0.0
  %2520 = vmatpush1.msra.mxu0 0.0
  %2521 = vmatprep.subr.mxu0 0.0
  %2522 = vmatpush1.msra.mxu0 0.0
  %2523 = vmatprep.subr.mxu0 0.0
  %2524 = vmatpush1.msra.mxu0 0.0
  %2525 = vmatprep.subr.mxu0 0.0
  %2526 = vmatpush1.msra.mxu0 0.0
  %2527 = vmatprep.subr.mxu0 0.0
  %2528 = vmatpush1.msra.mxu0 0.0
  %2529 = vmatprep.subr.mxu0 0.0
  %2530 = vmatpush1.msra.mxu0 0.0
  %2531 = vmatprep.subr.mxu0 0.0
  %2532 = vmatpush1.msra.mxu0 0.0
  %2533 = vmatprep.subr.mxu0 0.0
  %2534 = vmatpush1.msra.mxu0 0.0
  %2535 = vmatprep.subr.mxu0 0.0
  %2536 = vmatpush1.msra.mxu0 0.0
  %2537 = vmatprep.subr.mxu0 0.0
  %2538 = vmatpush1.msra.mxu0 0.0
  %2539 = vmatprep.subr.mxu0 0.0
  %2540 = vmatpush1.msra.mxu0 0.0
  %2541 = vmatprep.subr.mxu0 0.0
  %2542 = vmatpush1.msra.mxu0 0.0
  %2543 = vmatprep.subr.mxu0 0.0
  %2544 = vmatpush1.msra.mxu0 0.0
  %2545 = vmatprep.mubr.f32.mxu0 0.0
  %2546 = vmatmul.mubr.f32.gmra.mrb[0].mxu0 %v2458
  %v2547 = vpop.f32.mrb[0].mxu0
  %v2548 = vadd.f32 0.0, %v2547
  %v2549 = vpop.f32.mrb[0].mxu0
  %2550 = vmatprep.mubr.f32.mxu0 0.0
  %2551 = vmatmul.mubr.f32.gmra.mrb[0].mxu0 %v2461
  %v2552 = vpop.f32.mrb[0].mxu0
  %v2553 = vadd.f32 0.0, %v2552
  %v2554 = vpop.f32.mrb[0].mxu0
  %2555 = vmatprep.mubr.f32.mxu0 0.0
  %2556 = vmatmul.mubr.f32.gmra.mrb[0].mxu0 %v2464
  %v2557 = vpop.f32.mrb[0].mxu0
  %v2558 = vadd.f32 0.0, %v2557
  %v2559 = vpop.f32.mrb[0].mxu0
  %2560 = vmatprep.mubr.f32.mxu0 0.0
  %2561 = vmatmul.mubr.f32.gmra.mrb[0].mxu0 %v2467
  %v2562 = vpop.f32.mrb[0].mxu0
  %v2563 = vadd.f32 0.0, %v2562
  %v2564 = vpop.f32.mrb[0].mxu0
  %2565 = vmatprep.mubr.f32.mxu0 0.0
  %2566 = vmatmul.mubr.f32.gmra.mrb[0].mxu0 %v2470
  %v2567 = vpop.f32.mrb[0].mxu0
  %v2568 = vadd.f32 0.0, %v2567
  %v2569 = vpop.f32.mrb[0].mxu0
  %2570 = vmatprep.mubr.f32.mxu0 0.0
  %2571 = vmatmul.mubr.f32.gmra.mrb[0].mxu0 %v2473
  %v2572 = vpop.f32.mrb[0].mxu0
  %v2573 = vadd.f32 0.0, %v2572
  %v2574 = vpop.f32.mrb[0].mxu0
  %2575 = vmatprep.mubr.f32.mxu0 0.0
  %2576 = vmatmul.mubr.f32.gmra.mrb[0].mxu0 %v2476
  %v2577 = vpop.f32.mrb[0].mxu0
  %v2578 = vadd.f32 0.0, %v2577
  %v2579 = vpop.f32.mrb[0].mxu0
  %2580 = vmatprep.mubr.f32.mxu0 0.0
  %2581 = vmatmul.mubr.f32.gmra.mrb[0].mxu0 %v2479
  %v2582 = vpop.f32.mrb[0].mxu0
  %v2583 = vadd.f32 0.0, %v2582
  %v2584 = vpop.f32.mrb[0].mxu0
  %2585 = vdwg.mxu0
  %v2586 = vadd.f32 %v2416, %v2548
  %v2587 = vadd.f32 %v2417, %v2553
  %v2588 = vadd.f32 %v2418, %v2558
  %v2589 = vadd.f32 %v2419, %v2563
  %v2590 = vadd.f32 %v2420, %v2568
  %v2591 = vadd.f32 %v2421, %v2573
  %v2592 = vadd.f32 %v2422, %v2578
  %v2593 = vadd.f32 %v2423, %v2583
  %s2594 = scalar_lea.vmem %s11, 256
  %v2595 = vld [vmem:[%s2594] sm:$0xff]
  %v2596 = vld [vmem:[%s2594 + $0x8] sm:$0xff]
  %v2597 = vld [vmem:[%s2594 + $0x10] sm:$0xff]
  %v2598 = vld [vmem:[%s2594 + $0x18] sm:$0xff]
  %v2599 = vld [vmem:[%s2594 + $0x20] sm:$0xff]
  %v2600 = vld [vmem:[%s2594 + $0x28] sm:$0xff]
  %v2601 = vld [vmem:[%s2594 + $0x30] sm:$0xff]
  %v2602 = vld [vmem:[%s2594 + $0x38] sm:$0xff]
  %2603 = vrot.lane.b32.xlu0 %v1909, 124
  %v2604 = vpop.permute.xlu0 %2603
  %2605 = vrot.lane.b32.xlu0 %v1914, 124
  %v2606 = vpop.permute.xlu0 %2605
  %2607 = vrot.lane.b32.xlu0 %v1919, 124
  %v2608 = vpop.permute.xlu0 %2607
  %2609 = vrot.lane.b32.xlu0 %v1924, 124
  %v2610 = vpop.permute.xlu0 %2609
  %2611 = vrot.lane.b32.xlu0 %v1929, 124
  %v2612 = vpop.permute.xlu0 %2611
  %2613 = vrot.lane.b32.xlu0 %v1934, 124
  %v2614 = vpop.permute.xlu0 %2613
  %2615 = vrot.lane.b32.xlu0 %v1939, 124
  %v2616 = vpop.permute.xlu0 %2615
  %2617 = vrot.lane.b32.xlu0 %v1944, 124
  %v2618 = vpop.permute.xlu0 %2617
  %v2628 = vsel %vm427, %v2595, 0
  %v2631 = vsel %vm427, %v2596, 0
  %v2634 = vsel %vm427, %v2597, 0
  %v2637 = vsel %vm427, %v2598, 0
  %v2640 = vsel %vm427, %v2599, 0
  %v2643 = vsel %vm427, %v2600, 0
  %v2646 = vsel %vm427, %v2601, 0
  %v2649 = vsel %vm427, %v2602, 0
  %2651 = vmatprep.subr.mxu0 0.0
  %2652 = vmatpush1.msra.mxu0 %v2604
  %2653 = vmatprep.subr.mxu0 0.0
  %2654 = vmatpush1.msra.mxu0 %v2606
  %2655 = vmatprep.subr.mxu0 0.0
  %2656 = vmatpush1.msra.mxu0 %v2608
  %2657 = vmatprep.subr.mxu0 0.0
  %2658 = vmatpush1.msra.mxu0 %v2610
  %2659 = vmatprep.subr.mxu0 0.0
  %2660 = vmatpush1.msra.mxu0 %v2612
  %2661 = vmatprep.subr.mxu0 0.0
  %2662 = vmatpush1.msra.mxu0 %v2614
  %2663 = vmatprep.subr.mxu0 0.0
  %2664 = vmatpush1.msra.mxu0 %v2616
  %2665 = vmatprep.subr.mxu0 0.0
  %2666 = vmatpush1.msra.mxu0 %v2618
  %2667 = vmatprep.subr.mxu0 0.0
  %2668 = vmatpush1.msra.mxu0 0.0
  %2669 = vmatprep.subr.mxu0 0.0
  %2670 = vmatpush1.msra.mxu0 0.0
  %2671 = vmatprep.subr.mxu0 0.0
  %2672 = vmatpush1.msra.mxu0 0.0
  %2673 = vmatprep.subr.mxu0 0.0
  %2674 = vmatpush1.msra.mxu0 0.0
  %2675 = vmatprep.subr.mxu0 0.0
  %2676 = vmatpush1.msra.mxu0 0.0
  %2677 = vmatprep.subr.mxu0 0.0
  %2678 = vmatpush1.msra.mxu0 0.0
  %2679 = vmatprep.subr.mxu0 0.0
  %2680 = vmatpush1.msra.mxu0 0.0
  %2681 = vmatprep.subr.mxu0 0.0
  %2682 = vmatpush1.msra.mxu0 0.0
  %2683 = vmatprep.subr.mxu0 0.0
  %2684 = vmatpush1.msra.mxu0 0.0
  %2685 = vmatprep.subr.mxu0 0.0
  %2686 = vmatpush1.msra.mxu0 0.0
  %2687 = vmatprep.subr.mxu0 0.0
  %2688 = vmatpush1.msra.mxu0 0.0
  %2689 = vmatprep.subr.mxu0 0.0
  %2690 = vmatpush1.msra.mxu0 0.0
  %2691 = vmatprep.subr.mxu0 0.0
  %2692 = vmatpush1.msra.mxu0 0.0
  %2693 = vmatprep.subr.mxu0 0.0
  %2694 = vmatpush1.msra.mxu0 0.0
  %2695 = vmatprep.subr.mxu0 0.0
  %2696 = vmatpush1.msra.mxu0 0.0
  %2697 = vmatprep.subr.mxu0 0.0
  %2698 = vmatpush1.msra.mxu0 0.0
  %2699 = vmatprep.subr.mxu0 0.0
  %2700 = vmatpush1.msra.mxu0 0.0
  %2701 = vmatprep.subr.mxu0 0.0
  %2702 = vmatpush1.msra.mxu0 0.0
  %2703 = vmatprep.subr.mxu0 0.0
  %2704 = vmatpush1.msra.mxu0 0.0
  %2705 = vmatprep.subr.mxu0 0.0
  %2706 = vmatpush1.msra.mxu0 0.0
  %2707 = vmatprep.subr.mxu0 0.0
  %2708 = vmatpush1.msra.mxu0 0.0
  %2709 = vmatprep.subr.mxu0 0.0
  %2710 = vmatpush1.msra.mxu0 0.0
  %2711 = vmatprep.subr.mxu0 0.0
  %2712 = vmatpush1.msra.mxu0 0.0
  %2713 = vmatprep.subr.mxu0 0.0
  %2714 = vmatpush1.msra.mxu0 0.0
  %2715 = vmatprep.mubr.f32.mxu0 0.0
  %2716 = vmatmul.mubr.f32.gmra.mrb[0].mxu0 %v2628
  %v2717 = vpop.f32.mrb[0].mxu0
  %v2718 = vadd.f32 0.0, %v2717
  %v2719 = vpop.f32.mrb[0].mxu0
  %2720 = vmatprep.mubr.f32.mxu0 0.0
  %2721 = vmatmul.mubr.f32.gmra.mrb[0].mxu0 %v2631
  %v2722 = vpop.f32.mrb[0].mxu0
  %v2723 = vadd.f32 0.0, %v2722
  %v2724 = vpop.f32.mrb[0].mxu0
  %2725 = vmatprep.mubr.f32.mxu0 0.0
  %2726 = vmatmul.mubr.f32.gmra.mrb[0].mxu0 %v2634
  %v2727 = vpop.f32.mrb[0].mxu0
  %v2728 = vadd.f32 0.0, %v2727
  %v2729 = vpop.f32.mrb[0].mxu0
  %2730 = vmatprep.mubr.f32.mxu0 0.0
  %2731 = vmatmul.mubr.f32.gmra.mrb[0].mxu0 %v2637
  %v2732 = vpop.f32.mrb[0].mxu0
  %v2733 = vadd.f32 0.0, %v2732
  %v2734 = vpop.f32.mrb[0].mxu0
  %2735 = vmatprep.mubr.f32.mxu0 0.0
  %2736 = vmatmul.mubr.f32.gmra.mrb[0].mxu0 %v2640
  %v2737 = vpop.f32.mrb[0].mxu0
  %v2738 = vadd.f32 0.0, %v2737
  %v2739 = vpop.f32.mrb[0].mxu0
  %2740 = vmatprep.mubr.f32.mxu0 0.0
  %2741 = vmatmul.mubr.f32.gmra.mrb[0].mxu0 %v2643
  %v2742 = vpop.f32.mrb[0].mxu0
  %v2743 = vadd.f32 0.0, %v2742
  %v2744 = vpop.f32.mrb[0].mxu0
  %2745 = vmatprep.mubr.f32.mxu0 0.0
  %2746 = vmatmul.mubr.f32.gmra.mrb[0].mxu0 %v2646
  %v2747 = vpop.f32.mrb[0].mxu0
  %v2748 = vadd.f32 0.0, %v2747
  %v2749 = vpop.f32.mrb[0].mxu0
  %2750 = vmatprep.mubr.f32.mxu0 0.0
  %2751 = vmatmul.mubr.f32.gmra.mrb[0].mxu0 %v2649
  %v2752 = vpop.f32.mrb[0].mxu0
  %v2753 = vadd.f32 0.0, %v2752
  %v2754 = vpop.f32.mrb[0].mxu0
  %2755 = vdwg.mxu0
  %v2756 = vadd.f32 %v2586, %v2718
  %v2757 = vadd.f32 %v2587, %v2723
  %v2758 = vadd.f32 %v2588, %v2728
  %v2759 = vadd.f32 %v2589, %v2733
  %v2760 = vadd.f32 %v2590, %v2738
  %v2761 = vadd.f32 %v2591, %v2743
  %v2762 = vadd.f32 %v2592, %v2748
  %v2763 = vadd.f32 %v2593, %v2753
  %s2764 = scalar_lea.vmem %s11, 320
  %v2765 = vld [vmem:[%s2764] sm:$0xff]
  %v2766 = vld [vmem:[%s2764 + $0x8] sm:$0xff]
  %v2767 = vld [vmem:[%s2764 + $0x10] sm:$0xff]
  %v2768 = vld [vmem:[%s2764 + $0x18] sm:$0xff]
  %v2769 = vld [vmem:[%s2764 + $0x20] sm:$0xff]
  %v2770 = vld [vmem:[%s2764 + $0x28] sm:$0xff]
  %v2771 = vld [vmem:[%s2764 + $0x30] sm:$0xff]
  %v2772 = vld [vmem:[%s2764 + $0x38] sm:$0xff]
  %2773 = vrot.lane.b32.xlu0 %v1909, 123
  %v2774 = vpop.permute.xlu0 %2773
  %2775 = vrot.lane.b32.xlu0 %v1914, 123
  %v2776 = vpop.permute.xlu0 %2775
  %2777 = vrot.lane.b32.xlu0 %v1919, 123
  %v2778 = vpop.permute.xlu0 %2777
  %2779 = vrot.lane.b32.xlu0 %v1924, 123
  %v2780 = vpop.permute.xlu0 %2779
  %2781 = vrot.lane.b32.xlu0 %v1929, 123
  %v2782 = vpop.permute.xlu0 %2781
  %2783 = vrot.lane.b32.xlu0 %v1934, 123
  %v2784 = vpop.permute.xlu0 %2783
  %2785 = vrot.lane.b32.xlu0 %v1939, 123
  %v2786 = vpop.permute.xlu0 %2785
  %2787 = vrot.lane.b32.xlu0 %v1944, 123
  %v2788 = vpop.permute.xlu0 %2787
  %v2798 = vsel %vm427, %v2765, 0
  %v2801 = vsel %vm427, %v2766, 0
  %v2804 = vsel %vm427, %v2767, 0
  %v2807 = vsel %vm427, %v2768, 0
  %v2810 = vsel %vm427, %v2769, 0
  %v2813 = vsel %vm427, %v2770, 0
  %v2816 = vsel %vm427, %v2771, 0
  %v2819 = vsel %vm427, %v2772, 0
  %2821 = vmatprep.subr.mxu0 0.0
  %2822 = vmatpush1.msra.mxu0 %v2774
  %2823 = vmatprep.subr.mxu0 0.0
  %2824 = vmatpush1.msra.mxu0 %v2776
  %2825 = vmatprep.subr.mxu0 0.0
  %2826 = vmatpush1.msra.mxu0 %v2778
  %2827 = vmatprep.subr.mxu0 0.0
  %2828 = vmatpush1.msra.mxu0 %v2780
  %2829 = vmatprep.subr.mxu0 0.0
  %2830 = vmatpush1.msra.mxu0 %v2782
  %2831 = vmatprep.subr.mxu0 0.0
  %2832 = vmatpush1.msra.mxu0 %v2784
  %2833 = vmatprep.subr.mxu0 0.0
  %2834 = vmatpush1.msra.mxu0 %v2786
  %2835 = vmatprep.subr.mxu0 0.0
  %2836 = vmatpush1.msra.mxu0 %v2788
  %2837 = vmatprep.subr.mxu0 0.0
  %2838 = vmatpush1.msra.mxu0 0.0
  %2839 = vmatprep.subr.mxu0 0.0
  %2840 = vmatpush1.msra.mxu0 0.0
  %2841 = vmatprep.subr.mxu0 0.0
  %2842 = vmatpush1.msra.mxu0 0.0
  %2843 = vmatprep.subr.mxu0 0.0
  %2844 = vmatpush1.msra.mxu0 0.0
  %2845 = vmatprep.subr.mxu0 0.0
  %2846 = vmatpush1.msra.mxu0 0.0
  %2847 = vmatprep.subr.mxu0 0.0
  %2848 = vmatpush1.msra.mxu0 0.0
  %2849 = vmatprep.subr.mxu0 0.0
  %2850 = vmatpush1.msra.mxu0 0.0
  %2851 = vmatprep.subr.mxu0 0.0
  %2852 = vmatpush1.msra.mxu0 0.0
  %2853 = vmatprep.subr.mxu0 0.0
  %2854 = vmatpush1.msra.mxu0 0.0
  %2855 = vmatprep.subr.mxu0 0.0
  %2856 = vmatpush1.msra.mxu0 0.0
  %2857 = vmatprep.subr.mxu0 0.0
  %2858 = vmatpush1.msra.mxu0 0.0
  %2859 = vmatprep.subr.mxu0 0.0
  %2860 = vmatpush1.msra.mxu0 0.0
  %2861 = vmatprep.subr.mxu0 0.0
  %2862 = vmatpush1.msra.mxu0 0.0
  %2863 = vmatprep.subr.mxu0 0.0
  %2864 = vmatpush1.msra.mxu0 0.0
  %2865 = vmatprep.subr.mxu0 0.0
  %2866 = vmatpush1.msra.mxu0 0.0
  %2867 = vmatprep.subr.mxu0 0.0
  %2868 = vmatpush1.msra.mxu0 0.0
  %2869 = vmatprep.subr.mxu0 0.0
  %2870 = vmatpush1.msra.mxu0 0.0
  %2871 = vmatprep.subr.mxu0 0.0
  %2872 = vmatpush1.msra.mxu0 0.0
  %2873 = vmatprep.subr.mxu0 0.0
  %2874 = vmatpush1.msra.mxu0 0.0
  %2875 = vmatprep.subr.mxu0 0.0
  %2876 = vmatpush1.msra.mxu0 0.0
  %2877 = vmatprep.subr.mxu0 0.0
  %2878 = vmatpush1.msra.mxu0 0.0
  %2879 = vmatprep.subr.mxu0 0.0
  %2880 = vmatpush1.msra.mxu0 0.0
  %2881 = vmatprep.subr.mxu0 0.0
  %2882 = vmatpush1.msra.mxu0 0.0
  %2883 = vmatprep.subr.mxu0 0.0
  %2884 = vmatpush1.msra.mxu0 0.0
  %2885 = vmatprep.mubr.f32.mxu0 0.0
  %2886 = vmatmul.mubr.f32.gmra.mrb[0].mxu0 %v2798
  %v2887 = vpop.f32.mrb[0].mxu0
  %v2888 = vadd.f32 0.0, %v2887
  %v2889 = vpop.f32.mrb[0].mxu0
  %2890 = vmatprep.mubr.f32.mxu0 0.0
  %2891 = vmatmul.mubr.f32.gmra.mrb[0].mxu0 %v2801
  %v2892 = vpop.f32.mrb[0].mxu0
  %v2893 = vadd.f32 0.0, %v2892
  %v2894 = vpop.f32.mrb[0].mxu0
  %2895 = vmatprep.mubr.f32.mxu0 0.0
  %2896 = vmatmul.mubr.f32.gmra.mrb[0].mxu0 %v2804
  %v2897 = vpop.f32.mrb[0].mxu0
  %v2898 = vadd.f32 0.0, %v2897
  %v2899 = vpop.f32.mrb[0].mxu0
  %2900 = vmatprep.mubr.f32.mxu0 0.0
  %2901 = vmatmul.mubr.f32.gmra.mrb[0].mxu0 %v2807
  %v2902 = vpop.f32.mrb[0].mxu0
  %v2903 = vadd.f32 0.0, %v2902
  %v2904 = vpop.f32.mrb[0].mxu0
  %2905 = vmatprep.mubr.f32.mxu0 0.0
  %2906 = vmatmul.mubr.f32.gmra.mrb[0].mxu0 %v2810
  %v2907 = vpop.f32.mrb[0].mxu0
  %v2908 = vadd.f32 0.0, %v2907
  %v2909 = vpop.f32.mrb[0].mxu0
  %2910 = vmatprep.mubr.f32.mxu0 0.0
  %2911 = vmatmul.mubr.f32.gmra.mrb[0].mxu0 %v2813
  %v2912 = vpop.f32.mrb[0].mxu0
  %v2913 = vadd.f32 0.0, %v2912
  %v2914 = vpop.f32.mrb[0].mxu0
  %2915 = vmatprep.mubr.f32.mxu0 0.0
  %2916 = vmatmul.mubr.f32.gmra.mrb[0].mxu0 %v2816
  %v2917 = vpop.f32.mrb[0].mxu0
  %v2918 = vadd.f32 0.0, %v2917
  %v2919 = vpop.f32.mrb[0].mxu0
  %2920 = vmatprep.mubr.f32.mxu0 0.0
  %2921 = vmatmul.mubr.f32.gmra.mrb[0].mxu0 %v2819
  %v2922 = vpop.f32.mrb[0].mxu0
  %v2923 = vadd.f32 0.0, %v2922
  %v2924 = vpop.f32.mrb[0].mxu0
  %2925 = vdwg.mxu0
  %v2926 = vadd.f32 %v2756, %v2888
  %v2927 = vadd.f32 %v2757, %v2893
  %v2928 = vadd.f32 %v2758, %v2898
  %v2929 = vadd.f32 %v2759, %v2903
  %v2930 = vadd.f32 %v2760, %v2908
  %v2931 = vadd.f32 %v2761, %v2913
  %v2932 = vadd.f32 %v2762, %v2918
  %v2933 = vadd.f32 %v2763, %v2923
  %s2934 = scalar_lea.vmem %s11, 384
  %v2935 = vld [vmem:[%s2934] sm:$0xff]
  %v2936 = vld [vmem:[%s2934 + $0x8] sm:$0xff]
  %v2937 = vld [vmem:[%s2934 + $0x10] sm:$0xff]
  %v2938 = vld [vmem:[%s2934 + $0x18] sm:$0xff]
  %v2939 = vld [vmem:[%s2934 + $0x20] sm:$0xff]
  %v2940 = vld [vmem:[%s2934 + $0x28] sm:$0xff]
  %v2941 = vld [vmem:[%s2934 + $0x30] sm:$0xff]
  %v2942 = vld [vmem:[%s2934 + $0x38] sm:$0xff]
  %2943 = vrot.lane.b32.xlu0 %v1909, 122
  %v2944 = vpop.permute.xlu0 %2943
  %2945 = vrot.lane.b32.xlu0 %v1914, 122
  %v2946 = vpop.permute.xlu0 %2945
  %2947 = vrot.lane.b32.xlu0 %v1919, 122
  %v2948 = vpop.permute.xlu0 %2947
  %2949 = vrot.lane.b32.xlu0 %v1924, 122
  %v2950 = vpop.permute.xlu0 %2949
  %2951 = vrot.lane.b32.xlu0 %v1929, 122
  %v2952 = vpop.permute.xlu0 %2951
  %2953 = vrot.lane.b32.xlu0 %v1934, 122
  %v2954 = vpop.permute.xlu0 %2953
  %2955 = vrot.lane.b32.xlu0 %v1939, 122
  %v2956 = vpop.permute.xlu0 %2955
  %2957 = vrot.lane.b32.xlu0 %v1944, 122
  %v2958 = vpop.permute.xlu0 %2957
  %v2968 = vsel %vm427, %v2935, 0
  %v2971 = vsel %vm427, %v2936, 0
  %v2974 = vsel %vm427, %v2937, 0
  %v2977 = vsel %vm427, %v2938, 0
  %v2980 = vsel %vm427, %v2939, 0
  %v2983 = vsel %vm427, %v2940, 0
  %v2986 = vsel %vm427, %v2941, 0
  %v2989 = vsel %vm427, %v2942, 0
  %2991 = vmatprep.subr.mxu0 0.0
  %2992 = vmatpush1.msra.mxu0 %v2944
  %2993 = vmatprep.subr.mxu0 0.0
  %2994 = vmatpush1.msra.mxu0 %v2946
  %2995 = vmatprep.subr.mxu0 0.0
  %2996 = vmatpush1.msra.mxu0 %v2948
  %2997 = vmatprep.subr.mxu0 0.0
  %2998 = vmatpush1.msra.mxu0 %v2950
  %2999 = vmatprep.subr.mxu0 0.0
  %3000 = vmatpush1.msra.mxu0 %v2952
  %3001 = vmatprep.subr.mxu0 0.0
  %3002 = vmatpush1.msra.mxu0 %v2954
  %3003 = vmatprep.subr.mxu0 0.0
  %3004 = vmatpush1.msra.mxu0 %v2956
  %3005 = vmatprep.subr.mxu0 0.0
  %3006 = vmatpush1.msra.mxu0 %v2958
  %3007 = vmatprep.subr.mxu0 0.0
  %3008 = vmatpush1.msra.mxu0 0.0
  %3009 = vmatprep.subr.mxu0 0.0
  %3010 = vmatpush1.msra.mxu0 0.0
  %3011 = vmatprep.subr.mxu0 0.0
  %3012 = vmatpush1.msra.mxu0 0.0
  %3013 = vmatprep.subr.mxu0 0.0
  %3014 = vmatpush1.msra.mxu0 0.0
  %3015 = vmatprep.subr.mxu0 0.0
  %3016 = vmatpush1.msra.mxu0 0.0
  %3017 = vmatprep.subr.mxu0 0.0
  %3018 = vmatpush1.msra.mxu0 0.0
  %3019 = vmatprep.subr.mxu0 0.0
  %3020 = vmatpush1.msra.mxu0 0.0
  %3021 = vmatprep.subr.mxu0 0.0
  %3022 = vmatpush1.msra.mxu0 0.0
  %3023 = vmatprep.subr.mxu0 0.0
  %3024 = vmatpush1.msra.mxu0 0.0
  %3025 = vmatprep.subr.mxu0 0.0
  %3026 = vmatpush1.msra.mxu0 0.0
  %3027 = vmatprep.subr.mxu0 0.0
  %3028 = vmatpush1.msra.mxu0 0.0
  %3029 = vmatprep.subr.mxu0 0.0
  %3030 = vmatpush1.msra.mxu0 0.0
  %3031 = vmatprep.subr.mxu0 0.0
  %3032 = vmatpush1.msra.mxu0 0.0
  %3033 = vmatprep.subr.mxu0 0.0
  %3034 = vmatpush1.msra.mxu0 0.0
  %3035 = vmatprep.subr.mxu0 0.0
  %3036 = vmatpush1.msra.mxu0 0.0
  %3037 = vmatprep.subr.mxu0 0.0
  %3038 = vmatpush1.msra.mxu0 0.0
  %3039 = vmatprep.subr.mxu0 0.0
  %3040 = vmatpush1.msra.mxu0 0.0
  %3041 = vmatprep.subr.mxu0 0.0
  %3042 = vmatpush1.msra.mxu0 0.0
  %3043 = vmatprep.subr.mxu0 0.0
  %3044 = vmatpush1.msra.mxu0 0.0
  %3045 = vmatprep.subr.mxu0 0.0
  %3046 = vmatpush1.msra.mxu0 0.0
  %3047 = vmatprep.subr.mxu0 0.0
  %3048 = vmatpush1.msra.mxu0 0.0
  %3049 = vmatprep.subr.mxu0 0.0
  %3050 = vmatpush1.msra.mxu0 0.0
  %3051 = vmatprep.subr.mxu0 0.0
  %3052 = vmatpush1.msra.mxu0 0.0
  %3053 = vmatprep.subr.mxu0 0.0
  %3054 = vmatpush1.msra.mxu0 0.0
  %3055 = vmatprep.mubr.f32.mxu0 0.0
  %3056 = vmatmul.mubr.f32.gmra.mrb[0].mxu0 %v2968
  %v3057 = vpop.f32.mrb[0].mxu0
  %v3058 = vadd.f32 0.0, %v3057
  %v3059 = vpop.f32.mrb[0].mxu0
  %3060 = vmatprep.mubr.f32.mxu0 0.0
  %3061 = vmatmul.mubr.f32.gmra.mrb[0].mxu0 %v2971
  %v3062 = vpop.f32.mrb[0].mxu0
  %v3063 = vadd.f32 0.0, %v3062
  %v3064 = vpop.f32.mrb[0].mxu0
  %3065 = vmatprep.mubr.f32.mxu0 0.0
  %3066 = vmatmul.mubr.f32.gmra.mrb[0].mxu0 %v2974
  %v3067 = vpop.f32.mrb[0].mxu0
  %v3068 = vadd.f32 0.0, %v3067
  %v3069 = vpop.f32.mrb[0].mxu0
  %3070 = vmatprep.mubr.f32.mxu0 0.0
  %3071 = vmatmul.mubr.f32.gmra.mrb[0].mxu0 %v2977
  %v3072 = vpop.f32.mrb[0].mxu0
  %v3073 = vadd.f32 0.0, %v3072
  %v3074 = vpop.f32.mrb[0].mxu0
  %3075 = vmatprep.mubr.f32.mxu0 0.0
  %3076 = vmatmul.mubr.f32.gmra.mrb[0].mxu0 %v2980
  %v3077 = vpop.f32.mrb[0].mxu0
  %v3078 = vadd.f32 0.0, %v3077
  %v3079 = vpop.f32.mrb[0].mxu0
  %3080 = vmatprep.mubr.f32.mxu0 0.0
  %3081 = vmatmul.mubr.f32.gmra.mrb[0].mxu0 %v2983
  %v3082 = vpop.f32.mrb[0].mxu0
  %v3083 = vadd.f32 0.0, %v3082
  %v3084 = vpop.f32.mrb[0].mxu0
  %3085 = vmatprep.mubr.f32.mxu0 0.0
  %3086 = vmatmul.mubr.f32.gmra.mrb[0].mxu0 %v2986
  %v3087 = vpop.f32.mrb[0].mxu0
  %v3088 = vadd.f32 0.0, %v3087
  %v3089 = vpop.f32.mrb[0].mxu0
  %3090 = vmatprep.mubr.f32.mxu0 0.0
  %3091 = vmatmul.mubr.f32.gmra.mrb[0].mxu0 %v2989
  %v3092 = vpop.f32.mrb[0].mxu0
  %v3093 = vadd.f32 0.0, %v3092
  %v3094 = vpop.f32.mrb[0].mxu0
  %3095 = vdwg.mxu0
  %v3096 = vadd.f32 %v2926, %v3058
  %v3097 = vadd.f32 %v2927, %v3063
  %v3098 = vadd.f32 %v2928, %v3068
  %v3099 = vadd.f32 %v2929, %v3073
  %v3100 = vadd.f32 %v2930, %v3078
  %v3101 = vadd.f32 %v2931, %v3083
  %v3102 = vadd.f32 %v2932, %v3088
  %v3103 = vadd.f32 %v2933, %v3093
  %v3104 = vld [vmem:[%s12] sm:$0xff]
  %v3105 = vld [vmem:[%s12 + $0x8] sm:$0xff]
  %v3106 = vld [vmem:[%s12 + $0x10] sm:$0xff]
  %v3107 = vld [vmem:[%s12 + $0x18] sm:$0xff]
  %v3108 = vld [vmem:[%s12 + $0x20] sm:$0xff]
  %v3109 = vld [vmem:[%s12 + $0x28] sm:$0xff]
  %v3110 = vld [vmem:[%s12 + $0x30] sm:$0xff]
  %v3111 = vld [vmem:[%s12 + $0x38] sm:$0xff]
  %3113 = vset.pattern.permute.xlu0 0
  %3114 = vperm.xlu0 %3113, %v3104
  %v3115 = vpop.permute.xlu0 %3114
  %3118 = vset.pattern.permute.xlu0 0
  %3119 = vperm.xlu0 %3118, %v3105
  %v3120 = vpop.permute.xlu0 %3119
  %3123 = vset.pattern.permute.xlu0 0
  %3124 = vperm.xlu0 %3123, %v3106
  %v3125 = vpop.permute.xlu0 %3124
  %3128 = vset.pattern.permute.xlu0 0
  %3129 = vperm.xlu0 %3128, %v3107
  %v3130 = vpop.permute.xlu0 %3129
  %3133 = vset.pattern.permute.xlu0 0
  %3134 = vperm.xlu0 %3133, %v3108
  %v3135 = vpop.permute.xlu0 %3134
  %3138 = vset.pattern.permute.xlu0 0
  %3139 = vperm.xlu0 %3138, %v3109
  %v3140 = vpop.permute.xlu0 %3139
  %3143 = vset.pattern.permute.xlu0 0
  %3144 = vperm.xlu0 %3143, %v3110
  %v3145 = vpop.permute.xlu0 %3144
  %3148 = vset.pattern.permute.xlu0 0
  %3149 = vperm.xlu0 %3148, %v3111
  %v3150 = vpop.permute.xlu0 %3149
  %v3152 = vadd.f32 %v3096, %v3115
  %v3153 = vadd.f32 %v3097, %v3120
  %v3154 = vadd.f32 %v3098, %v3125
  %v3155 = vadd.f32 %v3099, %v3130
  %v3156 = vadd.f32 %v3100, %v3135
  %v3157 = vadd.f32 %v3101, %v3140
  %v3158 = vadd.f32 %v3102, %v3145
  %v3159 = vadd.f32 %v3103, %v3150
  %v3160 = vmax.f32 %v3152, 0.0
  %v3161 = vmax.f32 %v3153, 0.0
  %v3162 = vmax.f32 %v3154, 0.0
  %v3163 = vmax.f32 %v3155, 0.0
  %v3164 = vmax.f32 %v3156, 0.0
  %v3165 = vmax.f32 %v3157, 0.0
  %v3166 = vmax.f32 %v3158, 0.0
  %v3167 = vmax.f32 %v3159, 0.0
  %vm3168 = vcmask 89088
  %v3169 = vsel %vm3168, %v3160, 0.0
  %3170 = vadd.xlane.f32.xlu0 %v3169
  %v3171 = vpop.xlane.xlu0 %3170
  %v3172 = vsel %vm3168, %v3161, 0.0
  %3173 = vadd.xlane.f32.xlu0 %v3172
  %v3174 = vpop.xlane.xlu0 %3173
  %v3175 = vsel %vm3168, %v3162, 0.0
  %3176 = vadd.xlane.f32.xlu0 %v3175
  %v3177 = vpop.xlane.xlu0 %3176
  %v3178 = vsel %vm3168, %v3163, 0.0
  %3179 = vadd.xlane.f32.xlu0 %v3178
  %v3180 = vpop.xlane.xlu0 %3179
  %v3181 = vsel %vm3168, %v3164, 0.0
  %3182 = vadd.xlane.f32.xlu0 %v3181
  %v3183 = vpop.xlane.xlu0 %3182
  %v3184 = vsel %vm3168, %v3165, 0.0
  %3185 = vadd.xlane.f32.xlu0 %v3184
  %v3186 = vpop.xlane.xlu0 %3185
  %v3187 = vsel %vm3168, %v3166, 0.0
  %3188 = vadd.xlane.f32.xlu0 %v3187
  %v3189 = vpop.xlane.xlu0 %3188
  %v3190 = vsel %vm3168, %v3167, 0.0
  %3191 = vadd.xlane.f32.xlu0 %v3190
  %v3192 = vpop.xlane.xlu0 %3191
  %v3193 = vrcp.pop 11.0
  %v3194 = vmul.f32 %v3171, %v3193
  %v3195 = vmul.f32 %v3174, %v3193
  %v3196 = vmul.f32 %v3177, %v3193
  %v3197 = vmul.f32 %v3180, %v3193
  %v3198 = vmul.f32 %v3183, %v3193
  %v3199 = vmul.f32 %v3186, %v3193
  %v3200 = vmul.f32 %v3189, %v3193
  %v3201 = vmul.f32 %v3192, %v3193
  %v3202 = vld [vmem:[%s13] sm:$0xff]
  %v3203 = vld [vmem:[%s13 + $0x8] sm:$0xff]
  %v3204 = vld [vmem:[%s13 + $0x10] sm:$0xff]
  %v3205 = vld [vmem:[%s13 + $0x18] sm:$0xff]
  %v3206 = vld [vmem:[%s13 + $0x20] sm:$0xff]
  %v3207 = vld [vmem:[%s13 + $0x28] sm:$0xff]
  %v3208 = vld [vmem:[%s13 + $0x30] sm:$0xff]
  %v3209 = vld [vmem:[%s13 + $0x38] sm:$0xff]
  %v3210 = vld [vmem:[%s14] sm:$0xff]
  %v3211 = vld [vmem:[%s14 + $0x8] sm:$0xff]
  %v3212 = vld [vmem:[%s14 + $0x10] sm:$0xff]
  %v3213 = vld [vmem:[%s14 + $0x18] sm:$0xff]
  %v3214 = vld [vmem:[%s14 + $0x20] sm:$0xff]
  %v3215 = vld [vmem:[%s14 + $0x28] sm:$0xff]
  %v3216 = vld [vmem:[%s14 + $0x30] sm:$0xff]
  %v3217 = vld [vmem:[%s14 + $0x38] sm:$0xff]
  %v3219 = vsel %vm427, %v3202, 0
  %v3222 = vsel %vm427, %v3203, 0
  %v3225 = vsel %vm427, %v3204, 0
  %v3228 = vsel %vm427, %v3205, 0
  %v3231 = vsel %vm427, %v3206, 0
  %v3234 = vsel %vm427, %v3207, 0
  %v3237 = vsel %vm427, %v3208, 0
  %v3240 = vsel %vm427, %v3209, 0
  %3242 = vmatprep.subr.mxu0 0.0
  %3243 = vmatpush1.msra.mxu0 %v3194
  %3244 = vmatprep.subr.mxu0 0.0
  %3245 = vmatpush1.msra.mxu0 %v3195
  %3246 = vmatprep.subr.mxu0 0.0
  %3247 = vmatpush1.msra.mxu0 %v3196
  %3248 = vmatprep.subr.mxu0 0.0
  %3249 = vmatpush1.msra.mxu0 %v3197
  %3250 = vmatprep.subr.mxu0 0.0
  %3251 = vmatpush1.msra.mxu0 %v3198
  %3252 = vmatprep.subr.mxu0 0.0
  %3253 = vmatpush1.msra.mxu0 %v3199
  %3254 = vmatprep.subr.mxu0 0.0
  %3255 = vmatpush1.msra.mxu0 %v3200
  %3256 = vmatprep.subr.mxu0 0.0
  %3257 = vmatpush1.msra.mxu0 %v3201
  %3258 = vmatprep.subr.mxu0 0.0
  %3259 = vmatpush1.msra.mxu0 0.0
  %3260 = vmatprep.subr.mxu0 0.0
  %3261 = vmatpush1.msra.mxu0 0.0
  %3262 = vmatprep.subr.mxu0 0.0
  %3263 = vmatpush1.msra.mxu0 0.0
  %3264 = vmatprep.subr.mxu0 0.0
  %3265 = vmatpush1.msra.mxu0 0.0
  %3266 = vmatprep.subr.mxu0 0.0
  %3267 = vmatpush1.msra.mxu0 0.0
  %3268 = vmatprep.subr.mxu0 0.0
  %3269 = vmatpush1.msra.mxu0 0.0
  %3270 = vmatprep.subr.mxu0 0.0
  %3271 = vmatpush1.msra.mxu0 0.0
  %3272 = vmatprep.subr.mxu0 0.0
  %3273 = vmatpush1.msra.mxu0 0.0
  %3274 = vmatprep.subr.mxu0 0.0
  %3275 = vmatpush1.msra.mxu0 0.0
  %3276 = vmatprep.subr.mxu0 0.0
  %3277 = vmatpush1.msra.mxu0 0.0
  %3278 = vmatprep.subr.mxu0 0.0
  %3279 = vmatpush1.msra.mxu0 0.0
  %3280 = vmatprep.subr.mxu0 0.0
  %3281 = vmatpush1.msra.mxu0 0.0
  %3282 = vmatprep.subr.mxu0 0.0
  %3283 = vmatpush1.msra.mxu0 0.0
  %3284 = vmatprep.subr.mxu0 0.0
  %3285 = vmatpush1.msra.mxu0 0.0
  %3286 = vmatprep.subr.mxu0 0.0
  %3287 = vmatpush1.msra.mxu0 0.0
  %3288 = vmatprep.subr.mxu0 0.0
  %3289 = vmatpush1.msra.mxu0 0.0
  %3290 = vmatprep.subr.mxu0 0.0
  %3291 = vmatpush1.msra.mxu0 0.0
  %3292 = vmatprep.subr.mxu0 0.0
  %3293 = vmatpush1.msra.mxu0 0.0
  %3294 = vmatprep.subr.mxu0 0.0
  %3295 = vmatpush1.msra.mxu0 0.0
  %3296 = vmatprep.subr.mxu0 0.0
  %3297 = vmatpush1.msra.mxu0 0.0
  %3298 = vmatprep.subr.mxu0 0.0
  %3299 = vmatpush1.msra.mxu0 0.0
  %3300 = vmatprep.subr.mxu0 0.0
  %3301 = vmatpush1.msra.mxu0 0.0
  %3302 = vmatprep.subr.mxu0 0.0
  %3303 = vmatpush1.msra.mxu0 0.0
  %3304 = vmatprep.subr.mxu0 0.0
  %3305 = vmatpush1.msra.mxu0 0.0
  %3306 = vmatprep.mubr.f32.mxu0 0.0
  %3307 = vmatmul.mubr.f32.gmra.mrb[0].mxu0 %v3219
  %v3308 = vpop.f32.mrb[0].mxu0
  %v3309 = vadd.f32 %v3210, %v3308
  %v3310 = vpop.f32.mrb[0].mxu0
  %3311 = vmatprep.mubr.f32.mxu0 0.0
  %3312 = vmatmul.mubr.f32.gmra.mrb[0].mxu0 %v3222
  %v3313 = vpop.f32.mrb[0].mxu0
  %v3314 = vadd.f32 %v3211, %v3313
  %v3315 = vpop.f32.mrb[0].mxu0
  %3316 = vmatprep.mubr.f32.mxu0 0.0
  %3317 = vmatmul.mubr.f32.gmra.mrb[0].mxu0 %v3225
  %v3318 = vpop.f32.mrb[0].mxu0
  %v3319 = vadd.f32 %v3212, %v3318
  %v3320 = vpop.f32.mrb[0].mxu0
  %3321 = vmatprep.mubr.f32.mxu0 0.0
  %3322 = vmatmul.mubr.f32.gmra.mrb[0].mxu0 %v3228
  %v3323 = vpop.f32.mrb[0].mxu0
  %v3324 = vadd.f32 %v3213, %v3323
  %v3325 = vpop.f32.mrb[0].mxu0
  %3326 = vmatprep.mubr.f32.mxu0 0.0
  %3327 = vmatmul.mubr.f32.gmra.mrb[0].mxu0 %v3231
  %v3328 = vpop.f32.mrb[0].mxu0
  %v3329 = vadd.f32 %v3214, %v3328
  %v3330 = vpop.f32.mrb[0].mxu0
  %3331 = vmatprep.mubr.f32.mxu0 0.0
  %3332 = vmatmul.mubr.f32.gmra.mrb[0].mxu0 %v3234
  %v3333 = vpop.f32.mrb[0].mxu0
  %v3334 = vadd.f32 %v3215, %v3333
  %v3335 = vpop.f32.mrb[0].mxu0
  %3336 = vmatprep.mubr.f32.mxu0 0.0
  %3337 = vmatmul.mubr.f32.gmra.mrb[0].mxu0 %v3237
  %v3338 = vpop.f32.mrb[0].mxu0
  %v3339 = vadd.f32 %v3216, %v3338
  %v3340 = vpop.f32.mrb[0].mxu0
  %3341 = vmatprep.mubr.f32.mxu0 0.0
  %3342 = vmatmul.mubr.f32.gmra.mrb[0].mxu0 %v3240
  %v3343 = vpop.f32.mrb[0].mxu0
  %v3344 = vadd.f32 %v3217, %v3343
  %v3345 = vpop.f32.mrb[0].mxu0
  %3346 = vdwg.mxu0
  %v3347 = vsub.f32 0.0, %v3309
  %v3348 = vsub.f32 0.0, %v3314
  %v3349 = vsub.f32 0.0, %v3319
  %v3350 = vsub.f32 0.0, %v3324
  %v3351 = vsub.f32 0.0, %v3329
  %v3352 = vsub.f32 0.0, %v3334
  %v3353 = vsub.f32 0.0, %v3339
  %v3354 = vsub.f32 0.0, %v3344
  %v3355 = vmul.f32 %v3347, 1.442695
  %v3356 = vpow.pop %v3355
  %v3357 = vmul.f32 %v3348, 1.442695
  %v3358 = vpow.pop %v3357
  %v3359 = vmul.f32 %v3349, 1.442695
  %v3360 = vpow.pop %v3359
  %v3361 = vmul.f32 %v3350, 1.442695
  %v3362 = vpow.pop %v3361
  %v3363 = vmul.f32 %v3351, 1.442695
  %v3364 = vpow.pop %v3363
  %v3365 = vmul.f32 %v3352, 1.442695
  %v3366 = vpow.pop %v3365
  %v3367 = vmul.f32 %v3353, 1.442695
  %v3368 = vpow.pop %v3367
  %v3369 = vmul.f32 %v3354, 1.442695
  %v3370 = vpow.pop %v3369
  %v3371 = vadd.f32 %v3356, 1.0
  %v3372 = vadd.f32 %v3358, 1.0
  %v3373 = vadd.f32 %v3360, 1.0
  %v3374 = vadd.f32 %v3362, 1.0
  %v3375 = vadd.f32 %v3364, 1.0
  %v3376 = vadd.f32 %v3366, 1.0
  %v3377 = vadd.f32 %v3368, 1.0
  %v3378 = vadd.f32 %v3370, 1.0
  %v3379 = vrcp.pop %v3371
  %v3380 = vmul.f32 1.0, %v3379
  %v3381 = vrcp.pop %v3372
  %v3382 = vmul.f32 1.0, %v3381
  %v3383 = vrcp.pop %v3373
  %v3384 = vmul.f32 1.0, %v3383
  %v3385 = vrcp.pop %v3374
  %v3386 = vmul.f32 1.0, %v3385
  %v3387 = vrcp.pop %v3375
  %v3388 = vmul.f32 1.0, %v3387
  %v3389 = vrcp.pop %v3376
  %v3390 = vmul.f32 1.0, %v3389
  %v3391 = vrcp.pop %v3377
  %v3392 = vmul.f32 1.0, %v3391
  %v3393 = vrcp.pop %v3378
  %v3394 = vmul.f32 1.0, %v3393
  %v3395 = vmul.f32 %v3309, %v3380
  %v3396 = vmul.f32 %v3314, %v3382
  %v3397 = vmul.f32 %v3319, %v3384
  %v3398 = vmul.f32 %v3324, %v3386
  %v3399 = vmul.f32 %v3329, %v3388
  %v3400 = vmul.f32 %v3334, %v3390
  %v3401 = vmul.f32 %v3339, %v3392
  %v3402 = vmul.f32 %v3344, %v3394
  %v3403 = vld [vmem:[%s15] sm:$0xff]
  %v3404 = vld [vmem:[%s15 + $0x8] sm:$0xff]
  %v3405 = vld [vmem:[%s15 + $0x10] sm:$0xff]
  %v3406 = vld [vmem:[%s15 + $0x18] sm:$0xff]
  %v3407 = vld [vmem:[%s16] sm:$0xff]
  %v3408 = vld [vmem:[%s16 + $0x8] sm:$0xff]
  %v3409 = vld [vmem:[%s16 + $0x10] sm:$0xff]
  %v3410 = vld [vmem:[%s16 + $0x18] sm:$0xff]
  %v3412 = vsel %vm427, %v3403, 0
  %v3415 = vsel %vm427, %v3404, 0
  %v3418 = vsel %vm427, %v3405, 0
  %v3421 = vsel %vm427, %v3406, 0
  %3423 = vmatprep.subr.mxu0 0.0
  %3424 = vmatpush1.msra.mxu0 %v3395
  %3425 = vmatprep.subr.mxu0 0.0
  %3426 = vmatpush1.msra.mxu0 %v3396
  %3427 = vmatprep.subr.mxu0 0.0
  %3428 = vmatpush1.msra.mxu0 %v3397
  %3429 = vmatprep.subr.mxu0 0.0
  %3430 = vmatpush1.msra.mxu0 %v3398
  %3431 = vmatprep.subr.mxu0 0.0
  %3432 = vmatpush1.msra.mxu0 %v3399
  %3433 = vmatprep.subr.mxu0 0.0
  %3434 = vmatpush1.msra.mxu0 %v3400
  %3435 = vmatprep.subr.mxu0 0.0
  %3436 = vmatpush1.msra.mxu0 %v3401
  %3437 = vmatprep.subr.mxu0 0.0
  %3438 = vmatpush1.msra.mxu0 %v3402
  %3439 = vmatprep.subr.mxu0 0.0
  %3440 = vmatpush1.msra.mxu0 0.0
  %3441 = vmatprep.subr.mxu0 0.0
  %3442 = vmatpush1.msra.mxu0 0.0
  %3443 = vmatprep.subr.mxu0 0.0
  %3444 = vmatpush1.msra.mxu0 0.0
  %3445 = vmatprep.subr.mxu0 0.0
  %3446 = vmatpush1.msra.mxu0 0.0
  %3447 = vmatprep.subr.mxu0 0.0
  %3448 = vmatpush1.msra.mxu0 0.0
  %3449 = vmatprep.subr.mxu0 0.0
  %3450 = vmatpush1.msra.mxu0 0.0
  %3451 = vmatprep.subr.mxu0 0.0
  %3452 = vmatpush1.msra.mxu0 0.0
  %3453 = vmatprep.subr.mxu0 0.0
  %3454 = vmatpush1.msra.mxu0 0.0
  %3455 = vmatprep.subr.mxu0 0.0
  %3456 = vmatpush1.msra.mxu0 0.0
  %3457 = vmatprep.subr.mxu0 0.0
  %3458 = vmatpush1.msra.mxu0 0.0
  %3459 = vmatprep.subr.mxu0 0.0
  %3460 = vmatpush1.msra.mxu0 0.0
  %3461 = vmatprep.subr.mxu0 0.0
  %3462 = vmatpush1.msra.mxu0 0.0
  %3463 = vmatprep.subr.mxu0 0.0
  %3464 = vmatpush1.msra.mxu0 0.0
  %3465 = vmatprep.subr.mxu0 0.0
  %3466 = vmatpush1.msra.mxu0 0.0
  %3467 = vmatprep.subr.mxu0 0.0
  %3468 = vmatpush1.msra.mxu0 0.0
  %3469 = vmatprep.subr.mxu0 0.0
  %3470 = vmatpush1.msra.mxu0 0.0
  %3471 = vmatprep.subr.mxu0 0.0
  %3472 = vmatpush1.msra.mxu0 0.0
  %3473 = vmatprep.subr.mxu0 0.0
  %3474 = vmatpush1.msra.mxu0 0.0
  %3475 = vmatprep.subr.mxu0 0.0
  %3476 = vmatpush1.msra.mxu0 0.0
  %3477 = vmatprep.subr.mxu0 0.0
  %3478 = vmatpush1.msra.mxu0 0.0
  %3479 = vmatprep.subr.mxu0 0.0
  %3480 = vmatpush1.msra.mxu0 0.0
  %3481 = vmatprep.subr.mxu0 0.0
  %3482 = vmatpush1.msra.mxu0 0.0
  %3483 = vmatprep.subr.mxu0 0.0
  %3484 = vmatpush1.msra.mxu0 0.0
  %3485 = vmatprep.subr.mxu0 0.0
  %3486 = vmatpush1.msra.mxu0 0.0
  %3487 = vmatprep.mubr.f32.mxu0 0.0
  %3488 = vmatmul.mubr.f32.gmra.mrb[0].mxu0 %v3412
  %v3489 = vpop.f32.mrb[0].mxu0
  %v3490 = vadd.f32 %v3407, %v3489
  %v3491 = vpop.f32.mrb[0].mxu0
  %3492 = vmatprep.mubr.f32.mxu0 0.0
  %3493 = vmatmul.mubr.f32.gmra.mrb[0].mxu0 %v3415
  %v3494 = vpop.f32.mrb[0].mxu0
  %v3495 = vadd.f32 %v3408, %v3494
  %v3496 = vpop.f32.mrb[0].mxu0
  %3497 = vmatprep.mubr.f32.mxu0 0.0
  %3498 = vmatmul.mubr.f32.gmra.mrb[0].mxu0 %v3418
  %v3499 = vpop.f32.mrb[0].mxu0
  %v3500 = vadd.f32 %v3409, %v3499
  %v3501 = vpop.f32.mrb[0].mxu0
  %3502 = vmatprep.mubr.f32.mxu0 0.0
  %3503 = vmatmul.mubr.f32.gmra.mrb[0].mxu0 %v3421
  %v3504 = vpop.f32.mrb[0].mxu0
  %v3505 = vadd.f32 %v3410, %v3504
  %v3506 = vpop.f32.mrb[0].mxu0
  %3507 = vdwg.mxu0
  %v3508 = vsub.f32 0.0, %v3490
  %v3509 = vsub.f32 0.0, %v3495
  %v3510 = vsub.f32 0.0, %v3500
  %v3511 = vsub.f32 0.0, %v3505
  %v3512 = vmul.f32 %v3508, 1.442695
  %v3513 = vpow.pop %v3512
  %v3514 = vmul.f32 %v3509, 1.442695
  %v3515 = vpow.pop %v3514
  %v3516 = vmul.f32 %v3510, 1.442695
  %v3517 = vpow.pop %v3516
  %v3518 = vmul.f32 %v3511, 1.442695
  %v3519 = vpow.pop %v3518
  %v3520 = vadd.f32 %v3513, 1.0
  %v3521 = vadd.f32 %v3515, 1.0
  %v3522 = vadd.f32 %v3517, 1.0
  %v3523 = vadd.f32 %v3519, 1.0
  %v3524 = vrcp.pop %v3520
  %v3525 = vmul.f32 1.0, %v3524
  %v3526 = vrcp.pop %v3521
  %v3527 = vmul.f32 1.0, %v3526
  %v3528 = vrcp.pop %v3522
  %v3529 = vmul.f32 1.0, %v3528
  %v3530 = vrcp.pop %v3523
  %v3531 = vmul.f32 1.0, %v3530
  %v3532 = vmul.f32 %v3490, %v3525
  %v3533 = vmul.f32 %v3495, %v3527
  %v3534 = vmul.f32 %v3500, %v3529
  %v3535 = vmul.f32 %v3505, %v3531
  %v3536 = vld [vmem:[%s17] sm:$0xf]
  %v3537 = vld [vmem:[%s18] sm:$0xf]
  %v3539 = vsel %vm626, %v3536, 0
  %3541 = vmatprep.subr.mxu0 0.0
  %3542 = vmatpush1.msra.mxu0 %v3532
  %3543 = vmatprep.subr.mxu0 0.0
  %3544 = vmatpush1.msra.mxu0 %v3533
  %3545 = vmatprep.subr.mxu0 0.0
  %3546 = vmatpush1.msra.mxu0 %v3534
  %3547 = vmatprep.subr.mxu0 0.0
  %3548 = vmatpush1.msra.mxu0 %v3535
  %3549 = vmatprep.subr.mxu0 0.0
  %3550 = vmatpush1.msra.mxu0 0.0
  %3551 = vmatprep.subr.mxu0 0.0
  %3552 = vmatpush1.msra.mxu0 0.0
  %3553 = vmatprep.subr.mxu0 0.0
  %3554 = vmatpush1.msra.mxu0 0.0
  %3555 = vmatprep.subr.mxu0 0.0
  %3556 = vmatpush1.msra.mxu0 0.0
  %3557 = vmatprep.subr.mxu0 0.0
  %3558 = vmatpush1.msra.mxu0 0.0
  %3559 = vmatprep.subr.mxu0 0.0
  %3560 = vmatpush1.msra.mxu0 0.0
  %3561 = vmatprep.subr.mxu0 0.0
  %3562 = vmatpush1.msra.mxu0 0.0
  %3563 = vmatprep.subr.mxu0 0.0
  %3564 = vmatpush1.msra.mxu0 0.0
  %3565 = vmatprep.subr.mxu0 0.0
  %3566 = vmatpush1.msra.mxu0 0.0
  %3567 = vmatprep.subr.mxu0 0.0
  %3568 = vmatpush1.msra.mxu0 0.0
  %3569 = vmatprep.subr.mxu0 0.0
  %3570 = vmatpush1.msra.mxu0 0.0
  %3571 = vmatprep.subr.mxu0 0.0
  %3572 = vmatpush1.msra.mxu0 0.0
  %3573 = vmatprep.subr.mxu0 0.0
  %3574 = vmatpush1.msra.mxu0 0.0
  %3575 = vmatprep.subr.mxu0 0.0
  %3576 = vmatpush1.msra.mxu0 0.0
  %3577 = vmatprep.subr.mxu0 0.0
  %3578 = vmatpush1.msra.mxu0 0.0
  %3579 = vmatprep.subr.mxu0 0.0
  %3580 = vmatpush1.msra.mxu0 0.0
  %3581 = vmatprep.subr.mxu0 0.0
  %3582 = vmatpush1.msra.mxu0 0.0
  %3583 = vmatprep.subr.mxu0 0.0
  %3584 = vmatpush1.msra.mxu0 0.0
  %3585 = vmatprep.subr.mxu0 0.0
  %3586 = vmatpush1.msra.mxu0 0.0
  %3587 = vmatprep.subr.mxu0 0.0
  %3588 = vmatpush1.msra.mxu0 0.0
  %3589 = vmatprep.subr.mxu0 0.0
  %3590 = vmatpush1.msra.mxu0 0.0
  %3591 = vmatprep.subr.mxu0 0.0
  %3592 = vmatpush1.msra.mxu0 0.0
  %3593 = vmatprep.subr.mxu0 0.0
  %3594 = vmatpush1.msra.mxu0 0.0
  %3595 = vmatprep.subr.mxu0 0.0
  %3596 = vmatpush1.msra.mxu0 0.0
  %3597 = vmatprep.subr.mxu0 0.0
  %3598 = vmatpush1.msra.mxu0 0.0
  %3599 = vmatprep.subr.mxu0 0.0
  %3600 = vmatpush1.msra.mxu0 0.0
  %3601 = vmatprep.subr.mxu0 0.0
  %3602 = vmatpush1.msra.mxu0 0.0
  %3603 = vmatprep.subr.mxu0 0.0
  %3604 = vmatpush1.msra.mxu0 0.0
  %3605 = vmatprep.mubr.f32.mxu0 0.0
  %3606 = vmatmul.mubr.f32.gmra.mrb[0].mxu0 %v3539
  %v3607 = vpop.f32.mrb[0].mxu0
  %v3608 = vadd.f32 %v3537, %v3607
  %v3609 = vpop.f32.mrb[0].mxu0
  %3610 = vdwg.mxu0
  %vm3611 = vcmask 3072
  %3612 = vst.msk [vmem:[%s19] sm:$0xf] %vm3611, %v3608
  %v3613 = vlaneseq
  %v3614 = vshrl.u32 %v3613, 7
  %vm3615 = vcmp.lt.s32.totalorder %v3614, 2
  %v3616 = vmul.f32 %v3608, 1.442695
  %v3617 = vpow.pop %v3616
  %v3618 = vsel %vm3615, %v3617, %v3608
  %3619 = vst.msk [vmem:[%s20] sm:$0xf] %vm3611, %v3618
  // Predicated region
  $region78: #{inr_forward.2} parent=0 // pred_check
    _
  $region79: #{inr_forward.2} parent=0 // pred_check_branch
    %3621 = sbr.rel (0) target = $region81
  $region80: #{inr_forward.2} parent=0 // pred_region
    _
  $region81: #{inr_forward.2} parent=0 // pred_fallthru
    _
  // Predicated region
  $region82: #{inr_forward.2} parent=0 // pred_check
    _
  $region83: #{inr_forward.2} parent=0 // pred_check_branch
    %3623 = sbr.rel (0) target = $region85
  $region84: #{inr_forward.2} parent=0 // pred_region
    _
  $region85: #{inr_forward.2} parent=0 // pred_fallthru
    _
  // Predicated region
  $region86: #{inr_forward.2} parent=0 // pred_check
    _
  $region87: #{inr_forward.2} parent=0 // pred_check_branch
    %3625 = sbr.rel (0) target = $region89
  $region88: #{inr_forward.2} parent=0 // pred_region
    _
  $region89: #{inr_forward.2} parent=0 // pred_fallthru
    _
  // Predicated region
  $region90: #{inr_forward.2} parent=0 // pred_check
    _
  $region91: #{inr_forward.2} parent=0 // pred_check_branch
    %3627 = sbr.rel (0) target = $region93
  $region92: #{inr_forward.2} parent=0 // pred_region
    _
  $region93: #{inr_forward.2} parent=0 // pred_fallthru
    _

</llo_original>
